<compile_context>
chip_gen: v7x
topology: tpu7x:2x2x1
jax: 0.10.0
libtpu: 0.0.40
codegen_flags: <defaults>
</compile_context>

<pallas_src>
import functools

import numpy as np
import jax
import jax.numpy as jnp
from jax import lax
from jax.experimental import pallas as pl
from jax.experimental.pallas import tpu as pltpu

NEG_SLOPE = 0.01          # nn.LeakyReLU() default
_DILATIONS = (1, 2, 3, 4)
_BRANCH_CH = 8
_DMAX = max(_DILATIONS)


# ---------------------------------------------------------------------------
# Trace-time constant builders (numpy): reflection-pad / extraction matrices.
# ---------------------------------------------------------------------------
def _reflect(i, n):
    if i < 0:
        return -i
    if i >= n:
        return 2 * (n - 1) - i
    return i


def _pad_matrix(d, in_stride, h, w, s):
    """0/1 matrix mapping a flattened activation (row stride `in_stride`) to
    its ReflectionPad2d(d) version, flattened with row stride `s`.

    A 2*d*s + 2*d tail is appended so every tap of a 3x3 dilated conv is a
    contiguous lane-window slice of length h*s of the padded activation."""
    padlen = h * s + 2 * d * s + 2 * d
    hp, wp = h + 2 * d, w + 2 * d
    m = np.zeros((h * in_stride, padlen), np.float32)
    for p in range(padlen):
        ph, pw = p // s, p % s
        if ph >= hp or pw >= wp:
            continue                          # garbage column -> zeros
        oh = _reflect(ph - d, h)
        ow = _reflect(pw - d, w)
        m[oh * in_stride + ow, p] = 1.0
    return m


def _extract_matrix(h, w, s):
    """0/1 matrix mapping the stride-s flattened format back to clean H*W."""
    m = np.zeros((h * s, h * w), np.float32)
    for hh in range(h):
        for ww in range(w):
            m[hh * s + ww, hh * w + ww] = 1.0
    return m


# ---------------------------------------------------------------------------
# Kernel
# ---------------------------------------------------------------------------
def _feb_kernel(x_ref, mh_ref, m4_ref, ex_ref, wh_ref, bh_ref,
                w1_ref, b1_ref, w2_ref, b2_ref, w3_ref, b3_ref, w4_ref, b4_ref,
                wt_ref, bt_ref, o_ref, hd_ref, *, s, nacc, b_blk):
    cout = 4 * _BRANCH_CH

    def leaky(a):
        return jnp.where(a > 0, a, NEG_SLOPE * a)

    def tap_stack(xp, offs):
        """K-stack the nine 3x3 tap windows: (C, padlen) f32 -> (9C, nacc) bf16."""
        stk = jnp.concatenate([xp[:, o:o + nacc] for o in offs], axis=0)
        return stk.astype(jnp.bfloat16)

    # Head reads a true d=1 pad of the input; branches and tail read the
    # shared d=4 pad of the 32-channel activation (reflection pads nest:
    # pad(d) is the centre crop of pad(4), shifted by (4-d)*(s+1) lanes).
    head_offs = tuple(kh * s + kw for kh in range(3) for kw in range(3))

    def d4_offs(d):
        return tuple((_DMAX - d) * (s + 1) + (kh * s + kw) * d
                     for kh in range(3) for kw in range(3))

    mh = mh_ref[...]
    m4 = m4_ref[...]
    wh = wh_ref[...]
    bh = bh_ref[...]

    # ---- conv_head: ReflectionPad2d(1) + conv3x3 + LeakyReLU (per image) ---
    for b in range(b_blk):
        xb = x_ref[b].astype(jnp.bfloat16)                          # (Cin, H*W)
        xp = jnp.dot(xb, mh, preferred_element_type=jnp.float32)    # reflect pad
        x9 = tap_stack(xp, head_offs)                               # (9Cin, nacc)
        hb = jnp.dot(wh, x9, preferred_element_type=jnp.float32) + bh
        hd_ref[pl.ds(b * cout, cout), :] = leaky(hb)                # stage in VMEM

    # ---- shared ReflectionPad2d(4) of conv_head, all B images in one matmul
    hp = jnp.dot(hd_ref[...].astype(jnp.bfloat16), m4,
                 preferred_element_type=jnp.float32)                # (B*32, padlen4)

    branch_w = (w1_ref[...], w2_ref[...], w3_ref[...], w4_ref[...])
    branch_b = (b1_ref[...], b2_ref[...], b3_ref[...], b4_ref[...])
    wt = wt_ref[...]
    bt = bt_ref[...]

    for b in range(b_blk):
        # ---- four dilated branches, each on an 8-channel slice of conv_head
        outs = []
        for i, d in enumerate(_DILATIONS):
            r0 = b * cout + i * _BRANCH_CH
            x9 = tap_stack(hp[r0:r0 + _BRANCH_CH, :], d4_offs(d))   # (72, nacc)
            ob = jnp.dot(branch_w[i], x9, preferred_element_type=jnp.float32)
            outs.append(leaky(ob + branch_b[i]))
        cat = jnp.concatenate(outs, axis=0)                         # (32, nacc)

        # ---- conv_tail: d=1 taps read from the shared d=4 pad of `cat` -----
        cp = jnp.dot(cat.astype(jnp.bfloat16), m4,
                     preferred_element_type=jnp.float32)            # (32, padlen4)
        c9 = tap_stack(cp, d4_offs(1))                              # (288, nacc)
        tail = leaky(jnp.dot(wt, c9, preferred_element_type=jnp.float32) + bt)

        # ---- residual: overwrite staged conv_head rows with conv_head + tail
        rows = pl.ds(b * cout, cout)
        hd_ref[rows, :] = hd_ref[rows, :] + tail

    # ---- drop the stride-s garbage lanes: one batched f32 extract matmul ---
    # (keeps full f32 output precision and a lane-dense unmasked store)
    o_ref[...] = jnp.dot(hd_ref[...], ex_ref[...],
                         preferred_element_type=jnp.float32).astype(o_ref.dtype)


# ---------------------------------------------------------------------------
# Wrapper
# ---------------------------------------------------------------------------
def _prep_w(w_hwio):
    """(3, 3, Cin, Cout) HWIO -> (Cout, 9*Cin) tap-major K-stacked bf16.

    Column order (tap-major, then Cin) matches the kernel's concatenation of
    the nine tap windows."""
    kh, kw, ci, co = w_hwio.shape
    wt = jnp.transpose(jnp.reshape(w_hwio, (kh * kw, ci, co)), (2, 0, 1))
    return jnp.reshape(wt, (co, kh * kw * ci)).astype(jnp.bfloat16)


def _pick_block_b(n):
    """Images per grid step: amortize the ~0.35us/step floor, keeping the grid
    length >= 2 when possible so both v7x TensorCores get work."""
    for b in (8, 4, 2):
        if n % b == 0 and n // b >= 2:
            return b
    if n % 2 == 0:
        return 2
    return 1


@jax.jit
def feb_forward(params, x_nchw):
    """FEB.forward.  Input/output are NCHW to match the PyTorch module."""
    n, cin, h, w = x_nchw.shape
    cout = params["w_head"].shape[-1]
    assert cout == 4 * _BRANCH_CH, "FEB hard-codes 4 branches of 8 channels"
    assert h > _DMAX and w > _DMAX, "ReflectionPad2d requires pad < spatial dim"

    s = w + 2 * _DMAX                 # common padded row stride, all stages
    hw = h * w
    nacc = h * s
    b_blk = _pick_block_b(n)

    # Pad input channels up to a multiple of 8 so every K-stack piece and the
    # input block's sublane dim are 8-aligned (zero channels x zero weights).
    cin_p = ((cin + 7) // 8) * 8
    x3 = jnp.reshape(x_nchw, (n, cin, hw))              # free reshape
    w_head = params["w_head"]
    if cin_p != cin:
        x3 = jnp.pad(x3, ((0, 0), (0, cin_p - cin), (0, 0)))
        w_head = jnp.pad(w_head, ((0, 0), (0, 0), (0, cin_p - cin), (0, 0)))

    # Trace-time constants (0/1 selection matrices are exact in bf16).
    mh = jnp.asarray(_pad_matrix(1, w, h, w, s), jnp.bfloat16)      # input pad
    m4 = jnp.asarray(_pad_matrix(_DMAX, s, h, w, s), jnp.bfloat16)  # shared d=4
    ex = jnp.asarray(_extract_matrix(h, w, s))                      # f32

    wh = _prep_w(w_head)
    bh = jnp.reshape(params["b_head"], (cout, 1)).astype(jnp.float32)
    wt = _prep_w(params["w_tail"])
    bt = jnp.reshape(params["b_tail"], (cout, 1)).astype(jnp.float32)
    wb = [_prep_w(params[f"w_d{i + 1}"]) for i in range(4)]          # (8, 72) bf16
    bb = [jnp.reshape(params[f"b_d{i + 1}"], (_BRANCH_CH, 1)).astype(jnp.float32)
          for i in range(4)]

    # Constant blocks: fetched once, resident in VMEM across the whole grid.
    def cmap2(a):
        return pl.BlockSpec(a.shape, lambda i: (0, 0))

    in_specs = [pl.BlockSpec((b_blk, cin_p, hw), lambda i: (i, 0, 0)),
                cmap2(mh), cmap2(m4), cmap2(ex), cmap2(wh), cmap2(bh),
                cmap2(wb[0]), cmap2(bb[0]), cmap2(wb[1]), cmap2(bb[1]),
                cmap2(wb[2]), cmap2(bb[2]), cmap2(wb[3]), cmap2(bb[3]),
                cmap2(wt), cmap2(bt)]
    out_spec = pl.BlockSpec((b_blk * cout, hw), lambda i: (i, 0))

    kernel = functools.partial(_feb_kernel, s=s, nacc=nacc, b_blk=b_blk)
    out_flat = pl.pallas_call(
        kernel,
        out_shape=jax.ShapeDtypeStruct((n * cout, hw), x_nchw.dtype),
        grid_spec=pltpu.PrefetchScalarGridSpec(
            num_scalar_prefetch=0,
            grid=(n // b_blk,),
            in_specs=in_specs,
            out_specs=out_spec,
            scratch_shapes=[pltpu.VMEM((b_blk * cout, nacc), jnp.float32)],
        ),
        compiler_params=pltpu.CompilerParams(
            dimension_semantics=("parallel",),
            vmem_limit_bytes=32 * 1024 * 1024,
        ),
    )(x3, mh, m4, ex, wh, bh,
      wb[0], bb[0], wb[1], bb[1], wb[2], bb[2], wb[3], bb[3], wt, bt)

    return jnp.reshape(out_flat, (n, cout, h, w))


# ---------------------------------------------------------------------------
# Pure-JAX reference (for a numerical cross-check of the kernel).
# ---------------------------------------------------------------------------
def _feb_reference(params, x):
    def block(v, w_hwio, b, d):
        vp = jnp.pad(v, ((0, 0), (0, 0), (d, d), (d, d)), mode="reflect")
        y = lax.conv_general_dilated(
            vp, w_hwio, window_strides=(1, 1), padding="VALID",
            rhs_dilation=(d, d),
            dimension_numbers=("NCHW", "HWIO", "NCHW"),
            precision=lax.Precision.HIGHEST)
        y = y + jnp.reshape(b, (1, -1, 1, 1))
        return jnp.where(y > 0, y, NEG_SLOPE * y)

    head = block(x, params["w_head"], params["b_head"], 1)
    outs = [block(head[:, 8 * i:8 * (i + 1)],
                  params[f"w_d{i + 1}"], params[f"b_d{i + 1}"], i + 1)
            for i in range(4)]
    cat = jnp.concatenate(outs, axis=1)
    tail = block(cat, params["w_tail"], params["b_tail"], 1)
    return head + tail


# ---------------------------------------------------------------------------
# Parameters (synthetic, deterministic)
# ---------------------------------------------------------------------------
def init_feb_params(key, input_size, output_size=32):
    """Deterministic synthetic parameters matching FEB.__init__ shapes.

    Conv weights are HWIO (kh, kw, Cin, Cout); PyTorch OIHW weights need a
    (2, 3, 1, 0) transpose before being loaded into this dict."""
    keys = jax.random.split(key, 12)
    p = {}
    p["w_head"] = 0.1 * jax.random.normal(
        keys[0], (3, 3, input_size, output_size), jnp.float32)
    p["b_head"] = 0.1 * jax.random.normal(keys[1], (output_size,), jnp.float32)
    for i in range(4):
        p[f"w_d{i + 1}"] = 0.1 * jax.random.normal(
            keys[2 + 2 * i], (3, 3, _BRANCH_CH, _BRANCH_CH), jnp.float32)
        p[f"b_d{i + 1}"] = 0.1 * jax.random.normal(
            keys[3 + 2 * i], (_BRANCH_CH,), jnp.float32)
    p["w_tail"] = 0.1 * jax.random.normal(
        keys[10], (3, 3, output_size, output_size), jnp.float32)
    p["b_tail"] = 0.1 * jax.random.normal(keys[11], (output_size,), jnp.float32)
    return p


if __name__ == "__main__":
    key = jax.random.PRNGKey(0)
    k_params, k_data = jax.random.split(key)

    input_size = 4
    output_size = 32
    N, H, W = 2, 16, 16

    params = init_feb_params(k_params, input_size, output_size)
    x = jax.random.normal(k_data, (N, input_size, H, W), jnp.float32)

    y = feb_forward(params, x)
    y = jax.block_until_ready(y)

    assert y.shape == (N, output_size, H, W), y.shape
    assert bool(jnp.all(jnp.isfinite(y)))

    # Cross-check against the pure-JAX reference.  The kernel uses bf16 MXU
    # operands with f32 accumulation, so allow a correspondingly loose bound.
    y_ref = jax.block_until_ready(_feb_reference(params, x))
    err = float(jnp.max(jnp.abs(y - y_ref)))
    scale = float(jnp.max(jnp.abs(y_ref)))
    assert err <= 5e-2 + 5e-2 * scale, (err, scale)

    print("KERNEL_OK")
</pallas_src>

<mosaic_0001>
module attributes {stable_mosaic.version = 11 : i64} {
  func.func @_feb_kernel(%arg0: i32, %arg1: memref<2x8x256xf32, #tpu.memory_space<vmem>>, %arg2: memref<256x434xbf16, #tpu.memory_space<vmem>>, %arg3: memref<384x584xbf16, #tpu.memory_space<vmem>>, %arg4: memref<384x256xf32, #tpu.memory_space<vmem>>, %arg5: memref<32x72xbf16, #tpu.memory_space<vmem>>, %arg6: memref<32x1xf32, #tpu.memory_space<vmem>>, %arg7: memref<8x72xbf16, #tpu.memory_space<vmem>>, %arg8: memref<8x1xf32, #tpu.memory_space<vmem>>, %arg9: memref<8x72xbf16, #tpu.memory_space<vmem>>, %arg10: memref<8x1xf32, #tpu.memory_space<vmem>>, %arg11: memref<8x72xbf16, #tpu.memory_space<vmem>>, %arg12: memref<8x1xf32, #tpu.memory_space<vmem>>, %arg13: memref<8x72xbf16, #tpu.memory_space<vmem>>, %arg14: memref<8x1xf32, #tpu.memory_space<vmem>>, %arg15: memref<32x288xbf16, #tpu.memory_space<vmem>>, %arg16: memref<32x1xf32, #tpu.memory_space<vmem>>, %arg17: memref<64x256xf32, #tpu.memory_space<vmem>>, %arg18: memref<64x384xf32, #tpu.memory_space<vmem>>) attributes {dimension_semantics = [#tpu.dimension_semantics<parallel>], iteration_bounds = array<i64: 1>, scalar_prefetch = 0 : i64, scratch_operands = 1 : i64, tpu.core_type = #tpu.core_type<tc>, window_params = [{transform_indices = @transform_0, window_bounds = array<i64: 2, 8, 256>}, {pipeline_mode = #tpu.pipeline_mode<synchronous>, transform_indices = @transform_1, window_bounds = array<i64: 256, 434>}, {pipeline_mode = #tpu.pipeline_mode<synchronous>, transform_indices = @transform_2, window_bounds = array<i64: 384, 584>}, {pipeline_mode = #tpu.pipeline_mode<synchronous>, transform_indices = @transform_3, window_bounds = array<i64: 384, 256>}, {pipeline_mode = #tpu.pipeline_mode<synchronous>, transform_indices = @transform_4, window_bounds = array<i64: 32, 72>}, {pipeline_mode = #tpu.pipeline_mode<synchronous>, transform_indices = @transform_5, window_bounds = array<i64: 32, 1>}, {pipeline_mode = #tpu.pipeline_mode<synchronous>, transform_indices = @transform_6, window_bounds = array<i64: 8, 72>}, {pipeline_mode = #tpu.pipeline_mode<synchronous>, transform_indices = @transform_7, window_bounds = array<i64: 8, 1>}, {pipeline_mode = #tpu.pipeline_mode<synchronous>, transform_indices = @transform_8, window_bounds = array<i64: 8, 72>}, {pipeline_mode = #tpu.pipeline_mode<synchronous>, transform_indices = @transform_9, window_bounds = array<i64: 8, 1>}, {pipeline_mode = #tpu.pipeline_mode<synchronous>, transform_indices = @transform_10, window_bounds = array<i64: 8, 72>}, {pipeline_mode = #tpu.pipeline_mode<synchronous>, transform_indices = @transform_11, window_bounds = array<i64: 8, 1>}, {pipeline_mode = #tpu.pipeline_mode<synchronous>, transform_indices = @transform_12, window_bounds = array<i64: 8, 72>}, {pipeline_mode = #tpu.pipeline_mode<synchronous>, transform_indices = @transform_13, window_bounds = array<i64: 8, 1>}, {pipeline_mode = #tpu.pipeline_mode<synchronous>, transform_indices = @transform_14, window_bounds = array<i64: 32, 288>}, {pipeline_mode = #tpu.pipeline_mode<synchronous>, transform_indices = @transform_15, window_bounds = array<i64: 32, 1>}, {transform_indices = @transform_16, window_bounds = array<i64: 64, 256>}]} {
    %c0 = arith.constant 0 : index
    %c0_0 = arith.constant 0 : index
    %0 = vector.load %arg2[%c0, %c0_0] : memref<256x434xbf16, #tpu.memory_space<vmem>>, vector<256x434xbf16>
    %c0_1 = arith.constant 0 : index
    %c0_2 = arith.constant 0 : index
    %1 = vector.load %arg3[%c0_1, %c0_2] : memref<384x584xbf16, #tpu.memory_space<vmem>>, vector<384x584xbf16>
    %c0_3 = arith.constant 0 : index
    %c0_4 = arith.constant 0 : index
    %2 = vector.load %arg5[%c0_3, %c0_4] : memref<32x72xbf16, #tpu.memory_space<vmem>>, vector<32x72xbf16>
    %c0_5 = arith.constant 0 : index
    %c0_6 = arith.constant 0 : index
    %3 = vector.load %arg6[%c0_5, %c0_6] : memref<32x1xf32, #tpu.memory_space<vmem>>, vector<32x1xf32>
    %c0_7 = arith.constant 0 : index
    %c0_8 = arith.constant 0 : index
    %c0_9 = arith.constant 0 : index
    %4 = vector.load %arg1[%c0_7, %c0_8, %c0_9] : memref<2x8x256xf32, #tpu.memory_space<vmem>>, vector<1x8x256xf32>
    %5 = vector.shape_cast %4 : vector<1x8x256xf32> to vector<8x256xf32>
    %6 = arith.truncf %5 : vector<8x256xf32> to vector<8x256xbf16>
    %cst = arith.constant dense<0.000000e+00> : vector<8x434xf32>
    %7 = tpu.matmul %6, %0, %cst {dimension_numbers = #tpu.dot_dimension_numbers<[1], [0], [0], [1], [0, 0, 1, 1], [], []>} : vector<8x256xbf16>, vector<256x434xbf16>, vector<8x434xf32> -> vector<8x434xf32>
    %8 = vector.extract_strided_slice %7 {offsets = [0, 0], sizes = [8, 384], strides = [1, 1]} : vector<8x434xf32> to vector<8x384xf32>
    %9 = vector.extract_strided_slice %7 {offsets = [0, 1], sizes = [8, 384], strides = [1, 1]} : vector<8x434xf32> to vector<8x384xf32>
    %10 = vector.extract_strided_slice %7 {offsets = [0, 2], sizes = [8, 384], strides = [1, 1]} : vector<8x434xf32> to vector<8x384xf32>
    %11 = vector.extract_strided_slice %7 {offsets = [0, 24], sizes = [8, 384], strides = [1, 1]} : vector<8x434xf32> to vector<8x384xf32>
    %12 = vector.extract_strided_slice %7 {offsets = [0, 25], sizes = [8, 384], strides = [1, 1]} : vector<8x434xf32> to vector<8x384xf32>
    %13 = vector.extract_strided_slice %7 {offsets = [0, 26], sizes = [8, 384], strides = [1, 1]} : vector<8x434xf32> to vector<8x384xf32>
    %14 = vector.extract_strided_slice %7 {offsets = [0, 48], sizes = [8, 384], strides = [1, 1]} : vector<8x434xf32> to vector<8x384xf32>
    %15 = vector.extract_strided_slice %7 {offsets = [0, 49], sizes = [8, 384], strides = [1, 1]} : vector<8x434xf32> to vector<8x384xf32>
    %16 = vector.extract_strided_slice %7 {offsets = [0, 50], sizes = [8, 384], strides = [1, 1]} : vector<8x434xf32> to vector<8x384xf32>
    %17 = tpu.concatenate %8, %9, %10, %11, %12, %13, %14, %15, %16 in 0 : vector<8x384xf32>, vector<8x384xf32>, vector<8x384xf32>, vector<8x384xf32>, vector<8x384xf32>, vector<8x384xf32>, vector<8x384xf32>, vector<8x384xf32>, vector<8x384xf32> -> vector<72x384xf32>
    %18 = arith.truncf %17 : vector<72x384xf32> to vector<72x384xbf16>
    %cst_10 = arith.constant dense<0.000000e+00> : vector<32x384xf32>
    %19 = tpu.matmul %2, %18, %cst_10 {dimension_numbers = #tpu.dot_dimension_numbers<[1], [0], [0], [1], [0, 0, 1, 1], [], []>} : vector<32x72xbf16>, vector<72x384xbf16>, vector<32x384xf32> -> vector<32x384xf32>
    %20 = vector.broadcast %3 : vector<32x1xf32> to vector<32x384xf32>
    %21 = arith.addf %19, %20 : vector<32x384xf32>
    %cst_11 = arith.constant 0.000000e+00 : f32
    %22 = vector.broadcast %cst_11 : f32 to vector<32x384xf32>
    %23 = arith.cmpf ogt, %21, %22 : vector<32x384xf32>
    %cst_12 = arith.constant 0.00999999977 : f32
    %24 = vector.broadcast %cst_12 : f32 to vector<32x384xf32>
    %25 = arith.mulf %24, %21 : vector<32x384xf32>
    %26 = arith.select %23, %21, %25 : vector<32x384xi1>, vector<32x384xf32>
    %c0_13 = arith.constant 0 : index
    %c0_14 = arith.constant 0 : index
    %27 = vector.load %arg18[%c0_13, %c0_14] : memref<64x384xf32, #tpu.memory_space<vmem>>, vector<32x384xf32>
    tpu.vector_store %arg18[%c0_13, %c0_14], %26 {strides = array<i32>} : memref<64x384xf32, #tpu.memory_space<vmem>>, vector<32x384xf32>,
    %c1 = arith.constant 1 : index
    %c0_15 = arith.constant 0 : index
    %c0_16 = arith.constant 0 : index
    %28 = vector.load %arg1[%c1, %c0_15, %c0_16] : memref<2x8x256xf32, #tpu.memory_space<vmem>>, vector<1x8x256xf32>
    %29 = vector.shape_cast %28 : vector<1x8x256xf32> to vector<8x256xf32>
    %30 = arith.truncf %29 : vector<8x256xf32> to vector<8x256xbf16>
    %cst_17 = arith.constant dense<0.000000e+00> : vector<8x434xf32>
    %31 = tpu.matmul %30, %0, %cst_17 {dimension_numbers = #tpu.dot_dimension_numbers<[1], [0], [0], [1], [0, 0, 1, 1], [], []>} : vector<8x256xbf16>, vector<256x434xbf16>, vector<8x434xf32> -> vector<8x434xf32>
    %32 = vector.extract_strided_slice %31 {offsets = [0, 0], sizes = [8, 384], strides = [1, 1]} : vector<8x434xf32> to vector<8x384xf32>
    %33 = vector.extract_strided_slice %31 {offsets = [0, 1], sizes = [8, 384], strides = [1, 1]} : vector<8x434xf32> to vector<8x384xf32>
    %34 = vector.extract_strided_slice %31 {offsets = [0, 2], sizes = [8, 384], strides = [1, 1]} : vector<8x434xf32> to vector<8x384xf32>
    %35 = vector.extract_strided_slice %31 {offsets = [0, 24], sizes = [8, 384], strides = [1, 1]} : vector<8x434xf32> to vector<8x384xf32>
    %36 = vector.extract_strided_slice %31 {offsets = [0, 25], sizes = [8, 384], strides = [1, 1]} : vector<8x434xf32> to vector<8x384xf32>
    %37 = vector.extract_strided_slice %31 {offsets = [0, 26], sizes = [8, 384], strides = [1, 1]} : vector<8x434xf32> to vector<8x384xf32>
    %38 = vector.extract_strided_slice %31 {offsets = [0, 48], sizes = [8, 384], strides = [1, 1]} : vector<8x434xf32> to vector<8x384xf32>
    %39 = vector.extract_strided_slice %31 {offsets = [0, 49], sizes = [8, 384], strides = [1, 1]} : vector<8x434xf32> to vector<8x384xf32>
    %40 = vector.extract_strided_slice %31 {offsets = [0, 50], sizes = [8, 384], strides = [1, 1]} : vector<8x434xf32> to vector<8x384xf32>
    %41 = tpu.concatenate %32, %33, %34, %35, %36, %37, %38, %39, %40 in 0 : vector<8x384xf32>, vector<8x384xf32>, vector<8x384xf32>, vector<8x384xf32>, vector<8x384xf32>, vector<8x384xf32>, vector<8x384xf32>, vector<8x384xf32>, vector<8x384xf32> -> vector<72x384xf32>
    %42 = arith.truncf %41 : vector<72x384xf32> to vector<72x384xbf16>
    %cst_18 = arith.constant dense<0.000000e+00> : vector<32x384xf32>
    %43 = tpu.matmul %2, %42, %cst_18 {dimension_numbers = #tpu.dot_dimension_numbers<[1], [0], [0], [1], [0, 0, 1, 1], [], []>} : vector<32x72xbf16>, vector<72x384xbf16>, vector<32x384xf32> -> vector<32x384xf32>
    %44 = vector.broadcast %3 : vector<32x1xf32> to vector<32x384xf32>
    %45 = arith.addf %43, %44 : vector<32x384xf32>
    %cst_19 = arith.constant 0.000000e+00 : f32
    %46 = vector.broadcast %cst_19 : f32 to vector<32x384xf32>
    %47 = arith.cmpf ogt, %45, %46 : vector<32x384xf32>
    %cst_20 = arith.constant 0.00999999977 : f32
    %48 = vector.broadcast %cst_20 : f32 to vector<32x384xf32>
    %49 = arith.mulf %48, %45 : vector<32x384xf32>
    %50 = arith.select %47, %45, %49 : vector<32x384xi1>, vector<32x384xf32>
    %c32 = arith.constant 32 : index
    %c0_21 = arith.constant 0 : index
    %51 = vector.load %arg18[%c32, %c0_21] : memref<64x384xf32, #tpu.memory_space<vmem>>, vector<32x384xf32>
    tpu.vector_store %arg18[%c32, %c0_21], %50 {strides = array<i32>} : memref<64x384xf32, #tpu.memory_space<vmem>>, vector<32x384xf32>,
    %c0_22 = arith.constant 0 : index
    %c0_23 = arith.constant 0 : index
    %52 = vector.load %arg18[%c0_22, %c0_23] : memref<64x384xf32, #tpu.memory_space<vmem>>, vector<64x384xf32>
    %53 = arith.truncf %52 : vector<64x384xf32> to vector<64x384xbf16>
    %cst_24 = arith.constant dense<0.000000e+00> : vector<64x584xf32>
    %54 = tpu.matmul %53, %1, %cst_24 {dimension_numbers = #tpu.dot_dimension_numbers<[1], [0], [0], [1], [0, 0, 1, 1], [], []>} : vector<64x384xbf16>, vector<384x584xbf16>, vector<64x584xf32> -> vector<64x584xf32>
    %c0_25 = arith.constant 0 : index
    %c0_26 = arith.constant 0 : index
    %55 = vector.load %arg7[%c0_25, %c0_26] : memref<8x72xbf16, #tpu.memory_space<vmem>>, vector<8x72xbf16>
    %c0_27 = arith.constant 0 : index
    %c0_28 = arith.constant 0 : index
    %56 = vector.load %arg9[%c0_27, %c0_28] : memref<8x72xbf16, #tpu.memory_space<vmem>>, vector<8x72xbf16>
    %c0_29 = arith.constant 0 : index
    %c0_30 = arith.constant 0 : index
    %57 = vector.load %arg11[%c0_29, %c0_30] : memref<8x72xbf16, #tpu.memory_space<vmem>>, vector<8x72xbf16>
    %c0_31 = arith.constant 0 : index
    %c0_32 = arith.constant 0 : index
    %58 = vector.load %arg13[%c0_31, %c0_32] : memref<8x72xbf16, #tpu.memory_space<vmem>>, vector<8x72xbf16>
    %c0_33 = arith.constant 0 : index
    %c0_34 = arith.constant 0 : index
    %59 = vector.load %arg8[%c0_33, %c0_34] : memref<8x1xf32, #tpu.memory_space<vmem>>, vector<8x1xf32>
    %c0_35 = arith.constant 0 : index
    %c0_36 = arith.constant 0 : index
    %60 = vector.load %arg10[%c0_35, %c0_36] : memref<8x1xf32, #tpu.memory_space<vmem>>, vector<8x1xf32>
    %c0_37 = arith.constant 0 : index
    %c0_38 = arith.constant 0 : index
    %61 = vector.load %arg12[%c0_37, %c0_38] : memref<8x1xf32, #tpu.memory_space<vmem>>, vector<8x1xf32>
    %c0_39 = arith.constant 0 : index
    %c0_40 = arith.constant 0 : index
    %62 = vector.load %arg14[%c0_39, %c0_40] : memref<8x1xf32, #tpu.memory_space<vmem>>, vector<8x1xf32>
    %c0_41 = arith.constant 0 : index
    %c0_42 = arith.constant 0 : index
    %63 = vector.load %arg15[%c0_41, %c0_42] : memref<32x288xbf16, #tpu.memory_space<vmem>>, vector<32x288xbf16>
    %c0_43 = arith.constant 0 : index
    %c0_44 = arith.constant 0 : index
    %64 = vector.load %arg16[%c0_43, %c0_44] : memref<32x1xf32, #tpu.memory_space<vmem>>, vector<32x1xf32>
    %65 = vector.extract_strided_slice %54 {offsets = [0, 0], sizes = [8, 584], strides = [1, 1]} : vector<64x584xf32> to vector<8x584xf32>
    %66 = vector.extract_strided_slice %65 {offsets = [0, 75], sizes = [8, 384], strides = [1, 1]} : vector<8x584xf32> to vector<8x384xf32>
    %67 = vector.extract_strided_slice %65 {offsets = [0, 76], sizes = [8, 384], strides = [1, 1]} : vector<8x584xf32> to vector<8x384xf32>
    %68 = vector.extract_strided_slice %65 {offsets = [0, 77], sizes = [8, 384], strides = [1, 1]} : vector<8x584xf32> to vector<8x384xf32>
    %69 = vector.extract_strided_slice %65 {offsets = [0, 99], sizes = [8, 384], strides = [1, 1]} : vector<8x584xf32> to vector<8x384xf32>
    %70 = vector.extract_strided_slice %65 {offsets = [0, 100], sizes = [8, 384], strides = [1, 1]} : vector<8x584xf32> to vector<8x384xf32>
    %71 = vector.extract_strided_slice %65 {offsets = [0, 101], sizes = [8, 384], strides = [1, 1]} : vector<8x584xf32> to vector<8x384xf32>
    %72 = vector.extract_strided_slice %65 {offsets = [0, 123], sizes = [8, 384], strides = [1, 1]} : vector<8x584xf32> to vector<8x384xf32>
    %73 = vector.extract_strided_slice %65 {offsets = [0, 124], sizes = [8, 384], strides = [1, 1]} : vector<8x584xf32> to vector<8x384xf32>
    %74 = vector.extract_strided_slice %65 {offsets = [0, 125], sizes = [8, 384], strides = [1, 1]} : vector<8x584xf32> to vector<8x384xf32>
    %75 = tpu.concatenate %66, %67, %68, %69, %70, %71, %72, %73, %74 in 0 : vector<8x384xf32>, vector<8x384xf32>, vector<8x384xf32>, vector<8x384xf32>, vector<8x384xf32>, vector<8x384xf32>, vector<8x384xf32>, vector<8x384xf32>, vector<8x384xf32> -> vector<72x384xf32>
    %76 = arith.truncf %75 : vector<72x384xf32> to vector<72x384xbf16>
    %cst_45 = arith.constant dense<0.000000e+00> : vector<8x384xf32>
    %77 = tpu.matmul %55, %76, %cst_45 {dimension_numbers = #tpu.dot_dimension_numbers<[1], [0], [0], [1], [0, 0, 1, 1], [], []>} : vector<8x72xbf16>, vector<72x384xbf16>, vector<8x384xf32> -> vector<8x384xf32>
    %78 = vector.broadcast %59 : vector<8x1xf32> to vector<8x384xf32>
    %79 = arith.addf %77, %78 : vector<8x384xf32>
    %cst_46 = arith.constant 0.000000e+00 : f32
    %80 = vector.broadcast %cst_46 : f32 to vector<8x384xf32>
    %81 = arith.cmpf ogt, %79, %80 : vector<8x384xf32>
    %cst_47 = arith.constant 0.00999999977 : f32
    %82 = vector.broadcast %cst_47 : f32 to vector<8x384xf32>
    %83 = arith.mulf %82, %79 : vector<8x384xf32>
    %84 = arith.select %81, %79, %83 : vector<8x384xi1>, vector<8x384xf32>
    %85 = vector.extract_strided_slice %54 {offsets = [8, 0], sizes = [8, 584], strides = [1, 1]} : vector<64x584xf32> to vector<8x584xf32>
    %86 = vector.extract_strided_slice %85 {offsets = [0, 50], sizes = [8, 384], strides = [1, 1]} : vector<8x584xf32> to vector<8x384xf32>
    %87 = vector.extract_strided_slice %85 {offsets = [0, 52], sizes = [8, 384], strides = [1, 1]} : vector<8x584xf32> to vector<8x384xf32>
    %88 = vector.extract_strided_slice %85 {offsets = [0, 54], sizes = [8, 384], strides = [1, 1]} : vector<8x584xf32> to vector<8x384xf32>
    %89 = vector.extract_strided_slice %85 {offsets = [0, 98], sizes = [8, 384], strides = [1, 1]} : vector<8x584xf32> to vector<8x384xf32>
    %90 = vector.extract_strided_slice %85 {offsets = [0, 100], sizes = [8, 384], strides = [1, 1]} : vector<8x584xf32> to vector<8x384xf32>
    %91 = vector.extract_strided_slice %85 {offsets = [0, 102], sizes = [8, 384], strides = [1, 1]} : vector<8x584xf32> to vector<8x384xf32>
    %92 = vector.extract_strided_slice %85 {offsets = [0, 146], sizes = [8, 384], strides = [1, 1]} : vector<8x584xf32> to vector<8x384xf32>
    %93 = vector.extract_strided_slice %85 {offsets = [0, 148], sizes = [8, 384], strides = [1, 1]} : vector<8x584xf32> to vector<8x384xf32>
    %94 = vector.extract_strided_slice %85 {offsets = [0, 150], sizes = [8, 384], strides = [1, 1]} : vector<8x584xf32> to vector<8x384xf32>
    %95 = tpu.concatenate %86, %87, %88, %89, %90, %91, %92, %93, %94 in 0 : vector<8x384xf32>, vector<8x384xf32>, vector<8x384xf32>, vector<8x384xf32>, vector<8x384xf32>, vector<8x384xf32>, vector<8x384xf32>, vector<8x384xf32>, vector<8x384xf32> -> vector<72x384xf32>
    %96 = arith.truncf %95 : vector<72x384xf32> to vector<72x384xbf16>
    %cst_48 = arith.constant dense<0.000000e+00> : vector<8x384xf32>
    %97 = tpu.matmul %56, %96, %cst_48 {dimension_numbers = #tpu.dot_dimension_numbers<[1], [0], [0], [1], [0, 0, 1, 1], [], []>} : vector<8x72xbf16>, vector<72x384xbf16>, vector<8x384xf32> -> vector<8x384xf32>
    %98 = vector.broadcast %60 : vector<8x1xf32> to vector<8x384xf32>
    %99 = arith.addf %97, %98 : vector<8x384xf32>
    %cst_49 = arith.constant 0.000000e+00 : f32
    %100 = vector.broadcast %cst_49 : f32 to vector<8x384xf32>
    %101 = arith.cmpf ogt, %99, %100 : vector<8x384xf32>
    %cst_50 = arith.constant 0.00999999977 : f32
    %102 = vector.broadcast %cst_50 : f32 to vector<8x384xf32>
    %103 = arith.mulf %102, %99 : vector<8x384xf32>
    %104 = arith.select %101, %99, %103 : vector<8x384xi1>, vector<8x384xf32>
    %105 = vector.extract_strided_slice %54 {offsets = [16, 0], sizes = [8, 584], strides = [1, 1]} : vector<64x584xf32> to vector<8x584xf32>
    %106 = vector.extract_strided_slice %105 {offsets = [0, 25], sizes = [8, 384], strides = [1, 1]} : vector<8x584xf32> to vector<8x384xf32>
    %107 = vector.extract_strided_slice %105 {offsets = [0, 28], sizes = [8, 384], strides = [1, 1]} : vector<8x584xf32> to vector<8x384xf32>
    %108 = vector.extract_strided_slice %105 {offsets = [0, 31], sizes = [8, 384], strides = [1, 1]} : vector<8x584xf32> to vector<8x384xf32>
    %109 = vector.extract_strided_slice %105 {offsets = [0, 97], sizes = [8, 384], strides = [1, 1]} : vector<8x584xf32> to vector<8x384xf32>
    %110 = vector.extract_strided_slice %105 {offsets = [0, 100], sizes = [8, 384], strides = [1, 1]} : vector<8x584xf32> to vector<8x384xf32>
    %111 = vector.extract_strided_slice %105 {offsets = [0, 103], sizes = [8, 384], strides = [1, 1]} : vector<8x584xf32> to vector<8x384xf32>
    %112 = vector.extract_strided_slice %105 {offsets = [0, 169], sizes = [8, 384], strides = [1, 1]} : vector<8x584xf32> to vector<8x384xf32>
    %113 = vector.extract_strided_slice %105 {offsets = [0, 172], sizes = [8, 384], strides = [1, 1]} : vector<8x584xf32> to vector<8x384xf32>
    %114 = vector.extract_strided_slice %105 {offsets = [0, 175], sizes = [8, 384], strides = [1, 1]} : vector<8x584xf32> to vector<8x384xf32>
    %115 = tpu.concatenate %106, %107, %108, %109, %110, %111, %112, %113, %114 in 0 : vector<8x384xf32>, vector<8x384xf32>, vector<8x384xf32>, vector<8x384xf32>, vector<8x384xf32>, vector<8x384xf32>, vector<8x384xf32>, vector<8x384xf32>, vector<8x384xf32> -> vector<72x384xf32>
    %116 = arith.truncf %115 : vector<72x384xf32> to vector<72x384xbf16>
    %cst_51 = arith.constant dense<0.000000e+00> : vector<8x384xf32>
    %117 = tpu.matmul %57, %116, %cst_51 {dimension_numbers = #tpu.dot_dimension_numbers<[1], [0], [0], [1], [0, 0, 1, 1], [], []>} : vector<8x72xbf16>, vector<72x384xbf16>, vector<8x384xf32> -> vector<8x384xf32>
    %118 = vector.broadcast %61 : vector<8x1xf32> to vector<8x384xf32>
    %119 = arith.addf %117, %118 : vector<8x384xf32>
    %cst_52 = arith.constant 0.000000e+00 : f32
    %120 = vector.broadcast %cst_52 : f32 to vector<8x384xf32>
    %121 = arith.cmpf ogt, %119, %120 : vector<8x384xf32>
    %cst_53 = arith.constant 0.00999999977 : f32
    %122 = vector.broadcast %cst_53 : f32 to vector<8x384xf32>
    %123 = arith.mulf %122, %119 : vector<8x384xf32>
    %124 = arith.select %121, %119, %123 : vector<8x384xi1>, vector<8x384xf32>
    %125 = vector.extract_strided_slice %54 {offsets = [24, 0], sizes = [8, 584], strides = [1, 1]} : vector<64x584xf32> to vector<8x584xf32>
    %126 = vector.extract_strided_slice %125 {offsets = [0, 0], sizes = [8, 384], strides = [1, 1]} : vector<8x584xf32> to vector<8x384xf32>
    %127 = vector.extract_strided_slice %125 {offsets = [0, 4], sizes = [8, 384], strides = [1, 1]} : vector<8x584xf32> to vector<8x384xf32>
    %128 = vector.extract_strided_slice %125 {offsets = [0, 8], sizes = [8, 384], strides = [1, 1]} : vector<8x584xf32> to vector<8x384xf32>
    %129 = vector.extract_strided_slice %125 {offsets = [0, 96], sizes = [8, 384], strides = [1, 1]} : vector<8x584xf32> to vector<8x384xf32>
    %130 = vector.extract_strided_slice %125 {offsets = [0, 100], sizes = [8, 384], strides = [1, 1]} : vector<8x584xf32> to vector<8x384xf32>
    %131 = vector.extract_strided_slice %125 {offsets = [0, 104], sizes = [8, 384], strides = [1, 1]} : vector<8x584xf32> to vector<8x384xf32>
    %132 = vector.extract_strided_slice %125 {offsets = [0, 192], sizes = [8, 384], strides = [1, 1]} : vector<8x584xf32> to vector<8x384xf32>
    %133 = vector.extract_strided_slice %125 {offsets = [0, 196], sizes = [8, 384], strides = [1, 1]} : vector<8x584xf32> to vector<8x384xf32>
    %134 = vector.extract_strided_slice %125 {offsets = [0, 200], sizes = [8, 384], strides = [1, 1]} : vector<8x584xf32> to vector<8x384xf32>
    %135 = tpu.concatenate %126, %127, %128, %129, %130, %131, %132, %133, %134 in 0 : vector<8x384xf32>, vector<8x384xf32>, vector<8x384xf32>, vector<8x384xf32>, vector<8x384xf32>, vector<8x384xf32>, vector<8x384xf32>, vector<8x384xf32>, vector<8x384xf32> -> vector<72x384xf32>
    %136 = arith.truncf %135 : vector<72x384xf32> to vector<72x384xbf16>
    %cst_54 = arith.constant dense<0.000000e+00> : vector<8x384xf32>
    %137 = tpu.matmul %58, %136, %cst_54 {dimension_numbers = #tpu.dot_dimension_numbers<[1], [0], [0], [1], [0, 0, 1, 1], [], []>} : vector<8x72xbf16>, vector<72x384xbf16>, vector<8x384xf32> -> vector<8x384xf32>
    %138 = vector.broadcast %62 : vector<8x1xf32> to vector<8x384xf32>
    %139 = arith.addf %137, %138 : vector<8x384xf32>
    %cst_55 = arith.constant 0.000000e+00 : f32
    %140 = vector.broadcast %cst_55 : f32 to vector<8x384xf32>
    %141 = arith.cmpf ogt, %139, %140 : vector<8x384xf32>
    %cst_56 = arith.constant 0.00999999977 : f32
    %142 = vector.broadcast %cst_56 : f32 to vector<8x384xf32>
    %143 = arith.mulf %142, %139 : vector<8x384xf32>
    %144 = arith.select %141, %139, %143 : vector<8x384xi1>, vector<8x384xf32>
    %145 = tpu.concatenate %84, %104, %124, %144 in 0 : vector<8x384xf32>, vector<8x384xf32>, vector<8x384xf32>, vector<8x384xf32> -> vector<32x384xf32>
    %146 = arith.truncf %145 : vector<32x384xf32> to vector<32x384xbf16>
    %cst_57 = arith.constant dense<0.000000e+00> : vector<32x584xf32>
    %147 = tpu.matmul %146, %1, %cst_57 {dimension_numbers = #tpu.dot_dimension_numbers<[1], [0], [0], [1], [0, 0, 1, 1], [], []>} : vector<32x384xbf16>, vector<384x584xbf16>, vector<32x584xf32> -> vector<32x584xf32>
    %148 = vector.extract_strided_slice %147 {offsets = [0, 75], sizes = [32, 384], strides = [1, 1]} : vector<32x584xf32> to vector<32x384xf32>
    %149 = vector.extract_strided_slice %147 {offsets = [0, 76], sizes = [32, 384], strides = [1, 1]} : vector<32x584xf32> to vector<32x384xf32>
    %150 = vector.extract_strided_slice %147 {offsets = [0, 77], sizes = [32, 384], strides = [1, 1]} : vector<32x584xf32> to vector<32x384xf32>
    %151 = vector.extract_strided_slice %147 {offsets = [0, 99], sizes = [32, 384], strides = [1, 1]} : vector<32x584xf32> to vector<32x384xf32>
    %152 = vector.extract_strided_slice %147 {offsets = [0, 100], sizes = [32, 384], strides = [1, 1]} : vector<32x584xf32> to vector<32x384xf32>
    %153 = vector.extract_strided_slice %147 {offsets = [0, 101], sizes = [32, 384], strides = [1, 1]} : vector<32x584xf32> to vector<32x384xf32>
    %154 = vector.extract_strided_slice %147 {offsets = [0, 123], sizes = [32, 384], strides = [1, 1]} : vector<32x584xf32> to vector<32x384xf32>
    %155 = vector.extract_strided_slice %147 {offsets = [0, 124], sizes = [32, 384], strides = [1, 1]} : vector<32x584xf32> to vector<32x384xf32>
    %156 = vector.extract_strided_slice %147 {offsets = [0, 125], sizes = [32, 384], strides = [1, 1]} : vector<32x584xf32> to vector<32x384xf32>
    %157 = tpu.concatenate %148, %149, %150, %151, %152, %153, %154, %155, %156 in 0 : vector<32x384xf32>, vector<32x384xf32>, vector<32x384xf32>, vector<32x384xf32>, vector<32x384xf32>, vector<32x384xf32>, vector<32x384xf32>, vector<32x384xf32>, vector<32x384xf32> -> vector<288x384xf32>
    %158 = arith.truncf %157 : vector<288x384xf32> to vector<288x384xbf16>
    %cst_58 = arith.constant dense<0.000000e+00> : vector<32x384xf32>
    %159 = tpu.matmul %63, %158, %cst_58 {dimension_numbers = #tpu.dot_dimension_numbers<[1], [0], [0], [1], [0, 0, 1, 1], [], []>} : vector<32x288xbf16>, vector<288x384xbf16>, vector<32x384xf32> -> vector<32x384xf32>
    %160 = vector.broadcast %64 : vector<32x1xf32> to vector<32x384xf32>
    %161 = arith.addf %159, %160 : vector<32x384xf32>
    %cst_59 = arith.constant 0.000000e+00 : f32
    %162 = vector.broadcast %cst_59 : f32 to vector<32x384xf32>
    %163 = arith.cmpf ogt, %161, %162 : vector<32x384xf32>
    %cst_60 = arith.constant 0.00999999977 : f32
    %164 = vector.broadcast %cst_60 : f32 to vector<32x384xf32>
    %165 = arith.mulf %164, %161 : vector<32x384xf32>
    %166 = arith.select %163, %161, %165 : vector<32x384xi1>, vector<32x384xf32>
    %c0_61 = arith.constant 0 : index
    %c0_62 = arith.constant 0 : index
    %167 = vector.load %arg18[%c0_61, %c0_62] : memref<64x384xf32, #tpu.memory_space<vmem>>, vector<32x384xf32>
    %168 = arith.addf %167, %166 : vector<32x384xf32>
    %c0_63 = arith.constant 0 : index
    %c0_64 = arith.constant 0 : index
    %169 = vector.load %arg18[%c0_63, %c0_64] : memref<64x384xf32, #tpu.memory_space<vmem>>, vector<32x384xf32>
    tpu.vector_store %arg18[%c0_63, %c0_64], %168 {strides = array<i32>} : memref<64x384xf32, #tpu.memory_space<vmem>>, vector<32x384xf32>,
    %170 = vector.extract_strided_slice %54 {offsets = [32, 0], sizes = [8, 584], strides = [1, 1]} : vector<64x584xf32> to vector<8x584xf32>
    %171 = vector.extract_strided_slice %170 {offsets = [0, 75], sizes = [8, 384], strides = [1, 1]} : vector<8x584xf32> to vector<8x384xf32>
    %172 = vector.extract_strided_slice %170 {offsets = [0, 76], sizes = [8, 384], strides = [1, 1]} : vector<8x584xf32> to vector<8x384xf32>
    %173 = vector.extract_strided_slice %170 {offsets = [0, 77], sizes = [8, 384], strides = [1, 1]} : vector<8x584xf32> to vector<8x384xf32>
    %174 = vector.extract_strided_slice %170 {offsets = [0, 99], sizes = [8, 384], strides = [1, 1]} : vector<8x584xf32> to vector<8x384xf32>
    %175 = vector.extract_strided_slice %170 {offsets = [0, 100], sizes = [8, 384], strides = [1, 1]} : vector<8x584xf32> to vector<8x384xf32>
    %176 = vector.extract_strided_slice %170 {offsets = [0, 101], sizes = [8, 384], strides = [1, 1]} : vector<8x584xf32> to vector<8x384xf32>
    %177 = vector.extract_strided_slice %170 {offsets = [0, 123], sizes = [8, 384], strides = [1, 1]} : vector<8x584xf32> to vector<8x384xf32>
    %178 = vector.extract_strided_slice %170 {offsets = [0, 124], sizes = [8, 384], strides = [1, 1]} : vector<8x584xf32> to vector<8x384xf32>
    %179 = vector.extract_strided_slice %170 {offsets = [0, 125], sizes = [8, 384], strides = [1, 1]} : vector<8x584xf32> to vector<8x384xf32>
    %180 = tpu.concatenate %171, %172, %173, %174, %175, %176, %177, %178, %179 in 0 : vector<8x384xf32>, vector<8x384xf32>, vector<8x384xf32>, vector<8x384xf32>, vector<8x384xf32>, vector<8x384xf32>, vector<8x384xf32>, vector<8x384xf32>, vector<8x384xf32> -> vector<72x384xf32>
    %181 = arith.truncf %180 : vector<72x384xf32> to vector<72x384xbf16>
    %cst_65 = arith.constant dense<0.000000e+00> : vector<8x384xf32>
    %182 = tpu.matmul %55, %181, %cst_65 {dimension_numbers = #tpu.dot_dimension_numbers<[1], [0], [0], [1], [0, 0, 1, 1], [], []>} : vector<8x72xbf16>, vector<72x384xbf16>, vector<8x384xf32> -> vector<8x384xf32>
    %183 = vector.broadcast %59 : vector<8x1xf32> to vector<8x384xf32>
    %184 = arith.addf %182, %183 : vector<8x384xf32>
    %cst_66 = arith.constant 0.000000e+00 : f32
    %185 = vector.broadcast %cst_66 : f32 to vector<8x384xf32>
    %186 = arith.cmpf ogt, %184, %185 : vector<8x384xf32>
    %cst_67 = arith.constant 0.00999999977 : f32
    %187 = vector.broadcast %cst_67 : f32 to vector<8x384xf32>
    %188 = arith.mulf %187, %184 : vector<8x384xf32>
    %189 = arith.select %186, %184, %188 : vector<8x384xi1>, vector<8x384xf32>
    %190 = vector.extract_strided_slice %54 {offsets = [40, 0], sizes = [8, 584], strides = [1, 1]} : vector<64x584xf32> to vector<8x584xf32>
    %191 = vector.extract_strided_slice %190 {offsets = [0, 50], sizes = [8, 384], strides = [1, 1]} : vector<8x584xf32> to vector<8x384xf32>
    %192 = vector.extract_strided_slice %190 {offsets = [0, 52], sizes = [8, 384], strides = [1, 1]} : vector<8x584xf32> to vector<8x384xf32>
    %193 = vector.extract_strided_slice %190 {offsets = [0, 54], sizes = [8, 384], strides = [1, 1]} : vector<8x584xf32> to vector<8x384xf32>
    %194 = vector.extract_strided_slice %190 {offsets = [0, 98], sizes = [8, 384], strides = [1, 1]} : vector<8x584xf32> to vector<8x384xf32>
    %195 = vector.extract_strided_slice %190 {offsets = [0, 100], sizes = [8, 384], strides = [1, 1]} : vector<8x584xf32> to vector<8x384xf32>
    %196 = vector.extract_strided_slice %190 {offsets = [0, 102], sizes = [8, 384], strides = [1, 1]} : vector<8x584xf32> to vector<8x384xf32>
    %197 = vector.extract_strided_slice %190 {offsets = [0, 146], sizes = [8, 384], strides = [1, 1]} : vector<8x584xf32> to vector<8x384xf32>
    %198 = vector.extract_strided_slice %190 {offsets = [0, 148], sizes = [8, 384], strides = [1, 1]} : vector<8x584xf32> to vector<8x384xf32>
    %199 = vector.extract_strided_slice %190 {offsets = [0, 150], sizes = [8, 384], strides = [1, 1]} : vector<8x584xf32> to vector<8x384xf32>
    %200 = tpu.concatenate %191, %192, %193, %194, %195, %196, %197, %198, %199 in 0 : vector<8x384xf32>, vector<8x384xf32>, vector<8x384xf32>, vector<8x384xf32>, vector<8x384xf32>, vector<8x384xf32>, vector<8x384xf32>, vector<8x384xf32>, vector<8x384xf32> -> vector<72x384xf32>
    %201 = arith.truncf %200 : vector<72x384xf32> to vector<72x384xbf16>
    %cst_68 = arith.constant dense<0.000000e+00> : vector<8x384xf32>
    %202 = tpu.matmul %56, %201, %cst_68 {dimension_numbers = #tpu.dot_dimension_numbers<[1], [0], [0], [1], [0, 0, 1, 1], [], []>} : vector<8x72xbf16>, vector<72x384xbf16>, vector<8x384xf32> -> vector<8x384xf32>
    %203 = vector.broadcast %60 : vector<8x1xf32> to vector<8x384xf32>
    %204 = arith.addf %202, %203 : vector<8x384xf32>
    %cst_69 = arith.constant 0.000000e+00 : f32
    %205 = vector.broadcast %cst_69 : f32 to vector<8x384xf32>
    %206 = arith.cmpf ogt, %204, %205 : vector<8x384xf32>
    %cst_70 = arith.constant 0.00999999977 : f32
    %207 = vector.broadcast %cst_70 : f32 to vector<8x384xf32>
    %208 = arith.mulf %207, %204 : vector<8x384xf32>
    %209 = arith.select %206, %204, %208 : vector<8x384xi1>, vector<8x384xf32>
    %210 = vector.extract_strided_slice %54 {offsets = [48, 0], sizes = [8, 584], strides = [1, 1]} : vector<64x584xf32> to vector<8x584xf32>
    %211 = vector.extract_strided_slice %210 {offsets = [0, 25], sizes = [8, 384], strides = [1, 1]} : vector<8x584xf32> to vector<8x384xf32>
    %212 = vector.extract_strided_slice %210 {offsets = [0, 28], sizes = [8, 384], strides = [1, 1]} : vector<8x584xf32> to vector<8x384xf32>
    %213 = vector.extract_strided_slice %210 {offsets = [0, 31], sizes = [8, 384], strides = [1, 1]} : vector<8x584xf32> to vector<8x384xf32>
    %214 = vector.extract_strided_slice %210 {offsets = [0, 97], sizes = [8, 384], strides = [1, 1]} : vector<8x584xf32> to vector<8x384xf32>
    %215 = vector.extract_strided_slice %210 {offsets = [0, 100], sizes = [8, 384], strides = [1, 1]} : vector<8x584xf32> to vector<8x384xf32>
    %216 = vector.extract_strided_slice %210 {offsets = [0, 103], sizes = [8, 384], strides = [1, 1]} : vector<8x584xf32> to vector<8x384xf32>
    %217 = vector.extract_strided_slice %210 {offsets = [0, 169], sizes = [8, 384], strides = [1, 1]} : vector<8x584xf32> to vector<8x384xf32>
    %218 = vector.extract_strided_slice %210 {offsets = [0, 172], sizes = [8, 384], strides = [1, 1]} : vector<8x584xf32> to vector<8x384xf32>
    %219 = vector.extract_strided_slice %210 {offsets = [0, 175], sizes = [8, 384], strides = [1, 1]} : vector<8x584xf32> to vector<8x384xf32>
    %220 = tpu.concatenate %211, %212, %213, %214, %215, %216, %217, %218, %219 in 0 : vector<8x384xf32>, vector<8x384xf32>, vector<8x384xf32>, vector<8x384xf32>, vector<8x384xf32>, vector<8x384xf32>, vector<8x384xf32>, vector<8x384xf32>, vector<8x384xf32> -> vector<72x384xf32>
    %221 = arith.truncf %220 : vector<72x384xf32> to vector<72x384xbf16>
    %cst_71 = arith.constant dense<0.000000e+00> : vector<8x384xf32>
    %222 = tpu.matmul %57, %221, %cst_71 {dimension_numbers = #tpu.dot_dimension_numbers<[1], [0], [0], [1], [0, 0, 1, 1], [], []>} : vector<8x72xbf16>, vector<72x384xbf16>, vector<8x384xf32> -> vector<8x384xf32>
    %223 = vector.broadcast %61 : vector<8x1xf32> to vector<8x384xf32>
    %224 = arith.addf %222, %223 : vector<8x384xf32>
    %cst_72 = arith.constant 0.000000e+00 : f32
    %225 = vector.broadcast %cst_72 : f32 to vector<8x384xf32>
    %226 = arith.cmpf ogt, %224, %225 : vector<8x384xf32>
    %cst_73 = arith.constant 0.00999999977 : f32
    %227 = vector.broadcast %cst_73 : f32 to vector<8x384xf32>
    %228 = arith.mulf %227, %224 : vector<8x384xf32>
    %229 = arith.select %226, %224, %228 : vector<8x384xi1>, vector<8x384xf32>
    %230 = vector.extract_strided_slice %54 {offsets = [56, 0], sizes = [8, 584], strides = [1, 1]} : vector<64x584xf32> to vector<8x584xf32>
    %231 = vector.extract_strided_slice %230 {offsets = [0, 0], sizes = [8, 384], strides = [1, 1]} : vector<8x584xf32> to vector<8x384xf32>
    %232 = vector.extract_strided_slice %230 {offsets = [0, 4], sizes = [8, 384], strides = [1, 1]} : vector<8x584xf32> to vector<8x384xf32>
    %233 = vector.extract_strided_slice %230 {offsets = [0, 8], sizes = [8, 384], strides = [1, 1]} : vector<8x584xf32> to vector<8x384xf32>
    %234 = vector.extract_strided_slice %230 {offsets = [0, 96], sizes = [8, 384], strides = [1, 1]} : vector<8x584xf32> to vector<8x384xf32>
    %235 = vector.extract_strided_slice %230 {offsets = [0, 100], sizes = [8, 384], strides = [1, 1]} : vector<8x584xf32> to vector<8x384xf32>
    %236 = vector.extract_strided_slice %230 {offsets = [0, 104], sizes = [8, 384], strides = [1, 1]} : vector<8x584xf32> to vector<8x384xf32>
    %237 = vector.extract_strided_slice %230 {offsets = [0, 192], sizes = [8, 384], strides = [1, 1]} : vector<8x584xf32> to vector<8x384xf32>
    %238 = vector.extract_strided_slice %230 {offsets = [0, 196], sizes = [8, 384], strides = [1, 1]} : vector<8x584xf32> to vector<8x384xf32>
    %239 = vector.extract_strided_slice %230 {offsets = [0, 200], sizes = [8, 384], strides = [1, 1]} : vector<8x584xf32> to vector<8x384xf32>
    %240 = tpu.concatenate %231, %232, %233, %234, %235, %236, %237, %238, %239 in 0 : vector<8x384xf32>, vector<8x384xf32>, vector<8x384xf32>, vector<8x384xf32>, vector<8x384xf32>, vector<8x384xf32>, vector<8x384xf32>, vector<8x384xf32>, vector<8x384xf32> -> vector<72x384xf32>
    %241 = arith.truncf %240 : vector<72x384xf32> to vector<72x384xbf16>
    %cst_74 = arith.constant dense<0.000000e+00> : vector<8x384xf32>
    %242 = tpu.matmul %58, %241, %cst_74 {dimension_numbers = #tpu.dot_dimension_numbers<[1], [0], [0], [1], [0, 0, 1, 1], [], []>} : vector<8x72xbf16>, vector<72x384xbf16>, vector<8x384xf32> -> vector<8x384xf32>
    %243 = vector.broadcast %62 : vector<8x1xf32> to vector<8x384xf32>
    %244 = arith.addf %242, %243 : vector<8x384xf32>
    %cst_75 = arith.constant 0.000000e+00 : f32
    %245 = vector.broadcast %cst_75 : f32 to vector<8x384xf32>
    %246 = arith.cmpf ogt, %244, %245 : vector<8x384xf32>
    %cst_76 = arith.constant 0.00999999977 : f32
    %247 = vector.broadcast %cst_76 : f32 to vector<8x384xf32>
    %248 = arith.mulf %247, %244 : vector<8x384xf32>
    %249 = arith.select %246, %244, %248 : vector<8x384xi1>, vector<8x384xf32>
    %250 = tpu.concatenate %189, %209, %229, %249 in 0 : vector<8x384xf32>, vector<8x384xf32>, vector<8x384xf32>, vector<8x384xf32> -> vector<32x384xf32>
    %251 = arith.truncf %250 : vector<32x384xf32> to vector<32x384xbf16>
    %cst_77 = arith.constant dense<0.000000e+00> : vector<32x584xf32>
    %252 = tpu.matmul %251, %1, %cst_77 {dimension_numbers = #tpu.dot_dimension_numbers<[1], [0], [0], [1], [0, 0, 1, 1], [], []>} : vector<32x384xbf16>, vector<384x584xbf16>, vector<32x584xf32> -> vector<32x584xf32>
    %253 = vector.extract_strided_slice %252 {offsets = [0, 75], sizes = [32, 384], strides = [1, 1]} : vector<32x584xf32> to vector<32x384xf32>
    %254 = vector.extract_strided_slice %252 {offsets = [0, 76], sizes = [32, 384], strides = [1, 1]} : vector<32x584xf32> to vector<32x384xf32>
    %255 = vector.extract_strided_slice %252 {offsets = [0, 77], sizes = [32, 384], strides = [1, 1]} : vector<32x584xf32> to vector<32x384xf32>
    %256 = vector.extract_strided_slice %252 {offsets = [0, 99], sizes = [32, 384], strides = [1, 1]} : vector<32x584xf32> to vector<32x384xf32>
    %257 = vector.extract_strided_slice %252 {offsets = [0, 100], sizes = [32, 384], strides = [1, 1]} : vector<32x584xf32> to vector<32x384xf32>
    %258 = vector.extract_strided_slice %252 {offsets = [0, 101], sizes = [32, 384], strides = [1, 1]} : vector<32x584xf32> to vector<32x384xf32>
    %259 = vector.extract_strided_slice %252 {offsets = [0, 123], sizes = [32, 384], strides = [1, 1]} : vector<32x584xf32> to vector<32x384xf32>
    %260 = vector.extract_strided_slice %252 {offsets = [0, 124], sizes = [32, 384], strides = [1, 1]} : vector<32x584xf32> to vector<32x384xf32>
    %261 = vector.extract_strided_slice %252 {offsets = [0, 125], sizes = [32, 384], strides = [1, 1]} : vector<32x584xf32> to vector<32x384xf32>
    %262 = tpu.concatenate %253, %254, %255, %256, %257, %258, %259, %260, %261 in 0 : vector<32x384xf32>, vector<32x384xf32>, vector<32x384xf32>, vector<32x384xf32>, vector<32x384xf32>, vector<32x384xf32>, vector<32x384xf32>, vector<32x384xf32>, vector<32x384xf32> -> vector<288x384xf32>
    %263 = arith.truncf %262 : vector<288x384xf32> to vector<288x384xbf16>
    %cst_78 = arith.constant dense<0.000000e+00> : vector<32x384xf32>
    %264 = tpu.matmul %63, %263, %cst_78 {dimension_numbers = #tpu.dot_dimension_numbers<[1], [0], [0], [1], [0, 0, 1, 1], [], []>} : vector<32x288xbf16>, vector<288x384xbf16>, vector<32x384xf32> -> vector<32x384xf32>
    %265 = vector.broadcast %64 : vector<32x1xf32> to vector<32x384xf32>
    %266 = arith.addf %264, %265 : vector<32x384xf32>
    %cst_79 = arith.constant 0.000000e+00 : f32
    %267 = vector.broadcast %cst_79 : f32 to vector<32x384xf32>
    %268 = arith.cmpf ogt, %266, %267 : vector<32x384xf32>
    %cst_80 = arith.constant 0.00999999977 : f32
    %269 = vector.broadcast %cst_80 : f32 to vector<32x384xf32>
    %270 = arith.mulf %269, %266 : vector<32x384xf32>
    %271 = arith.select %268, %266, %270 : vector<32x384xi1>, vector<32x384xf32>
    %c32_81 = arith.constant 32 : index
    %c0_82 = arith.constant 0 : index
    %272 = vector.load %arg18[%c32_81, %c0_82] : memref<64x384xf32, #tpu.memory_space<vmem>>, vector<32x384xf32>
    %273 = arith.addf %272, %271 : vector<32x384xf32>
    %c32_83 = arith.constant 32 : index
    %c0_84 = arith.constant 0 : index
    %274 = vector.load %arg18[%c32_83, %c0_84] : memref<64x384xf32, #tpu.memory_space<vmem>>, vector<32x384xf32>
    tpu.vector_store %arg18[%c32_83, %c0_84], %273 {strides = array<i32>} : memref<64x384xf32, #tpu.memory_space<vmem>>, vector<32x384xf32>,
    %c0_85 = arith.constant 0 : index
    %c0_86 = arith.constant 0 : index
    %275 = vector.load %arg18[%c0_85, %c0_86] : memref<64x384xf32, #tpu.memory_space<vmem>>, vector<64x384xf32>
    %c0_87 = arith.constant 0 : index
    %c0_88 = arith.constant 0 : index
    %276 = vector.load %arg4[%c0_87, %c0_88] : memref<384x256xf32, #tpu.memory_space<vmem>>, vector<384x256xf32>
    %cst_89 = arith.constant dense<0.000000e+00> : vector<64x256xf32>
    %277 = tpu.matmul %275, %276, %cst_89 {dimension_numbers = #tpu.dot_dimension_numbers<[1], [0], [0], [1], [0, 0, 1, 1], [], []>} : vector<64x384xf32>, vector<384x256xf32>, vector<64x256xf32> -> vector<64x256xf32>
    %c0_90 = arith.constant 0 : index
    %c0_91 = arith.constant 0 : index
    %278 = vector.load %arg17[%c0_90, %c0_91] : memref<64x256xf32, #tpu.memory_space<vmem>>, vector<64x256xf32>
    tpu.vector_store %arg17[%c0_90, %c0_91], %277 {strides = array<i32>} : memref<64x256xf32, #tpu.memory_space<vmem>>, vector<64x256xf32>,
    return
  }
  func.func @transform_0(%arg0: i32) -> (i32, i32, i32) {
    %c0_i32 = arith.constant 0 : i32
    %c0_i32_0 = arith.constant 0 : i32
    %c0_i32_1 = arith.constant 0 : i32
    return %arg0, %c0_i32, %c0_i32_0 : i32, i32, i32
  }
  func.func @transform_1(%arg0: i32) -> (i32, i32) {
    %c0_i32 = arith.constant 0 : i32
    %c0_i32_0 = arith.constant 0 : i32
    %c0_i32_1 = arith.constant 0 : i32
    return %c0_i32, %c0_i32_0 : i32, i32
  }
  func.func @transform_2(%arg0: i32) -> (i32, i32) {
    %c0_i32 = arith.constant 0 : i32
    %c0_i32_0 = arith.constant 0 : i32
    %c0_i32_1 = arith.constant 0 : i32
    return %c0_i32, %c0_i32_0 : i32, i32
  }
  func.func @transform_3(%arg0: i32) -> (i32, i32) {
    %c0_i32 = arith.constant 0 : i32
    %c0_i32_0 = arith.constant 0 : i32
    %c0_i32_1 = arith.constant 0 : i32
    return %c0_i32, %c0_i32_0 : i32, i32
  }
  func.func @transform_4(%arg0: i32) -> (i32, i32) {
    %c0_i32 = arith.constant 0 : i32
    %c0_i32_0 = arith.constant 0 : i32
    %c0_i32_1 = arith.constant 0 : i32
    return %c0_i32, %c0_i32_0 : i32, i32
  }
  func.func @transform_5(%arg0: i32) -> (i32, i32) {
    %c0_i32 = arith.constant 0 : i32
    %c0_i32_0 = arith.constant 0 : i32
    %c0_i32_1 = arith.constant 0 : i32
    return %c0_i32, %c0_i32_0 : i32, i32
  }
  func.func @transform_6(%arg0: i32) -> (i32, i32) {
    %c0_i32 = arith.constant 0 : i32
    %c0_i32_0 = arith.constant 0 : i32
    %c0_i32_1 = arith.constant 0 : i32
    return %c0_i32, %c0_i32_0 : i32, i32
  }
  func.func @transform_7(%arg0: i32) -> (i32, i32) {
    %c0_i32 = arith.constant 0 : i32
    %c0_i32_0 = arith.constant 0 : i32
    %c0_i32_1 = arith.constant 0 : i32
    return %c0_i32, %c0_i32_0 : i32, i32
  }
  func.func @transform_8(%arg0: i32) -> (i32, i32) {
    %c0_i32 = arith.constant 0 : i32
    %c0_i32_0 = arith.constant 0 : i32
    %c0_i32_1 = arith.constant 0 : i32
    return %c0_i32, %c0_i32_0 : i32, i32
  }
  func.func @transform_9(%arg0: i32) -> (i32, i32) {
    %c0_i32 = arith.constant 0 : i32
    %c0_i32_0 = arith.constant 0 : i32
    %c0_i32_1 = arith.constant 0 : i32
    return %c0_i32, %c0_i32_0 : i32, i32
  }
  func.func @transform_10(%arg0: i32) -> (i32, i32) {
    %c0_i32 = arith.constant 0 : i32
    %c0_i32_0 = arith.constant 0 : i32
    %c0_i32_1 = arith.constant 0 : i32
    return %c0_i32, %c0_i32_0 : i32, i32
  }
  func.func @transform_11(%arg0: i32) -> (i32, i32) {
    %c0_i32 = arith.constant 0 : i32
    %c0_i32_0 = arith.constant 0 : i32
    %c0_i32_1 = arith.constant 0 : i32
    return %c0_i32, %c0_i32_0 : i32, i32
  }
  func.func @transform_12(%arg0: i32) -> (i32, i32) {
    %c0_i32 = arith.constant 0 : i32
    %c0_i32_0 = arith.constant 0 : i32
    %c0_i32_1 = arith.constant 0 : i32
    return %c0_i32, %c0_i32_0 : i32, i32
  }
  func.func @transform_13(%arg0: i32) -> (i32, i32) {
    %c0_i32 = arith.constant 0 : i32
    %c0_i32_0 = arith.constant 0 : i32
    %c0_i32_1 = arith.constant 0 : i32
    return %c0_i32, %c0_i32_0 : i32, i32
  }
  func.func @transform_14(%arg0: i32) -> (i32, i32) {
    %c0_i32 = arith.constant 0 : i32
    %c0_i32_0 = arith.constant 0 : i32
    %c0_i32_1 = arith.constant 0 : i32
    return %c0_i32, %c0_i32_0 : i32, i32
  }
  func.func @transform_15(%arg0: i32) -> (i32, i32) {
    %c0_i32 = arith.constant 0 : i32
    %c0_i32_0 = arith.constant 0 : i32
    %c0_i32_1 = arith.constant 0 : i32
    return %c0_i32, %c0_i32_0 : i32, i32
  }
  func.func @transform_16(%arg0: i32) -> (i32, i32) {
    %c0_i32 = arith.constant 0 : i32
    %c0_i32_0 = arith.constant 0 : i32
    return %arg0, %c0_i32 : i32, i32
  }
}

</mosaic_0001>

<llo_original>
// kernel: feb_forward.1
$region0: #{feb_forward.1}
  #allocation0 [shape = 'u32[]', space=smem, size = 0x4, offset = 0x4, fixed_abs, tag = 'smem constant byte address 0x4 - core index']
  #allocation1 [shape = 'u32[144,128]{1,0:T(1,128)}', space=vmem, size = 0x12000, scoped, tag = 'internal scratch']
  #allocation2 [shape = 'f32[64,384]{1,0:T(8,128)}', space=vmem, size = 0x18000, scoped, tag = 'scratch operand']
  %s0 = inlined_call_operand.vmem [shape: f32[2,8,256], index: 0, kind: input, shape index: {}]
  %s1 = inlined_call_operand.vmem [shape: bf16[256,434], index: 1, kind: input, shape index: {}]
  %s2 = inlined_call_operand.vmem [shape: bf16[384,584], index: 2, kind: input, shape index: {}]
  %s3 = inlined_call_operand.vmem [shape: f32[384,256], index: 3, kind: input, shape index: {}]
  %s4 = inlined_call_operand.vmem [shape: bf16[32,72], index: 4, kind: input, shape index: {}]
  %s5 = inlined_call_operand.vmem [shape: f32[32,1], index: 5, kind: input, shape index: {}]
  %s6 = inlined_call_operand.vmem [shape: bf16[8,72], index: 6, kind: input, shape index: {}]
  %s7 = inlined_call_operand.vmem [shape: f32[8,1], index: 7, kind: input, shape index: {}]
  %s8 = inlined_call_operand.vmem [shape: bf16[8,72], index: 8, kind: input, shape index: {}]
  %s9 = inlined_call_operand.vmem [shape: f32[8,1], index: 9, kind: input, shape index: {}]
  %s10 = inlined_call_operand.vmem [shape: bf16[8,72], index: 10, kind: input, shape index: {}]
  %s11 = inlined_call_operand.vmem [shape: f32[8,1], index: 11, kind: input, shape index: {}]
  %s12 = inlined_call_operand.vmem [shape: bf16[8,72], index: 12, kind: input, shape index: {}]
  %s13 = inlined_call_operand.vmem [shape: f32[8,1], index: 13, kind: input, shape index: {}]
  %s14 = inlined_call_operand.vmem [shape: bf16[32,288], index: 14, kind: input, shape index: {}]
  %s15 = inlined_call_operand.vmem [shape: f32[32,1], index: 15, kind: input, shape index: {}]
  %s16 = inlined_call_operand.vmem [shape: f32[64,256], index: 16, kind: output, shape index: {}]
  %s17 = sld [smem:[#allocation0]]
  $region74: #{feb_forward.1} parent=0
    _
  %s19 = ssub.s32 1, %s17
  %s20 = scalar_select 0, %s19, %s17
  // Predicated region
  $region2: #{feb_forward.1} parent=0 // pred_check
    _
  $region3: #{feb_forward.1} parent=0 // pred_check_branch
    %22 = sbr.rel (0) target = $region5
  $region4: #{feb_forward.1} parent=0 // pred_region
    _
  $region5: #{feb_forward.1} parent=0 // pred_fallthru
    _
  // Predicated region
  $region6: #{feb_forward.1} parent=0 // pred_check
    _
  $region7: #{feb_forward.1} parent=0 // pred_check_branch
    %24 = sbr.rel (0) target = $region9
  $region8: #{feb_forward.1} parent=0 // pred_region
    _
  $region9: #{feb_forward.1} parent=0 // pred_fallthru
    _
  // Predicated region
  $region10: #{feb_forward.1} parent=0 // pred_check
    _
  $region11: #{feb_forward.1} parent=0 // pred_check_branch
    %26 = sbr.rel (0) target = $region13
  $region12: #{feb_forward.1} parent=0 // pred_region
    _
  $region13: #{feb_forward.1} parent=0 // pred_fallthru
    _
  // Predicated region
  $region14: #{feb_forward.1} parent=0 // pred_check
    _
  $region15: #{feb_forward.1} parent=0 // pred_check_branch
    %28 = sbr.rel (0) target = $region17
  $region16: #{feb_forward.1} parent=0 // pred_region
    _
  $region17: #{feb_forward.1} parent=0 // pred_fallthru
    _
  // Predicated region
  $region18: #{feb_forward.1} parent=0 // pred_check
    _
  $region19: #{feb_forward.1} parent=0 // pred_check_branch
    %30 = sbr.rel (0) target = $region21
  $region20: #{feb_forward.1} parent=0 // pred_region
    _
  $region21: #{feb_forward.1} parent=0 // pred_fallthru
    _
  // Predicated region
  $region22: #{feb_forward.1} parent=0 // pred_check
    _
  $region23: #{feb_forward.1} parent=0 // pred_check_branch
    %32 = sbr.rel (0) target = $region25
  $region24: #{feb_forward.1} parent=0 // pred_region
    _
  $region25: #{feb_forward.1} parent=0 // pred_fallthru
    _
  // Predicated region
  $region26: #{feb_forward.1} parent=0 // pred_check
    _
  $region27: #{feb_forward.1} parent=0 // pred_check_branch
    %34 = sbr.rel (0) target = $region29
  $region28: #{feb_forward.1} parent=0 // pred_region
    _
  $region29: #{feb_forward.1} parent=0 // pred_fallthru
    _
  // Predicated region
  $region30: #{feb_forward.1} parent=0 // pred_check
    _
  $region31: #{feb_forward.1} parent=0 // pred_check_branch
    %36 = sbr.rel (0) target = $region33
  $region32: #{feb_forward.1} parent=0 // pred_region
    _
  $region33: #{feb_forward.1} parent=0 // pred_fallthru
    _
  // Predicated region
  $region34: #{feb_forward.1} parent=0 // pred_check
    _
  $region35: #{feb_forward.1} parent=0 // pred_check_branch
    %38 = sbr.rel (0) target = $region37
  $region36: #{feb_forward.1} parent=0 // pred_region
    _
  $region37: #{feb_forward.1} parent=0 // pred_fallthru
    _
  // Predicated region
  $region38: #{feb_forward.1} parent=0 // pred_check
    _
  $region39: #{feb_forward.1} parent=0 // pred_check_branch
    %40 = sbr.rel (0) target = $region41
  $region40: #{feb_forward.1} parent=0 // pred_region
    _
  $region41: #{feb_forward.1} parent=0 // pred_fallthru
    _
  // Predicated region
  $region42: #{feb_forward.1} parent=0 // pred_check
    _
  $region43: #{feb_forward.1} parent=0 // pred_check_branch
    %42 = sbr.rel (0) target = $region45
  $region44: #{feb_forward.1} parent=0 // pred_region
    _
  $region45: #{feb_forward.1} parent=0 // pred_fallthru
    _
  // Predicated region
  $region46: #{feb_forward.1} parent=0 // pred_check
    _
  $region47: #{feb_forward.1} parent=0 // pred_check_branch
    %44 = sbr.rel (0) target = $region49
  $region48: #{feb_forward.1} parent=0 // pred_region
    _
  $region49: #{feb_forward.1} parent=0 // pred_fallthru
    _
  // Predicated region
  $region50: #{feb_forward.1} parent=0 // pred_check
    _
  $region51: #{feb_forward.1} parent=0 // pred_check_branch
    %46 = sbr.rel (0) target = $region53
  $region52: #{feb_forward.1} parent=0 // pred_region
    _
  $region53: #{feb_forward.1} parent=0 // pred_fallthru
    _
  // Predicated region
  $region54: #{feb_forward.1} parent=0 // pred_check
    _
  $region55: #{feb_forward.1} parent=0 // pred_check_branch
    %48 = sbr.rel (0) target = $region57
  $region56: #{feb_forward.1} parent=0 // pred_region
    _
  $region57: #{feb_forward.1} parent=0 // pred_fallthru
    _
  // Predicated region
  $region58: #{feb_forward.1} parent=0 // pred_check
    _
  $region59: #{feb_forward.1} parent=0 // pred_check_branch
    %50 = sbr.rel (0) target = $region61
  $region60: #{feb_forward.1} parent=0 // pred_region
    _
  $region61: #{feb_forward.1} parent=0 // pred_fallthru
    _
  // Predicated region
  $region62: #{feb_forward.1} parent=0 // pred_check
    _
  $region63: #{feb_forward.1} parent=0 // pred_check_branch
    %52 = sbr.rel (0) target = $region65
  $region64: #{feb_forward.1} parent=0 // pred_region
    _
  $region65: #{feb_forward.1} parent=0 // pred_fallthru
    _
  %v54 = vld [vmem:[%s1] sm:$0xff]
  %v55 = vld [vmem:[%s1 + $0x8] sm:$0xff]
  %v56 = vld [vmem:[%s1 + $0x10] sm:$0xff]
  %v57 = vld [vmem:[%s1 + $0x18] sm:$0xff]
  %v58 = vld [vmem:[%s1 + $0x20] sm:$0xff]
  %v59 = vld [vmem:[%s1 + $0x28] sm:$0xff]
  %v60 = vld [vmem:[%s1 + $0x30] sm:$0xff]
  %v61 = vld [vmem:[%s1 + $0x38] sm:$0xff]
  %v62 = vld [vmem:[%s1 + $0x40] sm:$0xff]
  %v63 = vld [vmem:[%s1 + $0x48] sm:$0xff]
  %v64 = vld [vmem:[%s1 + $0x50] sm:$0xff]
  %v65 = vld [vmem:[%s1 + $0x58] sm:$0xff]
  %v66 = vld [vmem:[%s1 + $0x60] sm:$0xff]
  %v67 = vld [vmem:[%s1 + $0x68] sm:$0xff]
  %v68 = vld [vmem:[%s1 + $0x70] sm:$0xff]
  %v69 = vld [vmem:[%s1 + $0x78] sm:$0xff]
  %v70 = vld [vmem:[%s1 + $0x80] sm:$0xff]
  %v71 = vld [vmem:[%s1 + $0x88] sm:$0xff]
  %v72 = vld [vmem:[%s1 + $0x90] sm:$0xff]
  %v73 = vld [vmem:[%s1 + $0x98] sm:$0xff]
  %v74 = vld [vmem:[%s1 + $0xa0] sm:$0xff]
  %v75 = vld [vmem:[%s1 + $0xa8] sm:$0xff]
  %v76 = vld [vmem:[%s1 + $0xb0] sm:$0xff]
  %v77 = vld [vmem:[%s1 + $0xb8] sm:$0xff]
  %v78 = vld [vmem:[%s1 + $0xc0] sm:$0xff]
  %v79 = vld [vmem:[%s1 + $0xc8] sm:$0xff]
  %v80 = vld [vmem:[%s1 + $0xd0] sm:$0xff]
  %v81 = vld [vmem:[%s1 + $0xd8] sm:$0xff]
  %v82 = vld [vmem:[%s1 + $0xe0] sm:$0xff]
  %v83 = vld [vmem:[%s1 + $0xe8] sm:$0xff]
  %v84 = vld [vmem:[%s1 + $0xf0] sm:$0xff]
  %v85 = vld [vmem:[%s1 + $0xf8] sm:$0xff]
  %v86 = vld [vmem:[%s1 + $0x100] sm:$0xff]
  %v87 = vld [vmem:[%s1 + $0x108] sm:$0xff]
  %v88 = vld [vmem:[%s1 + $0x110] sm:$0xff]
  %v89 = vld [vmem:[%s1 + $0x118] sm:$0xff]
  %v90 = vld [vmem:[%s1 + $0x120] sm:$0xff]
  %v91 = vld [vmem:[%s1 + $0x128] sm:$0xff]
  %v92 = vld [vmem:[%s1 + $0x130] sm:$0xff]
  %v93 = vld [vmem:[%s1 + $0x138] sm:$0xff]
  %v94 = vld [vmem:[%s1 + $0x140] sm:$0xff]
  %v95 = vld [vmem:[%s1 + $0x148] sm:$0xff]
  %v96 = vld [vmem:[%s1 + $0x150] sm:$0xff]
  %v97 = vld [vmem:[%s1 + $0x158] sm:$0xff]
  %v98 = vld [vmem:[%s1 + $0x160] sm:$0xff]
  %v99 = vld [vmem:[%s1 + $0x168] sm:$0xff]
  %v100 = vld [vmem:[%s1 + $0x170] sm:$0xff]
  %v101 = vld [vmem:[%s1 + $0x178] sm:$0xff]
  %v102 = vld [vmem:[%s1 + $0x180] sm:$0xff]
  %v103 = vld [vmem:[%s1 + $0x188] sm:$0xff]
  %v104 = vld [vmem:[%s1 + $0x190] sm:$0xff]
  %v105 = vld [vmem:[%s1 + $0x198] sm:$0xff]
  %v106 = vld [vmem:[%s1 + $0x1a0] sm:$0xff]
  %v107 = vld [vmem:[%s1 + $0x1a8] sm:$0xff]
  %v108 = vld [vmem:[%s1 + $0x1b0] sm:$0xff]
  %v109 = vld [vmem:[%s1 + $0x1b8] sm:$0xff]
  %v110 = vld [vmem:[%s1 + $0x1c0] sm:$0xff]
  %v111 = vld [vmem:[%s1 + $0x1c8] sm:$0xff]
  %v112 = vld [vmem:[%s1 + $0x1d0] sm:$0xff]
  %v113 = vld [vmem:[%s1 + $0x1d8] sm:$0xff]
  %v114 = vld [vmem:[%s1 + $0x1e0] sm:$0xff]
  %v115 = vld [vmem:[%s1 + $0x1e8] sm:$0xff]
  %v116 = vld [vmem:[%s1 + $0x1f0] sm:$0xff]
  %v117 = vld [vmem:[%s1 + $0x1f8] sm:$0xff]
  %v118 = vld [vmem:[%s2] sm:$0xff]
  %v119 = vld [vmem:[%s2 + $0x8] sm:$0xff]
  %v120 = vld [vmem:[%s2 + $0x10] sm:$0xf]
  %v121 = vld [vmem:[%s2 + $0x14] sm:$0xff]
  %v122 = vld [vmem:[%s2 + $0x1c] sm:$0xff]
  %v123 = vld [vmem:[%s2 + $0x24] sm:$0xf]
  %v124 = vld [vmem:[%s2 + $0x28] sm:$0xff]
  %v125 = vld [vmem:[%s2 + $0x30] sm:$0xff]
  %v126 = vld [vmem:[%s2 + $0x38] sm:$0xf]
  %v127 = vld [vmem:[%s2 + $0x3c] sm:$0xff]
  %v128 = vld [vmem:[%s2 + $0x44] sm:$0xff]
  %v129 = vld [vmem:[%s2 + $0x4c] sm:$0xf]
  %v130 = vld [vmem:[%s2 + $0x50] sm:$0xff]
  %v131 = vld [vmem:[%s2 + $0x58] sm:$0xff]
  %v132 = vld [vmem:[%s2 + $0x60] sm:$0xf]
  %v133 = vld [vmem:[%s2 + $0x64] sm:$0xff]
  %v134 = vld [vmem:[%s2 + $0x6c] sm:$0xff]
  %v135 = vld [vmem:[%s2 + $0x74] sm:$0xf]
  %v136 = vld [vmem:[%s2 + $0x78] sm:$0xff]
  %v137 = vld [vmem:[%s2 + $0x80] sm:$0xff]
  %v138 = vld [vmem:[%s2 + $0x88] sm:$0xf]
  %v139 = vld [vmem:[%s2 + $0x8c] sm:$0xff]
  %v140 = vld [vmem:[%s2 + $0x94] sm:$0xff]
  %v141 = vld [vmem:[%s2 + $0x9c] sm:$0xf]
  %v142 = vld [vmem:[%s2 + $0xa0] sm:$0xff]
  %v143 = vld [vmem:[%s2 + $0xa8] sm:$0xff]
  %v144 = vld [vmem:[%s2 + $0xb0] sm:$0xf]
  %v145 = vld [vmem:[%s2 + $0xb4] sm:$0xff]
  %v146 = vld [vmem:[%s2 + $0xbc] sm:$0xff]
  %v147 = vld [vmem:[%s2 + $0xc4] sm:$0xf]
  %v148 = vld [vmem:[%s2 + $0xc8] sm:$0xff]
  %v149 = vld [vmem:[%s2 + $0xd0] sm:$0xff]
  %v150 = vld [vmem:[%s2 + $0xd8] sm:$0xf]
  %v151 = vld [vmem:[%s2 + $0xdc] sm:$0xff]
  %v152 = vld [vmem:[%s2 + $0xe4] sm:$0xff]
  %v153 = vld [vmem:[%s2 + $0xec] sm:$0xf]
  %v154 = vld [vmem:[%s2 + $0xf0] sm:$0xff]
  %v155 = vld [vmem:[%s2 + $0xf8] sm:$0xff]
  %v156 = vld [vmem:[%s2 + $0x100] sm:$0xf]
  %v157 = vld [vmem:[%s2 + $0x104] sm:$0xff]
  %v158 = vld [vmem:[%s2 + $0x10c] sm:$0xff]
  %v159 = vld [vmem:[%s2 + $0x114] sm:$0xf]
  %v160 = vld [vmem:[%s2 + $0x118] sm:$0xff]
  %v161 = vld [vmem:[%s2 + $0x120] sm:$0xff]
  %v162 = vld [vmem:[%s2 + $0x128] sm:$0xf]
  %v163 = vld [vmem:[%s2 + $0x12c] sm:$0xff]
  %v164 = vld [vmem:[%s2 + $0x134] sm:$0xff]
  %v165 = vld [vmem:[%s2 + $0x13c] sm:$0xf]
  %v166 = vld [vmem:[%s2 + $0x140] sm:$0xff]
  %v167 = vld [vmem:[%s2 + $0x148] sm:$0xff]
  %v168 = vld [vmem:[%s2 + $0x150] sm:$0xf]
  %v169 = vld [vmem:[%s2 + $0x154] sm:$0xff]
  %v170 = vld [vmem:[%s2 + $0x15c] sm:$0xff]
  %v171 = vld [vmem:[%s2 + $0x164] sm:$0xf]
  %v172 = vld [vmem:[%s2 + $0x168] sm:$0xff]
  %v173 = vld [vmem:[%s2 + $0x170] sm:$0xff]
  %v174 = vld [vmem:[%s2 + $0x178] sm:$0xf]
  %v175 = vld [vmem:[%s2 + $0x17c] sm:$0xff]
  %v176 = vld [vmem:[%s2 + $0x184] sm:$0xff]
  %v177 = vld [vmem:[%s2 + $0x18c] sm:$0xf]
  %v178 = vld [vmem:[%s2 + $0x190] sm:$0xff]
  %v179 = vld [vmem:[%s2 + $0x198] sm:$0xff]
  %v180 = vld [vmem:[%s2 + $0x1a0] sm:$0xf]
  %v181 = vld [vmem:[%s2 + $0x1a4] sm:$0xff]
  %v182 = vld [vmem:[%s2 + $0x1ac] sm:$0xff]
  %v183 = vld [vmem:[%s2 + $0x1b4] sm:$0xf]
  %v184 = vld [vmem:[%s2 + $0x1b8] sm:$0xff]
  %v185 = vld [vmem:[%s2 + $0x1c0] sm:$0xff]
  %v186 = vld [vmem:[%s2 + $0x1c8] sm:$0xf]
  %v187 = vld [vmem:[%s2 + $0x1cc] sm:$0xff]
  %v188 = vld [vmem:[%s2 + $0x1d4] sm:$0xff]
  %v189 = vld [vmem:[%s2 + $0x1dc] sm:$0xf]
  %v190 = vld [vmem:[%s2 + $0x1e0] sm:$0xff]
  %v191 = vld [vmem:[%s2 + $0x1e8] sm:$0xff]
  %v192 = vld [vmem:[%s2 + $0x1f0] sm:$0xf]
  %v193 = vld [vmem:[%s2 + $0x1f4] sm:$0xff]
  %v194 = vld [vmem:[%s2 + $0x1fc] sm:$0xff]
  %v195 = vld [vmem:[%s2 + $0x204] sm:$0xf]
  %v196 = vld [vmem:[%s2 + $0x208] sm:$0xff]
  %v197 = vld [vmem:[%s2 + $0x210] sm:$0xff]
  %v198 = vld [vmem:[%s2 + $0x218] sm:$0xf]
  %v199 = vld [vmem:[%s2 + $0x21c] sm:$0xff]
  %v200 = vld [vmem:[%s2 + $0x224] sm:$0xff]
  %v201 = vld [vmem:[%s2 + $0x22c] sm:$0xf]
  %v202 = vld [vmem:[%s2 + $0x230] sm:$0xff]
  %v203 = vld [vmem:[%s2 + $0x238] sm:$0xff]
  %v204 = vld [vmem:[%s2 + $0x240] sm:$0xf]
  %v205 = vld [vmem:[%s2 + $0x244] sm:$0xff]
  %v206 = vld [vmem:[%s2 + $0x24c] sm:$0xff]
  %v207 = vld [vmem:[%s2 + $0x254] sm:$0xf]
  %v208 = vld [vmem:[%s2 + $0x258] sm:$0xff]
  %v209 = vld [vmem:[%s2 + $0x260] sm:$0xff]
  %v210 = vld [vmem:[%s2 + $0x268] sm:$0xf]
  %v211 = vld [vmem:[%s2 + $0x26c] sm:$0xff]
  %v212 = vld [vmem:[%s2 + $0x274] sm:$0xff]
  %v213 = vld [vmem:[%s2 + $0x27c] sm:$0xf]
  %v214 = vld [vmem:[%s2 + $0x280] sm:$0xff]
  %v215 = vld [vmem:[%s2 + $0x288] sm:$0xff]
  %v216 = vld [vmem:[%s2 + $0x290] sm:$0xf]
  %v217 = vld [vmem:[%s2 + $0x294] sm:$0xff]
  %v218 = vld [vmem:[%s2 + $0x29c] sm:$0xff]
  %v219 = vld [vmem:[%s2 + $0x2a4] sm:$0xf]
  %v220 = vld [vmem:[%s2 + $0x2a8] sm:$0xff]
  %v221 = vld [vmem:[%s2 + $0x2b0] sm:$0xff]
  %v222 = vld [vmem:[%s2 + $0x2b8] sm:$0xf]
  %v223 = vld [vmem:[%s2 + $0x2bc] sm:$0xff]
  %v224 = vld [vmem:[%s2 + $0x2c4] sm:$0xff]
  %v225 = vld [vmem:[%s2 + $0x2cc] sm:$0xf]
  %v226 = vld [vmem:[%s2 + $0x2d0] sm:$0xff]
  %v227 = vld [vmem:[%s2 + $0x2d8] sm:$0xff]
  %v228 = vld [vmem:[%s2 + $0x2e0] sm:$0xf]
  %v229 = vld [vmem:[%s2 + $0x2e4] sm:$0xff]
  %v230 = vld [vmem:[%s2 + $0x2ec] sm:$0xff]
  %v231 = vld [vmem:[%s2 + $0x2f4] sm:$0xf]
  %v232 = vld [vmem:[%s2 + $0x2f8] sm:$0xff]
  %v233 = vld [vmem:[%s2 + $0x300] sm:$0xff]
  %v234 = vld [vmem:[%s2 + $0x308] sm:$0xf]
  %v235 = vld [vmem:[%s2 + $0x30c] sm:$0xff]
  %v236 = vld [vmem:[%s2 + $0x314] sm:$0xff]
  %v237 = vld [vmem:[%s2 + $0x31c] sm:$0xf]
  %v238 = vld [vmem:[%s2 + $0x320] sm:$0xff]
  %v239 = vld [vmem:[%s2 + $0x328] sm:$0xff]
  %v240 = vld [vmem:[%s2 + $0x330] sm:$0xf]
  %v241 = vld [vmem:[%s2 + $0x334] sm:$0xff]
  %v242 = vld [vmem:[%s2 + $0x33c] sm:$0xff]
  %v243 = vld [vmem:[%s2 + $0x344] sm:$0xf]
  %v244 = vld [vmem:[%s2 + $0x348] sm:$0xff]
  %v245 = vld [vmem:[%s2 + $0x350] sm:$0xff]
  %v246 = vld [vmem:[%s2 + $0x358] sm:$0xf]
  %v247 = vld [vmem:[%s2 + $0x35c] sm:$0xff]
  %v248 = vld [vmem:[%s2 + $0x364] sm:$0xff]
  %v249 = vld [vmem:[%s2 + $0x36c] sm:$0xf]
  %v250 = vld [vmem:[%s2 + $0x370] sm:$0xff]
  %v251 = vld [vmem:[%s2 + $0x378] sm:$0xff]
  %v252 = vld [vmem:[%s2 + $0x380] sm:$0xf]
  %v253 = vld [vmem:[%s2 + $0x384] sm:$0xff]
  %v254 = vld [vmem:[%s2 + $0x38c] sm:$0xff]
  %v255 = vld [vmem:[%s2 + $0x394] sm:$0xf]
  %v256 = vld [vmem:[%s2 + $0x398] sm:$0xff]
  %v257 = vld [vmem:[%s2 + $0x3a0] sm:$0xff]
  %v258 = vld [vmem:[%s2 + $0x3a8] sm:$0xf]
  %v259 = vld [vmem:[%s2 + $0x3ac] sm:$0xff]
  %v260 = vld [vmem:[%s2 + $0x3b4] sm:$0xff]
  %v261 = vld [vmem:[%s2 + $0x3bc] sm:$0xf]
  %v262 = vld [vmem:[%s4] sm:$0xf]
  %v263 = vld [vmem:[%s4 + $0x4] sm:$0xf]
  %v264 = vld [vmem:[%s4 + $0x8] sm:$0xf]
  %v265 = vld [vmem:[%s4 + $0xc] sm:$0xf]
  %v266 = vld [vmem:[%s5] sm:$0xff]
  %v267 = vld [vmem:[%s5 + $0x8] sm:$0xff]
  %v268 = vld [vmem:[%s5 + $0x10] sm:$0xff]
  %v269 = vld [vmem:[%s5 + $0x18] sm:$0xff]
  %v270 = vld [vmem:[%s0] sm:$0xff]
  %v271 = vld [vmem:[%s0 + $0x8] sm:$0xff]
  %v272 = vpack.c.bf16 %v270, %v270
  %v273 = vpack.c.bf16 %v271, %v271
  %v338 = vunpack.c.l.b16 %v54
  %v339 = vunpack.c.h.b16 %v54
  %v340 = vunpack.c.l.b16 %v55
  %v341 = vunpack.c.h.b16 %v55
  %v342 = vunpack.c.l.b16 %v56
  %v343 = vunpack.c.h.b16 %v56
  %v344 = vunpack.c.l.b16 %v57
  %v345 = vunpack.c.h.b16 %v57
  %v346 = vunpack.c.l.b16 %v58
  %v347 = vunpack.c.h.b16 %v58
  %v348 = vunpack.c.l.b16 %v59
  %v349 = vunpack.c.h.b16 %v59
  %v350 = vunpack.c.l.b16 %v60
  %v351 = vunpack.c.h.b16 %v60
  %v352 = vunpack.c.l.b16 %v61
  %v353 = vunpack.c.h.b16 %v61
  %v354 = vunpack.c.l.b16 %v62
  %v355 = vunpack.c.h.b16 %v62
  %v356 = vunpack.c.l.b16 %v63
  %v357 = vunpack.c.h.b16 %v63
  %v358 = vunpack.c.l.b16 %v64
  %v359 = vunpack.c.h.b16 %v64
  %v360 = vunpack.c.l.b16 %v65
  %v361 = vunpack.c.h.b16 %v65
  %v362 = vunpack.c.l.b16 %v66
  %v363 = vunpack.c.h.b16 %v66
  %v364 = vunpack.c.l.b16 %v67
  %v365 = vunpack.c.h.b16 %v67
  %v366 = vunpack.c.l.b16 %v68
  %v367 = vunpack.c.h.b16 %v68
  %v368 = vunpack.c.l.b16 %v69
  %v369 = vunpack.c.h.b16 %v69
  %v370 = vunpack.c.l.b16 %v70
  %v371 = vunpack.c.h.b16 %v70
  %v372 = vunpack.c.l.b16 %v71
  %v373 = vunpack.c.h.b16 %v71
  %v374 = vunpack.c.l.b16 %v72
  %v375 = vunpack.c.h.b16 %v72
  %v376 = vunpack.c.l.b16 %v73
  %v377 = vunpack.c.h.b16 %v73
  %v378 = vunpack.c.l.b16 %v74
  %v379 = vunpack.c.h.b16 %v74
  %v380 = vunpack.c.l.b16 %v75
  %v381 = vunpack.c.h.b16 %v75
  %v382 = vunpack.c.l.b16 %v76
  %v383 = vunpack.c.h.b16 %v76
  %v384 = vunpack.c.l.b16 %v77
  %v385 = vunpack.c.h.b16 %v77
  %v386 = vunpack.c.l.b16 %v78
  %v387 = vunpack.c.h.b16 %v78
  %v388 = vunpack.c.l.b16 %v79
  %v389 = vunpack.c.h.b16 %v79
  %v390 = vunpack.c.l.b16 %v80
  %v391 = vunpack.c.h.b16 %v80
  %v392 = vunpack.c.l.b16 %v81
  %v393 = vunpack.c.h.b16 %v81
  %v394 = vunpack.c.l.b16 %v82
  %v395 = vunpack.c.h.b16 %v82
  %v396 = vunpack.c.l.b16 %v83
  %v397 = vunpack.c.h.b16 %v83
  %v398 = vunpack.c.l.b16 %v84
  %v399 = vunpack.c.h.b16 %v84
  %v400 = vunpack.c.l.b16 %v85
  %v401 = vunpack.c.h.b16 %v85
  %v402 = vunpack.c.l.b16 %v86
  %v403 = vunpack.c.h.b16 %v86
  %v404 = vunpack.c.l.b16 %v87
  %v405 = vunpack.c.h.b16 %v87
  %v406 = vunpack.c.l.b16 %v88
  %v407 = vunpack.c.h.b16 %v88
  %v408 = vunpack.c.l.b16 %v89
  %v409 = vunpack.c.h.b16 %v89
  %v410 = vunpack.c.l.b16 %v90
  %v411 = vunpack.c.h.b16 %v90
  %v412 = vunpack.c.l.b16 %v91
  %v413 = vunpack.c.h.b16 %v91
  %v414 = vunpack.c.l.b16 %v92
  %v415 = vunpack.c.h.b16 %v92
  %v416 = vunpack.c.l.b16 %v93
  %v417 = vunpack.c.h.b16 %v93
  %v418 = vunpack.c.l.b16 %v94
  %v419 = vunpack.c.h.b16 %v94
  %v420 = vunpack.c.l.b16 %v95
  %v421 = vunpack.c.h.b16 %v95
  %v422 = vunpack.c.l.b16 %v96
  %v423 = vunpack.c.h.b16 %v96
  %v424 = vunpack.c.l.b16 %v97
  %v425 = vunpack.c.h.b16 %v97
  %v426 = vunpack.c.l.b16 %v98
  %v427 = vunpack.c.h.b16 %v98
  %v428 = vunpack.c.l.b16 %v99
  %v429 = vunpack.c.h.b16 %v99
  %v430 = vunpack.c.l.b16 %v100
  %v431 = vunpack.c.h.b16 %v100
  %v432 = vunpack.c.l.b16 %v101
  %v433 = vunpack.c.h.b16 %v101
  %v434 = vunpack.c.l.b16 %v102
  %v435 = vunpack.c.h.b16 %v102
  %v436 = vunpack.c.l.b16 %v103
  %v437 = vunpack.c.h.b16 %v103
  %v438 = vunpack.c.l.b16 %v104
  %v439 = vunpack.c.h.b16 %v104
  %v440 = vunpack.c.l.b16 %v105
  %v441 = vunpack.c.h.b16 %v105
  %v442 = vunpack.c.l.b16 %v106
  %v443 = vunpack.c.h.b16 %v106
  %v444 = vunpack.c.l.b16 %v107
  %v445 = vunpack.c.h.b16 %v107
  %v446 = vunpack.c.l.b16 %v108
  %v447 = vunpack.c.h.b16 %v108
  %v448 = vunpack.c.l.b16 %v109
  %v449 = vunpack.c.h.b16 %v109
  %v450 = vunpack.c.l.b16 %v110
  %v451 = vunpack.c.h.b16 %v110
  %v452 = vunpack.c.l.b16 %v111
  %v453 = vunpack.c.h.b16 %v111
  %v454 = vunpack.c.l.b16 %v112
  %v455 = vunpack.c.h.b16 %v112
  %v456 = vunpack.c.l.b16 %v113
  %v457 = vunpack.c.h.b16 %v113
  %v458 = vunpack.c.l.b16 %v114
  %v459 = vunpack.c.h.b16 %v114
  %v460 = vunpack.c.l.b16 %v115
  %v461 = vunpack.c.h.b16 %v115
  %v462 = vunpack.c.l.b16 %v116
  %v463 = vunpack.c.h.b16 %v116
  %v464 = vunpack.c.l.b16 %v117
  %v465 = vunpack.c.h.b16 %v117
  %v466 = vpack.c.b16 %v342, %v338
  %v467 = vpack.c.b16 %v343, %v339
  %v468 = vpack.c.b16 %v344, %v340
  %v469 = vpack.c.b16 %v345, %v341
  %v470 = vpack.c.b16 %v350, %v346
  %v471 = vpack.c.b16 %v351, %v347
  %v472 = vpack.c.b16 %v352, %v348
  %v473 = vpack.c.b16 %v353, %v349
  %v474 = vpack.c.b16 %v358, %v354
  %v475 = vpack.c.b16 %v359, %v355
  %v476 = vpack.c.b16 %v360, %v356
  %v477 = vpack.c.b16 %v361, %v357
  %v478 = vpack.c.b16 %v366, %v362
  %v479 = vpack.c.b16 %v367, %v363
  %v480 = vpack.c.b16 %v368, %v364
  %v481 = vpack.c.b16 %v369, %v365
  %v482 = vpack.c.b16 %v374, %v370
  %v483 = vpack.c.b16 %v375, %v371
  %v484 = vpack.c.b16 %v376, %v372
  %v485 = vpack.c.b16 %v377, %v373
  %v486 = vpack.c.b16 %v382, %v378
  %v487 = vpack.c.b16 %v383, %v379
  %v488 = vpack.c.b16 %v384, %v380
  %v489 = vpack.c.b16 %v385, %v381
  %v490 = vpack.c.b16 %v390, %v386
  %v491 = vpack.c.b16 %v391, %v387
  %v492 = vpack.c.b16 %v392, %v388
  %v493 = vpack.c.b16 %v393, %v389
  %v494 = vpack.c.b16 %v398, %v394
  %v495 = vpack.c.b16 %v399, %v395
  %v496 = vpack.c.b16 %v400, %v396
  %v497 = vpack.c.b16 %v401, %v397
  %v498 = vpack.c.b16 %v406, %v402
  %v499 = vpack.c.b16 %v407, %v403
  %v500 = vpack.c.b16 %v408, %v404
  %v501 = vpack.c.b16 %v409, %v405
  %v502 = vpack.c.b16 %v414, %v410
  %v503 = vpack.c.b16 %v415, %v411
  %v504 = vpack.c.b16 %v416, %v412
  %v505 = vpack.c.b16 %v417, %v413
  %v506 = vpack.c.b16 %v422, %v418
  %v507 = vpack.c.b16 %v423, %v419
  %v508 = vpack.c.b16 %v424, %v420
  %v509 = vpack.c.b16 %v425, %v421
  %v510 = vpack.c.b16 %v430, %v426
  %v511 = vpack.c.b16 %v431, %v427
  %v512 = vpack.c.b16 %v432, %v428
  %v513 = vpack.c.b16 %v433, %v429
  %v514 = vpack.c.b16 %v438, %v434
  %v515 = vpack.c.b16 %v439, %v435
  %v516 = vpack.c.b16 %v440, %v436
  %v517 = vpack.c.b16 %v441, %v437
  %v518 = vpack.c.b16 %v446, %v442
  %v519 = vpack.c.b16 %v447, %v443
  %v520 = vpack.c.b16 %v448, %v444
  %v521 = vpack.c.b16 %v449, %v445
  %v522 = vpack.c.b16 %v454, %v450
  %v523 = vpack.c.b16 %v455, %v451
  %v524 = vpack.c.b16 %v456, %v452
  %v525 = vpack.c.b16 %v457, %v453
  %v526 = vpack.c.b16 %v462, %v458
  %v527 = vpack.c.b16 %v463, %v459
  %v528 = vpack.c.b16 %v464, %v460
  %v529 = vpack.c.b16 %v465, %v461
  %594 = vmatprep.subr.bf16.mxu0 %v467
  %595 = vmatpush1.bf16.msra.mxu0 %v466
  %596 = vmatprep.subr.bf16.mxu0 %v471
  %597 = vmatpush1.bf16.msra.mxu0 %v470
  %598 = vmatprep.subr.bf16.mxu0 %v475
  %599 = vmatpush1.bf16.msra.mxu0 %v474
  %600 = vmatprep.subr.bf16.mxu0 %v479
  %601 = vmatpush1.bf16.msra.mxu0 %v478
  %602 = vmatprep.subr.bf16.mxu0 %v483
  %603 = vmatpush1.bf16.msra.mxu0 %v482
  %604 = vmatprep.subr.bf16.mxu0 %v487
  %605 = vmatpush1.bf16.msra.mxu0 %v486
  %606 = vmatprep.subr.bf16.mxu0 %v491
  %607 = vmatpush1.bf16.msra.mxu0 %v490
  %608 = vmatprep.subr.bf16.mxu0 %v495
  %609 = vmatpush1.bf16.msra.mxu0 %v494
  %610 = vmatprep.subr.bf16.mxu0 %v499
  %611 = vmatpush1.bf16.msra.mxu0 %v498
  %612 = vmatprep.subr.bf16.mxu0 %v503
  %613 = vmatpush1.bf16.msra.mxu0 %v502
  %614 = vmatprep.subr.bf16.mxu0 %v507
  %615 = vmatpush1.bf16.msra.mxu0 %v506
  %616 = vmatprep.subr.bf16.mxu0 %v511
  %617 = vmatpush1.bf16.msra.mxu0 %v510
  %618 = vmatprep.subr.bf16.mxu0 %v515
  %619 = vmatpush1.bf16.msra.mxu0 %v514
  %620 = vmatprep.subr.bf16.mxu0 %v519
  %621 = vmatpush1.bf16.msra.mxu0 %v518
  %622 = vmatprep.subr.bf16.mxu0 %v523
  %623 = vmatpush1.bf16.msra.mxu0 %v522
  %624 = vmatprep.subr.bf16.mxu0 %v527
  %625 = vmatpush1.bf16.msra.mxu0 %v526
  %626 = vmatprep.mubr.bf16.mxu0 %v273
  %627 = vmatmul.mubr.bf16.gmra.mrb[0].mxu0 %v272
  %v628 = vpop.f32.mrb[0].mxu0
  %v629 = vadd.f32 0.0, %v628
  %v630 = vpop.f32.mrb[0].mxu0
  %v631 = vadd.f32 0.0, %v630
  %v632 = vpop.f32.mrb[0].mxu0
  %v633 = vpop.f32.mrb[0].mxu0
  %634 = vdwg.mxu0
  %635 = vmatprep.subr.bf16.mxu0 %v469
  %636 = vmatpush1.bf16.msra.mxu0 %v468
  %637 = vmatprep.subr.bf16.mxu0 %v473
  %638 = vmatpush1.bf16.msra.mxu0 %v472
  %639 = vmatprep.subr.bf16.mxu0 %v477
  %640 = vmatpush1.bf16.msra.mxu0 %v476
  %641 = vmatprep.subr.bf16.mxu0 %v481
  %642 = vmatpush1.bf16.msra.mxu0 %v480
  %643 = vmatprep.subr.bf16.mxu0 %v485
  %644 = vmatpush1.bf16.msra.mxu0 %v484
  %645 = vmatprep.subr.bf16.mxu0 %v489
  %646 = vmatpush1.bf16.msra.mxu0 %v488
  %647 = vmatprep.subr.bf16.mxu0 %v493
  %648 = vmatpush1.bf16.msra.mxu0 %v492
  %649 = vmatprep.subr.bf16.mxu0 %v497
  %650 = vmatpush1.bf16.msra.mxu0 %v496
  %651 = vmatprep.subr.bf16.mxu0 %v501
  %652 = vmatpush1.bf16.msra.mxu0 %v500
  %653 = vmatprep.subr.bf16.mxu0 %v505
  %654 = vmatpush1.bf16.msra.mxu0 %v504
  %655 = vmatprep.subr.bf16.mxu0 %v509
  %656 = vmatpush1.bf16.msra.mxu0 %v508
  %657 = vmatprep.subr.bf16.mxu0 %v513
  %658 = vmatpush1.bf16.msra.mxu0 %v512
  %659 = vmatprep.subr.bf16.mxu0 %v517
  %660 = vmatpush1.bf16.msra.mxu0 %v516
  %661 = vmatprep.subr.bf16.mxu0 %v521
  %662 = vmatpush1.bf16.msra.mxu0 %v520
  %663 = vmatprep.subr.bf16.mxu0 %v525
  %664 = vmatpush1.bf16.msra.mxu0 %v524
  %665 = vmatprep.subr.bf16.mxu0 %v529
  %666 = vmatpush1.bf16.msra.mxu0 %v528
  %667 = vmatprep.mubr.bf16.mxu0 %v273
  %668 = vmatmul.mubr.bf16.gmra.mrb[0].mxu0 %v272
  %v669 = vpop.f32.mrb[0].mxu0
  %v670 = vadd.f32 0.0, %v669
  %v671 = vpop.f32.mrb[0].mxu0
  %v672 = vadd.f32 0.0, %v671
  %v673 = vpop.f32.mrb[0].mxu0
  %v674 = vpop.f32.mrb[0].mxu0
  %675 = vdwg.mxu0
  %680 = vrot.lane.b32.xlu0 %v629, 127
  %v681 = vpop.permute.xlu0 %680
  %682 = vrot.lane.b32.xlu0 %v631, 127
  %v683 = vpop.permute.xlu0 %682
  %684 = vrot.lane.b32.xlu0 %v670, 127
  %v685 = vpop.permute.xlu0 %684
  %686 = vrot.lane.b32.xlu0 %v672, 127
  %v687 = vpop.permute.xlu0 %686
  %vm688 = vcmask 1039360
  %v689 = vsel %vm688, %v681, %v683
  %v690 = vsel %vm688, %v683, %v685
  %v691 = vsel %vm688, %v685, %v687
  %695 = vrot.lane.b32.xlu0 %v629, 126
  %v696 = vpop.permute.xlu0 %695
  %697 = vrot.lane.b32.xlu0 %v631, 126
  %v698 = vpop.permute.xlu0 %697
  %699 = vrot.lane.b32.xlu0 %v670, 126
  %v700 = vpop.permute.xlu0 %699
  %701 = vrot.lane.b32.xlu0 %v672, 126
  %v702 = vpop.permute.xlu0 %701
  %vm703 = vcmask 1031168
  %v704 = vsel %vm703, %v696, %v698
  %v705 = vsel %vm703, %v698, %v700
  %v706 = vsel %vm703, %v700, %v702
  %710 = vrot.lane.b32.xlu0 %v629, 104
  %v711 = vpop.permute.xlu0 %710
  %712 = vrot.lane.b32.xlu0 %v631, 104
  %v713 = vpop.permute.xlu0 %712
  %714 = vrot.lane.b32.xlu0 %v670, 104
  %v715 = vpop.permute.xlu0 %714
  %716 = vrot.lane.b32.xlu0 %v672, 104
  %v717 = vpop.permute.xlu0 %716
  %vm718 = vcmask 850944
  %v719 = vsel %vm718, %v711, %v713
  %v720 = vsel %vm718, %v713, %v715
  %v721 = vsel %vm718, %v715, %v717
  %725 = vrot.lane.b32.xlu0 %v629, 103
  %v726 = vpop.permute.xlu0 %725
  %727 = vrot.lane.b32.xlu0 %v631, 103
  %v728 = vpop.permute.xlu0 %727
  %729 = vrot.lane.b32.xlu0 %v670, 103
  %v730 = vpop.permute.xlu0 %729
  %731 = vrot.lane.b32.xlu0 %v672, 103
  %v732 = vpop.permute.xlu0 %731
  %vm733 = vcmask 842752
  %v734 = vsel %vm733, %v726, %v728
  %v735 = vsel %vm733, %v728, %v730
  %v736 = vsel %vm733, %v730, %v732
  %740 = vrot.lane.b32.xlu0 %v629, 102
  %v741 = vpop.permute.xlu0 %740
  %742 = vrot.lane.b32.xlu0 %v631, 102
  %v743 = vpop.permute.xlu0 %742
  %744 = vrot.lane.b32.xlu0 %v670, 102
  %v745 = vpop.permute.xlu0 %744
  %746 = vrot.lane.b32.xlu0 %v672, 102
  %v747 = vpop.permute.xlu0 %746
  %vm748 = vcmask 834560
  %v749 = vsel %vm748, %v741, %v743
  %v750 = vsel %vm748, %v743, %v745
  %v751 = vsel %vm748, %v745, %v747
  %755 = vrot.lane.b32.xlu0 %v629, 80
  %v756 = vpop.permute.xlu0 %755
  %757 = vrot.lane.b32.xlu0 %v631, 80
  %v758 = vpop.permute.xlu0 %757
  %759 = vrot.lane.b32.xlu0 %v670, 80
  %v760 = vpop.permute.xlu0 %759
  %761 = vrot.lane.b32.xlu0 %v672, 80
  %v762 = vpop.permute.xlu0 %761
  %vm763 = vcmask 654336
  %v764 = vsel %vm763, %v756, %v758
  %v765 = vsel %vm763, %v758, %v760
  %v766 = vsel %vm763, %v760, %v762
  %770 = vrot.lane.b32.xlu0 %v629, 79
  %v771 = vpop.permute.xlu0 %770
  %772 = vrot.lane.b32.xlu0 %v631, 79
  %v773 = vpop.permute.xlu0 %772
  %774 = vrot.lane.b32.xlu0 %v670, 79
  %v775 = vpop.permute.xlu0 %774
  %776 = vrot.lane.b32.xlu0 %v672, 79
  %v777 = vpop.permute.xlu0 %776
  %vm778 = vcmask 646144
  %v779 = vsel %vm778, %v771, %v773
  %v780 = vsel %vm778, %v773, %v775
  %v781 = vsel %vm778, %v775, %v777
  %785 = vrot.lane.b32.xlu0 %v629, 78
  %v786 = vpop.permute.xlu0 %785
  %787 = vrot.lane.b32.xlu0 %v631, 78
  %v788 = vpop.permute.xlu0 %787
  %789 = vrot.lane.b32.xlu0 %v670, 78
  %v790 = vpop.permute.xlu0 %789
  %791 = vrot.lane.b32.xlu0 %v672, 78
  %v792 = vpop.permute.xlu0 %791
  %vm793 = vcmask 637952
  %v794 = vsel %vm793, %v786, %v788
  %v795 = vsel %vm793, %v788, %v790
  %v796 = vsel %vm793, %v790, %v792
  %v800 = vpack.c.bf16 %v689, %v629
  %v801 = vpack.c.bf16 %v690, %v631
  %v802 = vpack.c.bf16 %v691, %v670
  %v803 = vpack.c.bf16 %v719, %v704
  %v804 = vpack.c.bf16 %v720, %v705
  %v805 = vpack.c.bf16 %v721, %v706
  %v806 = vpack.c.bf16 %v749, %v734
  %v807 = vpack.c.bf16 %v750, %v735
  %v808 = vpack.c.bf16 %v751, %v736
  %v809 = vpack.c.bf16 %v779, %v764
  %v810 = vpack.c.bf16 %v780, %v765
  %v811 = vpack.c.bf16 %v781, %v766
  %v812 = vpack.c.bf16 %v794, %v794
  %v813 = vpack.c.bf16 %v795, %v795
  %v814 = vpack.c.bf16 %v796, %v796
  %816 = vset.pattern.permute.xlu0 0
  %817 = vperm.xlu0 %816, %v266
  %v818 = vpop.permute.xlu0 %817
  %821 = vset.pattern.permute.xlu0 0
  %822 = vperm.xlu0 %821, %v267
  %v823 = vpop.permute.xlu0 %822
  %826 = vset.pattern.permute.xlu0 0
  %827 = vperm.xlu0 %826, %v268
  %v828 = vpop.permute.xlu0 %827
  %831 = vset.pattern.permute.xlu0 0
  %832 = vperm.xlu0 %831, %v269
  %v833 = vpop.permute.xlu0 %832
  %v839 = vunpack.c.l.b16 %v262
  %v840 = vunpack.c.l.b16 %v263
  %v841 = vunpack.c.l.b16 %v264
  %v842 = vunpack.c.l.b16 %v265
  %v843 = vpack.c.b16 %v840, %v839
  %v844 = vpack.c.b16 %v842, %v841
  %vm845 = vcmask 588800
  %v847 = vsel %vm845, %v843, 0
  %v850 = vsel %vm845, %v844, 0
  %vm852 = vcmask 1043456
  %v854 = vsel %vm852, %v812, 0
  %v857 = vsel %vm852, %v813, 0
  %v860 = vsel %vm852, %v814, 0
  %862 = vmatprep.subr.bf16.mxu0 %v801
  %863 = vmatpush1.bf16.msra.mxu0 %v800
  %864 = vmatprep.subr.bf16.mxu0 %v804
  %865 = vmatpush1.bf16.msra.mxu0 %v803
  %866 = vmatprep.subr.bf16.mxu0 %v807
  %867 = vmatpush1.bf16.msra.mxu0 %v806
  %868 = vmatprep.subr.bf16.mxu0 %v810
  %869 = vmatpush1.bf16.msra.mxu0 %v809
  %870 = vmatprep.subr.bf16.mxu0 %v857
  %871 = vmatpush1.bf16.msra.mxu0 %v854
  %872 = vmatprep.subr.bf16.mxu0 0
  %873 = vmatpush1.bf16.msra.mxu0 0
  %874 = vmatprep.subr.bf16.mxu0 0
  %875 = vmatpush1.bf16.msra.mxu0 0
  %876 = vmatprep.subr.bf16.mxu0 0
  %877 = vmatpush1.bf16.msra.mxu0 0
  %878 = vmatprep.subr.bf16.mxu0 0
  %879 = vmatpush1.bf16.msra.mxu0 0
  %880 = vmatprep.subr.bf16.mxu0 0
  %881 = vmatpush1.bf16.msra.mxu0 0
  %882 = vmatprep.subr.bf16.mxu0 0
  %883 = vmatpush1.bf16.msra.mxu0 0
  %884 = vmatprep.subr.bf16.mxu0 0
  %885 = vmatpush1.bf16.msra.mxu0 0
  %886 = vmatprep.subr.bf16.mxu0 0
  %887 = vmatpush1.bf16.msra.mxu0 0
  %888 = vmatprep.subr.bf16.mxu0 0
  %889 = vmatpush1.bf16.msra.mxu0 0
  %890 = vmatprep.subr.bf16.mxu0 0
  %891 = vmatpush1.bf16.msra.mxu0 0
  %892 = vmatprep.subr.bf16.mxu0 0
  %893 = vmatpush1.bf16.msra.mxu0 0
  %894 = vmatprep.mubr.bf16.mxu0 0
  %895 = vmatmul.mubr.bf16.gmra.mrb[0].mxu0 %v847
  %v896 = vpop.f32.mrb[0].mxu0
  %v897 = vadd.f32 %v818, %v896
  %v898 = vpop.f32.mrb[0].mxu0
  %v899 = vadd.f32 %v818, %v898
  %v900 = vpop.f32.mrb[0].mxu0
  %v901 = vadd.f32 %v823, %v900
  %v902 = vpop.f32.mrb[0].mxu0
  %v903 = vadd.f32 %v823, %v902
  %904 = vmatprep.mubr.bf16.mxu0 0
  %905 = vmatmul.mubr.bf16.gmra.mrb[0].mxu0 %v850
  %v906 = vpop.f32.mrb[0].mxu0
  %v907 = vadd.f32 %v828, %v906
  %v908 = vpop.f32.mrb[0].mxu0
  %v909 = vadd.f32 %v828, %v908
  %v910 = vpop.f32.mrb[0].mxu0
  %v911 = vadd.f32 %v833, %v910
  %v912 = vpop.f32.mrb[0].mxu0
  %v913 = vadd.f32 %v833, %v912
  %914 = vdwg.mxu0
  %915 = vmatprep.subr.bf16.mxu0 0
  %916 = vmatpush1.bf16.msra.mxu0 %v802
  %917 = vmatprep.subr.bf16.mxu0 0
  %918 = vmatpush1.bf16.msra.mxu0 %v805
  %919 = vmatprep.subr.bf16.mxu0 0
  %920 = vmatpush1.bf16.msra.mxu0 %v808
  %921 = vmatprep.subr.bf16.mxu0 0
  %922 = vmatpush1.bf16.msra.mxu0 %v811
  %923 = vmatprep.subr.bf16.mxu0 0
  %924 = vmatpush1.bf16.msra.mxu0 %v860
  %925 = vmatprep.subr.bf16.mxu0 0
  %926 = vmatpush1.bf16.msra.mxu0 0
  %927 = vmatprep.subr.bf16.mxu0 0
  %928 = vmatpush1.bf16.msra.mxu0 0
  %929 = vmatprep.subr.bf16.mxu0 0
  %930 = vmatpush1.bf16.msra.mxu0 0
  %931 = vmatprep.subr.bf16.mxu0 0
  %932 = vmatpush1.bf16.msra.mxu0 0
  %933 = vmatprep.subr.bf16.mxu0 0
  %934 = vmatpush1.bf16.msra.mxu0 0
  %935 = vmatprep.subr.bf16.mxu0 0
  %936 = vmatpush1.bf16.msra.mxu0 0
  %937 = vmatprep.subr.bf16.mxu0 0
  %938 = vmatpush1.bf16.msra.mxu0 0
  %939 = vmatprep.subr.bf16.mxu0 0
  %940 = vmatpush1.bf16.msra.mxu0 0
  %941 = vmatprep.subr.bf16.mxu0 0
  %942 = vmatpush1.bf16.msra.mxu0 0
  %943 = vmatprep.subr.bf16.mxu0 0
  %944 = vmatpush1.bf16.msra.mxu0 0
  %945 = vmatprep.subr.bf16.mxu0 0
  %946 = vmatpush1.bf16.msra.mxu0 0
  %947 = vmatprep.mubr.bf16.mxu0 0
  %948 = vmatmul.mubr.bf16.gmra.mrb[0].mxu0 %v847
  %v949 = vpop.f32.mrb[0].mxu0
  %v950 = vadd.f32 %v818, %v949
  %v951 = vpop.f32.mrb[0].mxu0
  %v952 = vpop.f32.mrb[0].mxu0
  %v953 = vadd.f32 %v823, %v952
  %v954 = vpop.f32.mrb[0].mxu0
  %955 = vmatprep.mubr.bf16.mxu0 0
  %956 = vmatmul.mubr.bf16.gmra.mrb[0].mxu0 %v850
  %v957 = vpop.f32.mrb[0].mxu0
  %v958 = vadd.f32 %v828, %v957
  %v959 = vpop.f32.mrb[0].mxu0
  %v960 = vpop.f32.mrb[0].mxu0
  %v961 = vadd.f32 %v833, %v960
  %v962 = vpop.f32.mrb[0].mxu0
  %963 = vdwg.mxu0
  %vm964 = vcmp.gt.f32.partialorder %v897, 0.0
  %vm965 = vcmp.gt.f32.partialorder %v899, 0.0
  %vm966 = vcmp.gt.f32.partialorder %v950, 0.0
  %vm967 = vcmp.gt.f32.partialorder %v901, 0.0
  %vm968 = vcmp.gt.f32.partialorder %v903, 0.0
  %vm969 = vcmp.gt.f32.partialorder %v953, 0.0
  %vm970 = vcmp.gt.f32.partialorder %v907, 0.0
  %vm971 = vcmp.gt.f32.partialorder %v909, 0.0
  %vm972 = vcmp.gt.f32.partialorder %v958, 0.0
  %vm973 = vcmp.gt.f32.partialorder %v911, 0.0
  %vm974 = vcmp.gt.f32.partialorder %v913, 0.0
  %vm975 = vcmp.gt.f32.partialorder %v961, 0.0
  %v976 = vmul.f32 %v897, 0.01
  %v977 = vmul.f32 %v899, 0.01
  %v978 = vmul.f32 %v950, 0.01
  %v979 = vmul.f32 %v901, 0.01
  %v980 = vmul.f32 %v903, 0.01
  %v981 = vmul.f32 %v953, 0.01
  %v982 = vmul.f32 %v907, 0.01
  %v983 = vmul.f32 %v909, 0.01
  %v984 = vmul.f32 %v958, 0.01
  %v985 = vmul.f32 %v911, 0.01
  %v986 = vmul.f32 %v913, 0.01
  %v987 = vmul.f32 %v961, 0.01
  %v988 = vsel %vm964, %v897, %v976
  %v989 = vsel %vm965, %v899, %v977
  %v990 = vsel %vm966, %v950, %v978
  %v991 = vsel %vm967, %v901, %v979
  %v992 = vsel %vm968, %v903, %v980
  %v993 = vsel %vm969, %v953, %v981
  %v994 = vsel %vm970, %v907, %v982
  %v995 = vsel %vm971, %v909, %v983
  %v996 = vsel %vm972, %v958, %v984
  %v997 = vsel %vm973, %v911, %v985
  %v998 = vsel %vm974, %v913, %v986
  %v999 = vsel %vm975, %v961, %v987
  %1000 = vst [vmem:[#allocation2] sm:$0xff] %v988
  %1001 = vst [vmem:[#allocation2 + $0x8] sm:$0xff] %v989
  %1002 = vst [vmem:[#allocation2 + $0x10] sm:$0xff] %v990
  %1003 = vst [vmem:[#allocation2 + $0x18] sm:$0xff] %v991
  %1004 = vst [vmem:[#allocation2 + $0x20] sm:$0xff] %v992
  %1005 = vst [vmem:[#allocation2 + $0x28] sm:$0xff] %v993
  %1006 = vst [vmem:[#allocation2 + $0x30] sm:$0xff] %v994
  %1007 = vst [vmem:[#allocation2 + $0x38] sm:$0xff] %v995
  %1008 = vst [vmem:[#allocation2 + $0x40] sm:$0xff] %v996
  %1009 = vst [vmem:[#allocation2 + $0x48] sm:$0xff] %v997
  %1010 = vst [vmem:[#allocation2 + $0x50] sm:$0xff] %v998
  %1011 = vst [vmem:[#allocation2 + $0x58] sm:$0xff] %v999
  %s1012 = scalar_lea.vmem %s0, 16
  %v1013 = vld [vmem:[%s1012] sm:$0xff]
  %v1014 = vld [vmem:[%s1012 + $0x8] sm:$0xff]
  %v1015 = vpack.c.bf16 %v1013, %v1013
  %v1016 = vpack.c.bf16 %v1014, %v1014
  %1017 = vmatprep.subr.bf16.mxu0 %v467
  %1018 = vmatpush1.bf16.msra.mxu0 %v466
  %1019 = vmatprep.subr.bf16.mxu0 %v471
  %1020 = vmatpush1.bf16.msra.mxu0 %v470
  %1021 = vmatprep.subr.bf16.mxu0 %v475
  %1022 = vmatpush1.bf16.msra.mxu0 %v474
  %1023 = vmatprep.subr.bf16.mxu0 %v479
  %1024 = vmatpush1.bf16.msra.mxu0 %v478
  %1025 = vmatprep.subr.bf16.mxu0 %v483
  %1026 = vmatpush1.bf16.msra.mxu0 %v482
  %1027 = vmatprep.subr.bf16.mxu0 %v487
  %1028 = vmatpush1.bf16.msra.mxu0 %v486
  %1029 = vmatprep.subr.bf16.mxu0 %v491
  %1030 = vmatpush1.bf16.msra.mxu0 %v490
  %1031 = vmatprep.subr.bf16.mxu0 %v495
  %1032 = vmatpush1.bf16.msra.mxu0 %v494
  %1033 = vmatprep.subr.bf16.mxu0 %v499
  %1034 = vmatpush1.bf16.msra.mxu0 %v498
  %1035 = vmatprep.subr.bf16.mxu0 %v503
  %1036 = vmatpush1.bf16.msra.mxu0 %v502
  %1037 = vmatprep.subr.bf16.mxu0 %v507
  %1038 = vmatpush1.bf16.msra.mxu0 %v506
  %1039 = vmatprep.subr.bf16.mxu0 %v511
  %1040 = vmatpush1.bf16.msra.mxu0 %v510
  %1041 = vmatprep.subr.bf16.mxu0 %v515
  %1042 = vmatpush1.bf16.msra.mxu0 %v514
  %1043 = vmatprep.subr.bf16.mxu0 %v519
  %1044 = vmatpush1.bf16.msra.mxu0 %v518
  %1045 = vmatprep.subr.bf16.mxu0 %v523
  %1046 = vmatpush1.bf16.msra.mxu0 %v522
  %1047 = vmatprep.subr.bf16.mxu0 %v527
  %1048 = vmatpush1.bf16.msra.mxu0 %v526
  %1049 = vmatprep.mubr.bf16.mxu0 %v1016
  %1050 = vmatmul.mubr.bf16.gmra.mrb[0].mxu0 %v1015
  %v1051 = vpop.f32.mrb[0].mxu0
  %v1052 = vadd.f32 0.0, %v1051
  %v1053 = vpop.f32.mrb[0].mxu0
  %v1054 = vadd.f32 0.0, %v1053
  %v1055 = vpop.f32.mrb[0].mxu0
  %v1056 = vpop.f32.mrb[0].mxu0
  %1057 = vdwg.mxu0
  %1058 = vmatprep.subr.bf16.mxu0 %v469
  %1059 = vmatpush1.bf16.msra.mxu0 %v468
  %1060 = vmatprep.subr.bf16.mxu0 %v473
  %1061 = vmatpush1.bf16.msra.mxu0 %v472
  %1062 = vmatprep.subr.bf16.mxu0 %v477
  %1063 = vmatpush1.bf16.msra.mxu0 %v476
  %1064 = vmatprep.subr.bf16.mxu0 %v481
  %1065 = vmatpush1.bf16.msra.mxu0 %v480
  %1066 = vmatprep.subr.bf16.mxu0 %v485
  %1067 = vmatpush1.bf16.msra.mxu0 %v484
  %1068 = vmatprep.subr.bf16.mxu0 %v489
  %1069 = vmatpush1.bf16.msra.mxu0 %v488
  %1070 = vmatprep.subr.bf16.mxu0 %v493
  %1071 = vmatpush1.bf16.msra.mxu0 %v492
  %1072 = vmatprep.subr.bf16.mxu0 %v497
  %1073 = vmatpush1.bf16.msra.mxu0 %v496
  %1074 = vmatprep.subr.bf16.mxu0 %v501
  %1075 = vmatpush1.bf16.msra.mxu0 %v500
  %1076 = vmatprep.subr.bf16.mxu0 %v505
  %1077 = vmatpush1.bf16.msra.mxu0 %v504
  %1078 = vmatprep.subr.bf16.mxu0 %v509
  %1079 = vmatpush1.bf16.msra.mxu0 %v508
  %1080 = vmatprep.subr.bf16.mxu0 %v513
  %1081 = vmatpush1.bf16.msra.mxu0 %v512
  %1082 = vmatprep.subr.bf16.mxu0 %v517
  %1083 = vmatpush1.bf16.msra.mxu0 %v516
  %1084 = vmatprep.subr.bf16.mxu0 %v521
  %1085 = vmatpush1.bf16.msra.mxu0 %v520
  %1086 = vmatprep.subr.bf16.mxu0 %v525
  %1087 = vmatpush1.bf16.msra.mxu0 %v524
  %1088 = vmatprep.subr.bf16.mxu0 %v529
  %1089 = vmatpush1.bf16.msra.mxu0 %v528
  %1090 = vmatprep.mubr.bf16.mxu0 %v1016
  %1091 = vmatmul.mubr.bf16.gmra.mrb[0].mxu0 %v1015
  %v1092 = vpop.f32.mrb[0].mxu0
  %v1093 = vadd.f32 0.0, %v1092
  %v1094 = vpop.f32.mrb[0].mxu0
  %v1095 = vadd.f32 0.0, %v1094
  %v1096 = vpop.f32.mrb[0].mxu0
  %v1097 = vpop.f32.mrb[0].mxu0
  %1098 = vdwg.mxu0
  %1103 = vrot.lane.b32.xlu0 %v1052, 127
  %v1104 = vpop.permute.xlu0 %1103
  %1105 = vrot.lane.b32.xlu0 %v1054, 127
  %v1106 = vpop.permute.xlu0 %1105
  %1107 = vrot.lane.b32.xlu0 %v1093, 127
  %v1108 = vpop.permute.xlu0 %1107
  %1109 = vrot.lane.b32.xlu0 %v1095, 127
  %v1110 = vpop.permute.xlu0 %1109
  %v1111 = vsel %vm688, %v1104, %v1106
  %v1112 = vsel %vm688, %v1106, %v1108
  %v1113 = vsel %vm688, %v1108, %v1110
  %1117 = vrot.lane.b32.xlu0 %v1052, 126
  %v1118 = vpop.permute.xlu0 %1117
  %1119 = vrot.lane.b32.xlu0 %v1054, 126
  %v1120 = vpop.permute.xlu0 %1119
  %1121 = vrot.lane.b32.xlu0 %v1093, 126
  %v1122 = vpop.permute.xlu0 %1121
  %1123 = vrot.lane.b32.xlu0 %v1095, 126
  %v1124 = vpop.permute.xlu0 %1123
  %v1125 = vsel %vm703, %v1118, %v1120
  %v1126 = vsel %vm703, %v1120, %v1122
  %v1127 = vsel %vm703, %v1122, %v1124
  %1131 = vrot.lane.b32.xlu0 %v1052, 104
  %v1132 = vpop.permute.xlu0 %1131
  %1133 = vrot.lane.b32.xlu0 %v1054, 104
  %v1134 = vpop.permute.xlu0 %1133
  %1135 = vrot.lane.b32.xlu0 %v1093, 104
  %v1136 = vpop.permute.xlu0 %1135
  %1137 = vrot.lane.b32.xlu0 %v1095, 104
  %v1138 = vpop.permute.xlu0 %1137
  %v1139 = vsel %vm718, %v1132, %v1134
  %v1140 = vsel %vm718, %v1134, %v1136
  %v1141 = vsel %vm718, %v1136, %v1138
  %1145 = vrot.lane.b32.xlu0 %v1052, 103
  %v1146 = vpop.permute.xlu0 %1145
  %1147 = vrot.lane.b32.xlu0 %v1054, 103
  %v1148 = vpop.permute.xlu0 %1147
  %1149 = vrot.lane.b32.xlu0 %v1093, 103
  %v1150 = vpop.permute.xlu0 %1149
  %1151 = vrot.lane.b32.xlu0 %v1095, 103
  %v1152 = vpop.permute.xlu0 %1151
  %v1153 = vsel %vm733, %v1146, %v1148
  %v1154 = vsel %vm733, %v1148, %v1150
  %v1155 = vsel %vm733, %v1150, %v1152
  %1159 = vrot.lane.b32.xlu0 %v1052, 102
  %v1160 = vpop.permute.xlu0 %1159
  %1161 = vrot.lane.b32.xlu0 %v1054, 102
  %v1162 = vpop.permute.xlu0 %1161
  %1163 = vrot.lane.b32.xlu0 %v1093, 102
  %v1164 = vpop.permute.xlu0 %1163
  %1165 = vrot.lane.b32.xlu0 %v1095, 102
  %v1166 = vpop.permute.xlu0 %1165
  %v1167 = vsel %vm748, %v1160, %v1162
  %v1168 = vsel %vm748, %v1162, %v1164
  %v1169 = vsel %vm748, %v1164, %v1166
  %1173 = vrot.lane.b32.xlu0 %v1052, 80
  %v1174 = vpop.permute.xlu0 %1173
  %1175 = vrot.lane.b32.xlu0 %v1054, 80
  %v1176 = vpop.permute.xlu0 %1175
  %1177 = vrot.lane.b32.xlu0 %v1093, 80
  %v1178 = vpop.permute.xlu0 %1177
  %1179 = vrot.lane.b32.xlu0 %v1095, 80
  %v1180 = vpop.permute.xlu0 %1179
  %v1181 = vsel %vm763, %v1174, %v1176
  %v1182 = vsel %vm763, %v1176, %v1178
  %v1183 = vsel %vm763, %v1178, %v1180
  %1187 = vrot.lane.b32.xlu0 %v1052, 79
  %v1188 = vpop.permute.xlu0 %1187
  %1189 = vrot.lane.b32.xlu0 %v1054, 79
  %v1190 = vpop.permute.xlu0 %1189
  %1191 = vrot.lane.b32.xlu0 %v1093, 79
  %v1192 = vpop.permute.xlu0 %1191
  %1193 = vrot.lane.b32.xlu0 %v1095, 79
  %v1194 = vpop.permute.xlu0 %1193
  %v1195 = vsel %vm778, %v1188, %v1190
  %v1196 = vsel %vm778, %v1190, %v1192
  %v1197 = vsel %vm778, %v1192, %v1194
  %1201 = vrot.lane.b32.xlu0 %v1052, 78
  %v1202 = vpop.permute.xlu0 %1201
  %1203 = vrot.lane.b32.xlu0 %v1054, 78
  %v1204 = vpop.permute.xlu0 %1203
  %1205 = vrot.lane.b32.xlu0 %v1093, 78
  %v1206 = vpop.permute.xlu0 %1205
  %1207 = vrot.lane.b32.xlu0 %v1095, 78
  %v1208 = vpop.permute.xlu0 %1207
  %v1209 = vsel %vm793, %v1202, %v1204
  %v1210 = vsel %vm793, %v1204, %v1206
  %v1211 = vsel %vm793, %v1206, %v1208
  %v1215 = vpack.c.bf16 %v1111, %v1052
  %v1216 = vpack.c.bf16 %v1112, %v1054
  %v1217 = vpack.c.bf16 %v1113, %v1093
  %v1218 = vpack.c.bf16 %v1139, %v1125
  %v1219 = vpack.c.bf16 %v1140, %v1126
  %v1220 = vpack.c.bf16 %v1141, %v1127
  %v1221 = vpack.c.bf16 %v1167, %v1153
  %v1222 = vpack.c.bf16 %v1168, %v1154
  %v1223 = vpack.c.bf16 %v1169, %v1155
  %v1224 = vpack.c.bf16 %v1195, %v1181
  %v1225 = vpack.c.bf16 %v1196, %v1182
  %v1226 = vpack.c.bf16 %v1197, %v1183
  %v1227 = vpack.c.bf16 %v1209, %v1209
  %v1228 = vpack.c.bf16 %v1210, %v1210
  %v1229 = vpack.c.bf16 %v1211, %v1211
  %v1231 = vsel %vm852, %v1227, 0
  %v1234 = vsel %vm852, %v1228, 0
  %v1237 = vsel %vm852, %v1229, 0
  %1239 = vmatprep.subr.bf16.mxu0 %v1216
  %1240 = vmatpush1.bf16.msra.mxu0 %v1215
  %1241 = vmatprep.subr.bf16.mxu0 %v1219
  %1242 = vmatpush1.bf16.msra.mxu0 %v1218
  %1243 = vmatprep.subr.bf16.mxu0 %v1222
  %1244 = vmatpush1.bf16.msra.mxu0 %v1221
  %1245 = vmatprep.subr.bf16.mxu0 %v1225
  %1246 = vmatpush1.bf16.msra.mxu0 %v1224
  %1247 = vmatprep.subr.bf16.mxu0 %v1234
  %1248 = vmatpush1.bf16.msra.mxu0 %v1231
  %1249 = vmatprep.subr.bf16.mxu0 0
  %1250 = vmatpush1.bf16.msra.mxu0 0
  %1251 = vmatprep.subr.bf16.mxu0 0
  %1252 = vmatpush1.bf16.msra.mxu0 0
  %1253 = vmatprep.subr.bf16.mxu0 0
  %1254 = vmatpush1.bf16.msra.mxu0 0
  %1255 = vmatprep.subr.bf16.mxu0 0
  %1256 = vmatpush1.bf16.msra.mxu0 0
  %1257 = vmatprep.subr.bf16.mxu0 0
  %1258 = vmatpush1.bf16.msra.mxu0 0
  %1259 = vmatprep.subr.bf16.mxu0 0
  %1260 = vmatpush1.bf16.msra.mxu0 0
  %1261 = vmatprep.subr.bf16.mxu0 0
  %1262 = vmatpush1.bf16.msra.mxu0 0
  %1263 = vmatprep.subr.bf16.mxu0 0
  %1264 = vmatpush1.bf16.msra.mxu0 0
  %1265 = vmatprep.subr.bf16.mxu0 0
  %1266 = vmatpush1.bf16.msra.mxu0 0
  %1267 = vmatprep.subr.bf16.mxu0 0
  %1268 = vmatpush1.bf16.msra.mxu0 0
  %1269 = vmatprep.subr.bf16.mxu0 0
  %1270 = vmatpush1.bf16.msra.mxu0 0
  %1271 = vmatprep.mubr.bf16.mxu0 0
  %1272 = vmatmul.mubr.bf16.gmra.mrb[0].mxu0 %v847
  %v1273 = vpop.f32.mrb[0].mxu0
  %v1274 = vadd.f32 %v818, %v1273
  %v1275 = vpop.f32.mrb[0].mxu0
  %v1276 = vadd.f32 %v818, %v1275
  %v1277 = vpop.f32.mrb[0].mxu0
  %v1278 = vadd.f32 %v823, %v1277
  %v1279 = vpop.f32.mrb[0].mxu0
  %v1280 = vadd.f32 %v823, %v1279
  %1281 = vmatprep.mubr.bf16.mxu0 0
  %1282 = vmatmul.mubr.bf16.gmra.mrb[0].mxu0 %v850
  %v1283 = vpop.f32.mrb[0].mxu0
  %v1284 = vadd.f32 %v828, %v1283
  %v1285 = vpop.f32.mrb[0].mxu0
  %v1286 = vadd.f32 %v828, %v1285
  %v1287 = vpop.f32.mrb[0].mxu0
  %v1288 = vadd.f32 %v833, %v1287
  %v1289 = vpop.f32.mrb[0].mxu0
  %v1290 = vadd.f32 %v833, %v1289
  %1291 = vdwg.mxu0
  %1292 = vmatprep.subr.bf16.mxu0 0
  %1293 = vmatpush1.bf16.msra.mxu0 %v1217
  %1294 = vmatprep.subr.bf16.mxu0 0
  %1295 = vmatpush1.bf16.msra.mxu0 %v1220
  %1296 = vmatprep.subr.bf16.mxu0 0
  %1297 = vmatpush1.bf16.msra.mxu0 %v1223
  %1298 = vmatprep.subr.bf16.mxu0 0
  %1299 = vmatpush1.bf16.msra.mxu0 %v1226
  %1300 = vmatprep.subr.bf16.mxu0 0
  %1301 = vmatpush1.bf16.msra.mxu0 %v1237
  %1302 = vmatprep.subr.bf16.mxu0 0
  %1303 = vmatpush1.bf16.msra.mxu0 0
  %1304 = vmatprep.subr.bf16.mxu0 0
  %1305 = vmatpush1.bf16.msra.mxu0 0
  %1306 = vmatprep.subr.bf16.mxu0 0
  %1307 = vmatpush1.bf16.msra.mxu0 0
  %1308 = vmatprep.subr.bf16.mxu0 0
  %1309 = vmatpush1.bf16.msra.mxu0 0
  %1310 = vmatprep.subr.bf16.mxu0 0
  %1311 = vmatpush1.bf16.msra.mxu0 0
  %1312 = vmatprep.subr.bf16.mxu0 0
  %1313 = vmatpush1.bf16.msra.mxu0 0
  %1314 = vmatprep.subr.bf16.mxu0 0
  %1315 = vmatpush1.bf16.msra.mxu0 0
  %1316 = vmatprep.subr.bf16.mxu0 0
  %1317 = vmatpush1.bf16.msra.mxu0 0
  %1318 = vmatprep.subr.bf16.mxu0 0
  %1319 = vmatpush1.bf16.msra.mxu0 0
  %1320 = vmatprep.subr.bf16.mxu0 0
  %1321 = vmatpush1.bf16.msra.mxu0 0
  %1322 = vmatprep.subr.bf16.mxu0 0
  %1323 = vmatpush1.bf16.msra.mxu0 0
  %1324 = vmatprep.mubr.bf16.mxu0 0
  %1325 = vmatmul.mubr.bf16.gmra.mrb[0].mxu0 %v847
  %v1326 = vpop.f32.mrb[0].mxu0
  %v1327 = vadd.f32 %v818, %v1326
  %v1328 = vpop.f32.mrb[0].mxu0
  %v1329 = vpop.f32.mrb[0].mxu0
  %v1330 = vadd.f32 %v823, %v1329
  %v1331 = vpop.f32.mrb[0].mxu0
  %1332 = vmatprep.mubr.bf16.mxu0 0
  %1333 = vmatmul.mubr.bf16.gmra.mrb[0].mxu0 %v850
  %v1334 = vpop.f32.mrb[0].mxu0
  %v1335 = vadd.f32 %v828, %v1334
  %v1336 = vpop.f32.mrb[0].mxu0
  %v1337 = vpop.f32.mrb[0].mxu0
  %v1338 = vadd.f32 %v833, %v1337
  %v1339 = vpop.f32.mrb[0].mxu0
  %1340 = vdwg.mxu0
  %vm1341 = vcmp.gt.f32.partialorder %v1274, 0.0
  %vm1342 = vcmp.gt.f32.partialorder %v1276, 0.0
  %vm1343 = vcmp.gt.f32.partialorder %v1327, 0.0
  %vm1344 = vcmp.gt.f32.partialorder %v1278, 0.0
  %vm1345 = vcmp.gt.f32.partialorder %v1280, 0.0
  %vm1346 = vcmp.gt.f32.partialorder %v1330, 0.0
  %vm1347 = vcmp.gt.f32.partialorder %v1284, 0.0
  %vm1348 = vcmp.gt.f32.partialorder %v1286, 0.0
  %vm1349 = vcmp.gt.f32.partialorder %v1335, 0.0
  %vm1350 = vcmp.gt.f32.partialorder %v1288, 0.0
  %vm1351 = vcmp.gt.f32.partialorder %v1290, 0.0
  %vm1352 = vcmp.gt.f32.partialorder %v1338, 0.0
  %v1353 = vmul.f32 %v1274, 0.01
  %v1354 = vmul.f32 %v1276, 0.01
  %v1355 = vmul.f32 %v1327, 0.01
  %v1356 = vmul.f32 %v1278, 0.01
  %v1357 = vmul.f32 %v1280, 0.01
  %v1358 = vmul.f32 %v1330, 0.01
  %v1359 = vmul.f32 %v1284, 0.01
  %v1360 = vmul.f32 %v1286, 0.01
  %v1361 = vmul.f32 %v1335, 0.01
  %v1362 = vmul.f32 %v1288, 0.01
  %v1363 = vmul.f32 %v1290, 0.01
  %v1364 = vmul.f32 %v1338, 0.01
  %v1365 = vsel %vm1341, %v1274, %v1353
  %v1366 = vsel %vm1342, %v1276, %v1354
  %v1367 = vsel %vm1343, %v1327, %v1355
  %v1368 = vsel %vm1344, %v1278, %v1356
  %v1369 = vsel %vm1345, %v1280, %v1357
  %v1370 = vsel %vm1346, %v1330, %v1358
  %v1371 = vsel %vm1347, %v1284, %v1359
  %v1372 = vsel %vm1348, %v1286, %v1360
  %v1373 = vsel %vm1349, %v1335, %v1361
  %v1374 = vsel %vm1350, %v1288, %v1362
  %v1375 = vsel %vm1351, %v1290, %v1363
  %v1376 = vsel %vm1352, %v1338, %v1364
  %1377 = vst [vmem:[#allocation2 + $0x60] sm:$0xff] %v1365
  %1378 = vst [vmem:[#allocation2 + $0x68] sm:$0xff] %v1366
  %1379 = vst [vmem:[#allocation2 + $0x70] sm:$0xff] %v1367
  %1380 = vst [vmem:[#allocation2 + $0x78] sm:$0xff] %v1368
  %1381 = vst [vmem:[#allocation2 + $0x80] sm:$0xff] %v1369
  %1382 = vst [vmem:[#allocation2 + $0x88] sm:$0xff] %v1370
  %1383 = vst [vmem:[#allocation2 + $0x90] sm:$0xff] %v1371
  %1384 = vst [vmem:[#allocation2 + $0x98] sm:$0xff] %v1372
  %1385 = vst [vmem:[#allocation2 + $0xa0] sm:$0xff] %v1373
  %1386 = vst [vmem:[#allocation2 + $0xa8] sm:$0xff] %v1374
  %1387 = vst [vmem:[#allocation2 + $0xb0] sm:$0xff] %v1375
  %1388 = vst [vmem:[#allocation2 + $0xb8] sm:$0xff] %v1376
  %v1389 = vld [vmem:[#allocation2] sm:$0xff]
  %v1390 = vld [vmem:[#allocation2 + $0x8] sm:$0xff]
  %v1391 = vld [vmem:[#allocation2 + $0x10] sm:$0xff]
  %v1392 = vld [vmem:[#allocation2 + $0x18] sm:$0xff]
  %v1393 = vld [vmem:[#allocation2 + $0x20] sm:$0xff]
  %v1394 = vld [vmem:[#allocation2 + $0x28] sm:$0xff]
  %v1395 = vld [vmem:[#allocation2 + $0x30] sm:$0xff]
  %v1396 = vld [vmem:[#allocation2 + $0x38] sm:$0xff]
  %v1397 = vld [vmem:[#allocation2 + $0x40] sm:$0xff]
  %v1398 = vld [vmem:[#allocation2 + $0x48] sm:$0xff]
  %v1399 = vld [vmem:[#allocation2 + $0x50] sm:$0xff]
  %v1400 = vld [vmem:[#allocation2 + $0x58] sm:$0xff]
  %v1401 = vld [vmem:[#allocation2 + $0x60] sm:$0xff]
  %v1402 = vld [vmem:[#allocation2 + $0x68] sm:$0xff]
  %v1403 = vld [vmem:[#allocation2 + $0x70] sm:$0xff]
  %v1404 = vld [vmem:[#allocation2 + $0x78] sm:$0xff]
  %v1405 = vld [vmem:[#allocation2 + $0x80] sm:$0xff]
  %v1406 = vld [vmem:[#allocation2 + $0x88] sm:$0xff]
  %v1407 = vld [vmem:[#allocation2 + $0x90] sm:$0xff]
  %v1408 = vld [vmem:[#allocation2 + $0x98] sm:$0xff]
  %v1409 = vld [vmem:[#allocation2 + $0xa0] sm:$0xff]
  %v1410 = vld [vmem:[#allocation2 + $0xa8] sm:$0xff]
  %v1411 = vld [vmem:[#allocation2 + $0xb0] sm:$0xff]
  %v1412 = vld [vmem:[#allocation2 + $0xb8] sm:$0xff]
  %v1413 = vpack.c.bf16 %v1392, %v1389
  %v1414 = vpack.c.bf16 %v1393, %v1390
  %v1415 = vpack.c.bf16 %v1394, %v1391
  %v1416 = vpack.c.bf16 %v1398, %v1395
  %v1417 = vpack.c.bf16 %v1399, %v1396
  %v1418 = vpack.c.bf16 %v1400, %v1397
  %v1419 = vpack.c.bf16 %v1404, %v1401
  %v1420 = vpack.c.bf16 %v1405, %v1402
  %v1421 = vpack.c.bf16 %v1406, %v1403
  %v1422 = vpack.c.bf16 %v1410, %v1407
  %v1423 = vpack.c.bf16 %v1411, %v1408
  %v1424 = vpack.c.bf16 %v1412, %v1409
  %v1569 = vunpack.c.l.b16 %v118
  %v1570 = vunpack.c.h.b16 %v118
  %v1571 = vunpack.c.l.b16 %v119
  %v1572 = vunpack.c.h.b16 %v119
  %v1573 = vunpack.c.l.b16 %v120
  %v1574 = vunpack.c.l.b16 %v121
  %v1575 = vunpack.c.h.b16 %v121
  %v1576 = vunpack.c.l.b16 %v122
  %v1577 = vunpack.c.h.b16 %v122
  %v1578 = vunpack.c.l.b16 %v123
  %v1579 = vunpack.c.l.b16 %v124
  %v1580 = vunpack.c.h.b16 %v124
  %v1581 = vunpack.c.l.b16 %v125
  %v1582 = vunpack.c.h.b16 %v125
  %v1583 = vunpack.c.l.b16 %v126
  %v1584 = vunpack.c.l.b16 %v127
  %v1585 = vunpack.c.h.b16 %v127
  %v1586 = vunpack.c.l.b16 %v128
  %v1587 = vunpack.c.h.b16 %v128
  %v1588 = vunpack.c.l.b16 %v129
  %v1589 = vunpack.c.l.b16 %v130
  %v1590 = vunpack.c.h.b16 %v130
  %v1591 = vunpack.c.l.b16 %v131
  %v1592 = vunpack.c.h.b16 %v131
  %v1593 = vunpack.c.l.b16 %v132
  %v1594 = vunpack.c.l.b16 %v133
  %v1595 = vunpack.c.h.b16 %v133
  %v1596 = vunpack.c.l.b16 %v134
  %v1597 = vunpack.c.h.b16 %v134
  %v1598 = vunpack.c.l.b16 %v135
  %v1599 = vunpack.c.l.b16 %v136
  %v1600 = vunpack.c.h.b16 %v136
  %v1601 = vunpack.c.l.b16 %v137
  %v1602 = vunpack.c.h.b16 %v137
  %v1603 = vunpack.c.l.b16 %v138
  %v1604 = vunpack.c.l.b16 %v139
  %v1605 = vunpack.c.h.b16 %v139
  %v1606 = vunpack.c.l.b16 %v140
  %v1607 = vunpack.c.h.b16 %v140
  %v1608 = vunpack.c.l.b16 %v141
  %v1609 = vunpack.c.l.b16 %v142
  %v1610 = vunpack.c.h.b16 %v142
  %v1611 = vunpack.c.l.b16 %v143
  %v1612 = vunpack.c.h.b16 %v143
  %v1613 = vunpack.c.l.b16 %v144
  %v1614 = vunpack.c.l.b16 %v145
  %v1615 = vunpack.c.h.b16 %v145
  %v1616 = vunpack.c.l.b16 %v146
  %v1617 = vunpack.c.h.b16 %v146
  %v1618 = vunpack.c.l.b16 %v147
  %v1619 = vunpack.c.l.b16 %v148
  %v1620 = vunpack.c.h.b16 %v148
  %v1621 = vunpack.c.l.b16 %v149
  %v1622 = vunpack.c.h.b16 %v149
  %v1623 = vunpack.c.l.b16 %v150
  %v1624 = vunpack.c.l.b16 %v151
  %v1625 = vunpack.c.h.b16 %v151
  %v1626 = vunpack.c.l.b16 %v152
  %v1627 = vunpack.c.h.b16 %v152
  %v1628 = vunpack.c.l.b16 %v153
  %v1629 = vunpack.c.l.b16 %v154
  %v1630 = vunpack.c.h.b16 %v154
  %v1631 = vunpack.c.l.b16 %v155
  %v1632 = vunpack.c.h.b16 %v155
  %v1633 = vunpack.c.l.b16 %v156
  %v1634 = vunpack.c.l.b16 %v157
  %v1635 = vunpack.c.h.b16 %v157
  %v1636 = vunpack.c.l.b16 %v158
  %v1637 = vunpack.c.h.b16 %v158
  %v1638 = vunpack.c.l.b16 %v159
  %v1639 = vunpack.c.l.b16 %v160
  %v1640 = vunpack.c.h.b16 %v160
  %v1641 = vunpack.c.l.b16 %v161
  %v1642 = vunpack.c.h.b16 %v161
  %v1643 = vunpack.c.l.b16 %v162
  %v1644 = vunpack.c.l.b16 %v163
  %v1645 = vunpack.c.h.b16 %v163
  %v1646 = vunpack.c.l.b16 %v164
  %v1647 = vunpack.c.h.b16 %v164
  %v1648 = vunpack.c.l.b16 %v165
  %v1649 = vunpack.c.l.b16 %v166
  %v1650 = vunpack.c.h.b16 %v166
  %v1651 = vunpack.c.l.b16 %v167
  %v1652 = vunpack.c.h.b16 %v167
  %v1653 = vunpack.c.l.b16 %v168
  %v1654 = vunpack.c.l.b16 %v169
  %v1655 = vunpack.c.h.b16 %v169
  %v1656 = vunpack.c.l.b16 %v170
  %v1657 = vunpack.c.h.b16 %v170
  %v1658 = vunpack.c.l.b16 %v171
  %v1659 = vunpack.c.l.b16 %v172
  %v1660 = vunpack.c.h.b16 %v172
  %v1661 = vunpack.c.l.b16 %v173
  %v1662 = vunpack.c.h.b16 %v173
  %v1663 = vunpack.c.l.b16 %v174
  %v1664 = vunpack.c.l.b16 %v175
  %v1665 = vunpack.c.h.b16 %v175
  %v1666 = vunpack.c.l.b16 %v176
  %v1667 = vunpack.c.h.b16 %v176
  %v1668 = vunpack.c.l.b16 %v177
  %v1669 = vunpack.c.l.b16 %v178
  %v1670 = vunpack.c.h.b16 %v178
  %v1671 = vunpack.c.l.b16 %v179
  %v1672 = vunpack.c.h.b16 %v179
  %v1673 = vunpack.c.l.b16 %v180
  %v1674 = vunpack.c.l.b16 %v181
  %v1675 = vunpack.c.h.b16 %v181
  %v1676 = vunpack.c.l.b16 %v182
  %v1677 = vunpack.c.h.b16 %v182
  %v1678 = vunpack.c.l.b16 %v183
  %v1679 = vunpack.c.l.b16 %v184
  %v1680 = vunpack.c.h.b16 %v184
  %v1681 = vunpack.c.l.b16 %v185
  %v1682 = vunpack.c.h.b16 %v185
  %v1683 = vunpack.c.l.b16 %v186
  %v1684 = vunpack.c.l.b16 %v187
  %v1685 = vunpack.c.h.b16 %v187
  %v1686 = vunpack.c.l.b16 %v188
  %v1687 = vunpack.c.h.b16 %v188
  %v1688 = vunpack.c.l.b16 %v189
  %v1689 = vunpack.c.l.b16 %v190
  %v1690 = vunpack.c.h.b16 %v190
  %v1691 = vunpack.c.l.b16 %v191
  %v1692 = vunpack.c.h.b16 %v191
  %v1693 = vunpack.c.l.b16 %v192
  %v1694 = vunpack.c.l.b16 %v193
  %v1695 = vunpack.c.h.b16 %v193
  %v1696 = vunpack.c.l.b16 %v194
  %v1697 = vunpack.c.h.b16 %v194
  %v1698 = vunpack.c.l.b16 %v195
  %v1699 = vunpack.c.l.b16 %v196
  %v1700 = vunpack.c.h.b16 %v196
  %v1701 = vunpack.c.l.b16 %v197
  %v1702 = vunpack.c.h.b16 %v197
  %v1703 = vunpack.c.l.b16 %v198
  %v1704 = vunpack.c.l.b16 %v199
  %v1705 = vunpack.c.h.b16 %v199
  %v1706 = vunpack.c.l.b16 %v200
  %v1707 = vunpack.c.h.b16 %v200
  %v1708 = vunpack.c.l.b16 %v201
  %v1709 = vunpack.c.l.b16 %v202
  %v1710 = vunpack.c.h.b16 %v202
  %v1711 = vunpack.c.l.b16 %v203
  %v1712 = vunpack.c.h.b16 %v203
  %v1713 = vunpack.c.l.b16 %v204
  %v1714 = vunpack.c.l.b16 %v205
  %v1715 = vunpack.c.h.b16 %v205
  %v1716 = vunpack.c.l.b16 %v206
  %v1717 = vunpack.c.h.b16 %v206
  %v1718 = vunpack.c.l.b16 %v207
  %v1719 = vunpack.c.l.b16 %v208
  %v1720 = vunpack.c.h.b16 %v208
  %v1721 = vunpack.c.l.b16 %v209
  %v1722 = vunpack.c.h.b16 %v209
  %v1723 = vunpack.c.l.b16 %v210
  %v1724 = vunpack.c.l.b16 %v211
  %v1725 = vunpack.c.h.b16 %v211
  %v1726 = vunpack.c.l.b16 %v212
  %v1727 = vunpack.c.h.b16 %v212
  %v1728 = vunpack.c.l.b16 %v213
  %v1729 = vunpack.c.l.b16 %v214
  %v1730 = vunpack.c.h.b16 %v214
  %v1731 = vunpack.c.l.b16 %v215
  %v1732 = vunpack.c.h.b16 %v215
  %v1733 = vunpack.c.l.b16 %v216
  %v1734 = vunpack.c.l.b16 %v217
  %v1735 = vunpack.c.h.b16 %v217
  %v1736 = vunpack.c.l.b16 %v218
  %v1737 = vunpack.c.h.b16 %v218
  %v1738 = vunpack.c.l.b16 %v219
  %v1739 = vunpack.c.l.b16 %v220
  %v1740 = vunpack.c.h.b16 %v220
  %v1741 = vunpack.c.l.b16 %v221
  %v1742 = vunpack.c.h.b16 %v221
  %v1743 = vunpack.c.l.b16 %v222
  %v1744 = vunpack.c.l.b16 %v223
  %v1745 = vunpack.c.h.b16 %v223
  %v1746 = vunpack.c.l.b16 %v224
  %v1747 = vunpack.c.h.b16 %v224
  %v1748 = vunpack.c.l.b16 %v225
  %v1749 = vunpack.c.l.b16 %v226
  %v1750 = vunpack.c.h.b16 %v226
  %v1751 = vunpack.c.l.b16 %v227
  %v1752 = vunpack.c.h.b16 %v227
  %v1753 = vunpack.c.l.b16 %v228
  %v1754 = vunpack.c.l.b16 %v229
  %v1755 = vunpack.c.h.b16 %v229
  %v1756 = vunpack.c.l.b16 %v230
  %v1757 = vunpack.c.h.b16 %v230
  %v1758 = vunpack.c.l.b16 %v231
  %v1759 = vunpack.c.l.b16 %v232
  %v1760 = vunpack.c.h.b16 %v232
  %v1761 = vunpack.c.l.b16 %v233
  %v1762 = vunpack.c.h.b16 %v233
  %v1763 = vunpack.c.l.b16 %v234
  %v1764 = vunpack.c.l.b16 %v235
  %v1765 = vunpack.c.h.b16 %v235
  %v1766 = vunpack.c.l.b16 %v236
  %v1767 = vunpack.c.h.b16 %v236
  %v1768 = vunpack.c.l.b16 %v237
  %v1769 = vunpack.c.l.b16 %v238
  %v1770 = vunpack.c.h.b16 %v238
  %v1771 = vunpack.c.l.b16 %v239
  %v1772 = vunpack.c.h.b16 %v239
  %v1773 = vunpack.c.l.b16 %v240
  %v1774 = vunpack.c.l.b16 %v241
  %v1775 = vunpack.c.h.b16 %v241
  %v1776 = vunpack.c.l.b16 %v242
  %v1777 = vunpack.c.h.b16 %v242
  %v1778 = vunpack.c.l.b16 %v243
  %v1779 = vunpack.c.l.b16 %v244
  %v1780 = vunpack.c.h.b16 %v244
  %v1781 = vunpack.c.l.b16 %v245
  %v1782 = vunpack.c.h.b16 %v245
  %v1783 = vunpack.c.l.b16 %v246
  %v1784 = vunpack.c.l.b16 %v247
  %v1785 = vunpack.c.h.b16 %v247
  %v1786 = vunpack.c.l.b16 %v248
  %v1787 = vunpack.c.h.b16 %v248
  %v1788 = vunpack.c.l.b16 %v249
  %v1789 = vunpack.c.l.b16 %v250
  %v1790 = vunpack.c.h.b16 %v250
  %v1791 = vunpack.c.l.b16 %v251
  %v1792 = vunpack.c.h.b16 %v251
  %v1793 = vunpack.c.l.b16 %v252
  %v1794 = vunpack.c.l.b16 %v253
  %v1795 = vunpack.c.h.b16 %v253
  %v1796 = vunpack.c.l.b16 %v254
  %v1797 = vunpack.c.h.b16 %v254
  %v1798 = vunpack.c.l.b16 %v255
  %v1799 = vunpack.c.l.b16 %v256
  %v1800 = vunpack.c.h.b16 %v256
  %v1801 = vunpack.c.l.b16 %v257
  %v1802 = vunpack.c.h.b16 %v257
  %v1803 = vunpack.c.l.b16 %v258
  %v1804 = vunpack.c.l.b16 %v259
  %v1805 = vunpack.c.h.b16 %v259
  %v1806 = vunpack.c.l.b16 %v260
  %v1807 = vunpack.c.h.b16 %v260
  %v1808 = vunpack.c.l.b16 %v261
  %v1809 = vpack.c.b16 %v1574, %v1569
  %v1810 = vpack.c.b16 %v1575, %v1570
  %v1811 = vpack.c.b16 %v1576, %v1571
  %v1812 = vpack.c.b16 %v1577, %v1572
  %v1813 = vpack.c.b16 %v1578, %v1573
  %v1814 = vpack.c.b16 %v1584, %v1579
  %v1815 = vpack.c.b16 %v1585, %v1580
  %v1816 = vpack.c.b16 %v1586, %v1581
  %v1817 = vpack.c.b16 %v1587, %v1582
  %v1818 = vpack.c.b16 %v1588, %v1583
  %v1819 = vpack.c.b16 %v1594, %v1589
  %v1820 = vpack.c.b16 %v1595, %v1590
  %v1821 = vpack.c.b16 %v1596, %v1591
  %v1822 = vpack.c.b16 %v1597, %v1592
  %v1823 = vpack.c.b16 %v1598, %v1593
  %v1824 = vpack.c.b16 %v1604, %v1599
  %v1825 = vpack.c.b16 %v1605, %v1600
  %v1826 = vpack.c.b16 %v1606, %v1601
  %v1827 = vpack.c.b16 %v1607, %v1602
  %v1828 = vpack.c.b16 %v1608, %v1603
  %v1829 = vpack.c.b16 %v1614, %v1609
  %v1830 = vpack.c.b16 %v1615, %v1610
  %v1831 = vpack.c.b16 %v1616, %v1611
  %v1832 = vpack.c.b16 %v1617, %v1612
  %v1833 = vpack.c.b16 %v1618, %v1613
  %v1834 = vpack.c.b16 %v1624, %v1619
  %v1835 = vpack.c.b16 %v1625, %v1620
  %v1836 = vpack.c.b16 %v1626, %v1621
  %v1837 = vpack.c.b16 %v1627, %v1622
  %v1838 = vpack.c.b16 %v1628, %v1623
  %v1839 = vpack.c.b16 %v1634, %v1629
  %v1840 = vpack.c.b16 %v1635, %v1630
  %v1841 = vpack.c.b16 %v1636, %v1631
  %v1842 = vpack.c.b16 %v1637, %v1632
  %v1843 = vpack.c.b16 %v1638, %v1633
  %v1844 = vpack.c.b16 %v1644, %v1639
  %v1845 = vpack.c.b16 %v1645, %v1640
  %v1846 = vpack.c.b16 %v1646, %v1641
  %v1847 = vpack.c.b16 %v1647, %v1642
  %v1848 = vpack.c.b16 %v1648, %v1643
  %v1849 = vpack.c.b16 %v1654, %v1649
  %v1850 = vpack.c.b16 %v1655, %v1650
  %v1851 = vpack.c.b16 %v1656, %v1651
  %v1852 = vpack.c.b16 %v1657, %v1652
  %v1853 = vpack.c.b16 %v1658, %v1653
  %v1854 = vpack.c.b16 %v1664, %v1659
  %v1855 = vpack.c.b16 %v1665, %v1660
  %v1856 = vpack.c.b16 %v1666, %v1661
  %v1857 = vpack.c.b16 %v1667, %v1662
  %v1858 = vpack.c.b16 %v1668, %v1663
  %v1859 = vpack.c.b16 %v1674, %v1669
  %v1860 = vpack.c.b16 %v1675, %v1670
  %v1861 = vpack.c.b16 %v1676, %v1671
  %v1862 = vpack.c.b16 %v1677, %v1672
  %v1863 = vpack.c.b16 %v1678, %v1673
  %v1864 = vpack.c.b16 %v1684, %v1679
  %v1865 = vpack.c.b16 %v1685, %v1680
  %v1866 = vpack.c.b16 %v1686, %v1681
  %v1867 = vpack.c.b16 %v1687, %v1682
  %v1868 = vpack.c.b16 %v1688, %v1683
  %v1869 = vpack.c.b16 %v1694, %v1689
  %v1870 = vpack.c.b16 %v1695, %v1690
  %v1871 = vpack.c.b16 %v1696, %v1691
  %v1872 = vpack.c.b16 %v1697, %v1692
  %v1873 = vpack.c.b16 %v1698, %v1693
  %v1874 = vpack.c.b16 %v1704, %v1699
  %v1875 = vpack.c.b16 %v1705, %v1700
  %v1876 = vpack.c.b16 %v1706, %v1701
  %v1877 = vpack.c.b16 %v1707, %v1702
  %v1878 = vpack.c.b16 %v1708, %v1703
  %v1879 = vpack.c.b16 %v1714, %v1709
  %v1880 = vpack.c.b16 %v1715, %v1710
  %v1881 = vpack.c.b16 %v1716, %v1711
  %v1882 = vpack.c.b16 %v1717, %v1712
  %v1883 = vpack.c.b16 %v1718, %v1713
  %v1884 = vpack.c.b16 %v1724, %v1719
  %v1885 = vpack.c.b16 %v1725, %v1720
  %v1886 = vpack.c.b16 %v1726, %v1721
  %v1887 = vpack.c.b16 %v1727, %v1722
  %v1888 = vpack.c.b16 %v1728, %v1723
  %v1889 = vpack.c.b16 %v1734, %v1729
  %v1890 = vpack.c.b16 %v1735, %v1730
  %v1891 = vpack.c.b16 %v1736, %v1731
  %v1892 = vpack.c.b16 %v1737, %v1732
  %v1893 = vpack.c.b16 %v1738, %v1733
  %v1894 = vpack.c.b16 %v1744, %v1739
  %v1895 = vpack.c.b16 %v1745, %v1740
  %v1896 = vpack.c.b16 %v1746, %v1741
  %v1897 = vpack.c.b16 %v1747, %v1742
  %v1898 = vpack.c.b16 %v1748, %v1743
  %v1899 = vpack.c.b16 %v1754, %v1749
  %v1900 = vpack.c.b16 %v1755, %v1750
  %v1901 = vpack.c.b16 %v1756, %v1751
  %v1902 = vpack.c.b16 %v1757, %v1752
  %v1903 = vpack.c.b16 %v1758, %v1753
  %v1904 = vpack.c.b16 %v1764, %v1759
  %v1905 = vpack.c.b16 %v1765, %v1760
  %v1906 = vpack.c.b16 %v1766, %v1761
  %v1907 = vpack.c.b16 %v1767, %v1762
  %v1908 = vpack.c.b16 %v1768, %v1763
  %v1909 = vpack.c.b16 %v1774, %v1769
  %v1910 = vpack.c.b16 %v1775, %v1770
  %v1911 = vpack.c.b16 %v1776, %v1771
  %v1912 = vpack.c.b16 %v1777, %v1772
  %v1913 = vpack.c.b16 %v1778, %v1773
  %v1914 = vpack.c.b16 %v1784, %v1779
  %v1915 = vpack.c.b16 %v1785, %v1780
  %v1916 = vpack.c.b16 %v1786, %v1781
  %v1917 = vpack.c.b16 %v1787, %v1782
  %v1918 = vpack.c.b16 %v1788, %v1783
  %v1919 = vpack.c.b16 %v1794, %v1789
  %v1920 = vpack.c.b16 %v1795, %v1790
  %v1921 = vpack.c.b16 %v1796, %v1791
  %v1922 = vpack.c.b16 %v1797, %v1792
  %v1923 = vpack.c.b16 %v1798, %v1793
  %v1924 = vpack.c.b16 %v1804, %v1799
  %v1925 = vpack.c.b16 %v1805, %v1800
  %v1926 = vpack.c.b16 %v1806, %v1801
  %v1927 = vpack.c.b16 %v1807, %v1802
  %v1928 = vpack.c.b16 %v1808, %v1803
  %2049 = vmatprep.subr.bf16.mxu0 %v1810
  %2050 = vmatpush1.bf16.msra.mxu0 %v1809
  %2051 = vmatprep.subr.bf16.mxu0 %v1815
  %2052 = vmatpush1.bf16.msra.mxu0 %v1814
  %2053 = vmatprep.subr.bf16.mxu0 %v1820
  %2054 = vmatpush1.bf16.msra.mxu0 %v1819
  %2055 = vmatprep.subr.bf16.mxu0 %v1825
  %2056 = vmatpush1.bf16.msra.mxu0 %v1824
  %2057 = vmatprep.subr.bf16.mxu0 %v1830
  %2058 = vmatpush1.bf16.msra.mxu0 %v1829
  %2059 = vmatprep.subr.bf16.mxu0 %v1835
  %2060 = vmatpush1.bf16.msra.mxu0 %v1834
  %2061 = vmatprep.subr.bf16.mxu0 %v1840
  %2062 = vmatpush1.bf16.msra.mxu0 %v1839
  %2063 = vmatprep.subr.bf16.mxu0 %v1845
  %2064 = vmatpush1.bf16.msra.mxu0 %v1844
  %2065 = vmatprep.subr.bf16.mxu0 %v1850
  %2066 = vmatpush1.bf16.msra.mxu0 %v1849
  %2067 = vmatprep.subr.bf16.mxu0 %v1855
  %2068 = vmatpush1.bf16.msra.mxu0 %v1854
  %2069 = vmatprep.subr.bf16.mxu0 %v1860
  %2070 = vmatpush1.bf16.msra.mxu0 %v1859
  %2071 = vmatprep.subr.bf16.mxu0 %v1865
  %2072 = vmatpush1.bf16.msra.mxu0 %v1864
  %2073 = vmatprep.subr.bf16.mxu0 %v1870
  %2074 = vmatpush1.bf16.msra.mxu0 %v1869
  %2075 = vmatprep.subr.bf16.mxu0 %v1875
  %2076 = vmatpush1.bf16.msra.mxu0 %v1874
  %2077 = vmatprep.subr.bf16.mxu0 %v1880
  %2078 = vmatpush1.bf16.msra.mxu0 %v1879
  %2079 = vmatprep.subr.bf16.mxu0 %v1885
  %2080 = vmatpush1.bf16.msra.mxu0 %v1884
  %2081 = vmatprep.mubr.bf16.mxu0 %v1414
  %2082 = vmatmul.mubr.bf16.gmra.mrb[0].mxu0 %v1413
  %v2083 = vpop.f32.mrb[0].mxu0
  %v2084 = vadd.f32 0.0, %v2083
  %v2085 = vpop.f32.mrb[0].mxu0
  %v2086 = vadd.f32 0.0, %v2085
  %v2087 = vpop.f32.mrb[0].mxu0
  %v2088 = vadd.f32 0.0, %v2087
  %v2089 = vpop.f32.mrb[0].mxu0
  %v2090 = vadd.f32 0.0, %v2089
  %2091 = vmatprep.mubr.bf16.mxu0 %v1417
  %2092 = vmatmul.mubr.bf16.gmra.mrb[0].mxu0 %v1416
  %v2093 = vpop.f32.mrb[0].mxu0
  %v2094 = vadd.f32 0.0, %v2093
  %v2095 = vpop.f32.mrb[0].mxu0
  %v2096 = vadd.f32 0.0, %v2095
  %v2097 = vpop.f32.mrb[0].mxu0
  %v2098 = vadd.f32 0.0, %v2097
  %v2099 = vpop.f32.mrb[0].mxu0
  %v2100 = vadd.f32 0.0, %v2099
  %2101 = vmatprep.mubr.bf16.mxu0 %v1420
  %2102 = vmatmul.mubr.bf16.gmra.mrb[0].mxu0 %v1419
  %v2103 = vpop.f32.mrb[0].mxu0
  %v2104 = vadd.f32 0.0, %v2103
  %v2105 = vpop.f32.mrb[0].mxu0
  %v2106 = vadd.f32 0.0, %v2105
  %v2107 = vpop.f32.mrb[0].mxu0
  %v2108 = vadd.f32 0.0, %v2107
  %v2109 = vpop.f32.mrb[0].mxu0
  %v2110 = vadd.f32 0.0, %v2109
  %2111 = vmatprep.mubr.bf16.mxu0 %v1423
  %2112 = vmatmul.mubr.bf16.gmra.mrb[0].mxu0 %v1422
  %v2113 = vpop.f32.mrb[0].mxu0
  %v2114 = vadd.f32 0.0, %v2113
  %v2115 = vpop.f32.mrb[0].mxu0
  %v2116 = vadd.f32 0.0, %v2115
  %v2117 = vpop.f32.mrb[0].mxu0
  %v2118 = vadd.f32 0.0, %v2117
  %v2119 = vpop.f32.mrb[0].mxu0
  %v2120 = vadd.f32 0.0, %v2119
  %2121 = vdwg.mxu0
  %2122 = vmatprep.subr.bf16.mxu0 %v1890
  %2123 = vmatpush1.bf16.msra.mxu0 %v1889
  %2124 = vmatprep.subr.bf16.mxu0 %v1895
  %2125 = vmatpush1.bf16.msra.mxu0 %v1894
  %2126 = vmatprep.subr.bf16.mxu0 %v1900
  %2127 = vmatpush1.bf16.msra.mxu0 %v1899
  %2128 = vmatprep.subr.bf16.mxu0 %v1905
  %2129 = vmatpush1.bf16.msra.mxu0 %v1904
  %2130 = vmatprep.subr.bf16.mxu0 %v1910
  %2131 = vmatpush1.bf16.msra.mxu0 %v1909
  %2132 = vmatprep.subr.bf16.mxu0 %v1915
  %2133 = vmatpush1.bf16.msra.mxu0 %v1914
  %2134 = vmatprep.subr.bf16.mxu0 %v1920
  %2135 = vmatpush1.bf16.msra.mxu0 %v1919
  %2136 = vmatprep.subr.bf16.mxu0 %v1925
  %2137 = vmatpush1.bf16.msra.mxu0 %v1924
  %2138 = vmatprep.subr.bf16.mxu0 0
  %2139 = vmatpush1.bf16.msra.mxu0 0
  %2140 = vmatprep.subr.bf16.mxu0 0
  %2141 = vmatpush1.bf16.msra.mxu0 0
  %2142 = vmatprep.subr.bf16.mxu0 0
  %2143 = vmatpush1.bf16.msra.mxu0 0
  %2144 = vmatprep.subr.bf16.mxu0 0
  %2145 = vmatpush1.bf16.msra.mxu0 0
  %2146 = vmatprep.subr.bf16.mxu0 0
  %2147 = vmatpush1.bf16.msra.mxu0 0
  %2148 = vmatprep.subr.bf16.mxu0 0
  %2149 = vmatpush1.bf16.msra.mxu0 0
  %2150 = vmatprep.subr.bf16.mxu0 0
  %2151 = vmatpush1.bf16.msra.mxu0 0
  %2152 = vmatprep.subr.bf16.mxu0 0
  %2153 = vmatpush1.bf16.msra.mxu0 0
  %2154 = vmatprep.mubr.bf16.mxu0 0
  %2155 = vmatmul.mubr.bf16.gmra.mrb[0].mxu0 %v1415
  %v2156 = vpop.f32.mrb[0].mxu0
  %v2157 = vadd.f32 %v2084, %v2156
  %v2158 = vpop.f32.mrb[0].mxu0
  %v2159 = vadd.f32 %v2086, %v2158
  %v2160 = vpop.f32.mrb[0].mxu0
  %v2161 = vadd.f32 %v2088, %v2160
  %v2162 = vpop.f32.mrb[0].mxu0
  %v2163 = vadd.f32 %v2090, %v2162
  %2164 = vmatprep.mubr.bf16.mxu0 0
  %2165 = vmatmul.mubr.bf16.gmra.mrb[0].mxu0 %v1418
  %v2166 = vpop.f32.mrb[0].mxu0
  %v2167 = vadd.f32 %v2094, %v2166
  %v2168 = vpop.f32.mrb[0].mxu0
  %v2169 = vadd.f32 %v2096, %v2168
  %v2170 = vpop.f32.mrb[0].mxu0
  %v2171 = vadd.f32 %v2098, %v2170
  %v2172 = vpop.f32.mrb[0].mxu0
  %v2173 = vadd.f32 %v2100, %v2172
  %2174 = vmatprep.mubr.bf16.mxu0 0
  %2175 = vmatmul.mubr.bf16.gmra.mrb[0].mxu0 %v1421
  %v2176 = vpop.f32.mrb[0].mxu0
  %v2177 = vadd.f32 %v2104, %v2176
  %v2178 = vpop.f32.mrb[0].mxu0
  %v2179 = vadd.f32 %v2106, %v2178
  %v2180 = vpop.f32.mrb[0].mxu0
  %v2181 = vadd.f32 %v2108, %v2180
  %v2182 = vpop.f32.mrb[0].mxu0
  %v2183 = vadd.f32 %v2110, %v2182
  %2184 = vmatprep.mubr.bf16.mxu0 0
  %2185 = vmatmul.mubr.bf16.gmra.mrb[0].mxu0 %v1424
  %v2186 = vpop.f32.mrb[0].mxu0
  %v2187 = vadd.f32 %v2114, %v2186
  %v2188 = vpop.f32.mrb[0].mxu0
  %v2189 = vadd.f32 %v2116, %v2188
  %v2190 = vpop.f32.mrb[0].mxu0
  %v2191 = vadd.f32 %v2118, %v2190
  %v2192 = vpop.f32.mrb[0].mxu0
  %v2193 = vadd.f32 %v2120, %v2192
  %2194 = vdwg.mxu0
  %2195 = vmatprep.subr.bf16.mxu0 %v1812
  %2196 = vmatpush1.bf16.msra.mxu0 %v1811
  %2197 = vmatprep.subr.bf16.mxu0 %v1817
  %2198 = vmatpush1.bf16.msra.mxu0 %v1816
  %2199 = vmatprep.subr.bf16.mxu0 %v1822
  %2200 = vmatpush1.bf16.msra.mxu0 %v1821
  %2201 = vmatprep.subr.bf16.mxu0 %v1827
  %2202 = vmatpush1.bf16.msra.mxu0 %v1826
  %2203 = vmatprep.subr.bf16.mxu0 %v1832
  %2204 = vmatpush1.bf16.msra.mxu0 %v1831
  %2205 = vmatprep.subr.bf16.mxu0 %v1837
  %2206 = vmatpush1.bf16.msra.mxu0 %v1836
  %2207 = vmatprep.subr.bf16.mxu0 %v1842
  %2208 = vmatpush1.bf16.msra.mxu0 %v1841
  %2209 = vmatprep.subr.bf16.mxu0 %v1847
  %2210 = vmatpush1.bf16.msra.mxu0 %v1846
  %2211 = vmatprep.subr.bf16.mxu0 %v1852
  %2212 = vmatpush1.bf16.msra.mxu0 %v1851
  %2213 = vmatprep.subr.bf16.mxu0 %v1857
  %2214 = vmatpush1.bf16.msra.mxu0 %v1856
  %2215 = vmatprep.subr.bf16.mxu0 %v1862
  %2216 = vmatpush1.bf16.msra.mxu0 %v1861
  %2217 = vmatprep.subr.bf16.mxu0 %v1867
  %2218 = vmatpush1.bf16.msra.mxu0 %v1866
  %2219 = vmatprep.subr.bf16.mxu0 %v1872
  %2220 = vmatpush1.bf16.msra.mxu0 %v1871
  %2221 = vmatprep.subr.bf16.mxu0 %v1877
  %2222 = vmatpush1.bf16.msra.mxu0 %v1876
  %2223 = vmatprep.subr.bf16.mxu0 %v1882
  %2224 = vmatpush1.bf16.msra.mxu0 %v1881
  %2225 = vmatprep.subr.bf16.mxu0 %v1887
  %2226 = vmatpush1.bf16.msra.mxu0 %v1886
  %2227 = vmatprep.mubr.bf16.mxu0 %v1414
  %2228 = vmatmul.mubr.bf16.gmra.mrb[0].mxu0 %v1413
  %v2229 = vpop.f32.mrb[0].mxu0
  %v2230 = vadd.f32 0.0, %v2229
  %v2231 = vpop.f32.mrb[0].mxu0
  %v2232 = vadd.f32 0.0, %v2231
  %v2233 = vpop.f32.mrb[0].mxu0
  %v2234 = vadd.f32 0.0, %v2233
  %v2235 = vpop.f32.mrb[0].mxu0
  %v2236 = vadd.f32 0.0, %v2235
  %2237 = vmatprep.mubr.bf16.mxu0 %v1417
  %2238 = vmatmul.mubr.bf16.gmra.mrb[0].mxu0 %v1416
  %v2239 = vpop.f32.mrb[0].mxu0
  %v2240 = vadd.f32 0.0, %v2239
  %v2241 = vpop.f32.mrb[0].mxu0
  %v2242 = vadd.f32 0.0, %v2241
  %v2243 = vpop.f32.mrb[0].mxu0
  %v2244 = vadd.f32 0.0, %v2243
  %v2245 = vpop.f32.mrb[0].mxu0
  %v2246 = vadd.f32 0.0, %v2245
  %2247 = vmatprep.mubr.bf16.mxu0 %v1420
  %2248 = vmatmul.mubr.bf16.gmra.mrb[0].mxu0 %v1419
  %v2249 = vpop.f32.mrb[0].mxu0
  %v2250 = vadd.f32 0.0, %v2249
  %v2251 = vpop.f32.mrb[0].mxu0
  %v2252 = vadd.f32 0.0, %v2251
  %v2253 = vpop.f32.mrb[0].mxu0
  %v2254 = vadd.f32 0.0, %v2253
  %v2255 = vpop.f32.mrb[0].mxu0
  %v2256 = vadd.f32 0.0, %v2255
  %2257 = vmatprep.mubr.bf16.mxu0 %v1423
  %2258 = vmatmul.mubr.bf16.gmra.mrb[0].mxu0 %v1422
  %v2259 = vpop.f32.mrb[0].mxu0
  %v2260 = vadd.f32 0.0, %v2259
  %v2261 = vpop.f32.mrb[0].mxu0
  %v2262 = vadd.f32 0.0, %v2261
  %v2263 = vpop.f32.mrb[0].mxu0
  %v2264 = vadd.f32 0.0, %v2263
  %v2265 = vpop.f32.mrb[0].mxu0
  %v2266 = vadd.f32 0.0, %v2265
  %2267 = vdwg.mxu0
  %2268 = vmatprep.subr.bf16.mxu0 %v1892
  %2269 = vmatpush1.bf16.msra.mxu0 %v1891
  %2270 = vmatprep.subr.bf16.mxu0 %v1897
  %2271 = vmatpush1.bf16.msra.mxu0 %v1896
  %2272 = vmatprep.subr.bf16.mxu0 %v1902
  %2273 = vmatpush1.bf16.msra.mxu0 %v1901
  %2274 = vmatprep.subr.bf16.mxu0 %v1907
  %2275 = vmatpush1.bf16.msra.mxu0 %v1906
  %2276 = vmatprep.subr.bf16.mxu0 %v1912
  %2277 = vmatpush1.bf16.msra.mxu0 %v1911
  %2278 = vmatprep.subr.bf16.mxu0 %v1917
  %2279 = vmatpush1.bf16.msra.mxu0 %v1916
  %2280 = vmatprep.subr.bf16.mxu0 %v1922
  %2281 = vmatpush1.bf16.msra.mxu0 %v1921
  %2282 = vmatprep.subr.bf16.mxu0 %v1927
  %2283 = vmatpush1.bf16.msra.mxu0 %v1926
  %2284 = vmatprep.subr.bf16.mxu0 0
  %2285 = vmatpush1.bf16.msra.mxu0 0
  %2286 = vmatprep.subr.bf16.mxu0 0
  %2287 = vmatpush1.bf16.msra.mxu0 0
  %2288 = vmatprep.subr.bf16.mxu0 0
  %2289 = vmatpush1.bf16.msra.mxu0 0
  %2290 = vmatprep.subr.bf16.mxu0 0
  %2291 = vmatpush1.bf16.msra.mxu0 0
  %2292 = vmatprep.subr.bf16.mxu0 0
  %2293 = vmatpush1.bf16.msra.mxu0 0
  %2294 = vmatprep.subr.bf16.mxu0 0
  %2295 = vmatpush1.bf16.msra.mxu0 0
  %2296 = vmatprep.subr.bf16.mxu0 0
  %2297 = vmatpush1.bf16.msra.mxu0 0
  %2298 = vmatprep.subr.bf16.mxu0 0
  %2299 = vmatpush1.bf16.msra.mxu0 0
  %2300 = vmatprep.mubr.bf16.mxu0 0
  %2301 = vmatmul.mubr.bf16.gmra.mrb[0].mxu0 %v1415
  %v2302 = vpop.f32.mrb[0].mxu0
  %v2303 = vadd.f32 %v2230, %v2302
  %v2304 = vpop.f32.mrb[0].mxu0
  %v2305 = vadd.f32 %v2232, %v2304
  %v2306 = vpop.f32.mrb[0].mxu0
  %v2307 = vadd.f32 %v2234, %v2306
  %v2308 = vpop.f32.mrb[0].mxu0
  %v2309 = vadd.f32 %v2236, %v2308
  %2310 = vmatprep.mubr.bf16.mxu0 0
  %2311 = vmatmul.mubr.bf16.gmra.mrb[0].mxu0 %v1418
  %v2312 = vpop.f32.mrb[0].mxu0
  %v2313 = vadd.f32 %v2240, %v2312
  %v2314 = vpop.f32.mrb[0].mxu0
  %v2315 = vadd.f32 %v2242, %v2314
  %v2316 = vpop.f32.mrb[0].mxu0
  %v2317 = vadd.f32 %v2244, %v2316
  %v2318 = vpop.f32.mrb[0].mxu0
  %v2319 = vadd.f32 %v2246, %v2318
  %2320 = vmatprep.mubr.bf16.mxu0 0
  %2321 = vmatmul.mubr.bf16.gmra.mrb[0].mxu0 %v1421
  %v2322 = vpop.f32.mrb[0].mxu0
  %v2323 = vadd.f32 %v2250, %v2322
  %v2324 = vpop.f32.mrb[0].mxu0
  %v2325 = vadd.f32 %v2252, %v2324
  %v2326 = vpop.f32.mrb[0].mxu0
  %v2327 = vadd.f32 %v2254, %v2326
  %v2328 = vpop.f32.mrb[0].mxu0
  %v2329 = vadd.f32 %v2256, %v2328
  %2330 = vmatprep.mubr.bf16.mxu0 0
  %2331 = vmatmul.mubr.bf16.gmra.mrb[0].mxu0 %v1424
  %v2332 = vpop.f32.mrb[0].mxu0
  %v2333 = vadd.f32 %v2260, %v2332
  %v2334 = vpop.f32.mrb[0].mxu0
  %v2335 = vadd.f32 %v2262, %v2334
  %v2336 = vpop.f32.mrb[0].mxu0
  %v2337 = vadd.f32 %v2264, %v2336
  %v2338 = vpop.f32.mrb[0].mxu0
  %v2339 = vadd.f32 %v2266, %v2338
  %2340 = vdwg.mxu0
  %2341 = vmatprep.subr.bf16.mxu0 0
  %2342 = vmatpush1.bf16.msra.mxu0 %v1813
  %2343 = vmatprep.subr.bf16.mxu0 0
  %2344 = vmatpush1.bf16.msra.mxu0 %v1818
  %2345 = vmatprep.subr.bf16.mxu0 0
  %2346 = vmatpush1.bf16.msra.mxu0 %v1823
  %2347 = vmatprep.subr.bf16.mxu0 0
  %2348 = vmatpush1.bf16.msra.mxu0 %v1828
  %2349 = vmatprep.subr.bf16.mxu0 0
  %2350 = vmatpush1.bf16.msra.mxu0 %v1833
  %2351 = vmatprep.subr.bf16.mxu0 0
  %2352 = vmatpush1.bf16.msra.mxu0 %v1838
  %2353 = vmatprep.subr.bf16.mxu0 0
  %2354 = vmatpush1.bf16.msra.mxu0 %v1843
  %2355 = vmatprep.subr.bf16.mxu0 0
  %2356 = vmatpush1.bf16.msra.mxu0 %v1848
  %2357 = vmatprep.subr.bf16.mxu0 0
  %2358 = vmatpush1.bf16.msra.mxu0 %v1853
  %2359 = vmatprep.subr.bf16.mxu0 0
  %2360 = vmatpush1.bf16.msra.mxu0 %v1858
  %2361 = vmatprep.subr.bf16.mxu0 0
  %2362 = vmatpush1.bf16.msra.mxu0 %v1863
  %2363 = vmatprep.subr.bf16.mxu0 0
  %2364 = vmatpush1.bf16.msra.mxu0 %v1868
  %2365 = vmatprep.subr.bf16.mxu0 0
  %2366 = vmatpush1.bf16.msra.mxu0 %v1873
  %2367 = vmatprep.subr.bf16.mxu0 0
  %2368 = vmatpush1.bf16.msra.mxu0 %v1878
  %2369 = vmatprep.subr.bf16.mxu0 0
  %2370 = vmatpush1.bf16.msra.mxu0 %v1883
  %2371 = vmatprep.subr.bf16.mxu0 0
  %2372 = vmatpush1.bf16.msra.mxu0 %v1888
  %2373 = vmatprep.mubr.bf16.mxu0 %v1414
  %2374 = vmatmul.mubr.bf16.gmra.mrb[0].mxu0 %v1413
  %v2375 = vpop.f32.mrb[0].mxu0
  %v2376 = vpop.f32.mrb[0].mxu0
  %v2377 = vpop.f32.mrb[0].mxu0
  %v2378 = vadd.f32 0.0, %v2377
  %v2379 = vpop.f32.mrb[0].mxu0
  %2380 = vmatprep.mubr.bf16.mxu0 %v1417
  %2381 = vmatmul.mubr.bf16.gmra.mrb[0].mxu0 %v1416
  %v2382 = vpop.f32.mrb[0].mxu0
  %v2383 = vadd.f32 0.0, %v2382
  %v2384 = vpop.f32.mrb[0].mxu0
  %v2385 = vpop.f32.mrb[0].mxu0
  %v2386 = vadd.f32 0.0, %v2385
  %v2387 = vpop.f32.mrb[0].mxu0
  %2388 = vmatprep.mubr.bf16.mxu0 %v1420
  %2389 = vmatmul.mubr.bf16.gmra.mrb[0].mxu0 %v1419
  %v2390 = vpop.f32.mrb[0].mxu0
  %v2391 = vpop.f32.mrb[0].mxu0
  %v2392 = vpop.f32.mrb[0].mxu0
  %v2393 = vadd.f32 0.0, %v2392
  %v2394 = vpop.f32.mrb[0].mxu0
  %2395 = vmatprep.mubr.bf16.mxu0 %v1423
  %2396 = vmatmul.mubr.bf16.gmra.mrb[0].mxu0 %v1422
  %v2397 = vpop.f32.mrb[0].mxu0
  %v2398 = vadd.f32 0.0, %v2397
  %v2399 = vpop.f32.mrb[0].mxu0
  %v2400 = vpop.f32.mrb[0].mxu0
  %v2401 = vadd.f32 0.0, %v2400
  %v2402 = vpop.f32.mrb[0].mxu0
  %2403 = vdwg.mxu0
  %2404 = vmatprep.subr.bf16.mxu0 0
  %2405 = vmatpush1.bf16.msra.mxu0 %v1893
  %2406 = vmatprep.subr.bf16.mxu0 0
  %2407 = vmatpush1.bf16.msra.mxu0 %v1898
  %2408 = vmatprep.subr.bf16.mxu0 0
  %2409 = vmatpush1.bf16.msra.mxu0 %v1903
  %2410 = vmatprep.subr.bf16.mxu0 0
  %2411 = vmatpush1.bf16.msra.mxu0 %v1908
  %2412 = vmatprep.subr.bf16.mxu0 0
  %2413 = vmatpush1.bf16.msra.mxu0 %v1913
  %2414 = vmatprep.subr.bf16.mxu0 0
  %2415 = vmatpush1.bf16.msra.mxu0 %v1918
  %2416 = vmatprep.subr.bf16.mxu0 0
  %2417 = vmatpush1.bf16.msra.mxu0 %v1923
  %2418 = vmatprep.subr.bf16.mxu0 0
  %2419 = vmatpush1.bf16.msra.mxu0 %v1928
  %2420 = vmatprep.subr.bf16.mxu0 0
  %2421 = vmatpush1.bf16.msra.mxu0 0
  %2422 = vmatprep.subr.bf16.mxu0 0
  %2423 = vmatpush1.bf16.msra.mxu0 0
  %2424 = vmatprep.subr.bf16.mxu0 0
  %2425 = vmatpush1.bf16.msra.mxu0 0
  %2426 = vmatprep.subr.bf16.mxu0 0
  %2427 = vmatpush1.bf16.msra.mxu0 0
  %2428 = vmatprep.subr.bf16.mxu0 0
  %2429 = vmatpush1.bf16.msra.mxu0 0
  %2430 = vmatprep.subr.bf16.mxu0 0
  %2431 = vmatpush1.bf16.msra.mxu0 0
  %2432 = vmatprep.subr.bf16.mxu0 0
  %2433 = vmatpush1.bf16.msra.mxu0 0
  %2434 = vmatprep.subr.bf16.mxu0 0
  %2435 = vmatpush1.bf16.msra.mxu0 0
  %2436 = vmatprep.mubr.bf16.mxu0 0
  %2437 = vmatmul.mubr.bf16.gmra.mrb[0].mxu0 %v1415
  %v2438 = vpop.f32.mrb[0].mxu0
  %v2439 = vpop.f32.mrb[0].mxu0
  %v2440 = vpop.f32.mrb[0].mxu0
  %v2441 = vadd.f32 %v2378, %v2440
  %v2442 = vpop.f32.mrb[0].mxu0
  %2443 = vmatprep.mubr.bf16.mxu0 0
  %2444 = vmatmul.mubr.bf16.gmra.mrb[0].mxu0 %v1418
  %v2445 = vpop.f32.mrb[0].mxu0
  %v2446 = vadd.f32 %v2383, %v2445
  %v2447 = vpop.f32.mrb[0].mxu0
  %v2448 = vpop.f32.mrb[0].mxu0
  %v2449 = vadd.f32 %v2386, %v2448
  %v2450 = vpop.f32.mrb[0].mxu0
  %2451 = vmatprep.mubr.bf16.mxu0 0
  %2452 = vmatmul.mubr.bf16.gmra.mrb[0].mxu0 %v1421
  %v2453 = vpop.f32.mrb[0].mxu0
  %v2454 = vpop.f32.mrb[0].mxu0
  %v2455 = vpop.f32.mrb[0].mxu0
  %v2456 = vadd.f32 %v2393, %v2455
  %v2457 = vpop.f32.mrb[0].mxu0
  %2458 = vmatprep.mubr.bf16.mxu0 0
  %2459 = vmatmul.mubr.bf16.gmra.mrb[0].mxu0 %v1424
  %v2460 = vpop.f32.mrb[0].mxu0
  %v2461 = vadd.f32 %v2398, %v2460
  %v2462 = vpop.f32.mrb[0].mxu0
  %v2463 = vpop.f32.mrb[0].mxu0
  %v2464 = vadd.f32 %v2401, %v2463
  %v2465 = vpop.f32.mrb[0].mxu0
  %2466 = vdwg.mxu0
  %v2467 = vld [vmem:[%s6] sm:$0xf]
  %v2468 = vld [vmem:[%s8] sm:$0xf]
  %v2469 = vld [vmem:[%s10] sm:$0xf]
  %v2470 = vld [vmem:[%s12] sm:$0xf]
  %v2471 = vld [vmem:[%s7] sm:$0xff]
  %v2472 = vld [vmem:[%s9] sm:$0xff]
  %v2473 = vld [vmem:[%s11] sm:$0xff]
  %v2474 = vld [vmem:[%s13] sm:$0xff]
  %v2475 = vld [vmem:[%s14] sm:$0xff]
  %v2476 = vld [vmem:[%s14 + $0x8] sm:$0xf]
  %v2477 = vld [vmem:[%s14 + $0xc] sm:$0xff]
  %v2478 = vld [vmem:[%s14 + $0x14] sm:$0xf]
  %v2479 = vld [vmem:[%s14 + $0x18] sm:$0xff]
  %v2480 = vld [vmem:[%s14 + $0x20] sm:$0xf]
  %v2481 = vld [vmem:[%s14 + $0x24] sm:$0xff]
  %v2482 = vld [vmem:[%s14 + $0x2c] sm:$0xf]
  %v2483 = vld [vmem:[%s15] sm:$0xff]
  %v2484 = vld [vmem:[%s15 + $0x8] sm:$0xff]
  %v2485 = vld [vmem:[%s15 + $0x10] sm:$0xff]
  %v2486 = vld [vmem:[%s15 + $0x18] sm:$0xff]
  %2491 = vrot.lane.b32.xlu0 %v2157, 127
  %v2492 = vpop.permute.xlu0 %2491
  %2493 = vrot.lane.b32.xlu0 %v2159, 127
  %v2494 = vpop.permute.xlu0 %2493
  %2495 = vrot.lane.b32.xlu0 %v2303, 127
  %v2496 = vpop.permute.xlu0 %2495
  %2497 = vrot.lane.b32.xlu0 %v2305, 127
  %v2498 = vpop.permute.xlu0 %2497
  %v2499 = vsel %vm688, %v2492, %v2494
  %v2500 = vsel %vm688, %v2494, %v2496
  %v2501 = vsel %vm688, %v2496, %v2498
  %2506 = vrot.lane.b32.xlu0 %v2157, 126
  %v2507 = vpop.permute.xlu0 %2506
  %2508 = vrot.lane.b32.xlu0 %v2159, 126
  %v2509 = vpop.permute.xlu0 %2508
  %2510 = vrot.lane.b32.xlu0 %v2303, 126
  %v2511 = vpop.permute.xlu0 %2510
  %2512 = vrot.lane.b32.xlu0 %v2305, 126
  %v2513 = vpop.permute.xlu0 %2512
  %v2514 = vsel %vm703, %v2507, %v2509
  %v2515 = vsel %vm703, %v2509, %v2511
  %v2516 = vsel %vm703, %v2511, %v2513
  %2521 = vrot.lane.b32.xlu0 %v2157, 104
  %v2522 = vpop.permute.xlu0 %2521
  %2523 = vrot.lane.b32.xlu0 %v2159, 104
  %v2524 = vpop.permute.xlu0 %2523
  %2525 = vrot.lane.b32.xlu0 %v2303, 104
  %v2526 = vpop.permute.xlu0 %2525
  %2527 = vrot.lane.b32.xlu0 %v2305, 104
  %v2528 = vpop.permute.xlu0 %2527
  %v2529 = vsel %vm718, %v2522, %v2524
  %v2530 = vsel %vm718, %v2524, %v2526
  %v2531 = vsel %vm718, %v2526, %v2528
  %2536 = vrot.lane.b32.xlu0 %v2157, 103
  %v2537 = vpop.permute.xlu0 %2536
  %2538 = vrot.lane.b32.xlu0 %v2159, 103
  %v2539 = vpop.permute.xlu0 %2538
  %2540 = vrot.lane.b32.xlu0 %v2303, 103
  %v2541 = vpop.permute.xlu0 %2540
  %2542 = vrot.lane.b32.xlu0 %v2305, 103
  %v2543 = vpop.permute.xlu0 %2542
  %v2544 = vsel %vm733, %v2537, %v2539
  %v2545 = vsel %vm733, %v2539, %v2541
  %v2546 = vsel %vm733, %v2541, %v2543
  %2551 = vrot.lane.b32.xlu0 %v2157, 102
  %v2552 = vpop.permute.xlu0 %2551
  %2553 = vrot.lane.b32.xlu0 %v2159, 102
  %v2554 = vpop.permute.xlu0 %2553
  %2555 = vrot.lane.b32.xlu0 %v2303, 102
  %v2556 = vpop.permute.xlu0 %2555
  %2557 = vrot.lane.b32.xlu0 %v2305, 102
  %v2558 = vpop.permute.xlu0 %2557
  %v2559 = vsel %vm748, %v2552, %v2554
  %v2560 = vsel %vm748, %v2554, %v2556
  %v2561 = vsel %vm748, %v2556, %v2558
  %2566 = vrot.lane.b32.xlu0 %v2157, 80
  %v2567 = vpop.permute.xlu0 %2566
  %2568 = vrot.lane.b32.xlu0 %v2159, 80
  %v2569 = vpop.permute.xlu0 %2568
  %2570 = vrot.lane.b32.xlu0 %v2303, 80
  %v2571 = vpop.permute.xlu0 %2570
  %2572 = vrot.lane.b32.xlu0 %v2305, 80
  %v2573 = vpop.permute.xlu0 %2572
  %v2574 = vsel %vm763, %v2567, %v2569
  %v2575 = vsel %vm763, %v2569, %v2571
  %v2576 = vsel %vm763, %v2571, %v2573
  %2581 = vrot.lane.b32.xlu0 %v2157, 79
  %v2582 = vpop.permute.xlu0 %2581
  %2583 = vrot.lane.b32.xlu0 %v2159, 79
  %v2584 = vpop.permute.xlu0 %2583
  %2585 = vrot.lane.b32.xlu0 %v2303, 79
  %v2586 = vpop.permute.xlu0 %2585
  %2587 = vrot.lane.b32.xlu0 %v2305, 79
  %v2588 = vpop.permute.xlu0 %2587
  %v2589 = vsel %vm778, %v2582, %v2584
  %v2590 = vsel %vm778, %v2584, %v2586
  %v2591 = vsel %vm778, %v2586, %v2588
  %2596 = vrot.lane.b32.xlu0 %v2157, 78
  %v2597 = vpop.permute.xlu0 %2596
  %2598 = vrot.lane.b32.xlu0 %v2159, 78
  %v2599 = vpop.permute.xlu0 %2598
  %2600 = vrot.lane.b32.xlu0 %v2303, 78
  %v2601 = vpop.permute.xlu0 %2600
  %2602 = vrot.lane.b32.xlu0 %v2305, 78
  %v2603 = vpop.permute.xlu0 %2602
  %v2604 = vsel %vm793, %v2597, %v2599
  %v2605 = vsel %vm793, %v2599, %v2601
  %v2606 = vsel %vm793, %v2601, %v2603
  %v2611 = vpack.c.bf16 %v2499, %v2157
  %v2612 = vpack.c.bf16 %v2500, %v2159
  %v2613 = vpack.c.bf16 %v2501, %v2303
  %v2614 = vpack.c.bf16 %v2498, %v2305
  %v2615 = vpack.c.bf16 %v2529, %v2514
  %v2616 = vpack.c.bf16 %v2530, %v2515
  %v2617 = vpack.c.bf16 %v2531, %v2516
  %v2618 = vpack.c.bf16 %v2528, %v2513
  %v2619 = vpack.c.bf16 %v2559, %v2544
  %v2620 = vpack.c.bf16 %v2560, %v2545
  %v2621 = vpack.c.bf16 %v2561, %v2546
  %v2622 = vpack.c.bf16 %v2558, %v2543
  %v2623 = vpack.c.bf16 %v2589, %v2574
  %v2624 = vpack.c.bf16 %v2590, %v2575
  %v2625 = vpack.c.bf16 %v2591, %v2576
  %v2626 = vpack.c.bf16 %v2588, %v2573
  %v2627 = vpack.c.bf16 %v2604, %v2604
  %v2628 = vpack.c.bf16 %v2605, %v2605
  %v2629 = vpack.c.bf16 %v2606, %v2606
  %v2630 = vpack.c.bf16 %v2603, %v2603
  %2632 = vset.pattern.permute.xlu0 0
  %2633 = vperm.xlu0 %2632, %v2471
  %v2634 = vpop.permute.xlu0 %2633
  %2656 = vrot.lane.b32.xlu0 %v2611, 53
  %v2657 = vpop.permute.xlu0 %2656
  %2658 = vrot.lane.b32.xlu0 %v2612, 53
  %v2659 = vpop.permute.xlu0 %2658
  %2660 = vrot.lane.b32.xlu0 %v2613, 53
  %v2661 = vpop.permute.xlu0 %2660
  %2662 = vrot.lane.b32.xlu0 %v2614, 53
  %v2663 = vpop.permute.xlu0 %2662
  %2664 = vrot.lane.b32.xlu0 %v2615, 53
  %v2665 = vpop.permute.xlu0 %2664
  %2666 = vrot.lane.b32.xlu0 %v2616, 53
  %v2667 = vpop.permute.xlu0 %2666
  %2668 = vrot.lane.b32.xlu0 %v2617, 53
  %v2669 = vpop.permute.xlu0 %2668
  %2670 = vrot.lane.b32.xlu0 %v2618, 53
  %v2671 = vpop.permute.xlu0 %2670
  %2672 = vrot.lane.b32.xlu0 %v2619, 53
  %v2673 = vpop.permute.xlu0 %2672
  %2674 = vrot.lane.b32.xlu0 %v2620, 53
  %v2675 = vpop.permute.xlu0 %2674
  %2676 = vrot.lane.b32.xlu0 %v2621, 53
  %v2677 = vpop.permute.xlu0 %2676
  %2678 = vrot.lane.b32.xlu0 %v2622, 53
  %v2679 = vpop.permute.xlu0 %2678
  %2680 = vrot.lane.b32.xlu0 %v2623, 53
  %v2681 = vpop.permute.xlu0 %2680
  %2682 = vrot.lane.b32.xlu0 %v2624, 53
  %v2683 = vpop.permute.xlu0 %2682
  %2684 = vrot.lane.b32.xlu0 %v2625, 53
  %v2685 = vpop.permute.xlu0 %2684
  %2686 = vrot.lane.b32.xlu0 %v2626, 53
  %v2687 = vpop.permute.xlu0 %2686
  %2688 = vrot.lane.b32.xlu0 %v2627, 53
  %v2689 = vpop.permute.xlu0 %2688
  %2690 = vrot.lane.b32.xlu0 %v2628, 53
  %v2691 = vpop.permute.xlu0 %2690
  %2692 = vrot.lane.b32.xlu0 %v2629, 53
  %v2693 = vpop.permute.xlu0 %2692
  %2694 = vrot.lane.b32.xlu0 %v2630, 53
  %v2695 = vpop.permute.xlu0 %2694
  %vm2696 = vcmask 433152
  %v2697 = vsel %vm2696, %v2657, %v2659
  %v2698 = vsel %vm2696, %v2659, %v2661
  %v2699 = vsel %vm2696, %v2661, %v2663
  %v2700 = vsel %vm2696, %v2665, %v2667
  %v2701 = vsel %vm2696, %v2667, %v2669
  %v2702 = vsel %vm2696, %v2669, %v2671
  %v2703 = vsel %vm2696, %v2673, %v2675
  %v2704 = vsel %vm2696, %v2675, %v2677
  %v2705 = vsel %vm2696, %v2677, %v2679
  %v2706 = vsel %vm2696, %v2681, %v2683
  %v2707 = vsel %vm2696, %v2683, %v2685
  %v2708 = vsel %vm2696, %v2685, %v2687
  %v2709 = vsel %vm2696, %v2689, %v2691
  %v2710 = vsel %vm2696, %v2691, %v2693
  %v2711 = vsel %vm2696, %v2693, %v2695
  %v2725 = vsel %vm845, %v2467, 0
  %v2728 = vsel %vm852, %v2709, 0
  %v2731 = vsel %vm852, %v2710, 0
  %v2734 = vsel %vm852, %v2711, 0
  %2736 = vmatprep.subr.bf16.mxu0 %v2698
  %2737 = vmatpush1.bf16.msra.mxu0 %v2697
  %2738 = vmatprep.subr.bf16.mxu0 %v2701
  %2739 = vmatpush1.bf16.msra.mxu0 %v2700
  %2740 = vmatprep.subr.bf16.mxu0 %v2704
  %2741 = vmatpush1.bf16.msra.mxu0 %v2703
  %2742 = vmatprep.subr.bf16.mxu0 %v2707
  %2743 = vmatpush1.bf16.msra.mxu0 %v2706
  %2744 = vmatprep.subr.bf16.mxu0 %v2731
  %2745 = vmatpush1.bf16.msra.mxu0 %v2728
  %2746 = vmatprep.subr.bf16.mxu0 0
  %2747 = vmatpush1.bf16.msra.mxu0 0
  %2748 = vmatprep.subr.bf16.mxu0 0
  %2749 = vmatpush1.bf16.msra.mxu0 0
  %2750 = vmatprep.subr.bf16.mxu0 0
  %2751 = vmatpush1.bf16.msra.mxu0 0
  %2752 = vmatprep.subr.bf16.mxu0 0
  %2753 = vmatpush1.bf16.msra.mxu0 0
  %2754 = vmatprep.subr.bf16.mxu0 0
  %2755 = vmatpush1.bf16.msra.mxu0 0
  %2756 = vmatprep.subr.bf16.mxu0 0
  %2757 = vmatpush1.bf16.msra.mxu0 0
  %2758 = vmatprep.subr.bf16.mxu0 0
  %2759 = vmatpush1.bf16.msra.mxu0 0
  %2760 = vmatprep.subr.bf16.mxu0 0
  %2761 = vmatpush1.bf16.msra.mxu0 0
  %2762 = vmatprep.subr.bf16.mxu0 0
  %2763 = vmatpush1.bf16.msra.mxu0 0
  %2764 = vmatprep.subr.bf16.mxu0 0
  %2765 = vmatpush1.bf16.msra.mxu0 0
  %2766 = vmatprep.subr.bf16.mxu0 0
  %2767 = vmatpush1.bf16.msra.mxu0 0
  %2768 = vmatprep.mubr.bf16.mxu0 0
  %2769 = vmatmul.mubr.bf16.gmra.mrb[0].mxu0 %v2725
  %v2770 = vpop.f32.mrb[0].mxu0
  %v2771 = vadd.f32 %v2634, %v2770
  %v2772 = vpop.f32.mrb[0].mxu0
  %v2773 = vadd.f32 %v2634, %v2772
  %v2774 = vpop.f32.mrb[0].mxu0
  %v2775 = vpop.f32.mrb[0].mxu0
  %2776 = vdwg.mxu0
  %2777 = vmatprep.subr.bf16.mxu0 0
  %2778 = vmatpush1.bf16.msra.mxu0 %v2699
  %2779 = vmatprep.subr.bf16.mxu0 0
  %2780 = vmatpush1.bf16.msra.mxu0 %v2702
  %2781 = vmatprep.subr.bf16.mxu0 0
  %2782 = vmatpush1.bf16.msra.mxu0 %v2705
  %2783 = vmatprep.subr.bf16.mxu0 0
  %2784 = vmatpush1.bf16.msra.mxu0 %v2708
  %2785 = vmatprep.subr.bf16.mxu0 0
  %2786 = vmatpush1.bf16.msra.mxu0 %v2734
  %2787 = vmatprep.subr.bf16.mxu0 0
  %2788 = vmatpush1.bf16.msra.mxu0 0
  %2789 = vmatprep.subr.bf16.mxu0 0
  %2790 = vmatpush1.bf16.msra.mxu0 0
  %2791 = vmatprep.subr.bf16.mxu0 0
  %2792 = vmatpush1.bf16.msra.mxu0 0
  %2793 = vmatprep.subr.bf16.mxu0 0
  %2794 = vmatpush1.bf16.msra.mxu0 0
  %2795 = vmatprep.subr.bf16.mxu0 0
  %2796 = vmatpush1.bf16.msra.mxu0 0
  %2797 = vmatprep.subr.bf16.mxu0 0
  %2798 = vmatpush1.bf16.msra.mxu0 0
  %2799 = vmatprep.subr.bf16.mxu0 0
  %2800 = vmatpush1.bf16.msra.mxu0 0
  %2801 = vmatprep.subr.bf16.mxu0 0
  %2802 = vmatpush1.bf16.msra.mxu0 0
  %2803 = vmatprep.subr.bf16.mxu0 0
  %2804 = vmatpush1.bf16.msra.mxu0 0
  %2805 = vmatprep.subr.bf16.mxu0 0
  %2806 = vmatpush1.bf16.msra.mxu0 0
  %2807 = vmatprep.subr.bf16.mxu0 0
  %2808 = vmatpush1.bf16.msra.mxu0 0
  %2809 = vmatprep.mubr.bf16.mxu0 0
  %2810 = vmatmul.mubr.bf16.gmra.mrb[0].mxu0 %v2725
  %v2811 = vpop.f32.mrb[0].mxu0
  %v2812 = vadd.f32 %v2634, %v2811
  %v2813 = vpop.f32.mrb[0].mxu0
  %v2814 = vpop.f32.mrb[0].mxu0
  %v2815 = vpop.f32.mrb[0].mxu0
  %2816 = vdwg.mxu0
  %vm2817 = vcmp.gt.f32.partialorder %v2771, 0.0
  %vm2818 = vcmp.gt.f32.partialorder %v2773, 0.0
  %vm2819 = vcmp.gt.f32.partialorder %v2812, 0.0
  %v2820 = vmul.f32 %v2771, 0.01
  %v2821 = vmul.f32 %v2773, 0.01
  %v2822 = vmul.f32 %v2812, 0.01
  %v2823 = vsel %vm2817, %v2771, %v2820
  %v2824 = vsel %vm2818, %v2773, %v2821
  %v2825 = vsel %vm2819, %v2812, %v2822
  %2830 = vrot.lane.b32.xlu0 %v2161, 126
  %v2831 = vpop.permute.xlu0 %2830
  %2832 = vrot.lane.b32.xlu0 %v2163, 126
  %v2833 = vpop.permute.xlu0 %2832
  %2834 = vrot.lane.b32.xlu0 %v2307, 126
  %v2835 = vpop.permute.xlu0 %2834
  %2836 = vrot.lane.b32.xlu0 %v2309, 126
  %v2837 = vpop.permute.xlu0 %2836
  %v2838 = vsel %vm703, %v2831, %v2833
  %v2839 = vsel %vm703, %v2833, %v2835
  %v2840 = vsel %vm703, %v2835, %v2837
  %2845 = vrot.lane.b32.xlu0 %v2161, 124
  %v2846 = vpop.permute.xlu0 %2845
  %2847 = vrot.lane.b32.xlu0 %v2163, 124
  %v2848 = vpop.permute.xlu0 %2847
  %2849 = vrot.lane.b32.xlu0 %v2307, 124
  %v2850 = vpop.permute.xlu0 %2849
  %2851 = vrot.lane.b32.xlu0 %v2309, 124
  %v2852 = vpop.permute.xlu0 %2851
  %vm2853 = vcmask 1014784
  %v2854 = vsel %vm2853, %v2846, %v2848
  %v2855 = vsel %vm2853, %v2848, %v2850
  %v2856 = vsel %vm2853, %v2850, %v2852
  %2861 = vrot.lane.b32.xlu0 %v2161, 80
  %v2862 = vpop.permute.xlu0 %2861
  %2863 = vrot.lane.b32.xlu0 %v2163, 80
  %v2864 = vpop.permute.xlu0 %2863
  %2865 = vrot.lane.b32.xlu0 %v2307, 80
  %v2866 = vpop.permute.xlu0 %2865
  %2867 = vrot.lane.b32.xlu0 %v2309, 80
  %v2868 = vpop.permute.xlu0 %2867
  %v2869 = vsel %vm763, %v2862, %v2864
  %v2870 = vsel %vm763, %v2864, %v2866
  %v2871 = vsel %vm763, %v2866, %v2868
  %2876 = vrot.lane.b32.xlu0 %v2161, 78
  %v2877 = vpop.permute.xlu0 %2876
  %2878 = vrot.lane.b32.xlu0 %v2163, 78
  %v2879 = vpop.permute.xlu0 %2878
  %2880 = vrot.lane.b32.xlu0 %v2307, 78
  %v2881 = vpop.permute.xlu0 %2880
  %2882 = vrot.lane.b32.xlu0 %v2309, 78
  %v2883 = vpop.permute.xlu0 %2882
  %v2884 = vsel %vm793, %v2877, %v2879
  %v2885 = vsel %vm793, %v2879, %v2881
  %v2886 = vsel %vm793, %v2881, %v2883
  %2891 = vrot.lane.b32.xlu0 %v2161, 76
  %v2892 = vpop.permute.xlu0 %2891
  %2893 = vrot.lane.b32.xlu0 %v2163, 76
  %v2894 = vpop.permute.xlu0 %2893
  %2895 = vrot.lane.b32.xlu0 %v2307, 76
  %v2896 = vpop.permute.xlu0 %2895
  %2897 = vrot.lane.b32.xlu0 %v2309, 76
  %v2898 = vpop.permute.xlu0 %2897
  %vm2899 = vcmask 621568
  %v2900 = vsel %vm2899, %v2892, %v2894
  %v2901 = vsel %vm2899, %v2894, %v2896
  %v2902 = vsel %vm2899, %v2896, %v2898
  %2908 = vrot.lane.b32.xlu0 %v2163, 32
  %v2909 = vpop.permute.xlu0 %2908
  %2910 = vrot.lane.b32.xlu0 %v2307, 32
  %v2911 = vpop.permute.xlu0 %2910
  %2912 = vrot.lane.b32.xlu0 %v2309, 32
  %v2913 = vpop.permute.xlu0 %2912
  %2914 = vrot.lane.b32.xlu0 %v2441, 32
  %v2915 = vpop.permute.xlu0 %2914
  %vm2916 = vcmask 261120
  %v2917 = vsel %vm2916, %v2909, %v2911
  %v2918 = vsel %vm2916, %v2911, %v2913
  %v2919 = vsel %vm2916, %v2913, %v2915
  %2924 = vrot.lane.b32.xlu0 %v2163, 30
  %v2925 = vpop.permute.xlu0 %2924
  %2926 = vrot.lane.b32.xlu0 %v2307, 30
  %v2927 = vpop.permute.xlu0 %2926
  %2928 = vrot.lane.b32.xlu0 %v2309, 30
  %v2929 = vpop.permute.xlu0 %2928
  %2930 = vrot.lane.b32.xlu0 %v2441, 30
  %v2931 = vpop.permute.xlu0 %2930
  %vm2932 = vcmask 244736
  %v2933 = vsel %vm2932, %v2925, %v2927
  %v2934 = vsel %vm2932, %v2927, %v2929
  %v2935 = vsel %vm2932, %v2929, %v2931
  %2940 = vrot.lane.b32.xlu0 %v2163, 28
  %v2941 = vpop.permute.xlu0 %2940
  %2942 = vrot.lane.b32.xlu0 %v2307, 28
  %v2943 = vpop.permute.xlu0 %2942
  %2944 = vrot.lane.b32.xlu0 %v2309, 28
  %v2945 = vpop.permute.xlu0 %2944
  %2946 = vrot.lane.b32.xlu0 %v2441, 28
  %v2947 = vpop.permute.xlu0 %2946
  %vm2948 = vcmask 228352
  %v2949 = vsel %vm2948, %v2941, %v2943
  %v2950 = vsel %vm2948, %v2943, %v2945
  %v2951 = vsel %vm2948, %v2945, %v2947
  %v2956 = vpack.c.bf16 %v2838, %v2161
  %v2957 = vpack.c.bf16 %v2839, %v2163
  %v2958 = vpack.c.bf16 %v2840, %v2307
  %v2959 = vpack.c.bf16 %v2837, %v2309
  %v2960 = vpack.c.bf16 %v2869, %v2854
  %v2961 = vpack.c.bf16 %v2870, %v2855
  %v2962 = vpack.c.bf16 %v2871, %v2856
  %v2963 = vpack.c.bf16 %v2868, %v2852
  %v2964 = vpack.c.bf16 %v2900, %v2884
  %v2965 = vpack.c.bf16 %v2901, %v2885
  %v2966 = vpack.c.bf16 %v2902, %v2886
  %v2967 = vpack.c.bf16 %v2898, %v2883
  %v2968 = vpack.c.bf16 %v2925, %v2909
  %v2969 = vpack.c.bf16 %v2933, %v2917
  %v2970 = vpack.c.bf16 %v2934, %v2918
  %v2971 = vpack.c.bf16 %v2935, %v2919
  %v2972 = vpack.c.bf16 %v2941, %v2941
  %v2973 = vpack.c.bf16 %v2949, %v2949
  %v2974 = vpack.c.bf16 %v2950, %v2950
  %v2975 = vpack.c.bf16 %v2951, %v2951
  %2977 = vset.pattern.permute.xlu0 0
  %2978 = vperm.xlu0 %2977, %v2472
  %v2979 = vpop.permute.xlu0 %2978
  %3001 = vrot.lane.b32.xlu0 %v2956, 78
  %v3002 = vpop.permute.xlu0 %3001
  %3003 = vrot.lane.b32.xlu0 %v2957, 78
  %v3004 = vpop.permute.xlu0 %3003
  %3005 = vrot.lane.b32.xlu0 %v2958, 78
  %v3006 = vpop.permute.xlu0 %3005
  %3007 = vrot.lane.b32.xlu0 %v2959, 78
  %v3008 = vpop.permute.xlu0 %3007
  %3009 = vrot.lane.b32.xlu0 %v2960, 78
  %v3010 = vpop.permute.xlu0 %3009
  %3011 = vrot.lane.b32.xlu0 %v2961, 78
  %v3012 = vpop.permute.xlu0 %3011
  %3013 = vrot.lane.b32.xlu0 %v2962, 78
  %v3014 = vpop.permute.xlu0 %3013
  %3015 = vrot.lane.b32.xlu0 %v2963, 78
  %v3016 = vpop.permute.xlu0 %3015
  %3017 = vrot.lane.b32.xlu0 %v2964, 78
  %v3018 = vpop.permute.xlu0 %3017
  %3019 = vrot.lane.b32.xlu0 %v2965, 78
  %v3020 = vpop.permute.xlu0 %3019
  %3021 = vrot.lane.b32.xlu0 %v2966, 78
  %v3022 = vpop.permute.xlu0 %3021
  %3023 = vrot.lane.b32.xlu0 %v2967, 78
  %v3024 = vpop.permute.xlu0 %3023
  %3025 = vrot.lane.b32.xlu0 %v2968, 78
  %v3026 = vpop.permute.xlu0 %3025
  %3027 = vrot.lane.b32.xlu0 %v2969, 78
  %v3028 = vpop.permute.xlu0 %3027
  %3029 = vrot.lane.b32.xlu0 %v2970, 78
  %v3030 = vpop.permute.xlu0 %3029
  %3031 = vrot.lane.b32.xlu0 %v2971, 78
  %v3032 = vpop.permute.xlu0 %3031
  %3033 = vrot.lane.b32.xlu0 %v2972, 78
  %v3034 = vpop.permute.xlu0 %3033
  %3035 = vrot.lane.b32.xlu0 %v2973, 78
  %v3036 = vpop.permute.xlu0 %3035
  %3037 = vrot.lane.b32.xlu0 %v2974, 78
  %v3038 = vpop.permute.xlu0 %3037
  %3039 = vrot.lane.b32.xlu0 %v2975, 78
  %v3040 = vpop.permute.xlu0 %3039
  %vm3041 = vcmask 637952
  %v3042 = vsel %vm3041, %v3002, %v3004
  %v3043 = vsel %vm3041, %v3004, %v3006
  %v3044 = vsel %vm3041, %v3006, %v3008
  %v3045 = vsel %vm3041, %v3010, %v3012
  %v3046 = vsel %vm3041, %v3012, %v3014
  %v3047 = vsel %vm3041, %v3014, %v3016
  %v3048 = vsel %vm3041, %v3018, %v3020
  %v3049 = vsel %vm3041, %v3020, %v3022
  %v3050 = vsel %vm3041, %v3022, %v3024
  %v3051 = vsel %vm3041, %v3026, %v3028
  %v3052 = vsel %vm3041, %v3028, %v3030
  %v3053 = vsel %vm3041, %v3030, %v3032
  %v3054 = vsel %vm3041, %v3034, %v3036
  %v3055 = vsel %vm3041, %v3036, %v3038
  %v3056 = vsel %vm3041, %v3038, %v3040
  %v3070 = vsel %vm845, %v2468, 0
  %v3073 = vsel %vm852, %v3054, 0
  %v3076 = vsel %vm852, %v3055, 0
  %v3079 = vsel %vm852, %v3056, 0
  %3081 = vmatprep.subr.bf16.mxu0 %v3043
  %3082 = vmatpush1.bf16.msra.mxu0 %v3042
  %3083 = vmatprep.subr.bf16.mxu0 %v3046
  %3084 = vmatpush1.bf16.msra.mxu0 %v3045
  %3085 = vmatprep.subr.bf16.mxu0 %v3049
  %3086 = vmatpush1.bf16.msra.mxu0 %v3048
  %3087 = vmatprep.subr.bf16.mxu0 %v3052
  %3088 = vmatpush1.bf16.msra.mxu0 %v3051
  %3089 = vmatprep.subr.bf16.mxu0 %v3076
  %3090 = vmatpush1.bf16.msra.mxu0 %v3073
  %3091 = vmatprep.subr.bf16.mxu0 0
  %3092 = vmatpush1.bf16.msra.mxu0 0
  %3093 = vmatprep.subr.bf16.mxu0 0
  %3094 = vmatpush1.bf16.msra.mxu0 0
  %3095 = vmatprep.subr.bf16.mxu0 0
  %3096 = vmatpush1.bf16.msra.mxu0 0
  %3097 = vmatprep.subr.bf16.mxu0 0
  %3098 = vmatpush1.bf16.msra.mxu0 0
  %3099 = vmatprep.subr.bf16.mxu0 0
  %3100 = vmatpush1.bf16.msra.mxu0 0
  %3101 = vmatprep.subr.bf16.mxu0 0
  %3102 = vmatpush1.bf16.msra.mxu0 0
  %3103 = vmatprep.subr.bf16.mxu0 0
  %3104 = vmatpush1.bf16.msra.mxu0 0
  %3105 = vmatprep.subr.bf16.mxu0 0
  %3106 = vmatpush1.bf16.msra.mxu0 0
  %3107 = vmatprep.subr.bf16.mxu0 0
  %3108 = vmatpush1.bf16.msra.mxu0 0
  %3109 = vmatprep.subr.bf16.mxu0 0
  %3110 = vmatpush1.bf16.msra.mxu0 0
  %3111 = vmatprep.subr.bf16.mxu0 0
  %3112 = vmatpush1.bf16.msra.mxu0 0
  %3113 = vmatprep.mubr.bf16.mxu0 0
  %3114 = vmatmul.mubr.bf16.gmra.mrb[0].mxu0 %v3070
  %v3115 = vpop.f32.mrb[0].mxu0
  %v3116 = vadd.f32 %v2979, %v3115
  %v3117 = vpop.f32.mrb[0].mxu0
  %v3118 = vadd.f32 %v2979, %v3117
  %v3119 = vpop.f32.mrb[0].mxu0
  %v3120 = vpop.f32.mrb[0].mxu0
  %3121 = vdwg.mxu0
  %3122 = vmatprep.subr.bf16.mxu0 0
  %3123 = vmatpush1.bf16.msra.mxu0 %v3044
  %3124 = vmatprep.subr.bf16.mxu0 0
  %3125 = vmatpush1.bf16.msra.mxu0 %v3047
  %3126 = vmatprep.subr.bf16.mxu0 0
  %3127 = vmatpush1.bf16.msra.mxu0 %v3050
  %3128 = vmatprep.subr.bf16.mxu0 0
  %3129 = vmatpush1.bf16.msra.mxu0 %v3053
  %3130 = vmatprep.subr.bf16.mxu0 0
  %3131 = vmatpush1.bf16.msra.mxu0 %v3079
  %3132 = vmatprep.subr.bf16.mxu0 0
  %3133 = vmatpush1.bf16.msra.mxu0 0
  %3134 = vmatprep.subr.bf16.mxu0 0
  %3135 = vmatpush1.bf16.msra.mxu0 0
  %3136 = vmatprep.subr.bf16.mxu0 0
  %3137 = vmatpush1.bf16.msra.mxu0 0
  %3138 = vmatprep.subr.bf16.mxu0 0
  %3139 = vmatpush1.bf16.msra.mxu0 0
  %3140 = vmatprep.subr.bf16.mxu0 0
  %3141 = vmatpush1.bf16.msra.mxu0 0
  %3142 = vmatprep.subr.bf16.mxu0 0
  %3143 = vmatpush1.bf16.msra.mxu0 0
  %3144 = vmatprep.subr.bf16.mxu0 0
  %3145 = vmatpush1.bf16.msra.mxu0 0
  %3146 = vmatprep.subr.bf16.mxu0 0
  %3147 = vmatpush1.bf16.msra.mxu0 0
  %3148 = vmatprep.subr.bf16.mxu0 0
  %3149 = vmatpush1.bf16.msra.mxu0 0
  %3150 = vmatprep.subr.bf16.mxu0 0
  %3151 = vmatpush1.bf16.msra.mxu0 0
  %3152 = vmatprep.subr.bf16.mxu0 0
  %3153 = vmatpush1.bf16.msra.mxu0 0
  %3154 = vmatprep.mubr.bf16.mxu0 0
  %3155 = vmatmul.mubr.bf16.gmra.mrb[0].mxu0 %v3070
  %v3156 = vpop.f32.mrb[0].mxu0
  %v3157 = vadd.f32 %v2979, %v3156
  %v3158 = vpop.f32.mrb[0].mxu0
  %v3159 = vpop.f32.mrb[0].mxu0
  %v3160 = vpop.f32.mrb[0].mxu0
  %3161 = vdwg.mxu0
  %vm3162 = vcmp.gt.f32.partialorder %v3116, 0.0
  %vm3163 = vcmp.gt.f32.partialorder %v3118, 0.0
  %vm3164 = vcmp.gt.f32.partialorder %v3157, 0.0
  %v3165 = vmul.f32 %v3116, 0.01
  %v3166 = vmul.f32 %v3118, 0.01
  %v3167 = vmul.f32 %v3157, 0.01
  %v3168 = vsel %vm3162, %v3116, %v3165
  %v3169 = vsel %vm3163, %v3118, %v3166
  %v3170 = vsel %vm3164, %v3157, %v3167
  %3175 = vrot.lane.b32.xlu0 %v2167, 125
  %v3176 = vpop.permute.xlu0 %3175
  %3177 = vrot.lane.b32.xlu0 %v2169, 125
  %v3178 = vpop.permute.xlu0 %3177
  %3179 = vrot.lane.b32.xlu0 %v2313, 125
  %v3180 = vpop.permute.xlu0 %3179
  %3181 = vrot.lane.b32.xlu0 %v2315, 125
  %v3182 = vpop.permute.xlu0 %3181
  %vm3183 = vcmask 1022976
  %v3184 = vsel %vm3183, %v3176, %v3178
  %v3185 = vsel %vm3183, %v3178, %v3180
  %v3186 = vsel %vm3183, %v3180, %v3182
  %3191 = vrot.lane.b32.xlu0 %v2167, 122
  %v3192 = vpop.permute.xlu0 %3191
  %3193 = vrot.lane.b32.xlu0 %v2169, 122
  %v3194 = vpop.permute.xlu0 %3193
  %3195 = vrot.lane.b32.xlu0 %v2313, 122
  %v3196 = vpop.permute.xlu0 %3195
  %3197 = vrot.lane.b32.xlu0 %v2315, 122
  %v3198 = vpop.permute.xlu0 %3197
  %vm3199 = vcmask 998400
  %v3200 = vsel %vm3199, %v3192, %v3194
  %v3201 = vsel %vm3199, %v3194, %v3196
  %v3202 = vsel %vm3199, %v3196, %v3198
  %3207 = vrot.lane.b32.xlu0 %v2167, 56
  %v3208 = vpop.permute.xlu0 %3207
  %3209 = vrot.lane.b32.xlu0 %v2169, 56
  %v3210 = vpop.permute.xlu0 %3209
  %3211 = vrot.lane.b32.xlu0 %v2313, 56
  %v3212 = vpop.permute.xlu0 %3211
  %3213 = vrot.lane.b32.xlu0 %v2315, 56
  %v3214 = vpop.permute.xlu0 %3213
  %vm3215 = vcmask 457728
  %v3216 = vsel %vm3215, %v3208, %v3210
  %v3217 = vsel %vm3215, %v3210, %v3212
  %v3218 = vsel %vm3215, %v3212, %v3214
  %3223 = vrot.lane.b32.xlu0 %v2167, 53
  %v3224 = vpop.permute.xlu0 %3223
  %3225 = vrot.lane.b32.xlu0 %v2169, 53
  %v3226 = vpop.permute.xlu0 %3225
  %3227 = vrot.lane.b32.xlu0 %v2313, 53
  %v3228 = vpop.permute.xlu0 %3227
  %3229 = vrot.lane.b32.xlu0 %v2315, 53
  %v3230 = vpop.permute.xlu0 %3229
  %vm3231 = vcmask 433152
  %v3232 = vsel %vm3231, %v3224, %v3226
  %v3233 = vsel %vm3231, %v3226, %v3228
  %v3234 = vsel %vm3231, %v3228, %v3230
  %3239 = vrot.lane.b32.xlu0 %v2167, 50
  %v3240 = vpop.permute.xlu0 %3239
  %3241 = vrot.lane.b32.xlu0 %v2169, 50
  %v3242 = vpop.permute.xlu0 %3241
  %3243 = vrot.lane.b32.xlu0 %v2313, 50
  %v3244 = vpop.permute.xlu0 %3243
  %3245 = vrot.lane.b32.xlu0 %v2315, 50
  %v3246 = vpop.permute.xlu0 %3245
  %vm3247 = vcmask 408576
  %v3248 = vsel %vm3247, %v3240, %v3242
  %v3249 = vsel %vm3247, %v3242, %v3244
  %v3250 = vsel %vm3247, %v3244, %v3246
  %3256 = vrot.lane.b32.xlu0 %v2169, 112
  %v3257 = vpop.permute.xlu0 %3256
  %3258 = vrot.lane.b32.xlu0 %v2313, 112
  %v3259 = vpop.permute.xlu0 %3258
  %3260 = vrot.lane.b32.xlu0 %v2315, 112
  %v3261 = vpop.permute.xlu0 %3260
  %3262 = vrot.lane.b32.xlu0 %v2446, 112
  %v3263 = vpop.permute.xlu0 %3262
  %vm3264 = vcmask 916480
  %v3265 = vsel %vm3264, %v3257, %v3259
  %v3266 = vsel %vm3264, %v3259, %v3261
  %v3267 = vsel %vm3264, %v3261, %v3263
  %3272 = vrot.lane.b32.xlu0 %v2169, 109
  %v3273 = vpop.permute.xlu0 %3272
  %3274 = vrot.lane.b32.xlu0 %v2313, 109
  %v3275 = vpop.permute.xlu0 %3274
  %3276 = vrot.lane.b32.xlu0 %v2315, 109
  %v3277 = vpop.permute.xlu0 %3276
  %3278 = vrot.lane.b32.xlu0 %v2446, 109
  %v3279 = vpop.permute.xlu0 %3278
  %vm3280 = vcmask 891904
  %v3281 = vsel %vm3280, %v3273, %v3275
  %v3282 = vsel %vm3280, %v3275, %v3277
  %v3283 = vsel %vm3280, %v3277, %v3279
  %3288 = vrot.lane.b32.xlu0 %v2169, 106
  %v3289 = vpop.permute.xlu0 %3288
  %3290 = vrot.lane.b32.xlu0 %v2313, 106
  %v3291 = vpop.permute.xlu0 %3290
  %3292 = vrot.lane.b32.xlu0 %v2315, 106
  %v3293 = vpop.permute.xlu0 %3292
  %3294 = vrot.lane.b32.xlu0 %v2446, 106
  %v3295 = vpop.permute.xlu0 %3294
  %vm3296 = vcmask 867328
  %v3297 = vsel %vm3296, %v3289, %v3291
  %v3298 = vsel %vm3296, %v3291, %v3293
  %v3299 = vsel %vm3296, %v3293, %v3295
  %v3304 = vpack.c.bf16 %v3184, %v2167
  %v3305 = vpack.c.bf16 %v3185, %v2169
  %v3306 = vpack.c.bf16 %v3186, %v2313
  %v3307 = vpack.c.bf16 %v3182, %v2315
  %v3308 = vpack.c.bf16 %v3216, %v3200
  %v3309 = vpack.c.bf16 %v3217, %v3201
  %v3310 = vpack.c.bf16 %v3218, %v3202
  %v3311 = vpack.c.bf16 %v3214, %v3198
  %v3312 = vpack.c.bf16 %v3248, %v3232
  %v3313 = vpack.c.bf16 %v3249, %v3233
  %v3314 = vpack.c.bf16 %v3250, %v3234
  %v3315 = vpack.c.bf16 %v3246, %v3230
  %v3316 = vpack.c.bf16 %v3281, %v3265
  %v3317 = vpack.c.bf16 %v3282, %v3266
  %v3318 = vpack.c.bf16 %v3283, %v3267
  %v3319 = vpack.c.bf16 %v3279, %v3263
  %v3320 = vpack.c.bf16 %v3297, %v3297
  %v3321 = vpack.c.bf16 %v3298, %v3298
  %v3322 = vpack.c.bf16 %v3299, %v3299
  %v3323 = vpack.c.bf16 %v3295, %v3295
  %3325 = vset.pattern.permute.xlu0 0
  %3326 = vperm.xlu0 %3325, %v2473
  %v3327 = vpop.permute.xlu0 %3326
  %3349 = vrot.lane.b32.xlu0 %v3304, 103
  %v3350 = vpop.permute.xlu0 %3349
  %3351 = vrot.lane.b32.xlu0 %v3305, 103
  %v3352 = vpop.permute.xlu0 %3351
  %3353 = vrot.lane.b32.xlu0 %v3306, 103
  %v3354 = vpop.permute.xlu0 %3353
  %3355 = vrot.lane.b32.xlu0 %v3307, 103
  %v3356 = vpop.permute.xlu0 %3355
  %3357 = vrot.lane.b32.xlu0 %v3308, 103
  %v3358 = vpop.permute.xlu0 %3357
  %3359 = vrot.lane.b32.xlu0 %v3309, 103
  %v3360 = vpop.permute.xlu0 %3359
  %3361 = vrot.lane.b32.xlu0 %v3310, 103
  %v3362 = vpop.permute.xlu0 %3361
  %3363 = vrot.lane.b32.xlu0 %v3311, 103
  %v3364 = vpop.permute.xlu0 %3363
  %3365 = vrot.lane.b32.xlu0 %v3312, 103
  %v3366 = vpop.permute.xlu0 %3365
  %3367 = vrot.lane.b32.xlu0 %v3313, 103
  %v3368 = vpop.permute.xlu0 %3367
  %3369 = vrot.lane.b32.xlu0 %v3314, 103
  %v3370 = vpop.permute.xlu0 %3369
  %3371 = vrot.lane.b32.xlu0 %v3315, 103
  %v3372 = vpop.permute.xlu0 %3371
  %3373 = vrot.lane.b32.xlu0 %v3316, 103
  %v3374 = vpop.permute.xlu0 %3373
  %3375 = vrot.lane.b32.xlu0 %v3317, 103
  %v3376 = vpop.permute.xlu0 %3375
  %3377 = vrot.lane.b32.xlu0 %v3318, 103
  %v3378 = vpop.permute.xlu0 %3377
  %3379 = vrot.lane.b32.xlu0 %v3319, 103
  %v3380 = vpop.permute.xlu0 %3379
  %3381 = vrot.lane.b32.xlu0 %v3320, 103
  %v3382 = vpop.permute.xlu0 %3381
  %3383 = vrot.lane.b32.xlu0 %v3321, 103
  %v3384 = vpop.permute.xlu0 %3383
  %3385 = vrot.lane.b32.xlu0 %v3322, 103
  %v3386 = vpop.permute.xlu0 %3385
  %3387 = vrot.lane.b32.xlu0 %v3323, 103
  %v3388 = vpop.permute.xlu0 %3387
  %vm3389 = vcmask 842752
  %v3390 = vsel %vm3389, %v3350, %v3352
  %v3391 = vsel %vm3389, %v3352, %v3354
  %v3392 = vsel %vm3389, %v3354, %v3356
  %v3393 = vsel %vm3389, %v3358, %v3360
  %v3394 = vsel %vm3389, %v3360, %v3362
  %v3395 = vsel %vm3389, %v3362, %v3364
  %v3396 = vsel %vm3389, %v3366, %v3368
  %v3397 = vsel %vm3389, %v3368, %v3370
  %v3398 = vsel %vm3389, %v3370, %v3372
  %v3399 = vsel %vm3389, %v3374, %v3376
  %v3400 = vsel %vm3389, %v3376, %v3378
  %v3401 = vsel %vm3389, %v3378, %v3380
  %v3402 = vsel %vm3389, %v3382, %v3384
  %v3403 = vsel %vm3389, %v3384, %v3386
  %v3404 = vsel %vm3389, %v3386, %v3388
  %v3418 = vsel %vm845, %v2469, 0
  %v3421 = vsel %vm852, %v3402, 0
  %v3424 = vsel %vm852, %v3403, 0
  %v3427 = vsel %vm852, %v3404, 0
  %3429 = vmatprep.subr.bf16.mxu0 %v3391
  %3430 = vmatpush1.bf16.msra.mxu0 %v3390
  %3431 = vmatprep.subr.bf16.mxu0 %v3394
  %3432 = vmatpush1.bf16.msra.mxu0 %v3393
  %3433 = vmatprep.subr.bf16.mxu0 %v3397
  %3434 = vmatpush1.bf16.msra.mxu0 %v3396
  %3435 = vmatprep.subr.bf16.mxu0 %v3400
  %3436 = vmatpush1.bf16.msra.mxu0 %v3399
  %3437 = vmatprep.subr.bf16.mxu0 %v3424
  %3438 = vmatpush1.bf16.msra.mxu0 %v3421
  %3439 = vmatprep.subr.bf16.mxu0 0
  %3440 = vmatpush1.bf16.msra.mxu0 0
  %3441 = vmatprep.subr.bf16.mxu0 0
  %3442 = vmatpush1.bf16.msra.mxu0 0
  %3443 = vmatprep.subr.bf16.mxu0 0
  %3444 = vmatpush1.bf16.msra.mxu0 0
  %3445 = vmatprep.subr.bf16.mxu0 0
  %3446 = vmatpush1.bf16.msra.mxu0 0
  %3447 = vmatprep.subr.bf16.mxu0 0
  %3448 = vmatpush1.bf16.msra.mxu0 0
  %3449 = vmatprep.subr.bf16.mxu0 0
  %3450 = vmatpush1.bf16.msra.mxu0 0
  %3451 = vmatprep.subr.bf16.mxu0 0
  %3452 = vmatpush1.bf16.msra.mxu0 0
  %3453 = vmatprep.subr.bf16.mxu0 0
  %3454 = vmatpush1.bf16.msra.mxu0 0
  %3455 = vmatprep.subr.bf16.mxu0 0
  %3456 = vmatpush1.bf16.msra.mxu0 0
  %3457 = vmatprep.subr.bf16.mxu0 0
  %3458 = vmatpush1.bf16.msra.mxu0 0
  %3459 = vmatprep.subr.bf16.mxu0 0
  %3460 = vmatpush1.bf16.msra.mxu0 0
  %3461 = vmatprep.mubr.bf16.mxu0 0
  %3462 = vmatmul.mubr.bf16.gmra.mrb[0].mxu0 %v3418
  %v3463 = vpop.f32.mrb[0].mxu0
  %v3464 = vadd.f32 %v3327, %v3463
  %v3465 = vpop.f32.mrb[0].mxu0
  %v3466 = vadd.f32 %v3327, %v3465
  %v3467 = vpop.f32.mrb[0].mxu0
  %v3468 = vpop.f32.mrb[0].mxu0
  %3469 = vdwg.mxu0
  %3470 = vmatprep.subr.bf16.mxu0 0
  %3471 = vmatpush1.bf16.msra.mxu0 %v3392
  %3472 = vmatprep.subr.bf16.mxu0 0
  %3473 = vmatpush1.bf16.msra.mxu0 %v3395
  %3474 = vmatprep.subr.bf16.mxu0 0
  %3475 = vmatpush1.bf16.msra.mxu0 %v3398
  %3476 = vmatprep.subr.bf16.mxu0 0
  %3477 = vmatpush1.bf16.msra.mxu0 %v3401
  %3478 = vmatprep.subr.bf16.mxu0 0
  %3479 = vmatpush1.bf16.msra.mxu0 %v3427
  %3480 = vmatprep.subr.bf16.mxu0 0
  %3481 = vmatpush1.bf16.msra.mxu0 0
  %3482 = vmatprep.subr.bf16.mxu0 0
  %3483 = vmatpush1.bf16.msra.mxu0 0
  %3484 = vmatprep.subr.bf16.mxu0 0
  %3485 = vmatpush1.bf16.msra.mxu0 0
  %3486 = vmatprep.subr.bf16.mxu0 0
  %3487 = vmatpush1.bf16.msra.mxu0 0
  %3488 = vmatprep.subr.bf16.mxu0 0
  %3489 = vmatpush1.bf16.msra.mxu0 0
  %3490 = vmatprep.subr.bf16.mxu0 0
  %3491 = vmatpush1.bf16.msra.mxu0 0
  %3492 = vmatprep.subr.bf16.mxu0 0
  %3493 = vmatpush1.bf16.msra.mxu0 0
  %3494 = vmatprep.subr.bf16.mxu0 0
  %3495 = vmatpush1.bf16.msra.mxu0 0
  %3496 = vmatprep.subr.bf16.mxu0 0
  %3497 = vmatpush1.bf16.msra.mxu0 0
  %3498 = vmatprep.subr.bf16.mxu0 0
  %3499 = vmatpush1.bf16.msra.mxu0 0
  %3500 = vmatprep.subr.bf16.mxu0 0
  %3501 = vmatpush1.bf16.msra.mxu0 0
  %3502 = vmatprep.mubr.bf16.mxu0 0
  %3503 = vmatmul.mubr.bf16.gmra.mrb[0].mxu0 %v3418
  %v3504 = vpop.f32.mrb[0].mxu0
  %v3505 = vadd.f32 %v3327, %v3504
  %v3506 = vpop.f32.mrb[0].mxu0
  %v3507 = vpop.f32.mrb[0].mxu0
  %v3508 = vpop.f32.mrb[0].mxu0
  %3509 = vdwg.mxu0
  %vm3510 = vcmp.gt.f32.partialorder %v3464, 0.0
  %vm3511 = vcmp.gt.f32.partialorder %v3466, 0.0
  %vm3512 = vcmp.gt.f32.partialorder %v3505, 0.0
  %v3513 = vmul.f32 %v3464, 0.01
  %v3514 = vmul.f32 %v3466, 0.01
  %v3515 = vmul.f32 %v3505, 0.01
  %v3516 = vsel %vm3510, %v3464, %v3513
  %v3517 = vsel %vm3511, %v3466, %v3514
  %v3518 = vsel %vm3512, %v3505, %v3515
  %3523 = vrot.lane.b32.xlu0 %v2171, 124
  %v3524 = vpop.permute.xlu0 %3523
  %3525 = vrot.lane.b32.xlu0 %v2173, 124
  %v3526 = vpop.permute.xlu0 %3525
  %3527 = vrot.lane.b32.xlu0 %v2317, 124
  %v3528 = vpop.permute.xlu0 %3527
  %3529 = vrot.lane.b32.xlu0 %v2319, 124
  %v3530 = vpop.permute.xlu0 %3529
  %v3531 = vsel %vm2853, %v3524, %v3526
  %v3532 = vsel %vm2853, %v3526, %v3528
  %v3533 = vsel %vm2853, %v3528, %v3530
  %3537 = vrot.lane.b32.xlu0 %v2171, 120
  %v3538 = vpop.permute.xlu0 %3537
  %3539 = vrot.lane.b32.xlu0 %v2173, 120
  %v3540 = vpop.permute.xlu0 %3539
  %3541 = vrot.lane.b32.xlu0 %v2317, 120
  %v3542 = vpop.permute.xlu0 %3541
  %3543 = vrot.lane.b32.xlu0 %v2319, 120
  %v3544 = vpop.permute.xlu0 %3543
  %vm3545 = vcmask 982016
  %v3546 = vsel %vm3545, %v3538, %v3540
  %v3547 = vsel %vm3545, %v3540, %v3542
  %v3548 = vsel %vm3545, %v3542, %v3544
  %3552 = vrot.lane.b32.xlu0 %v2171, 32
  %v3553 = vpop.permute.xlu0 %3552
  %3554 = vrot.lane.b32.xlu0 %v2173, 32
  %v3555 = vpop.permute.xlu0 %3554
  %3556 = vrot.lane.b32.xlu0 %v2317, 32
  %v3557 = vpop.permute.xlu0 %3556
  %3558 = vrot.lane.b32.xlu0 %v2319, 32
  %v3559 = vpop.permute.xlu0 %3558
  %v3560 = vsel %vm2916, %v3553, %v3555
  %v3561 = vsel %vm2916, %v3555, %v3557
  %v3562 = vsel %vm2916, %v3557, %v3559
  %3566 = vrot.lane.b32.xlu0 %v2171, 28
  %v3567 = vpop.permute.xlu0 %3566
  %3568 = vrot.lane.b32.xlu0 %v2173, 28
  %v3569 = vpop.permute.xlu0 %3568
  %3570 = vrot.lane.b32.xlu0 %v2317, 28
  %v3571 = vpop.permute.xlu0 %3570
  %3572 = vrot.lane.b32.xlu0 %v2319, 28
  %v3573 = vpop.permute.xlu0 %3572
  %v3574 = vsel %vm2948, %v3567, %v3569
  %v3575 = vsel %vm2948, %v3569, %v3571
  %v3576 = vsel %vm2948, %v3571, %v3573
  %3580 = vrot.lane.b32.xlu0 %v2171, 24
  %v3581 = vpop.permute.xlu0 %3580
  %3582 = vrot.lane.b32.xlu0 %v2173, 24
  %v3583 = vpop.permute.xlu0 %3582
  %3584 = vrot.lane.b32.xlu0 %v2317, 24
  %v3585 = vpop.permute.xlu0 %3584
  %3586 = vrot.lane.b32.xlu0 %v2319, 24
  %v3587 = vpop.permute.xlu0 %3586
  %vm3588 = vcmask 195584
  %v3589 = vsel %vm3588, %v3581, %v3583
  %v3590 = vsel %vm3588, %v3583, %v3585
  %v3591 = vsel %vm3588, %v3585, %v3587
  %3596 = vrot.lane.b32.xlu0 %v2173, 64
  %v3597 = vpop.permute.xlu0 %3596
  %3598 = vrot.lane.b32.xlu0 %v2317, 64
  %v3599 = vpop.permute.xlu0 %3598
  %3600 = vrot.lane.b32.xlu0 %v2319, 64
  %v3601 = vpop.permute.xlu0 %3600
  %3602 = vrot.lane.b32.xlu0 %v2449, 64
  %v3603 = vpop.permute.xlu0 %3602
  %vm3604 = vcmask 523264
  %v3605 = vsel %vm3604, %v3597, %v3599
  %v3606 = vsel %vm3604, %v3599, %v3601
  %v3607 = vsel %vm3604, %v3601, %v3603
  %3611 = vrot.lane.b32.xlu0 %v2173, 60
  %v3612 = vpop.permute.xlu0 %3611
  %3613 = vrot.lane.b32.xlu0 %v2317, 60
  %v3614 = vpop.permute.xlu0 %3613
  %3615 = vrot.lane.b32.xlu0 %v2319, 60
  %v3616 = vpop.permute.xlu0 %3615
  %3617 = vrot.lane.b32.xlu0 %v2449, 60
  %v3618 = vpop.permute.xlu0 %3617
  %vm3619 = vcmask 490496
  %v3620 = vsel %vm3619, %v3612, %v3614
  %v3621 = vsel %vm3619, %v3614, %v3616
  %v3622 = vsel %vm3619, %v3616, %v3618
  %3626 = vrot.lane.b32.xlu0 %v2173, 56
  %v3627 = vpop.permute.xlu0 %3626
  %3628 = vrot.lane.b32.xlu0 %v2317, 56
  %v3629 = vpop.permute.xlu0 %3628
  %3630 = vrot.lane.b32.xlu0 %v2319, 56
  %v3631 = vpop.permute.xlu0 %3630
  %3632 = vrot.lane.b32.xlu0 %v2449, 56
  %v3633 = vpop.permute.xlu0 %3632
  %v3634 = vsel %vm3215, %v3627, %v3629
  %v3635 = vsel %vm3215, %v3629, %v3631
  %v3636 = vsel %vm3215, %v3631, %v3633
  %v3640 = vpack.c.bf16 %v3531, %v2171
  %v3641 = vpack.c.bf16 %v3532, %v2173
  %v3642 = vpack.c.bf16 %v3533, %v2317
  %v3643 = vpack.c.bf16 %v3560, %v3546
  %v3644 = vpack.c.bf16 %v3561, %v3547
  %v3645 = vpack.c.bf16 %v3562, %v3548
  %v3646 = vpack.c.bf16 %v3589, %v3574
  %v3647 = vpack.c.bf16 %v3590, %v3575
  %v3648 = vpack.c.bf16 %v3591, %v3576
  %v3649 = vpack.c.bf16 %v3620, %v3605
  %v3650 = vpack.c.bf16 %v3621, %v3606
  %v3651 = vpack.c.bf16 %v3622, %v3607
  %v3652 = vpack.c.bf16 %v3634, %v3634
  %v3653 = vpack.c.bf16 %v3635, %v3635
  %v3654 = vpack.c.bf16 %v3636, %v3636
  %3656 = vset.pattern.permute.xlu0 0
  %3657 = vperm.xlu0 %3656, %v2474
  %v3658 = vpop.permute.xlu0 %3657
  %v3661 = vsel %vm845, %v2470, 0
  %v3664 = vsel %vm852, %v3652, 0
  %v3667 = vsel %vm852, %v3653, 0
  %v3670 = vsel %vm852, %v3654, 0
  %3672 = vmatprep.subr.bf16.mxu0 %v3641
  %3673 = vmatpush1.bf16.msra.mxu0 %v3640
  %3674 = vmatprep.subr.bf16.mxu0 %v3644
  %3675 = vmatpush1.bf16.msra.mxu0 %v3643
  %3676 = vmatprep.subr.bf16.mxu0 %v3647
  %3677 = vmatpush1.bf16.msra.mxu0 %v3646
  %3678 = vmatprep.subr.bf16.mxu0 %v3650
  %3679 = vmatpush1.bf16.msra.mxu0 %v3649
  %3680 = vmatprep.subr.bf16.mxu0 %v3667
  %3681 = vmatpush1.bf16.msra.mxu0 %v3664
  %3682 = vmatprep.subr.bf16.mxu0 0
  %3683 = vmatpush1.bf16.msra.mxu0 0
  %3684 = vmatprep.subr.bf16.mxu0 0
  %3685 = vmatpush1.bf16.msra.mxu0 0
  %3686 = vmatprep.subr.bf16.mxu0 0
  %3687 = vmatpush1.bf16.msra.mxu0 0
  %3688 = vmatprep.subr.bf16.mxu0 0
  %3689 = vmatpush1.bf16.msra.mxu0 0
  %3690 = vmatprep.subr.bf16.mxu0 0
  %3691 = vmatpush1.bf16.msra.mxu0 0
  %3692 = vmatprep.subr.bf16.mxu0 0
  %3693 = vmatpush1.bf16.msra.mxu0 0
  %3694 = vmatprep.subr.bf16.mxu0 0
  %3695 = vmatpush1.bf16.msra.mxu0 0
  %3696 = vmatprep.subr.bf16.mxu0 0
  %3697 = vmatpush1.bf16.msra.mxu0 0
  %3698 = vmatprep.subr.bf16.mxu0 0
  %3699 = vmatpush1.bf16.msra.mxu0 0
  %3700 = vmatprep.subr.bf16.mxu0 0
  %3701 = vmatpush1.bf16.msra.mxu0 0
  %3702 = vmatprep.subr.bf16.mxu0 0
  %3703 = vmatpush1.bf16.msra.mxu0 0
  %3704 = vmatprep.mubr.bf16.mxu0 0
  %3705 = vmatmul.mubr.bf16.gmra.mrb[0].mxu0 %v3661
  %v3706 = vpop.f32.mrb[0].mxu0
  %v3707 = vadd.f32 %v3658, %v3706
  %v3708 = vpop.f32.mrb[0].mxu0
  %v3709 = vadd.f32 %v3658, %v3708
  %v3710 = vpop.f32.mrb[0].mxu0
  %v3711 = vpop.f32.mrb[0].mxu0
  %3712 = vdwg.mxu0
  %3713 = vmatprep.subr.bf16.mxu0 0
  %3714 = vmatpush1.bf16.msra.mxu0 %v3642
  %3715 = vmatprep.subr.bf16.mxu0 0
  %3716 = vmatpush1.bf16.msra.mxu0 %v3645
  %3717 = vmatprep.subr.bf16.mxu0 0
  %3718 = vmatpush1.bf16.msra.mxu0 %v3648
  %3719 = vmatprep.subr.bf16.mxu0 0
  %3720 = vmatpush1.bf16.msra.mxu0 %v3651
  %3721 = vmatprep.subr.bf16.mxu0 0
  %3722 = vmatpush1.bf16.msra.mxu0 %v3670
  %3723 = vmatprep.subr.bf16.mxu0 0
  %3724 = vmatpush1.bf16.msra.mxu0 0
  %3725 = vmatprep.subr.bf16.mxu0 0
  %3726 = vmatpush1.bf16.msra.mxu0 0
  %3727 = vmatprep.subr.bf16.mxu0 0
  %3728 = vmatpush1.bf16.msra.mxu0 0
  %3729 = vmatprep.subr.bf16.mxu0 0
  %3730 = vmatpush1.bf16.msra.mxu0 0
  %3731 = vmatprep.subr.bf16.mxu0 0
  %3732 = vmatpush1.bf16.msra.mxu0 0
  %3733 = vmatprep.subr.bf16.mxu0 0
  %3734 = vmatpush1.bf16.msra.mxu0 0
  %3735 = vmatprep.subr.bf16.mxu0 0
  %3736 = vmatpush1.bf16.msra.mxu0 0
  %3737 = vmatprep.subr.bf16.mxu0 0
  %3738 = vmatpush1.bf16.msra.mxu0 0
  %3739 = vmatprep.subr.bf16.mxu0 0
  %3740 = vmatpush1.bf16.msra.mxu0 0
  %3741 = vmatprep.subr.bf16.mxu0 0
  %3742 = vmatpush1.bf16.msra.mxu0 0
  %3743 = vmatprep.subr.bf16.mxu0 0
  %3744 = vmatpush1.bf16.msra.mxu0 0
  %3745 = vmatprep.mubr.bf16.mxu0 0
  %3746 = vmatmul.mubr.bf16.gmra.mrb[0].mxu0 %v3661
  %v3747 = vpop.f32.mrb[0].mxu0
  %v3748 = vadd.f32 %v3658, %v3747
  %v3749 = vpop.f32.mrb[0].mxu0
  %v3750 = vpop.f32.mrb[0].mxu0
  %v3751 = vpop.f32.mrb[0].mxu0
  %3752 = vdwg.mxu0
  %vm3753 = vcmp.gt.f32.partialorder %v3707, 0.0
  %vm3754 = vcmp.gt.f32.partialorder %v3709, 0.0
  %vm3755 = vcmp.gt.f32.partialorder %v3748, 0.0
  %v3756 = vmul.f32 %v3707, 0.01
  %v3757 = vmul.f32 %v3709, 0.01
  %v3758 = vmul.f32 %v3748, 0.01
  %v3759 = vsel %vm3753, %v3707, %v3756
  %v3760 = vsel %vm3754, %v3709, %v3757
  %v3761 = vsel %vm3755, %v3748, %v3758
  %v3762 = vpack.c.bf16 %v3168, %v2823
  %v3763 = vpack.c.bf16 %v3169, %v2824
  %v3764 = vpack.c.bf16 %v3170, %v2825
  %v3765 = vpack.c.bf16 %v3759, %v3516
  %v3766 = vpack.c.bf16 %v3760, %v3517
  %v3767 = vpack.c.bf16 %v3761, %v3518
  %3768 = vmatprep.subr.bf16.mxu0 %v1810
  %3769 = vmatpush1.bf16.msra.mxu0 %v1809
  %3770 = vmatprep.subr.bf16.mxu0 %v1815
  %3771 = vmatpush1.bf16.msra.mxu0 %v1814
  %3772 = vmatprep.subr.bf16.mxu0 %v1820
  %3773 = vmatpush1.bf16.msra.mxu0 %v1819
  %3774 = vmatprep.subr.bf16.mxu0 %v1825
  %3775 = vmatpush1.bf16.msra.mxu0 %v1824
  %3776 = vmatprep.subr.bf16.mxu0 %v1830
  %3777 = vmatpush1.bf16.msra.mxu0 %v1829
  %3778 = vmatprep.subr.bf16.mxu0 %v1835
  %3779 = vmatpush1.bf16.msra.mxu0 %v1834
  %3780 = vmatprep.subr.bf16.mxu0 %v1840
  %3781 = vmatpush1.bf16.msra.mxu0 %v1839
  %3782 = vmatprep.subr.bf16.mxu0 %v1845
  %3783 = vmatpush1.bf16.msra.mxu0 %v1844
  %3784 = vmatprep.subr.bf16.mxu0 %v1850
  %3785 = vmatpush1.bf16.msra.mxu0 %v1849
  %3786 = vmatprep.subr.bf16.mxu0 %v1855
  %3787 = vmatpush1.bf16.msra.mxu0 %v1854
  %3788 = vmatprep.subr.bf16.mxu0 %v1860
  %3789 = vmatpush1.bf16.msra.mxu0 %v1859
  %3790 = vmatprep.subr.bf16.mxu0 %v1865
  %3791 = vmatpush1.bf16.msra.mxu0 %v1864
  %3792 = vmatprep.subr.bf16.mxu0 %v1870
  %3793 = vmatpush1.bf16.msra.mxu0 %v1869
  %3794 = vmatprep.subr.bf16.mxu0 %v1875
  %3795 = vmatpush1.bf16.msra.mxu0 %v1874
  %3796 = vmatprep.subr.bf16.mxu0 %v1880
  %3797 = vmatpush1.bf16.msra.mxu0 %v1879
  %3798 = vmatprep.subr.bf16.mxu0 %v1885
  %3799 = vmatpush1.bf16.msra.mxu0 %v1884
  %3800 = vmatprep.mubr.bf16.mxu0 %v3763
  %3801 = vmatmul.mubr.bf16.gmra.mrb[0].mxu0 %v3762
  %v3802 = vpop.f32.mrb[0].mxu0
  %v3803 = vadd.f32 0.0, %v3802
  %v3804 = vpop.f32.mrb[0].mxu0
  %v3805 = vadd.f32 0.0, %v3804
  %v3806 = vpop.f32.mrb[0].mxu0
  %v3807 = vadd.f32 0.0, %v3806
  %v3808 = vpop.f32.mrb[0].mxu0
  %v3809 = vadd.f32 0.0, %v3808
  %3810 = vmatprep.mubr.bf16.mxu0 %v3766
  %3811 = vmatmul.mubr.bf16.gmra.mrb[0].mxu0 %v3765
  %v3812 = vpop.f32.mrb[0].mxu0
  %v3813 = vadd.f32 0.0, %v3812
  %v3814 = vpop.f32.mrb[0].mxu0
  %v3815 = vadd.f32 0.0, %v3814
  %v3816 = vpop.f32.mrb[0].mxu0
  %v3817 = vadd.f32 0.0, %v3816
  %v3818 = vpop.f32.mrb[0].mxu0
  %v3819 = vadd.f32 0.0, %v3818
  %3820 = vdwg.mxu0
  %3821 = vmatprep.subr.bf16.mxu0 %v1890
  %3822 = vmatpush1.bf16.msra.mxu0 %v1889
  %3823 = vmatprep.subr.bf16.mxu0 %v1895
  %3824 = vmatpush1.bf16.msra.mxu0 %v1894
  %3825 = vmatprep.subr.bf16.mxu0 %v1900
  %3826 = vmatpush1.bf16.msra.mxu0 %v1899
  %3827 = vmatprep.subr.bf16.mxu0 %v1905
  %3828 = vmatpush1.bf16.msra.mxu0 %v1904
  %3829 = vmatprep.subr.bf16.mxu0 %v1910
  %3830 = vmatpush1.bf16.msra.mxu0 %v1909
  %3831 = vmatprep.subr.bf16.mxu0 %v1915
  %3832 = vmatpush1.bf16.msra.mxu0 %v1914
  %3833 = vmatprep.subr.bf16.mxu0 %v1920
  %3834 = vmatpush1.bf16.msra.mxu0 %v1919
  %3835 = vmatprep.subr.bf16.mxu0 %v1925
  %3836 = vmatpush1.bf16.msra.mxu0 %v1924
  %3837 = vmatprep.subr.bf16.mxu0 0
  %3838 = vmatpush1.bf16.msra.mxu0 0
  %3839 = vmatprep.subr.bf16.mxu0 0
  %3840 = vmatpush1.bf16.msra.mxu0 0
  %3841 = vmatprep.subr.bf16.mxu0 0
  %3842 = vmatpush1.bf16.msra.mxu0 0
  %3843 = vmatprep.subr.bf16.mxu0 0
  %3844 = vmatpush1.bf16.msra.mxu0 0
  %3845 = vmatprep.subr.bf16.mxu0 0
  %3846 = vmatpush1.bf16.msra.mxu0 0
  %3847 = vmatprep.subr.bf16.mxu0 0
  %3848 = vmatpush1.bf16.msra.mxu0 0
  %3849 = vmatprep.subr.bf16.mxu0 0
  %3850 = vmatpush1.bf16.msra.mxu0 0
  %3851 = vmatprep.subr.bf16.mxu0 0
  %3852 = vmatpush1.bf16.msra.mxu0 0
  %3853 = vmatprep.mubr.bf16.mxu0 0
  %3854 = vmatmul.mubr.bf16.gmra.mrb[0].mxu0 %v3764
  %v3855 = vpop.f32.mrb[0].mxu0
  %v3856 = vadd.f32 %v3803, %v3855
  %v3857 = vpop.f32.mrb[0].mxu0
  %v3858 = vadd.f32 %v3805, %v3857
  %v3859 = vpop.f32.mrb[0].mxu0
  %v3860 = vadd.f32 %v3807, %v3859
  %v3861 = vpop.f32.mrb[0].mxu0
  %v3862 = vadd.f32 %v3809, %v3861
  %3863 = vmatprep.mubr.bf16.mxu0 0
  %3864 = vmatmul.mubr.bf16.gmra.mrb[0].mxu0 %v3767
  %v3865 = vpop.f32.mrb[0].mxu0
  %v3866 = vadd.f32 %v3813, %v3865
  %v3867 = vpop.f32.mrb[0].mxu0
  %v3868 = vadd.f32 %v3815, %v3867
  %v3869 = vpop.f32.mrb[0].mxu0
  %v3870 = vadd.f32 %v3817, %v3869
  %v3871 = vpop.f32.mrb[0].mxu0
  %v3872 = vadd.f32 %v3819, %v3871
  %3873 = vdwg.mxu0
  %3874 = vmatprep.subr.bf16.mxu0 %v1812
  %3875 = vmatpush1.bf16.msra.mxu0 %v1811
  %3876 = vmatprep.subr.bf16.mxu0 %v1817
  %3877 = vmatpush1.bf16.msra.mxu0 %v1816
  %3878 = vmatprep.subr.bf16.mxu0 %v1822
  %3879 = vmatpush1.bf16.msra.mxu0 %v1821
  %3880 = vmatprep.subr.bf16.mxu0 %v1827
  %3881 = vmatpush1.bf16.msra.mxu0 %v1826
  %3882 = vmatprep.subr.bf16.mxu0 %v1832
  %3883 = vmatpush1.bf16.msra.mxu0 %v1831
  %3884 = vmatprep.subr.bf16.mxu0 %v1837
  %3885 = vmatpush1.bf16.msra.mxu0 %v1836
  %3886 = vmatprep.subr.bf16.mxu0 %v1842
  %3887 = vmatpush1.bf16.msra.mxu0 %v1841
  %3888 = vmatprep.subr.bf16.mxu0 %v1847
  %3889 = vmatpush1.bf16.msra.mxu0 %v1846
  %3890 = vmatprep.subr.bf16.mxu0 %v1852
  %3891 = vmatpush1.bf16.msra.mxu0 %v1851
  %3892 = vmatprep.subr.bf16.mxu0 %v1857
  %3893 = vmatpush1.bf16.msra.mxu0 %v1856
  %3894 = vmatprep.subr.bf16.mxu0 %v1862
  %3895 = vmatpush1.bf16.msra.mxu0 %v1861
  %3896 = vmatprep.subr.bf16.mxu0 %v1867
  %3897 = vmatpush1.bf16.msra.mxu0 %v1866
  %3898 = vmatprep.subr.bf16.mxu0 %v1872
  %3899 = vmatpush1.bf16.msra.mxu0 %v1871
  %3900 = vmatprep.subr.bf16.mxu0 %v1877
  %3901 = vmatpush1.bf16.msra.mxu0 %v1876
  %3902 = vmatprep.subr.bf16.mxu0 %v1882
  %3903 = vmatpush1.bf16.msra.mxu0 %v1881
  %3904 = vmatprep.subr.bf16.mxu0 %v1887
  %3905 = vmatpush1.bf16.msra.mxu0 %v1886
  %3906 = vmatprep.mubr.bf16.mxu0 %v3763
  %3907 = vmatmul.mubr.bf16.gmra.mrb[0].mxu0 %v3762
  %v3908 = vpop.f32.mrb[0].mxu0
  %v3909 = vadd.f32 0.0, %v3908
  %v3910 = vpop.f32.mrb[0].mxu0
  %v3911 = vadd.f32 0.0, %v3910
  %v3912 = vpop.f32.mrb[0].mxu0
  %v3913 = vadd.f32 0.0, %v3912
  %v3914 = vpop.f32.mrb[0].mxu0
  %v3915 = vadd.f32 0.0, %v3914
  %3916 = vmatprep.mubr.bf16.mxu0 %v3766
  %3917 = vmatmul.mubr.bf16.gmra.mrb[0].mxu0 %v3765
  %v3918 = vpop.f32.mrb[0].mxu0
  %v3919 = vadd.f32 0.0, %v3918
  %v3920 = vpop.f32.mrb[0].mxu0
  %v3921 = vadd.f32 0.0, %v3920
  %v3922 = vpop.f32.mrb[0].mxu0
  %v3923 = vadd.f32 0.0, %v3922
  %v3924 = vpop.f32.mrb[0].mxu0
  %v3925 = vadd.f32 0.0, %v3924
  %3926 = vdwg.mxu0
  %3927 = vmatprep.subr.bf16.mxu0 %v1892
  %3928 = vmatpush1.bf16.msra.mxu0 %v1891
  %3929 = vmatprep.subr.bf16.mxu0 %v1897
  %3930 = vmatpush1.bf16.msra.mxu0 %v1896
  %3931 = vmatprep.subr.bf16.mxu0 %v1902
  %3932 = vmatpush1.bf16.msra.mxu0 %v1901
  %3933 = vmatprep.subr.bf16.mxu0 %v1907
  %3934 = vmatpush1.bf16.msra.mxu0 %v1906
  %3935 = vmatprep.subr.bf16.mxu0 %v1912
  %3936 = vmatpush1.bf16.msra.mxu0 %v1911
  %3937 = vmatprep.subr.bf16.mxu0 %v1917
  %3938 = vmatpush1.bf16.msra.mxu0 %v1916
  %3939 = vmatprep.subr.bf16.mxu0 %v1922
  %3940 = vmatpush1.bf16.msra.mxu0 %v1921
  %3941 = vmatprep.subr.bf16.mxu0 %v1927
  %3942 = vmatpush1.bf16.msra.mxu0 %v1926
  %3943 = vmatprep.subr.bf16.mxu0 0
  %3944 = vmatpush1.bf16.msra.mxu0 0
  %3945 = vmatprep.subr.bf16.mxu0 0
  %3946 = vmatpush1.bf16.msra.mxu0 0
  %3947 = vmatprep.subr.bf16.mxu0 0
  %3948 = vmatpush1.bf16.msra.mxu0 0
  %3949 = vmatprep.subr.bf16.mxu0 0
  %3950 = vmatpush1.bf16.msra.mxu0 0
  %3951 = vmatprep.subr.bf16.mxu0 0
  %3952 = vmatpush1.bf16.msra.mxu0 0
  %3953 = vmatprep.subr.bf16.mxu0 0
  %3954 = vmatpush1.bf16.msra.mxu0 0
  %3955 = vmatprep.subr.bf16.mxu0 0
  %3956 = vmatpush1.bf16.msra.mxu0 0
  %3957 = vmatprep.subr.bf16.mxu0 0
  %3958 = vmatpush1.bf16.msra.mxu0 0
  %3959 = vmatprep.mubr.bf16.mxu0 0
  %3960 = vmatmul.mubr.bf16.gmra.mrb[0].mxu0 %v3764
  %v3961 = vpop.f32.mrb[0].mxu0
  %v3962 = vadd.f32 %v3909, %v3961
  %v3963 = vpop.f32.mrb[0].mxu0
  %v3964 = vadd.f32 %v3911, %v3963
  %v3965 = vpop.f32.mrb[0].mxu0
  %v3966 = vadd.f32 %v3913, %v3965
  %v3967 = vpop.f32.mrb[0].mxu0
  %v3968 = vadd.f32 %v3915, %v3967
  %3969 = vmatprep.mubr.bf16.mxu0 0
  %3970 = vmatmul.mubr.bf16.gmra.mrb[0].mxu0 %v3767
  %v3971 = vpop.f32.mrb[0].mxu0
  %v3972 = vadd.f32 %v3919, %v3971
  %v3973 = vpop.f32.mrb[0].mxu0
  %v3974 = vadd.f32 %v3921, %v3973
  %v3975 = vpop.f32.mrb[0].mxu0
  %v3976 = vadd.f32 %v3923, %v3975
  %v3977 = vpop.f32.mrb[0].mxu0
  %v3978 = vadd.f32 %v3925, %v3977
  %3979 = vdwg.mxu0
  %3996 = vrot.lane.b32.xlu0 %v3856, 127
  %v3997 = vpop.permute.xlu0 %3996
  %3998 = vrot.lane.b32.xlu0 %v3858, 127
  %v3999 = vpop.permute.xlu0 %3998
  %4000 = vrot.lane.b32.xlu0 %v3962, 127
  %v4001 = vpop.permute.xlu0 %4000
  %4002 = vrot.lane.b32.xlu0 %v3964, 127
  %v4003 = vpop.permute.xlu0 %4002
  %4004 = vrot.lane.b32.xlu0 %v3860, 127
  %v4005 = vpop.permute.xlu0 %4004
  %4006 = vrot.lane.b32.xlu0 %v3862, 127
  %v4007 = vpop.permute.xlu0 %4006
  %4008 = vrot.lane.b32.xlu0 %v3966, 127
  %v4009 = vpop.permute.xlu0 %4008
  %4010 = vrot.lane.b32.xlu0 %v3968, 127
  %v4011 = vpop.permute.xlu0 %4010
  %4012 = vrot.lane.b32.xlu0 %v3866, 127
  %v4013 = vpop.permute.xlu0 %4012
  %4014 = vrot.lane.b32.xlu0 %v3868, 127
  %v4015 = vpop.permute.xlu0 %4014
  %4016 = vrot.lane.b32.xlu0 %v3972, 127
  %v4017 = vpop.permute.xlu0 %4016
  %4018 = vrot.lane.b32.xlu0 %v3974, 127
  %v4019 = vpop.permute.xlu0 %4018
  %4020 = vrot.lane.b32.xlu0 %v3870, 127
  %v4021 = vpop.permute.xlu0 %4020
  %4022 = vrot.lane.b32.xlu0 %v3872, 127
  %v4023 = vpop.permute.xlu0 %4022
  %4024 = vrot.lane.b32.xlu0 %v3976, 127
  %v4025 = vpop.permute.xlu0 %4024
  %4026 = vrot.lane.b32.xlu0 %v3978, 127
  %v4027 = vpop.permute.xlu0 %4026
  %v4028 = vsel %vm688, %v3997, %v3999
  %v4029 = vsel %vm688, %v3999, %v4001
  %v4030 = vsel %vm688, %v4001, %v4003
  %v4031 = vsel %vm688, %v4005, %v4007
  %v4032 = vsel %vm688, %v4007, %v4009
  %v4033 = vsel %vm688, %v4009, %v4011
  %v4034 = vsel %vm688, %v4013, %v4015
  %v4035 = vsel %vm688, %v4015, %v4017
  %v4036 = vsel %vm688, %v4017, %v4019
  %v4037 = vsel %vm688, %v4021, %v4023
  %v4038 = vsel %vm688, %v4023, %v4025
  %v4039 = vsel %vm688, %v4025, %v4027
  %4056 = vrot.lane.b32.xlu0 %v3856, 126
  %v4057 = vpop.permute.xlu0 %4056
  %4058 = vrot.lane.b32.xlu0 %v3858, 126
  %v4059 = vpop.permute.xlu0 %4058
  %4060 = vrot.lane.b32.xlu0 %v3962, 126
  %v4061 = vpop.permute.xlu0 %4060
  %4062 = vrot.lane.b32.xlu0 %v3964, 126
  %v4063 = vpop.permute.xlu0 %4062
  %4064 = vrot.lane.b32.xlu0 %v3860, 126
  %v4065 = vpop.permute.xlu0 %4064
  %4066 = vrot.lane.b32.xlu0 %v3862, 126
  %v4067 = vpop.permute.xlu0 %4066
  %4068 = vrot.lane.b32.xlu0 %v3966, 126
  %v4069 = vpop.permute.xlu0 %4068
  %4070 = vrot.lane.b32.xlu0 %v3968, 126
  %v4071 = vpop.permute.xlu0 %4070
  %4072 = vrot.lane.b32.xlu0 %v3866, 126
  %v4073 = vpop.permute.xlu0 %4072
  %4074 = vrot.lane.b32.xlu0 %v3868, 126
  %v4075 = vpop.permute.xlu0 %4074
  %4076 = vrot.lane.b32.xlu0 %v3972, 126
  %v4077 = vpop.permute.xlu0 %4076
  %4078 = vrot.lane.b32.xlu0 %v3974, 126
  %v4079 = vpop.permute.xlu0 %4078
  %4080 = vrot.lane.b32.xlu0 %v3870, 126
  %v4081 = vpop.permute.xlu0 %4080
  %4082 = vrot.lane.b32.xlu0 %v3872, 126
  %v4083 = vpop.permute.xlu0 %4082
  %4084 = vrot.lane.b32.xlu0 %v3976, 126
  %v4085 = vpop.permute.xlu0 %4084
  %4086 = vrot.lane.b32.xlu0 %v3978, 126
  %v4087 = vpop.permute.xlu0 %4086
  %v4088 = vsel %vm703, %v4057, %v4059
  %v4089 = vsel %vm703, %v4059, %v4061
  %v4090 = vsel %vm703, %v4061, %v4063
  %v4091 = vsel %vm703, %v4065, %v4067
  %v4092 = vsel %vm703, %v4067, %v4069
  %v4093 = vsel %vm703, %v4069, %v4071
  %v4094 = vsel %vm703, %v4073, %v4075
  %v4095 = vsel %vm703, %v4075, %v4077
  %v4096 = vsel %vm703, %v4077, %v4079
  %v4097 = vsel %vm703, %v4081, %v4083
  %v4098 = vsel %vm703, %v4083, %v4085
  %v4099 = vsel %vm703, %v4085, %v4087
  %4116 = vrot.lane.b32.xlu0 %v3856, 104
  %v4117 = vpop.permute.xlu0 %4116
  %4118 = vrot.lane.b32.xlu0 %v3858, 104
  %v4119 = vpop.permute.xlu0 %4118
  %4120 = vrot.lane.b32.xlu0 %v3962, 104
  %v4121 = vpop.permute.xlu0 %4120
  %4122 = vrot.lane.b32.xlu0 %v3964, 104
  %v4123 = vpop.permute.xlu0 %4122
  %4124 = vrot.lane.b32.xlu0 %v3860, 104
  %v4125 = vpop.permute.xlu0 %4124
  %4126 = vrot.lane.b32.xlu0 %v3862, 104
  %v4127 = vpop.permute.xlu0 %4126
  %4128 = vrot.lane.b32.xlu0 %v3966, 104
  %v4129 = vpop.permute.xlu0 %4128
  %4130 = vrot.lane.b32.xlu0 %v3968, 104
  %v4131 = vpop.permute.xlu0 %4130
  %4132 = vrot.lane.b32.xlu0 %v3866, 104
  %v4133 = vpop.permute.xlu0 %4132
  %4134 = vrot.lane.b32.xlu0 %v3868, 104
  %v4135 = vpop.permute.xlu0 %4134
  %4136 = vrot.lane.b32.xlu0 %v3972, 104
  %v4137 = vpop.permute.xlu0 %4136
  %4138 = vrot.lane.b32.xlu0 %v3974, 104
  %v4139 = vpop.permute.xlu0 %4138
  %4140 = vrot.lane.b32.xlu0 %v3870, 104
  %v4141 = vpop.permute.xlu0 %4140
  %4142 = vrot.lane.b32.xlu0 %v3872, 104
  %v4143 = vpop.permute.xlu0 %4142
  %4144 = vrot.lane.b32.xlu0 %v3976, 104
  %v4145 = vpop.permute.xlu0 %4144
  %4146 = vrot.lane.b32.xlu0 %v3978, 104
  %v4147 = vpop.permute.xlu0 %4146
  %v4148 = vsel %vm718, %v4117, %v4119
  %v4149 = vsel %vm718, %v4119, %v4121
  %v4150 = vsel %vm718, %v4121, %v4123
  %v4151 = vsel %vm718, %v4125, %v4127
  %v4152 = vsel %vm718, %v4127, %v4129
  %v4153 = vsel %vm718, %v4129, %v4131
  %v4154 = vsel %vm718, %v4133, %v4135
  %v4155 = vsel %vm718, %v4135, %v4137
  %v4156 = vsel %vm718, %v4137, %v4139
  %v4157 = vsel %vm718, %v4141, %v4143
  %v4158 = vsel %vm718, %v4143, %v4145
  %v4159 = vsel %vm718, %v4145, %v4147
  %4176 = vrot.lane.b32.xlu0 %v3856, 103
  %v4177 = vpop.permute.xlu0 %4176
  %4178 = vrot.lane.b32.xlu0 %v3858, 103
  %v4179 = vpop.permute.xlu0 %4178
  %4180 = vrot.lane.b32.xlu0 %v3962, 103
  %v4181 = vpop.permute.xlu0 %4180
  %4182 = vrot.lane.b32.xlu0 %v3964, 103
  %v4183 = vpop.permute.xlu0 %4182
  %4184 = vrot.lane.b32.xlu0 %v3860, 103
  %v4185 = vpop.permute.xlu0 %4184
  %4186 = vrot.lane.b32.xlu0 %v3862, 103
  %v4187 = vpop.permute.xlu0 %4186
  %4188 = vrot.lane.b32.xlu0 %v3966, 103
  %v4189 = vpop.permute.xlu0 %4188
  %4190 = vrot.lane.b32.xlu0 %v3968, 103
  %v4191 = vpop.permute.xlu0 %4190
  %4192 = vrot.lane.b32.xlu0 %v3866, 103
  %v4193 = vpop.permute.xlu0 %4192
  %4194 = vrot.lane.b32.xlu0 %v3868, 103
  %v4195 = vpop.permute.xlu0 %4194
  %4196 = vrot.lane.b32.xlu0 %v3972, 103
  %v4197 = vpop.permute.xlu0 %4196
  %4198 = vrot.lane.b32.xlu0 %v3974, 103
  %v4199 = vpop.permute.xlu0 %4198
  %4200 = vrot.lane.b32.xlu0 %v3870, 103
  %v4201 = vpop.permute.xlu0 %4200
  %4202 = vrot.lane.b32.xlu0 %v3872, 103
  %v4203 = vpop.permute.xlu0 %4202
  %4204 = vrot.lane.b32.xlu0 %v3976, 103
  %v4205 = vpop.permute.xlu0 %4204
  %4206 = vrot.lane.b32.xlu0 %v3978, 103
  %v4207 = vpop.permute.xlu0 %4206
  %v4208 = vsel %vm733, %v4177, %v4179
  %v4209 = vsel %vm733, %v4179, %v4181
  %v4210 = vsel %vm733, %v4181, %v4183
  %v4211 = vsel %vm733, %v4185, %v4187
  %v4212 = vsel %vm733, %v4187, %v4189
  %v4213 = vsel %vm733, %v4189, %v4191
  %v4214 = vsel %vm733, %v4193, %v4195
  %v4215 = vsel %vm733, %v4195, %v4197
  %v4216 = vsel %vm733, %v4197, %v4199
  %v4217 = vsel %vm733, %v4201, %v4203
  %v4218 = vsel %vm733, %v4203, %v4205
  %v4219 = vsel %vm733, %v4205, %v4207
  %4236 = vrot.lane.b32.xlu0 %v3856, 102
  %v4237 = vpop.permute.xlu0 %4236
  %4238 = vrot.lane.b32.xlu0 %v3858, 102
  %v4239 = vpop.permute.xlu0 %4238
  %4240 = vrot.lane.b32.xlu0 %v3962, 102
  %v4241 = vpop.permute.xlu0 %4240
  %4242 = vrot.lane.b32.xlu0 %v3964, 102
  %v4243 = vpop.permute.xlu0 %4242
  %4244 = vrot.lane.b32.xlu0 %v3860, 102
  %v4245 = vpop.permute.xlu0 %4244
  %4246 = vrot.lane.b32.xlu0 %v3862, 102
  %v4247 = vpop.permute.xlu0 %4246
  %4248 = vrot.lane.b32.xlu0 %v3966, 102
  %v4249 = vpop.permute.xlu0 %4248
  %4250 = vrot.lane.b32.xlu0 %v3968, 102
  %v4251 = vpop.permute.xlu0 %4250
  %4252 = vrot.lane.b32.xlu0 %v3866, 102
  %v4253 = vpop.permute.xlu0 %4252
  %4254 = vrot.lane.b32.xlu0 %v3868, 102
  %v4255 = vpop.permute.xlu0 %4254
  %4256 = vrot.lane.b32.xlu0 %v3972, 102
  %v4257 = vpop.permute.xlu0 %4256
  %4258 = vrot.lane.b32.xlu0 %v3974, 102
  %v4259 = vpop.permute.xlu0 %4258
  %4260 = vrot.lane.b32.xlu0 %v3870, 102
  %v4261 = vpop.permute.xlu0 %4260
  %4262 = vrot.lane.b32.xlu0 %v3872, 102
  %v4263 = vpop.permute.xlu0 %4262
  %4264 = vrot.lane.b32.xlu0 %v3976, 102
  %v4265 = vpop.permute.xlu0 %4264
  %4266 = vrot.lane.b32.xlu0 %v3978, 102
  %v4267 = vpop.permute.xlu0 %4266
  %v4268 = vsel %vm748, %v4237, %v4239
  %v4269 = vsel %vm748, %v4239, %v4241
  %v4270 = vsel %vm748, %v4241, %v4243
  %v4271 = vsel %vm748, %v4245, %v4247
  %v4272 = vsel %vm748, %v4247, %v4249
  %v4273 = vsel %vm748, %v4249, %v4251
  %v4274 = vsel %vm748, %v4253, %v4255
  %v4275 = vsel %vm748, %v4255, %v4257
  %v4276 = vsel %vm748, %v4257, %v4259
  %v4277 = vsel %vm748, %v4261, %v4263
  %v4278 = vsel %vm748, %v4263, %v4265
  %v4279 = vsel %vm748, %v4265, %v4267
  %4296 = vrot.lane.b32.xlu0 %v3856, 80
  %v4297 = vpop.permute.xlu0 %4296
  %4298 = vrot.lane.b32.xlu0 %v3858, 80
  %v4299 = vpop.permute.xlu0 %4298
  %4300 = vrot.lane.b32.xlu0 %v3962, 80
  %v4301 = vpop.permute.xlu0 %4300
  %4302 = vrot.lane.b32.xlu0 %v3964, 80
  %v4303 = vpop.permute.xlu0 %4302
  %4304 = vrot.lane.b32.xlu0 %v3860, 80
  %v4305 = vpop.permute.xlu0 %4304
  %4306 = vrot.lane.b32.xlu0 %v3862, 80
  %v4307 = vpop.permute.xlu0 %4306
  %4308 = vrot.lane.b32.xlu0 %v3966, 80
  %v4309 = vpop.permute.xlu0 %4308
  %4310 = vrot.lane.b32.xlu0 %v3968, 80
  %v4311 = vpop.permute.xlu0 %4310
  %4312 = vrot.lane.b32.xlu0 %v3866, 80
  %v4313 = vpop.permute.xlu0 %4312
  %4314 = vrot.lane.b32.xlu0 %v3868, 80
  %v4315 = vpop.permute.xlu0 %4314
  %4316 = vrot.lane.b32.xlu0 %v3972, 80
  %v4317 = vpop.permute.xlu0 %4316
  %4318 = vrot.lane.b32.xlu0 %v3974, 80
  %v4319 = vpop.permute.xlu0 %4318
  %4320 = vrot.lane.b32.xlu0 %v3870, 80
  %v4321 = vpop.permute.xlu0 %4320
  %4322 = vrot.lane.b32.xlu0 %v3872, 80
  %v4323 = vpop.permute.xlu0 %4322
  %4324 = vrot.lane.b32.xlu0 %v3976, 80
  %v4325 = vpop.permute.xlu0 %4324
  %4326 = vrot.lane.b32.xlu0 %v3978, 80
  %v4327 = vpop.permute.xlu0 %4326
  %v4328 = vsel %vm763, %v4297, %v4299
  %v4329 = vsel %vm763, %v4299, %v4301
  %v4330 = vsel %vm763, %v4301, %v4303
  %v4331 = vsel %vm763, %v4305, %v4307
  %v4332 = vsel %vm763, %v4307, %v4309
  %v4333 = vsel %vm763, %v4309, %v4311
  %v4334 = vsel %vm763, %v4313, %v4315
  %v4335 = vsel %vm763, %v4315, %v4317
  %v4336 = vsel %vm763, %v4317, %v4319
  %v4337 = vsel %vm763, %v4321, %v4323
  %v4338 = vsel %vm763, %v4323, %v4325
  %v4339 = vsel %vm763, %v4325, %v4327
  %4356 = vrot.lane.b32.xlu0 %v3856, 79
  %v4357 = vpop.permute.xlu0 %4356
  %4358 = vrot.lane.b32.xlu0 %v3858, 79
  %v4359 = vpop.permute.xlu0 %4358
  %4360 = vrot.lane.b32.xlu0 %v3962, 79
  %v4361 = vpop.permute.xlu0 %4360
  %4362 = vrot.lane.b32.xlu0 %v3964, 79
  %v4363 = vpop.permute.xlu0 %4362
  %4364 = vrot.lane.b32.xlu0 %v3860, 79
  %v4365 = vpop.permute.xlu0 %4364
  %4366 = vrot.lane.b32.xlu0 %v3862, 79
  %v4367 = vpop.permute.xlu0 %4366
  %4368 = vrot.lane.b32.xlu0 %v3966, 79
  %v4369 = vpop.permute.xlu0 %4368
  %4370 = vrot.lane.b32.xlu0 %v3968, 79
  %v4371 = vpop.permute.xlu0 %4370
  %4372 = vrot.lane.b32.xlu0 %v3866, 79
  %v4373 = vpop.permute.xlu0 %4372
  %4374 = vrot.lane.b32.xlu0 %v3868, 79
  %v4375 = vpop.permute.xlu0 %4374
  %4376 = vrot.lane.b32.xlu0 %v3972, 79
  %v4377 = vpop.permute.xlu0 %4376
  %4378 = vrot.lane.b32.xlu0 %v3974, 79
  %v4379 = vpop.permute.xlu0 %4378
  %4380 = vrot.lane.b32.xlu0 %v3870, 79
  %v4381 = vpop.permute.xlu0 %4380
  %4382 = vrot.lane.b32.xlu0 %v3872, 79
  %v4383 = vpop.permute.xlu0 %4382
  %4384 = vrot.lane.b32.xlu0 %v3976, 79
  %v4385 = vpop.permute.xlu0 %4384
  %4386 = vrot.lane.b32.xlu0 %v3978, 79
  %v4387 = vpop.permute.xlu0 %4386
  %v4388 = vsel %vm778, %v4357, %v4359
  %v4389 = vsel %vm778, %v4359, %v4361
  %v4390 = vsel %vm778, %v4361, %v4363
  %v4391 = vsel %vm778, %v4365, %v4367
  %v4392 = vsel %vm778, %v4367, %v4369
  %v4393 = vsel %vm778, %v4369, %v4371
  %v4394 = vsel %vm778, %v4373, %v4375
  %v4395 = vsel %vm778, %v4375, %v4377
  %v4396 = vsel %vm778, %v4377, %v4379
  %v4397 = vsel %vm778, %v4381, %v4383
  %v4398 = vsel %vm778, %v4383, %v4385
  %v4399 = vsel %vm778, %v4385, %v4387
  %4416 = vrot.lane.b32.xlu0 %v3856, 78
  %v4417 = vpop.permute.xlu0 %4416
  %4418 = vrot.lane.b32.xlu0 %v3858, 78
  %v4419 = vpop.permute.xlu0 %4418
  %4420 = vrot.lane.b32.xlu0 %v3962, 78
  %v4421 = vpop.permute.xlu0 %4420
  %4422 = vrot.lane.b32.xlu0 %v3964, 78
  %v4423 = vpop.permute.xlu0 %4422
  %4424 = vrot.lane.b32.xlu0 %v3860, 78
  %v4425 = vpop.permute.xlu0 %4424
  %4426 = vrot.lane.b32.xlu0 %v3862, 78
  %v4427 = vpop.permute.xlu0 %4426
  %4428 = vrot.lane.b32.xlu0 %v3966, 78
  %v4429 = vpop.permute.xlu0 %4428
  %4430 = vrot.lane.b32.xlu0 %v3968, 78
  %v4431 = vpop.permute.xlu0 %4430
  %4432 = vrot.lane.b32.xlu0 %v3866, 78
  %v4433 = vpop.permute.xlu0 %4432
  %4434 = vrot.lane.b32.xlu0 %v3868, 78
  %v4435 = vpop.permute.xlu0 %4434
  %4436 = vrot.lane.b32.xlu0 %v3972, 78
  %v4437 = vpop.permute.xlu0 %4436
  %4438 = vrot.lane.b32.xlu0 %v3974, 78
  %v4439 = vpop.permute.xlu0 %4438
  %4440 = vrot.lane.b32.xlu0 %v3870, 78
  %v4441 = vpop.permute.xlu0 %4440
  %4442 = vrot.lane.b32.xlu0 %v3872, 78
  %v4443 = vpop.permute.xlu0 %4442
  %4444 = vrot.lane.b32.xlu0 %v3976, 78
  %v4445 = vpop.permute.xlu0 %4444
  %4446 = vrot.lane.b32.xlu0 %v3978, 78
  %v4447 = vpop.permute.xlu0 %4446
  %v4448 = vsel %vm793, %v4417, %v4419
  %v4449 = vsel %vm793, %v4419, %v4421
  %v4450 = vsel %vm793, %v4421, %v4423
  %v4451 = vsel %vm793, %v4425, %v4427
  %v4452 = vsel %vm793, %v4427, %v4429
  %v4453 = vsel %vm793, %v4429, %v4431
  %v4454 = vsel %vm793, %v4433, %v4435
  %v4455 = vsel %vm793, %v4435, %v4437
  %v4456 = vsel %vm793, %v4437, %v4439
  %v4457 = vsel %vm793, %v4441, %v4443
  %v4458 = vsel %vm793, %v4443, %v4445
  %v4459 = vsel %vm793, %v4445, %v4447
  %v4476 = vpack.c.bf16 %v3860, %v3856
  %v4477 = vpack.c.bf16 %v3862, %v3858
  %v4478 = vpack.c.bf16 %v3966, %v3962
  %v4479 = vpack.c.bf16 %v3968, %v3964
  %v4480 = vpack.c.bf16 %v3870, %v3866
  %v4481 = vpack.c.bf16 %v3872, %v3868
  %v4482 = vpack.c.bf16 %v3976, %v3972
  %v4483 = vpack.c.bf16 %v3978, %v3974
  %v4484 = vpack.c.bf16 %v4031, %v4028
  %v4485 = vpack.c.bf16 %v4032, %v4029
  %v4486 = vpack.c.bf16 %v4033, %v4030
  %v4487 = vpack.c.bf16 %v4011, %v4003
  %v4488 = vpack.c.bf16 %v4037, %v4034
  %v4489 = vpack.c.bf16 %v4038, %v4035
  %v4490 = vpack.c.bf16 %v4039, %v4036
  %v4491 = vpack.c.bf16 %v4027, %v4019
  %v4492 = vpack.c.bf16 %v4091, %v4088
  %v4493 = vpack.c.bf16 %v4092, %v4089
  %v4494 = vpack.c.bf16 %v4093, %v4090
  %v4495 = vpack.c.bf16 %v4071, %v4063
  %v4496 = vpack.c.bf16 %v4097, %v4094
  %v4497 = vpack.c.bf16 %v4098, %v4095
  %v4498 = vpack.c.bf16 %v4099, %v4096
  %v4499 = vpack.c.bf16 %v4087, %v4079
  %v4500 = vpack.c.bf16 %v4151, %v4148
  %v4501 = vpack.c.bf16 %v4152, %v4149
  %v4502 = vpack.c.bf16 %v4153, %v4150
  %v4503 = vpack.c.bf16 %v4131, %v4123
  %v4504 = vpack.c.bf16 %v4157, %v4154
  %v4505 = vpack.c.bf16 %v4158, %v4155
  %v4506 = vpack.c.bf16 %v4159, %v4156
  %v4507 = vpack.c.bf16 %v4147, %v4139
  %v4508 = vpack.c.bf16 %v4211, %v4208
  %v4509 = vpack.c.bf16 %v4212, %v4209
  %v4510 = vpack.c.bf16 %v4213, %v4210
  %v4511 = vpack.c.bf16 %v4191, %v4183
  %v4512 = vpack.c.bf16 %v4217, %v4214
  %v4513 = vpack.c.bf16 %v4218, %v4215
  %v4514 = vpack.c.bf16 %v4219, %v4216
  %v4515 = vpack.c.bf16 %v4207, %v4199
  %v4516 = vpack.c.bf16 %v4271, %v4268
  %v4517 = vpack.c.bf16 %v4272, %v4269
  %v4518 = vpack.c.bf16 %v4273, %v4270
  %v4519 = vpack.c.bf16 %v4251, %v4243
  %v4520 = vpack.c.bf16 %v4277, %v4274
  %v4521 = vpack.c.bf16 %v4278, %v4275
  %v4522 = vpack.c.bf16 %v4279, %v4276
  %v4523 = vpack.c.bf16 %v4267, %v4259
  %v4524 = vpack.c.bf16 %v4331, %v4328
  %v4525 = vpack.c.bf16 %v4332, %v4329
  %v4526 = vpack.c.bf16 %v4333, %v4330
  %v4527 = vpack.c.bf16 %v4311, %v4303
  %v4528 = vpack.c.bf16 %v4337, %v4334
  %v4529 = vpack.c.bf16 %v4338, %v4335
  %v4530 = vpack.c.bf16 %v4339, %v4336
  %v4531 = vpack.c.bf16 %v4327, %v4319
  %v4532 = vpack.c.bf16 %v4391, %v4388
  %v4533 = vpack.c.bf16 %v4392, %v4389
  %v4534 = vpack.c.bf16 %v4393, %v4390
  %v4535 = vpack.c.bf16 %v4371, %v4363
  %v4536 = vpack.c.bf16 %v4397, %v4394
  %v4537 = vpack.c.bf16 %v4398, %v4395
  %v4538 = vpack.c.bf16 %v4399, %v4396
  %v4539 = vpack.c.bf16 %v4387, %v4379
  %v4540 = vpack.c.bf16 %v4451, %v4448
  %v4541 = vpack.c.bf16 %v4452, %v4449
  %v4542 = vpack.c.bf16 %v4453, %v4450
  %v4543 = vpack.c.bf16 %v4431, %v4423
  %v4544 = vpack.c.bf16 %v4457, %v4454
  %v4545 = vpack.c.bf16 %v4458, %v4455
  %v4546 = vpack.c.bf16 %v4459, %v4456
  %v4547 = vpack.c.bf16 %v4447, %v4439
  %4549 = vset.pattern.permute.xlu0 0
  %4550 = vperm.xlu0 %4549, %v2483
  %v4551 = vpop.permute.xlu0 %4550
  %4554 = vset.pattern.permute.xlu0 0
  %4555 = vperm.xlu0 %4554, %v2484
  %v4556 = vpop.permute.xlu0 %4555
  %4559 = vset.pattern.permute.xlu0 0
  %4560 = vperm.xlu0 %4559, %v2485
  %v4561 = vpop.permute.xlu0 %4560
  %4564 = vset.pattern.permute.xlu0 0
  %4565 = vperm.xlu0 %4564, %v2486
  %v4566 = vpop.permute.xlu0 %4565
  %v4576 = vunpack.c.l.b16 %v2475
  %v4577 = vunpack.c.h.b16 %v2475
  %v4578 = vunpack.c.l.b16 %v2476
  %v4579 = vunpack.c.l.b16 %v2477
  %v4580 = vunpack.c.h.b16 %v2477
  %v4581 = vunpack.c.l.b16 %v2478
  %v4582 = vunpack.c.l.b16 %v2479
  %v4583 = vunpack.c.h.b16 %v2479
  %v4584 = vunpack.c.l.b16 %v2480
  %v4585 = vunpack.c.l.b16 %v2481
  %v4586 = vunpack.c.h.b16 %v2481
  %v4587 = vunpack.c.l.b16 %v2482
  %v4588 = vpack.c.b16 %v4579, %v4576
  %v4589 = vpack.c.b16 %v4580, %v4577
  %v4590 = vpack.c.b16 %v4581, %v4578
  %v4591 = vpack.c.b16 %v4585, %v4582
  %v4592 = vpack.c.b16 %v4586, %v4583
  %v4593 = vpack.c.b16 %v4587, %v4584
  %4670 = vrot.lane.b32.xlu0 %v4476, 53
  %v4671 = vpop.permute.xlu0 %4670
  %4672 = vrot.lane.b32.xlu0 %v4477, 53
  %v4673 = vpop.permute.xlu0 %4672
  %4674 = vrot.lane.b32.xlu0 %v4478, 53
  %v4675 = vpop.permute.xlu0 %4674
  %4676 = vrot.lane.b32.xlu0 %v4479, 53
  %v4677 = vpop.permute.xlu0 %4676
  %4678 = vrot.lane.b32.xlu0 %v4480, 53
  %v4679 = vpop.permute.xlu0 %4678
  %4680 = vrot.lane.b32.xlu0 %v4481, 53
  %v4681 = vpop.permute.xlu0 %4680
  %4682 = vrot.lane.b32.xlu0 %v4482, 53
  %v4683 = vpop.permute.xlu0 %4682
  %4684 = vrot.lane.b32.xlu0 %v4483, 53
  %v4685 = vpop.permute.xlu0 %4684
  %4686 = vrot.lane.b32.xlu0 %v4484, 53
  %v4687 = vpop.permute.xlu0 %4686
  %4688 = vrot.lane.b32.xlu0 %v4485, 53
  %v4689 = vpop.permute.xlu0 %4688
  %4690 = vrot.lane.b32.xlu0 %v4486, 53
  %v4691 = vpop.permute.xlu0 %4690
  %4692 = vrot.lane.b32.xlu0 %v4487, 53
  %v4693 = vpop.permute.xlu0 %4692
  %4694 = vrot.lane.b32.xlu0 %v4488, 53
  %v4695 = vpop.permute.xlu0 %4694
  %4696 = vrot.lane.b32.xlu0 %v4489, 53
  %v4697 = vpop.permute.xlu0 %4696
  %4698 = vrot.lane.b32.xlu0 %v4490, 53
  %v4699 = vpop.permute.xlu0 %4698
  %4700 = vrot.lane.b32.xlu0 %v4491, 53
  %v4701 = vpop.permute.xlu0 %4700
  %4702 = vrot.lane.b32.xlu0 %v4492, 53
  %v4703 = vpop.permute.xlu0 %4702
  %4704 = vrot.lane.b32.xlu0 %v4493, 53
  %v4705 = vpop.permute.xlu0 %4704
  %4706 = vrot.lane.b32.xlu0 %v4494, 53
  %v4707 = vpop.permute.xlu0 %4706
  %4708 = vrot.lane.b32.xlu0 %v4495, 53
  %v4709 = vpop.permute.xlu0 %4708
  %4710 = vrot.lane.b32.xlu0 %v4496, 53
  %v4711 = vpop.permute.xlu0 %4710
  %4712 = vrot.lane.b32.xlu0 %v4497, 53
  %v4713 = vpop.permute.xlu0 %4712
  %4714 = vrot.lane.b32.xlu0 %v4498, 53
  %v4715 = vpop.permute.xlu0 %4714
  %4716 = vrot.lane.b32.xlu0 %v4499, 53
  %v4717 = vpop.permute.xlu0 %4716
  %4718 = vrot.lane.b32.xlu0 %v4500, 53
  %v4719 = vpop.permute.xlu0 %4718
  %4720 = vrot.lane.b32.xlu0 %v4501, 53
  %v4721 = vpop.permute.xlu0 %4720
  %4722 = vrot.lane.b32.xlu0 %v4502, 53
  %v4723 = vpop.permute.xlu0 %4722
  %4724 = vrot.lane.b32.xlu0 %v4503, 53
  %v4725 = vpop.permute.xlu0 %4724
  %4726 = vrot.lane.b32.xlu0 %v4504, 53
  %v4727 = vpop.permute.xlu0 %4726
  %4728 = vrot.lane.b32.xlu0 %v4505, 53
  %v4729 = vpop.permute.xlu0 %4728
  %4730 = vrot.lane.b32.xlu0 %v4506, 53
  %v4731 = vpop.permute.xlu0 %4730
  %4732 = vrot.lane.b32.xlu0 %v4507, 53
  %v4733 = vpop.permute.xlu0 %4732
  %4734 = vrot.lane.b32.xlu0 %v4508, 53
  %v4735 = vpop.permute.xlu0 %4734
  %4736 = vrot.lane.b32.xlu0 %v4509, 53
  %v4737 = vpop.permute.xlu0 %4736
  %4738 = vrot.lane.b32.xlu0 %v4510, 53
  %v4739 = vpop.permute.xlu0 %4738
  %4740 = vrot.lane.b32.xlu0 %v4511, 53
  %v4741 = vpop.permute.xlu0 %4740
  %4742 = vrot.lane.b32.xlu0 %v4512, 53
  %v4743 = vpop.permute.xlu0 %4742
  %4744 = vrot.lane.b32.xlu0 %v4513, 53
  %v4745 = vpop.permute.xlu0 %4744
  %4746 = vrot.lane.b32.xlu0 %v4514, 53
  %v4747 = vpop.permute.xlu0 %4746
  %4748 = vrot.lane.b32.xlu0 %v4515, 53
  %v4749 = vpop.permute.xlu0 %4748
  %4750 = vrot.lane.b32.xlu0 %v4516, 53
  %v4751 = vpop.permute.xlu0 %4750
  %4752 = vrot.lane.b32.xlu0 %v4517, 53
  %v4753 = vpop.permute.xlu0 %4752
  %4754 = vrot.lane.b32.xlu0 %v4518, 53
  %v4755 = vpop.permute.xlu0 %4754
  %4756 = vrot.lane.b32.xlu0 %v4519, 53
  %v4757 = vpop.permute.xlu0 %4756
  %4758 = vrot.lane.b32.xlu0 %v4520, 53
  %v4759 = vpop.permute.xlu0 %4758
  %4760 = vrot.lane.b32.xlu0 %v4521, 53
  %v4761 = vpop.permute.xlu0 %4760
  %4762 = vrot.lane.b32.xlu0 %v4522, 53
  %v4763 = vpop.permute.xlu0 %4762
  %4764 = vrot.lane.b32.xlu0 %v4523, 53
  %v4765 = vpop.permute.xlu0 %4764
  %4766 = vrot.lane.b32.xlu0 %v4524, 53
  %v4767 = vpop.permute.xlu0 %4766
  %4768 = vrot.lane.b32.xlu0 %v4525, 53
  %v4769 = vpop.permute.xlu0 %4768
  %4770 = vrot.lane.b32.xlu0 %v4526, 53
  %v4771 = vpop.permute.xlu0 %4770
  %4772 = vrot.lane.b32.xlu0 %v4527, 53
  %v4773 = vpop.permute.xlu0 %4772
  %4774 = vrot.lane.b32.xlu0 %v4528, 53
  %v4775 = vpop.permute.xlu0 %4774
  %4776 = vrot.lane.b32.xlu0 %v4529, 53
  %v4777 = vpop.permute.xlu0 %4776
  %4778 = vrot.lane.b32.xlu0 %v4530, 53
  %v4779 = vpop.permute.xlu0 %4778
  %4780 = vrot.lane.b32.xlu0 %v4531, 53
  %v4781 = vpop.permute.xlu0 %4780
  %4782 = vrot.lane.b32.xlu0 %v4532, 53
  %v4783 = vpop.permute.xlu0 %4782
  %4784 = vrot.lane.b32.xlu0 %v4533, 53
  %v4785 = vpop.permute.xlu0 %4784
  %4786 = vrot.lane.b32.xlu0 %v4534, 53
  %v4787 = vpop.permute.xlu0 %4786
  %4788 = vrot.lane.b32.xlu0 %v4535, 53
  %v4789 = vpop.permute.xlu0 %4788
  %4790 = vrot.lane.b32.xlu0 %v4536, 53
  %v4791 = vpop.permute.xlu0 %4790
  %4792 = vrot.lane.b32.xlu0 %v4537, 53
  %v4793 = vpop.permute.xlu0 %4792
  %4794 = vrot.lane.b32.xlu0 %v4538, 53
  %v4795 = vpop.permute.xlu0 %4794
  %4796 = vrot.lane.b32.xlu0 %v4539, 53
  %v4797 = vpop.permute.xlu0 %4796
  %4798 = vrot.lane.b32.xlu0 %v4540, 53
  %v4799 = vpop.permute.xlu0 %4798
  %4800 = vrot.lane.b32.xlu0 %v4541, 53
  %v4801 = vpop.permute.xlu0 %4800
  %4802 = vrot.lane.b32.xlu0 %v4542, 53
  %v4803 = vpop.permute.xlu0 %4802
  %4804 = vrot.lane.b32.xlu0 %v4543, 53
  %v4805 = vpop.permute.xlu0 %4804
  %4806 = vrot.lane.b32.xlu0 %v4544, 53
  %v4807 = vpop.permute.xlu0 %4806
  %4808 = vrot.lane.b32.xlu0 %v4545, 53
  %v4809 = vpop.permute.xlu0 %4808
  %4810 = vrot.lane.b32.xlu0 %v4546, 53
  %v4811 = vpop.permute.xlu0 %4810
  %4812 = vrot.lane.b32.xlu0 %v4547, 53
  %v4813 = vpop.permute.xlu0 %4812
  %v4814 = vsel %vm2696, %v4671, %v4673
  %v4815 = vsel %vm2696, %v4673, %v4675
  %v4816 = vsel %vm2696, %v4675, %v4677
  %v4817 = vsel %vm2696, %v4679, %v4681
  %v4818 = vsel %vm2696, %v4681, %v4683
  %v4819 = vsel %vm2696, %v4683, %v4685
  %v4820 = vsel %vm2696, %v4687, %v4689
  %v4821 = vsel %vm2696, %v4689, %v4691
  %v4822 = vsel %vm2696, %v4691, %v4693
  %v4823 = vsel %vm2696, %v4695, %v4697
  %v4824 = vsel %vm2696, %v4697, %v4699
  %v4825 = vsel %vm2696, %v4699, %v4701
  %v4826 = vsel %vm2696, %v4703, %v4705
  %v4827 = vsel %vm2696, %v4705, %v4707
  %v4828 = vsel %vm2696, %v4707, %v4709
  %v4829 = vsel %vm2696, %v4711, %v4713
  %v4830 = vsel %vm2696, %v4713, %v4715
  %v4831 = vsel %vm2696, %v4715, %v4717
  %v4832 = vsel %vm2696, %v4719, %v4721
  %v4833 = vsel %vm2696, %v4721, %v4723
  %v4834 = vsel %vm2696, %v4723, %v4725
  %v4835 = vsel %vm2696, %v4727, %v4729
  %v4836 = vsel %vm2696, %v4729, %v4731
  %v4837 = vsel %vm2696, %v4731, %v4733
  %v4838 = vsel %vm2696, %v4735, %v4737
  %v4839 = vsel %vm2696, %v4737, %v4739
  %v4840 = vsel %vm2696, %v4739, %v4741
  %v4841 = vsel %vm2696, %v4743, %v4745
  %v4842 = vsel %vm2696, %v4745, %v4747
  %v4843 = vsel %vm2696, %v4747, %v4749
  %v4844 = vsel %vm2696, %v4751, %v4753
  %v4845 = vsel %vm2696, %v4753, %v4755
  %v4846 = vsel %vm2696, %v4755, %v4757
  %v4847 = vsel %vm2696, %v4759, %v4761
  %v4848 = vsel %vm2696, %v4761, %v4763
  %v4849 = vsel %vm2696, %v4763, %v4765
  %v4850 = vsel %vm2696, %v4767, %v4769
  %v4851 = vsel %vm2696, %v4769, %v4771
  %v4852 = vsel %vm2696, %v4771, %v4773
  %v4853 = vsel %vm2696, %v4775, %v4777
  %v4854 = vsel %vm2696, %v4777, %v4779
  %v4855 = vsel %vm2696, %v4779, %v4781
  %v4856 = vsel %vm2696, %v4783, %v4785
  %v4857 = vsel %vm2696, %v4785, %v4787
  %v4858 = vsel %vm2696, %v4787, %v4789
  %v4859 = vsel %vm2696, %v4791, %v4793
  %v4860 = vsel %vm2696, %v4793, %v4795
  %v4861 = vsel %vm2696, %v4795, %v4797
  %v4862 = vsel %vm2696, %v4799, %v4801
  %v4863 = vsel %vm2696, %v4801, %v4803
  %v4864 = vsel %vm2696, %v4803, %v4805
  %v4865 = vsel %vm2696, %v4807, %v4809
  %v4866 = vsel %vm2696, %v4809, %v4811
  %v4867 = vsel %vm2696, %v4811, %v4813
  %v4923 = vsel %vm2916, %v4590, 0
  %v4926 = vsel %vm2916, %v4593, 0
  %4928 = vmatprep.subr.bf16.mxu0 %v4815
  %4929 = vmatpush1.bf16.msra.mxu0 %v4814
  %4930 = vmatprep.subr.bf16.mxu0 %v4818
  %4931 = vmatpush1.bf16.msra.mxu0 %v4817
  %4932 = vmatprep.subr.bf16.mxu0 %v4821
  %4933 = vmatpush1.bf16.msra.mxu0 %v4820
  %4934 = vmatprep.subr.bf16.mxu0 %v4824
  %4935 = vmatpush1.bf16.msra.mxu0 %v4823
  %4936 = vmatprep.subr.bf16.mxu0 %v4827
  %4937 = vmatpush1.bf16.msra.mxu0 %v4826
  %4938 = vmatprep.subr.bf16.mxu0 %v4830
  %4939 = vmatpush1.bf16.msra.mxu0 %v4829
  %4940 = vmatprep.subr.bf16.mxu0 %v4833
  %4941 = vmatpush1.bf16.msra.mxu0 %v4832
  %4942 = vmatprep.subr.bf16.mxu0 %v4836
  %4943 = vmatpush1.bf16.msra.mxu0 %v4835
  %4944 = vmatprep.subr.bf16.mxu0 %v4839
  %4945 = vmatpush1.bf16.msra.mxu0 %v4838
  %4946 = vmatprep.subr.bf16.mxu0 %v4842
  %4947 = vmatpush1.bf16.msra.mxu0 %v4841
  %4948 = vmatprep.subr.bf16.mxu0 %v4845
  %4949 = vmatpush1.bf16.msra.mxu0 %v4844
  %4950 = vmatprep.subr.bf16.mxu0 %v4848
  %4951 = vmatpush1.bf16.msra.mxu0 %v4847
  %4952 = vmatprep.subr.bf16.mxu0 %v4851
  %4953 = vmatpush1.bf16.msra.mxu0 %v4850
  %4954 = vmatprep.subr.bf16.mxu0 %v4854
  %4955 = vmatpush1.bf16.msra.mxu0 %v4853
  %4956 = vmatprep.subr.bf16.mxu0 %v4857
  %4957 = vmatpush1.bf16.msra.mxu0 %v4856
  %4958 = vmatprep.subr.bf16.mxu0 %v4860
  %4959 = vmatpush1.bf16.msra.mxu0 %v4859
  %4960 = vmatprep.mubr.bf16.mxu0 %v4589
  %4961 = vmatmul.mubr.bf16.gmra.mrb[0].mxu0 %v4588
  %v4962 = vpop.f32.mrb[0].mxu0
  %v4963 = vadd.f32 %v4551, %v4962
  %v4964 = vpop.f32.mrb[0].mxu0
  %v4965 = vadd.f32 %v4551, %v4964
  %v4966 = vpop.f32.mrb[0].mxu0
  %v4967 = vadd.f32 %v4556, %v4966
  %v4968 = vpop.f32.mrb[0].mxu0
  %v4969 = vadd.f32 %v4556, %v4968
  %4970 = vmatprep.mubr.bf16.mxu0 %v4592
  %4971 = vmatmul.mubr.bf16.gmra.mrb[0].mxu0 %v4591
  %v4972 = vpop.f32.mrb[0].mxu0
  %v4973 = vadd.f32 %v4561, %v4972
  %v4974 = vpop.f32.mrb[0].mxu0
  %v4975 = vadd.f32 %v4561, %v4974
  %v4976 = vpop.f32.mrb[0].mxu0
  %v4977 = vadd.f32 %v4566, %v4976
  %v4978 = vpop.f32.mrb[0].mxu0
  %v4979 = vadd.f32 %v4566, %v4978
  %4980 = vdwg.mxu0
  %4981 = vmatprep.subr.bf16.mxu0 %v4863
  %4982 = vmatpush1.bf16.msra.mxu0 %v4862
  %4983 = vmatprep.subr.bf16.mxu0 %v4866
  %4984 = vmatpush1.bf16.msra.mxu0 %v4865
  %4985 = vmatprep.subr.bf16.mxu0 0
  %4986 = vmatpush1.bf16.msra.mxu0 0
  %4987 = vmatprep.subr.bf16.mxu0 0
  %4988 = vmatpush1.bf16.msra.mxu0 0
  %4989 = vmatprep.subr.bf16.mxu0 0
  %4990 = vmatpush1.bf16.msra.mxu0 0
  %4991 = vmatprep.subr.bf16.mxu0 0
  %4992 = vmatpush1.bf16.msra.mxu0 0
  %4993 = vmatprep.subr.bf16.mxu0 0
  %4994 = vmatpush1.bf16.msra.mxu0 0
  %4995 = vmatprep.subr.bf16.mxu0 0
  %4996 = vmatpush1.bf16.msra.mxu0 0
  %4997 = vmatprep.subr.bf16.mxu0 0
  %4998 = vmatpush1.bf16.msra.mxu0 0
  %4999 = vmatprep.subr.bf16.mxu0 0
  %5000 = vmatpush1.bf16.msra.mxu0 0
  %5001 = vmatprep.subr.bf16.mxu0 0
  %5002 = vmatpush1.bf16.msra.mxu0 0
  %5003 = vmatprep.subr.bf16.mxu0 0
  %5004 = vmatpush1.bf16.msra.mxu0 0
  %5005 = vmatprep.subr.bf16.mxu0 0
  %5006 = vmatpush1.bf16.msra.mxu0 0
  %5007 = vmatprep.subr.bf16.mxu0 0
  %5008 = vmatpush1.bf16.msra.mxu0 0
  %5009 = vmatprep.subr.bf16.mxu0 0
  %5010 = vmatpush1.bf16.msra.mxu0 0
  %5011 = vmatprep.subr.bf16.mxu0 0
  %5012 = vmatpush1.bf16.msra.mxu0 0
  %5013 = vmatprep.mubr.bf16.mxu0 0
  %5014 = vmatmul.mubr.bf16.gmra.mrb[0].mxu0 %v4923
  %v5015 = vpop.f32.mrb[0].mxu0
  %v5016 = vadd.f32 %v4963, %v5015
  %v5017 = vpop.f32.mrb[0].mxu0
  %v5018 = vadd.f32 %v4965, %v5017
  %v5019 = vpop.f32.mrb[0].mxu0
  %v5020 = vadd.f32 %v4967, %v5019
  %v5021 = vpop.f32.mrb[0].mxu0
  %v5022 = vadd.f32 %v4969, %v5021
  %5023 = vmatprep.mubr.bf16.mxu0 0
  %5024 = vmatmul.mubr.bf16.gmra.mrb[0].mxu0 %v4926
  %v5025 = vpop.f32.mrb[0].mxu0
  %v5026 = vadd.f32 %v4973, %v5025
  %v5027 = vpop.f32.mrb[0].mxu0
  %v5028 = vadd.f32 %v4975, %v5027
  %v5029 = vpop.f32.mrb[0].mxu0
  %v5030 = vadd.f32 %v4977, %v5029
  %v5031 = vpop.f32.mrb[0].mxu0
  %v5032 = vadd.f32 %v4979, %v5031
  %5033 = vdwg.mxu0
  %5034 = vmatprep.subr.bf16.mxu0 0
  %5035 = vmatpush1.bf16.msra.mxu0 %v4816
  %5036 = vmatprep.subr.bf16.mxu0 0
  %5037 = vmatpush1.bf16.msra.mxu0 %v4819
  %5038 = vmatprep.subr.bf16.mxu0 0
  %5039 = vmatpush1.bf16.msra.mxu0 %v4822
  %5040 = vmatprep.subr.bf16.mxu0 0
  %5041 = vmatpush1.bf16.msra.mxu0 %v4825
  %5042 = vmatprep.subr.bf16.mxu0 0
  %5043 = vmatpush1.bf16.msra.mxu0 %v4828
  %5044 = vmatprep.subr.bf16.mxu0 0
  %5045 = vmatpush1.bf16.msra.mxu0 %v4831
  %5046 = vmatprep.subr.bf16.mxu0 0
  %5047 = vmatpush1.bf16.msra.mxu0 %v4834
  %5048 = vmatprep.subr.bf16.mxu0 0
  %5049 = vmatpush1.bf16.msra.mxu0 %v4837
  %5050 = vmatprep.subr.bf16.mxu0 0
  %5051 = vmatpush1.bf16.msra.mxu0 %v4840
  %5052 = vmatprep.subr.bf16.mxu0 0
  %5053 = vmatpush1.bf16.msra.mxu0 %v4843
  %5054 = vmatprep.subr.bf16.mxu0 0
  %5055 = vmatpush1.bf16.msra.mxu0 %v4846
  %5056 = vmatprep.subr.bf16.mxu0 0
  %5057 = vmatpush1.bf16.msra.mxu0 %v4849
  %5058 = vmatprep.subr.bf16.mxu0 0
  %5059 = vmatpush1.bf16.msra.mxu0 %v4852
  %5060 = vmatprep.subr.bf16.mxu0 0
  %5061 = vmatpush1.bf16.msra.mxu0 %v4855
  %5062 = vmatprep.subr.bf16.mxu0 0
  %5063 = vmatpush1.bf16.msra.mxu0 %v4858
  %5064 = vmatprep.subr.bf16.mxu0 0
  %5065 = vmatpush1.bf16.msra.mxu0 %v4861
  %5066 = vmatprep.mubr.bf16.mxu0 %v4589
  %5067 = vmatmul.mubr.bf16.gmra.mrb[0].mxu0 %v4588
  %v5068 = vpop.f32.mrb[0].mxu0
  %v5069 = vadd.f32 %v4551, %v5068
  %v5070 = vpop.f32.mrb[0].mxu0
  %v5071 = vpop.f32.mrb[0].mxu0
  %v5072 = vadd.f32 %v4556, %v5071
  %v5073 = vpop.f32.mrb[0].mxu0
  %5074 = vmatprep.mubr.bf16.mxu0 %v4592
  %5075 = vmatmul.mubr.bf16.gmra.mrb[0].mxu0 %v4591
  %v5076 = vpop.f32.mrb[0].mxu0
  %v5077 = vadd.f32 %v4561, %v5076
  %v5078 = vpop.f32.mrb[0].mxu0
  %v5079 = vpop.f32.mrb[0].mxu0
  %v5080 = vadd.f32 %v4566, %v5079
  %v5081 = vpop.f32.mrb[0].mxu0
  %5082 = vdwg.mxu0
  %5083 = vmatprep.subr.bf16.mxu0 0
  %5084 = vmatpush1.bf16.msra.mxu0 %v4864
  %5085 = vmatprep.subr.bf16.mxu0 0
  %5086 = vmatpush1.bf16.msra.mxu0 %v4867
  %5087 = vmatprep.subr.bf16.mxu0 0
  %5088 = vmatpush1.bf16.msra.mxu0 0
  %5089 = vmatprep.subr.bf16.mxu0 0
  %5090 = vmatpush1.bf16.msra.mxu0 0
  %5091 = vmatprep.subr.bf16.mxu0 0
  %5092 = vmatpush1.bf16.msra.mxu0 0
  %5093 = vmatprep.subr.bf16.mxu0 0
  %5094 = vmatpush1.bf16.msra.mxu0 0
  %5095 = vmatprep.subr.bf16.mxu0 0
  %5096 = vmatpush1.bf16.msra.mxu0 0
  %5097 = vmatprep.subr.bf16.mxu0 0
  %5098 = vmatpush1.bf16.msra.mxu0 0
  %5099 = vmatprep.subr.bf16.mxu0 0
  %5100 = vmatpush1.bf16.msra.mxu0 0
  %5101 = vmatprep.subr.bf16.mxu0 0
  %5102 = vmatpush1.bf16.msra.mxu0 0
  %5103 = vmatprep.subr.bf16.mxu0 0
  %5104 = vmatpush1.bf16.msra.mxu0 0
  %5105 = vmatprep.subr.bf16.mxu0 0
  %5106 = vmatpush1.bf16.msra.mxu0 0
  %5107 = vmatprep.subr.bf16.mxu0 0
  %5108 = vmatpush1.bf16.msra.mxu0 0
  %5109 = vmatprep.subr.bf16.mxu0 0
  %5110 = vmatpush1.bf16.msra.mxu0 0
  %5111 = vmatprep.subr.bf16.mxu0 0
  %5112 = vmatpush1.bf16.msra.mxu0 0
  %5113 = vmatprep.subr.bf16.mxu0 0
  %5114 = vmatpush1.bf16.msra.mxu0 0
  %5115 = vmatprep.mubr.bf16.mxu0 0
  %5116 = vmatmul.mubr.bf16.gmra.mrb[0].mxu0 %v4923
  %v5117 = vpop.f32.mrb[0].mxu0
  %v5118 = vadd.f32 %v5069, %v5117
  %v5119 = vpop.f32.mrb[0].mxu0
  %v5120 = vpop.f32.mrb[0].mxu0
  %v5121 = vadd.f32 %v5072, %v5120
  %v5122 = vpop.f32.mrb[0].mxu0
  %5123 = vmatprep.mubr.bf16.mxu0 0
  %5124 = vmatmul.mubr.bf16.gmra.mrb[0].mxu0 %v4926
  %v5125 = vpop.f32.mrb[0].mxu0
  %v5126 = vadd.f32 %v5077, %v5125
  %v5127 = vpop.f32.mrb[0].mxu0
  %v5128 = vpop.f32.mrb[0].mxu0
  %v5129 = vadd.f32 %v5080, %v5128
  %v5130 = vpop.f32.mrb[0].mxu0
  %5131 = vdwg.mxu0
  %vm5132 = vcmp.gt.f32.partialorder %v5016, 0.0
  %vm5133 = vcmp.gt.f32.partialorder %v5018, 0.0
  %vm5134 = vcmp.gt.f32.partialorder %v5118, 0.0
  %vm5135 = vcmp.gt.f32.partialorder %v5020, 0.0
  %vm5136 = vcmp.gt.f32.partialorder %v5022, 0.0
  %vm5137 = vcmp.gt.f32.partialorder %v5121, 0.0
  %vm5138 = vcmp.gt.f32.partialorder %v5026, 0.0
  %vm5139 = vcmp.gt.f32.partialorder %v5028, 0.0
  %vm5140 = vcmp.gt.f32.partialorder %v5126, 0.0
  %vm5141 = vcmp.gt.f32.partialorder %v5030, 0.0
  %vm5142 = vcmp.gt.f32.partialorder %v5032, 0.0
  %vm5143 = vcmp.gt.f32.partialorder %v5129, 0.0
  %v5144 = vmul.f32 %v5016, 0.01
  %v5145 = vmul.f32 %v5018, 0.01
  %v5146 = vmul.f32 %v5118, 0.01
  %v5147 = vmul.f32 %v5020, 0.01
  %v5148 = vmul.f32 %v5022, 0.01
  %v5149 = vmul.f32 %v5121, 0.01
  %v5150 = vmul.f32 %v5026, 0.01
  %v5151 = vmul.f32 %v5028, 0.01
  %v5152 = vmul.f32 %v5126, 0.01
  %v5153 = vmul.f32 %v5030, 0.01
  %v5154 = vmul.f32 %v5032, 0.01
  %v5155 = vmul.f32 %v5129, 0.01
  %v5156 = vsel %vm5132, %v5016, %v5144
  %v5157 = vsel %vm5133, %v5018, %v5145
  %v5158 = vsel %vm5134, %v5118, %v5146
  %v5159 = vsel %vm5135, %v5020, %v5147
  %v5160 = vsel %vm5136, %v5022, %v5148
  %v5161 = vsel %vm5137, %v5121, %v5149
  %v5162 = vsel %vm5138, %v5026, %v5150
  %v5163 = vsel %vm5139, %v5028, %v5151
  %v5164 = vsel %vm5140, %v5126, %v5152
  %v5165 = vsel %vm5141, %v5030, %v5153
  %v5166 = vsel %vm5142, %v5032, %v5154
  %v5167 = vsel %vm5143, %v5129, %v5155
  %v5168 = vld [vmem:[#allocation2] sm:$0xff]
  %v5169 = vld [vmem:[#allocation2 + $0x8] sm:$0xff]
  %v5170 = vld [vmem:[#allocation2 + $0x10] sm:$0xff]
  %v5171 = vld [vmem:[#allocation2 + $0x18] sm:$0xff]
  %v5172 = vld [vmem:[#allocation2 + $0x20] sm:$0xff]
  %v5173 = vld [vmem:[#allocation2 + $0x28] sm:$0xff]
  %v5174 = vld [vmem:[#allocation2 + $0x30] sm:$0xff]
  %v5175 = vld [vmem:[#allocation2 + $0x38] sm:$0xff]
  %v5176 = vld [vmem:[#allocation2 + $0x40] sm:$0xff]
  %v5177 = vld [vmem:[#allocation2 + $0x48] sm:$0xff]
  %v5178 = vld [vmem:[#allocation2 + $0x50] sm:$0xff]
  %v5179 = vld [vmem:[#allocation2 + $0x58] sm:$0xff]
  %v5180 = vadd.f32 %v5168, %v5156
  %v5181 = vadd.f32 %v5169, %v5157
  %v5182 = vadd.f32 %v5170, %v5158
  %v5183 = vadd.f32 %v5171, %v5159
  %v5184 = vadd.f32 %v5172, %v5160
  %v5185 = vadd.f32 %v5173, %v5161
  %v5186 = vadd.f32 %v5174, %v5162
  %v5187 = vadd.f32 %v5175, %v5163
  %v5188 = vadd.f32 %v5176, %v5164
  %v5189 = vadd.f32 %v5177, %v5165
  %v5190 = vadd.f32 %v5178, %v5166
  %v5191 = vadd.f32 %v5179, %v5167
  %5192 = vst [vmem:[#allocation2] sm:$0xff] %v5180
  %5193 = vst [vmem:[#allocation2 + $0x8] sm:$0xff] %v5181
  %5194 = vst [vmem:[#allocation2 + $0x10] sm:$0xff] %v5182
  %5195 = vst [vmem:[#allocation2 + $0x18] sm:$0xff] %v5183
  %5196 = vst [vmem:[#allocation2 + $0x20] sm:$0xff] %v5184
  %5197 = vst [vmem:[#allocation2 + $0x28] sm:$0xff] %v5185
  %5198 = vst [vmem:[#allocation2 + $0x30] sm:$0xff] %v5186
  %5199 = vst [vmem:[#allocation2 + $0x38] sm:$0xff] %v5187
  %5200 = vst [vmem:[#allocation2 + $0x40] sm:$0xff] %v5188
  %5201 = vst [vmem:[#allocation2 + $0x48] sm:$0xff] %v5189
  %5202 = vst [vmem:[#allocation2 + $0x50] sm:$0xff] %v5190
  %5203 = vst [vmem:[#allocation2 + $0x58] sm:$0xff] %v5191
  %5208 = vrot.lane.b32.xlu0 %v2177, 127
  %v5209 = vpop.permute.xlu0 %5208
  %5210 = vrot.lane.b32.xlu0 %v2179, 127
  %v5211 = vpop.permute.xlu0 %5210
  %5212 = vrot.lane.b32.xlu0 %v2323, 127
  %v5213 = vpop.permute.xlu0 %5212
  %5214 = vrot.lane.b32.xlu0 %v2325, 127
  %v5215 = vpop.permute.xlu0 %5214
  %v5216 = vsel %vm688, %v5209, %v5211
  %v5217 = vsel %vm688, %v5211, %v5213
  %v5218 = vsel %vm688, %v5213, %v5215
  %5223 = vrot.lane.b32.xlu0 %v2177, 126
  %v5224 = vpop.permute.xlu0 %5223
  %5225 = vrot.lane.b32.xlu0 %v2179, 126
  %v5226 = vpop.permute.xlu0 %5225
  %5227 = vrot.lane.b32.xlu0 %v2323, 126
  %v5228 = vpop.permute.xlu0 %5227
  %5229 = vrot.lane.b32.xlu0 %v2325, 126
  %v5230 = vpop.permute.xlu0 %5229
  %v5231 = vsel %vm703, %v5224, %v5226
  %v5232 = vsel %vm703, %v5226, %v5228
  %v5233 = vsel %vm703, %v5228, %v5230
  %5238 = vrot.lane.b32.xlu0 %v2177, 104
  %v5239 = vpop.permute.xlu0 %5238
  %5240 = vrot.lane.b32.xlu0 %v2179, 104
  %v5241 = vpop.permute.xlu0 %5240
  %5242 = vrot.lane.b32.xlu0 %v2323, 104
  %v5243 = vpop.permute.xlu0 %5242
  %5244 = vrot.lane.b32.xlu0 %v2325, 104
  %v5245 = vpop.permute.xlu0 %5244
  %v5246 = vsel %vm718, %v5239, %v5241
  %v5247 = vsel %vm718, %v5241, %v5243
  %v5248 = vsel %vm718, %v5243, %v5245
  %5253 = vrot.lane.b32.xlu0 %v2177, 103
  %v5254 = vpop.permute.xlu0 %5253
  %5255 = vrot.lane.b32.xlu0 %v2179, 103
  %v5256 = vpop.permute.xlu0 %5255
  %5257 = vrot.lane.b32.xlu0 %v2323, 103
  %v5258 = vpop.permute.xlu0 %5257
  %5259 = vrot.lane.b32.xlu0 %v2325, 103
  %v5260 = vpop.permute.xlu0 %5259
  %v5261 = vsel %vm733, %v5254, %v5256
  %v5262 = vsel %vm733, %v5256, %v5258
  %v5263 = vsel %vm733, %v5258, %v5260
  %5268 = vrot.lane.b32.xlu0 %v2177, 102
  %v5269 = vpop.permute.xlu0 %5268
  %5270 = vrot.lane.b32.xlu0 %v2179, 102
  %v5271 = vpop.permute.xlu0 %5270
  %5272 = vrot.lane.b32.xlu0 %v2323, 102
  %v5273 = vpop.permute.xlu0 %5272
  %5274 = vrot.lane.b32.xlu0 %v2325, 102
  %v5275 = vpop.permute.xlu0 %5274
  %v5276 = vsel %vm748, %v5269, %v5271
  %v5277 = vsel %vm748, %v5271, %v5273
  %v5278 = vsel %vm748, %v5273, %v5275
  %5283 = vrot.lane.b32.xlu0 %v2177, 80
  %v5284 = vpop.permute.xlu0 %5283
  %5285 = vrot.lane.b32.xlu0 %v2179, 80
  %v5286 = vpop.permute.xlu0 %5285
  %5287 = vrot.lane.b32.xlu0 %v2323, 80
  %v5288 = vpop.permute.xlu0 %5287
  %5289 = vrot.lane.b32.xlu0 %v2325, 80
  %v5290 = vpop.permute.xlu0 %5289
  %v5291 = vsel %vm763, %v5284, %v5286
  %v5292 = vsel %vm763, %v5286, %v5288
  %v5293 = vsel %vm763, %v5288, %v5290
  %5298 = vrot.lane.b32.xlu0 %v2177, 79
  %v5299 = vpop.permute.xlu0 %5298
  %5300 = vrot.lane.b32.xlu0 %v2179, 79
  %v5301 = vpop.permute.xlu0 %5300
  %5302 = vrot.lane.b32.xlu0 %v2323, 79
  %v5303 = vpop.permute.xlu0 %5302
  %5304 = vrot.lane.b32.xlu0 %v2325, 79
  %v5305 = vpop.permute.xlu0 %5304
  %v5306 = vsel %vm778, %v5299, %v5301
  %v5307 = vsel %vm778, %v5301, %v5303
  %v5308 = vsel %vm778, %v5303, %v5305
  %5313 = vrot.lane.b32.xlu0 %v2177, 78
  %v5314 = vpop.permute.xlu0 %5313
  %5315 = vrot.lane.b32.xlu0 %v2179, 78
  %v5316 = vpop.permute.xlu0 %5315
  %5317 = vrot.lane.b32.xlu0 %v2323, 78
  %v5318 = vpop.permute.xlu0 %5317
  %5319 = vrot.lane.b32.xlu0 %v2325, 78
  %v5320 = vpop.permute.xlu0 %5319
  %v5321 = vsel %vm793, %v5314, %v5316
  %v5322 = vsel %vm793, %v5316, %v5318
  %v5323 = vsel %vm793, %v5318, %v5320
  %v5328 = vpack.c.bf16 %v5216, %v2177
  %v5329 = vpack.c.bf16 %v5217, %v2179
  %v5330 = vpack.c.bf16 %v5218, %v2323
  %v5331 = vpack.c.bf16 %v5215, %v2325
  %v5332 = vpack.c.bf16 %v5246, %v5231
  %v5333 = vpack.c.bf16 %v5247, %v5232
  %v5334 = vpack.c.bf16 %v5248, %v5233
  %v5335 = vpack.c.bf16 %v5245, %v5230
  %v5336 = vpack.c.bf16 %v5276, %v5261
  %v5337 = vpack.c.bf16 %v5277, %v5262
  %v5338 = vpack.c.bf16 %v5278, %v5263
  %v5339 = vpack.c.bf16 %v5275, %v5260
  %v5340 = vpack.c.bf16 %v5306, %v5291
  %v5341 = vpack.c.bf16 %v5307, %v5292
  %v5342 = vpack.c.bf16 %v5308, %v5293
  %v5343 = vpack.c.bf16 %v5305, %v5290
  %v5344 = vpack.c.bf16 %v5321, %v5321
  %v5345 = vpack.c.bf16 %v5322, %v5322
  %v5346 = vpack.c.bf16 %v5323, %v5323
  %v5347 = vpack.c.bf16 %v5320, %v5320
  %5368 = vrot.lane.b32.xlu0 %v5328, 53
  %v5369 = vpop.permute.xlu0 %5368
  %5370 = vrot.lane.b32.xlu0 %v5329, 53
  %v5371 = vpop.permute.xlu0 %5370
  %5372 = vrot.lane.b32.xlu0 %v5330, 53
  %v5373 = vpop.permute.xlu0 %5372
  %5374 = vrot.lane.b32.xlu0 %v5331, 53
  %v5375 = vpop.permute.xlu0 %5374
  %5376 = vrot.lane.b32.xlu0 %v5332, 53
  %v5377 = vpop.permute.xlu0 %5376
  %5378 = vrot.lane.b32.xlu0 %v5333, 53
  %v5379 = vpop.permute.xlu0 %5378
  %5380 = vrot.lane.b32.xlu0 %v5334, 53
  %v5381 = vpop.permute.xlu0 %5380
  %5382 = vrot.lane.b32.xlu0 %v5335, 53
  %v5383 = vpop.permute.xlu0 %5382
  %5384 = vrot.lane.b32.xlu0 %v5336, 53
  %v5385 = vpop.permute.xlu0 %5384
  %5386 = vrot.lane.b32.xlu0 %v5337, 53
  %v5387 = vpop.permute.xlu0 %5386
  %5388 = vrot.lane.b32.xlu0 %v5338, 53
  %v5389 = vpop.permute.xlu0 %5388
  %5390 = vrot.lane.b32.xlu0 %v5339, 53
  %v5391 = vpop.permute.xlu0 %5390
  %5392 = vrot.lane.b32.xlu0 %v5340, 53
  %v5393 = vpop.permute.xlu0 %5392
  %5394 = vrot.lane.b32.xlu0 %v5341, 53
  %v5395 = vpop.permute.xlu0 %5394
  %5396 = vrot.lane.b32.xlu0 %v5342, 53
  %v5397 = vpop.permute.xlu0 %5396
  %5398 = vrot.lane.b32.xlu0 %v5343, 53
  %v5399 = vpop.permute.xlu0 %5398
  %5400 = vrot.lane.b32.xlu0 %v5344, 53
  %v5401 = vpop.permute.xlu0 %5400
  %5402 = vrot.lane.b32.xlu0 %v5345, 53
  %v5403 = vpop.permute.xlu0 %5402
  %5404 = vrot.lane.b32.xlu0 %v5346, 53
  %v5405 = vpop.permute.xlu0 %5404
  %5406 = vrot.lane.b32.xlu0 %v5347, 53
  %v5407 = vpop.permute.xlu0 %5406
  %v5408 = vsel %vm2696, %v5369, %v5371
  %v5409 = vsel %vm2696, %v5371, %v5373
  %v5410 = vsel %vm2696, %v5373, %v5375
  %v5411 = vsel %vm2696, %v5377, %v5379
  %v5412 = vsel %vm2696, %v5379, %v5381
  %v5413 = vsel %vm2696, %v5381, %v5383
  %v5414 = vsel %vm2696, %v5385, %v5387
  %v5415 = vsel %vm2696, %v5387, %v5389
  %v5416 = vsel %vm2696, %v5389, %v5391
  %v5417 = vsel %vm2696, %v5393, %v5395
  %v5418 = vsel %vm2696, %v5395, %v5397
  %v5419 = vsel %vm2696, %v5397, %v5399
  %v5420 = vsel %vm2696, %v5401, %v5403
  %v5421 = vsel %vm2696, %v5403, %v5405
  %v5422 = vsel %vm2696, %v5405, %v5407
  %v5436 = vsel %vm852, %v5420, 0
  %v5439 = vsel %vm852, %v5421, 0
  %v5442 = vsel %vm852, %v5422, 0
  %5444 = vmatprep.subr.bf16.mxu0 %v5409
  %5445 = vmatpush1.bf16.msra.mxu0 %v5408
  %5446 = vmatprep.subr.bf16.mxu0 %v5412
  %5447 = vmatpush1.bf16.msra.mxu0 %v5411
  %5448 = vmatprep.subr.bf16.mxu0 %v5415
  %5449 = vmatpush1.bf16.msra.mxu0 %v5414
  %5450 = vmatprep.subr.bf16.mxu0 %v5418
  %5451 = vmatpush1.bf16.msra.mxu0 %v5417
  %5452 = vmatprep.subr.bf16.mxu0 %v5439
  %5453 = vmatpush1.bf16.msra.mxu0 %v5436
  %5454 = vmatprep.subr.bf16.mxu0 0
  %5455 = vmatpush1.bf16.msra.mxu0 0
  %5456 = vmatprep.subr.bf16.mxu0 0
  %5457 = vmatpush1.bf16.msra.mxu0 0
  %5458 = vmatprep.subr.bf16.mxu0 0
  %5459 = vmatpush1.bf16.msra.mxu0 0
  %5460 = vmatprep.subr.bf16.mxu0 0
  %5461 = vmatpush1.bf16.msra.mxu0 0
  %5462 = vmatprep.subr.bf16.mxu0 0
  %5463 = vmatpush1.bf16.msra.mxu0 0
  %5464 = vmatprep.subr.bf16.mxu0 0
  %5465 = vmatpush1.bf16.msra.mxu0 0
  %5466 = vmatprep.subr.bf16.mxu0 0
  %5467 = vmatpush1.bf16.msra.mxu0 0
  %5468 = vmatprep.subr.bf16.mxu0 0
  %5469 = vmatpush1.bf16.msra.mxu0 0
  %5470 = vmatprep.subr.bf16.mxu0 0
  %5471 = vmatpush1.bf16.msra.mxu0 0
  %5472 = vmatprep.subr.bf16.mxu0 0
  %5473 = vmatpush1.bf16.msra.mxu0 0
  %5474 = vmatprep.subr.bf16.mxu0 0
  %5475 = vmatpush1.bf16.msra.mxu0 0
  %5476 = vmatprep.mubr.bf16.mxu0 0
  %5477 = vmatmul.mubr.bf16.gmra.mrb[0].mxu0 %v2725
  %v5478 = vpop.f32.mrb[0].mxu0
  %v5479 = vadd.f32 %v2634, %v5478
  %v5480 = vpop.f32.mrb[0].mxu0
  %v5481 = vadd.f32 %v2634, %v5480
  %v5482 = vpop.f32.mrb[0].mxu0
  %v5483 = vpop.f32.mrb[0].mxu0
  %5484 = vdwg.mxu0
  %5485 = vmatprep.subr.bf16.mxu0 0
  %5486 = vmatpush1.bf16.msra.mxu0 %v5410
  %5487 = vmatprep.subr.bf16.mxu0 0
  %5488 = vmatpush1.bf16.msra.mxu0 %v5413
  %5489 = vmatprep.subr.bf16.mxu0 0
  %5490 = vmatpush1.bf16.msra.mxu0 %v5416
  %5491 = vmatprep.subr.bf16.mxu0 0
  %5492 = vmatpush1.bf16.msra.mxu0 %v5419
  %5493 = vmatprep.subr.bf16.mxu0 0
  %5494 = vmatpush1.bf16.msra.mxu0 %v5442
  %5495 = vmatprep.subr.bf16.mxu0 0
  %5496 = vmatpush1.bf16.msra.mxu0 0
  %5497 = vmatprep.subr.bf16.mxu0 0
  %5498 = vmatpush1.bf16.msra.mxu0 0
  %5499 = vmatprep.subr.bf16.mxu0 0
  %5500 = vmatpush1.bf16.msra.mxu0 0
  %5501 = vmatprep.subr.bf16.mxu0 0
  %5502 = vmatpush1.bf16.msra.mxu0 0
  %5503 = vmatprep.subr.bf16.mxu0 0
  %5504 = vmatpush1.bf16.msra.mxu0 0
  %5505 = vmatprep.subr.bf16.mxu0 0
  %5506 = vmatpush1.bf16.msra.mxu0 0
  %5507 = vmatprep.subr.bf16.mxu0 0
  %5508 = vmatpush1.bf16.msra.mxu0 0
  %5509 = vmatprep.subr.bf16.mxu0 0
  %5510 = vmatpush1.bf16.msra.mxu0 0
  %5511 = vmatprep.subr.bf16.mxu0 0
  %5512 = vmatpush1.bf16.msra.mxu0 0
  %5513 = vmatprep.subr.bf16.mxu0 0
  %5514 = vmatpush1.bf16.msra.mxu0 0
  %5515 = vmatprep.subr.bf16.mxu0 0
  %5516 = vmatpush1.bf16.msra.mxu0 0
  %5517 = vmatprep.mubr.bf16.mxu0 0
  %5518 = vmatmul.mubr.bf16.gmra.mrb[0].mxu0 %v2725
  %v5519 = vpop.f32.mrb[0].mxu0
  %v5520 = vadd.f32 %v2634, %v5519
  %v5521 = vpop.f32.mrb[0].mxu0
  %v5522 = vpop.f32.mrb[0].mxu0
  %v5523 = vpop.f32.mrb[0].mxu0
  %5524 = vdwg.mxu0
  %vm5525 = vcmp.gt.f32.partialorder %v5479, 0.0
  %vm5526 = vcmp.gt.f32.partialorder %v5481, 0.0
  %vm5527 = vcmp.gt.f32.partialorder %v5520, 0.0
  %v5528 = vmul.f32 %v5479, 0.01
  %v5529 = vmul.f32 %v5481, 0.01
  %v5530 = vmul.f32 %v5520, 0.01
  %v5531 = vsel %vm5525, %v5479, %v5528
  %v5532 = vsel %vm5526, %v5481, %v5529
  %v5533 = vsel %vm5527, %v5520, %v5530
  %5538 = vrot.lane.b32.xlu0 %v2181, 126
  %v5539 = vpop.permute.xlu0 %5538
  %5540 = vrot.lane.b32.xlu0 %v2183, 126
  %v5541 = vpop.permute.xlu0 %5540
  %5542 = vrot.lane.b32.xlu0 %v2327, 126
  %v5543 = vpop.permute.xlu0 %5542
  %5544 = vrot.lane.b32.xlu0 %v2329, 126
  %v5545 = vpop.permute.xlu0 %5544
  %v5546 = vsel %vm703, %v5539, %v5541
  %v5547 = vsel %vm703, %v5541, %v5543
  %v5548 = vsel %vm703, %v5543, %v5545
  %5553 = vrot.lane.b32.xlu0 %v2181, 124
  %v5554 = vpop.permute.xlu0 %5553
  %5555 = vrot.lane.b32.xlu0 %v2183, 124
  %v5556 = vpop.permute.xlu0 %5555
  %5557 = vrot.lane.b32.xlu0 %v2327, 124
  %v5558 = vpop.permute.xlu0 %5557
  %5559 = vrot.lane.b32.xlu0 %v2329, 124
  %v5560 = vpop.permute.xlu0 %5559
  %v5561 = vsel %vm2853, %v5554, %v5556
  %v5562 = vsel %vm2853, %v5556, %v5558
  %v5563 = vsel %vm2853, %v5558, %v5560
  %5568 = vrot.lane.b32.xlu0 %v2181, 80
  %v5569 = vpop.permute.xlu0 %5568
  %5570 = vrot.lane.b32.xlu0 %v2183, 80
  %v5571 = vpop.permute.xlu0 %5570
  %5572 = vrot.lane.b32.xlu0 %v2327, 80
  %v5573 = vpop.permute.xlu0 %5572
  %5574 = vrot.lane.b32.xlu0 %v2329, 80
  %v5575 = vpop.permute.xlu0 %5574
  %v5576 = vsel %vm763, %v5569, %v5571
  %v5577 = vsel %vm763, %v5571, %v5573
  %v5578 = vsel %vm763, %v5573, %v5575
  %5583 = vrot.lane.b32.xlu0 %v2181, 78
  %v5584 = vpop.permute.xlu0 %5583
  %5585 = vrot.lane.b32.xlu0 %v2183, 78
  %v5586 = vpop.permute.xlu0 %5585
  %5587 = vrot.lane.b32.xlu0 %v2327, 78
  %v5588 = vpop.permute.xlu0 %5587
  %5589 = vrot.lane.b32.xlu0 %v2329, 78
  %v5590 = vpop.permute.xlu0 %5589
  %v5591 = vsel %vm793, %v5584, %v5586
  %v5592 = vsel %vm793, %v5586, %v5588
  %v5593 = vsel %vm793, %v5588, %v5590
  %5598 = vrot.lane.b32.xlu0 %v2181, 76
  %v5599 = vpop.permute.xlu0 %5598
  %5600 = vrot.lane.b32.xlu0 %v2183, 76
  %v5601 = vpop.permute.xlu0 %5600
  %5602 = vrot.lane.b32.xlu0 %v2327, 76
  %v5603 = vpop.permute.xlu0 %5602
  %5604 = vrot.lane.b32.xlu0 %v2329, 76
  %v5605 = vpop.permute.xlu0 %5604
  %v5606 = vsel %vm2899, %v5599, %v5601
  %v5607 = vsel %vm2899, %v5601, %v5603
  %v5608 = vsel %vm2899, %v5603, %v5605
  %5614 = vrot.lane.b32.xlu0 %v2183, 32
  %v5615 = vpop.permute.xlu0 %5614
  %5616 = vrot.lane.b32.xlu0 %v2327, 32
  %v5617 = vpop.permute.xlu0 %5616
  %5618 = vrot.lane.b32.xlu0 %v2329, 32
  %v5619 = vpop.permute.xlu0 %5618
  %5620 = vrot.lane.b32.xlu0 %v2456, 32
  %v5621 = vpop.permute.xlu0 %5620
  %v5622 = vsel %vm2916, %v5615, %v5617
  %v5623 = vsel %vm2916, %v5617, %v5619
  %v5624 = vsel %vm2916, %v5619, %v5621
  %5629 = vrot.lane.b32.xlu0 %v2183, 30
  %v5630 = vpop.permute.xlu0 %5629
  %5631 = vrot.lane.b32.xlu0 %v2327, 30
  %v5632 = vpop.permute.xlu0 %5631
  %5633 = vrot.lane.b32.xlu0 %v2329, 30
  %v5634 = vpop.permute.xlu0 %5633
  %5635 = vrot.lane.b32.xlu0 %v2456, 30
  %v5636 = vpop.permute.xlu0 %5635
  %v5637 = vsel %vm2932, %v5630, %v5632
  %v5638 = vsel %vm2932, %v5632, %v5634
  %v5639 = vsel %vm2932, %v5634, %v5636
  %5644 = vrot.lane.b32.xlu0 %v2183, 28
  %v5645 = vpop.permute.xlu0 %5644
  %5646 = vrot.lane.b32.xlu0 %v2327, 28
  %v5647 = vpop.permute.xlu0 %5646
  %5648 = vrot.lane.b32.xlu0 %v2329, 28
  %v5649 = vpop.permute.xlu0 %5648
  %5650 = vrot.lane.b32.xlu0 %v2456, 28
  %v5651 = vpop.permute.xlu0 %5650
  %v5652 = vsel %vm2948, %v5645, %v5647
  %v5653 = vsel %vm2948, %v5647, %v5649
  %v5654 = vsel %vm2948, %v5649, %v5651
  %v5659 = vpack.c.bf16 %v5546, %v2181
  %v5660 = vpack.c.bf16 %v5547, %v2183
  %v5661 = vpack.c.bf16 %v5548, %v2327
  %v5662 = vpack.c.bf16 %v5545, %v2329
  %v5663 = vpack.c.bf16 %v5576, %v5561
  %v5664 = vpack.c.bf16 %v5577, %v5562
  %v5665 = vpack.c.bf16 %v5578, %v5563
  %v5666 = vpack.c.bf16 %v5575, %v5560
  %v5667 = vpack.c.bf16 %v5606, %v5591
  %v5668 = vpack.c.bf16 %v5607, %v5592
  %v5669 = vpack.c.bf16 %v5608, %v5593
  %v5670 = vpack.c.bf16 %v5605, %v5590
  %v5671 = vpack.c.bf16 %v5630, %v5615
  %v5672 = vpack.c.bf16 %v5637, %v5622
  %v5673 = vpack.c.bf16 %v5638, %v5623
  %v5674 = vpack.c.bf16 %v5639, %v5624
  %v5675 = vpack.c.bf16 %v5645, %v5645
  %v5676 = vpack.c.bf16 %v5652, %v5652
  %v5677 = vpack.c.bf16 %v5653, %v5653
  %v5678 = vpack.c.bf16 %v5654, %v5654
  %5699 = vrot.lane.b32.xlu0 %v5659, 78
  %v5700 = vpop.permute.xlu0 %5699
  %5701 = vrot.lane.b32.xlu0 %v5660, 78
  %v5702 = vpop.permute.xlu0 %5701
  %5703 = vrot.lane.b32.xlu0 %v5661, 78
  %v5704 = vpop.permute.xlu0 %5703
  %5705 = vrot.lane.b32.xlu0 %v5662, 78
  %v5706 = vpop.permute.xlu0 %5705
  %5707 = vrot.lane.b32.xlu0 %v5663, 78
  %v5708 = vpop.permute.xlu0 %5707
  %5709 = vrot.lane.b32.xlu0 %v5664, 78
  %v5710 = vpop.permute.xlu0 %5709
  %5711 = vrot.lane.b32.xlu0 %v5665, 78
  %v5712 = vpop.permute.xlu0 %5711
  %5713 = vrot.lane.b32.xlu0 %v5666, 78
  %v5714 = vpop.permute.xlu0 %5713
  %5715 = vrot.lane.b32.xlu0 %v5667, 78
  %v5716 = vpop.permute.xlu0 %5715
  %5717 = vrot.lane.b32.xlu0 %v5668, 78
  %v5718 = vpop.permute.xlu0 %5717
  %5719 = vrot.lane.b32.xlu0 %v5669, 78
  %v5720 = vpop.permute.xlu0 %5719
  %5721 = vrot.lane.b32.xlu0 %v5670, 78
  %v5722 = vpop.permute.xlu0 %5721
  %5723 = vrot.lane.b32.xlu0 %v5671, 78
  %v5724 = vpop.permute.xlu0 %5723
  %5725 = vrot.lane.b32.xlu0 %v5672, 78
  %v5726 = vpop.permute.xlu0 %5725
  %5727 = vrot.lane.b32.xlu0 %v5673, 78
  %v5728 = vpop.permute.xlu0 %5727
  %5729 = vrot.lane.b32.xlu0 %v5674, 78
  %v5730 = vpop.permute.xlu0 %5729
  %5731 = vrot.lane.b32.xlu0 %v5675, 78
  %v5732 = vpop.permute.xlu0 %5731
  %5733 = vrot.lane.b32.xlu0 %v5676, 78
  %v5734 = vpop.permute.xlu0 %5733
  %5735 = vrot.lane.b32.xlu0 %v5677, 78
  %v5736 = vpop.permute.xlu0 %5735
  %5737 = vrot.lane.b32.xlu0 %v5678, 78
  %v5738 = vpop.permute.xlu0 %5737
  %v5739 = vsel %vm3041, %v5700, %v5702
  %v5740 = vsel %vm3041, %v5702, %v5704
  %v5741 = vsel %vm3041, %v5704, %v5706
  %v5742 = vsel %vm3041, %v5708, %v5710
  %v5743 = vsel %vm3041, %v5710, %v5712
  %v5744 = vsel %vm3041, %v5712, %v5714
  %v5745 = vsel %vm3041, %v5716, %v5718
  %v5746 = vsel %vm3041, %v5718, %v5720
  %v5747 = vsel %vm3041, %v5720, %v5722
  %v5748 = vsel %vm3041, %v5724, %v5726
  %v5749 = vsel %vm3041, %v5726, %v5728
  %v5750 = vsel %vm3041, %v5728, %v5730
  %v5751 = vsel %vm3041, %v5732, %v5734
  %v5752 = vsel %vm3041, %v5734, %v5736
  %v5753 = vsel %vm3041, %v5736, %v5738
  %v5767 = vsel %vm852, %v5751, 0
  %v5770 = vsel %vm852, %v5752, 0
  %v5773 = vsel %vm852, %v5753, 0
  %5775 = vmatprep.subr.bf16.mxu0 %v5740
  %5776 = vmatpush1.bf16.msra.mxu0 %v5739
  %5777 = vmatprep.subr.bf16.mxu0 %v5743
  %5778 = vmatpush1.bf16.msra.mxu0 %v5742
  %5779 = vmatprep.subr.bf16.mxu0 %v5746
  %5780 = vmatpush1.bf16.msra.mxu0 %v5745
  %5781 = vmatprep.subr.bf16.mxu0 %v5749
  %5782 = vmatpush1.bf16.msra.mxu0 %v5748
  %5783 = vmatprep.subr.bf16.mxu0 %v5770
  %5784 = vmatpush1.bf16.msra.mxu0 %v5767
  %5785 = vmatprep.subr.bf16.mxu0 0
  %5786 = vmatpush1.bf16.msra.mxu0 0
  %5787 = vmatprep.subr.bf16.mxu0 0
  %5788 = vmatpush1.bf16.msra.mxu0 0
  %5789 = vmatprep.subr.bf16.mxu0 0
  %5790 = vmatpush1.bf16.msra.mxu0 0
  %5791 = vmatprep.subr.bf16.mxu0 0
  %5792 = vmatpush1.bf16.msra.mxu0 0
  %5793 = vmatprep.subr.bf16.mxu0 0
  %5794 = vmatpush1.bf16.msra.mxu0 0
  %5795 = vmatprep.subr.bf16.mxu0 0
  %5796 = vmatpush1.bf16.msra.mxu0 0
  %5797 = vmatprep.subr.bf16.mxu0 0
  %5798 = vmatpush1.bf16.msra.mxu0 0
  %5799 = vmatprep.subr.bf16.mxu0 0
  %5800 = vmatpush1.bf16.msra.mxu0 0
  %5801 = vmatprep.subr.bf16.mxu0 0
  %5802 = vmatpush1.bf16.msra.mxu0 0
  %5803 = vmatprep.subr.bf16.mxu0 0
  %5804 = vmatpush1.bf16.msra.mxu0 0
  %5805 = vmatprep.subr.bf16.mxu0 0
  %5806 = vmatpush1.bf16.msra.mxu0 0
  %5807 = vmatprep.mubr.bf16.mxu0 0
  %5808 = vmatmul.mubr.bf16.gmra.mrb[0].mxu0 %v3070
  %v5809 = vpop.f32.mrb[0].mxu0
  %v5810 = vadd.f32 %v2979, %v5809
  %v5811 = vpop.f32.mrb[0].mxu0
  %v5812 = vadd.f32 %v2979, %v5811
  %v5813 = vpop.f32.mrb[0].mxu0
  %v5814 = vpop.f32.mrb[0].mxu0
  %5815 = vdwg.mxu0
  %5816 = vmatprep.subr.bf16.mxu0 0
  %5817 = vmatpush1.bf16.msra.mxu0 %v5741
  %5818 = vmatprep.subr.bf16.mxu0 0
  %5819 = vmatpush1.bf16.msra.mxu0 %v5744
  %5820 = vmatprep.subr.bf16.mxu0 0
  %5821 = vmatpush1.bf16.msra.mxu0 %v5747
  %5822 = vmatprep.subr.bf16.mxu0 0
  %5823 = vmatpush1.bf16.msra.mxu0 %v5750
  %5824 = vmatprep.subr.bf16.mxu0 0
  %5825 = vmatpush1.bf16.msra.mxu0 %v5773
  %5826 = vmatprep.subr.bf16.mxu0 0
  %5827 = vmatpush1.bf16.msra.mxu0 0
  %5828 = vmatprep.subr.bf16.mxu0 0
  %5829 = vmatpush1.bf16.msra.mxu0 0
  %5830 = vmatprep.subr.bf16.mxu0 0
  %5831 = vmatpush1.bf16.msra.mxu0 0
  %5832 = vmatprep.subr.bf16.mxu0 0
  %5833 = vmatpush1.bf16.msra.mxu0 0
  %5834 = vmatprep.subr.bf16.mxu0 0
  %5835 = vmatpush1.bf16.msra.mxu0 0
  %5836 = vmatprep.subr.bf16.mxu0 0
  %5837 = vmatpush1.bf16.msra.mxu0 0
  %5838 = vmatprep.subr.bf16.mxu0 0
  %5839 = vmatpush1.bf16.msra.mxu0 0
  %5840 = vmatprep.subr.bf16.mxu0 0
  %5841 = vmatpush1.bf16.msra.mxu0 0
  %5842 = vmatprep.subr.bf16.mxu0 0
  %5843 = vmatpush1.bf16.msra.mxu0 0
  %5844 = vmatprep.subr.bf16.mxu0 0
  %5845 = vmatpush1.bf16.msra.mxu0 0
  %5846 = vmatprep.subr.bf16.mxu0 0
  %5847 = vmatpush1.bf16.msra.mxu0 0
  %5848 = vmatprep.mubr.bf16.mxu0 0
  %5849 = vmatmul.mubr.bf16.gmra.mrb[0].mxu0 %v3070
  %v5850 = vpop.f32.mrb[0].mxu0
  %v5851 = vadd.f32 %v2979, %v5850
  %v5852 = vpop.f32.mrb[0].mxu0
  %v5853 = vpop.f32.mrb[0].mxu0
  %v5854 = vpop.f32.mrb[0].mxu0
  %5855 = vdwg.mxu0
  %vm5856 = vcmp.gt.f32.partialorder %v5810, 0.0
  %vm5857 = vcmp.gt.f32.partialorder %v5812, 0.0
  %vm5858 = vcmp.gt.f32.partialorder %v5851, 0.0
  %v5859 = vmul.f32 %v5810, 0.01
  %v5860 = vmul.f32 %v5812, 0.01
  %v5861 = vmul.f32 %v5851, 0.01
  %v5862 = vsel %vm5856, %v5810, %v5859
  %v5863 = vsel %vm5857, %v5812, %v5860
  %v5864 = vsel %vm5858, %v5851, %v5861
  %5869 = vrot.lane.b32.xlu0 %v2187, 125
  %v5870 = vpop.permute.xlu0 %5869
  %5871 = vrot.lane.b32.xlu0 %v2189, 125
  %v5872 = vpop.permute.xlu0 %5871
  %5873 = vrot.lane.b32.xlu0 %v2333, 125
  %v5874 = vpop.permute.xlu0 %5873
  %5875 = vrot.lane.b32.xlu0 %v2335, 125
  %v5876 = vpop.permute.xlu0 %5875
  %v5877 = vsel %vm3183, %v5870, %v5872
  %v5878 = vsel %vm3183, %v5872, %v5874
  %v5879 = vsel %vm3183, %v5874, %v5876
  %5884 = vrot.lane.b32.xlu0 %v2187, 122
  %v5885 = vpop.permute.xlu0 %5884
  %5886 = vrot.lane.b32.xlu0 %v2189, 122
  %v5887 = vpop.permute.xlu0 %5886
  %5888 = vrot.lane.b32.xlu0 %v2333, 122
  %v5889 = vpop.permute.xlu0 %5888
  %5890 = vrot.lane.b32.xlu0 %v2335, 122
  %v5891 = vpop.permute.xlu0 %5890
  %v5892 = vsel %vm3199, %v5885, %v5887
  %v5893 = vsel %vm3199, %v5887, %v5889
  %v5894 = vsel %vm3199, %v5889, %v5891
  %5899 = vrot.lane.b32.xlu0 %v2187, 56
  %v5900 = vpop.permute.xlu0 %5899
  %5901 = vrot.lane.b32.xlu0 %v2189, 56
  %v5902 = vpop.permute.xlu0 %5901
  %5903 = vrot.lane.b32.xlu0 %v2333, 56
  %v5904 = vpop.permute.xlu0 %5903
  %5905 = vrot.lane.b32.xlu0 %v2335, 56
  %v5906 = vpop.permute.xlu0 %5905
  %v5907 = vsel %vm3215, %v5900, %v5902
  %v5908 = vsel %vm3215, %v5902, %v5904
  %v5909 = vsel %vm3215, %v5904, %v5906
  %5914 = vrot.lane.b32.xlu0 %v2187, 53
  %v5915 = vpop.permute.xlu0 %5914
  %5916 = vrot.lane.b32.xlu0 %v2189, 53
  %v5917 = vpop.permute.xlu0 %5916
  %5918 = vrot.lane.b32.xlu0 %v2333, 53
  %v5919 = vpop.permute.xlu0 %5918
  %5920 = vrot.lane.b32.xlu0 %v2335, 53
  %v5921 = vpop.permute.xlu0 %5920
  %v5922 = vsel %vm3231, %v5915, %v5917
  %v5923 = vsel %vm3231, %v5917, %v5919
  %v5924 = vsel %vm3231, %v5919, %v5921
  %5929 = vrot.lane.b32.xlu0 %v2187, 50
  %v5930 = vpop.permute.xlu0 %5929
  %5931 = vrot.lane.b32.xlu0 %v2189, 50
  %v5932 = vpop.permute.xlu0 %5931
  %5933 = vrot.lane.b32.xlu0 %v2333, 50
  %v5934 = vpop.permute.xlu0 %5933
  %5935 = vrot.lane.b32.xlu0 %v2335, 50
  %v5936 = vpop.permute.xlu0 %5935
  %v5937 = vsel %vm3247, %v5930, %v5932
  %v5938 = vsel %vm3247, %v5932, %v5934
  %v5939 = vsel %vm3247, %v5934, %v5936
  %5945 = vrot.lane.b32.xlu0 %v2189, 112
  %v5946 = vpop.permute.xlu0 %5945
  %5947 = vrot.lane.b32.xlu0 %v2333, 112
  %v5948 = vpop.permute.xlu0 %5947
  %5949 = vrot.lane.b32.xlu0 %v2335, 112
  %v5950 = vpop.permute.xlu0 %5949
  %5951 = vrot.lane.b32.xlu0 %v2461, 112
  %v5952 = vpop.permute.xlu0 %5951
  %v5953 = vsel %vm3264, %v5946, %v5948
  %v5954 = vsel %vm3264, %v5948, %v5950
  %v5955 = vsel %vm3264, %v5950, %v5952
  %5960 = vrot.lane.b32.xlu0 %v2189, 109
  %v5961 = vpop.permute.xlu0 %5960
  %5962 = vrot.lane.b32.xlu0 %v2333, 109
  %v5963 = vpop.permute.xlu0 %5962
  %5964 = vrot.lane.b32.xlu0 %v2335, 109
  %v5965 = vpop.permute.xlu0 %5964
  %5966 = vrot.lane.b32.xlu0 %v2461, 109
  %v5967 = vpop.permute.xlu0 %5966
  %v5968 = vsel %vm3280, %v5961, %v5963
  %v5969 = vsel %vm3280, %v5963, %v5965
  %v5970 = vsel %vm3280, %v5965, %v5967
  %5975 = vrot.lane.b32.xlu0 %v2189, 106
  %v5976 = vpop.permute.xlu0 %5975
  %5977 = vrot.lane.b32.xlu0 %v2333, 106
  %v5978 = vpop.permute.xlu0 %5977
  %5979 = vrot.lane.b32.xlu0 %v2335, 106
  %v5980 = vpop.permute.xlu0 %5979
  %5981 = vrot.lane.b32.xlu0 %v2461, 106
  %v5982 = vpop.permute.xlu0 %5981
  %v5983 = vsel %vm3296, %v5976, %v5978
  %v5984 = vsel %vm3296, %v5978, %v5980
  %v5985 = vsel %vm3296, %v5980, %v5982
  %v5990 = vpack.c.bf16 %v5877, %v2187
  %v5991 = vpack.c.bf16 %v5878, %v2189
  %v5992 = vpack.c.bf16 %v5879, %v2333
  %v5993 = vpack.c.bf16 %v5876, %v2335
  %v5994 = vpack.c.bf16 %v5907, %v5892
  %v5995 = vpack.c.bf16 %v5908, %v5893
  %v5996 = vpack.c.bf16 %v5909, %v5894
  %v5997 = vpack.c.bf16 %v5906, %v5891
  %v5998 = vpack.c.bf16 %v5937, %v5922
  %v5999 = vpack.c.bf16 %v5938, %v5923
  %v6000 = vpack.c.bf16 %v5939, %v5924
  %v6001 = vpack.c.bf16 %v5936, %v5921
  %v6002 = vpack.c.bf16 %v5968, %v5953
  %v6003 = vpack.c.bf16 %v5969, %v5954
  %v6004 = vpack.c.bf16 %v5970, %v5955
  %v6005 = vpack.c.bf16 %v5967, %v5952
  %v6006 = vpack.c.bf16 %v5983, %v5983
  %v6007 = vpack.c.bf16 %v5984, %v5984
  %v6008 = vpack.c.bf16 %v5985, %v5985
  %v6009 = vpack.c.bf16 %v5982, %v5982
  %6030 = vrot.lane.b32.xlu0 %v5990, 103
  %v6031 = vpop.permute.xlu0 %6030
  %6032 = vrot.lane.b32.xlu0 %v5991, 103
  %v6033 = vpop.permute.xlu0 %6032
  %6034 = vrot.lane.b32.xlu0 %v5992, 103
  %v6035 = vpop.permute.xlu0 %6034
  %6036 = vrot.lane.b32.xlu0 %v5993, 103
  %v6037 = vpop.permute.xlu0 %6036
  %6038 = vrot.lane.b32.xlu0 %v5994, 103
  %v6039 = vpop.permute.xlu0 %6038
  %6040 = vrot.lane.b32.xlu0 %v5995, 103
  %v6041 = vpop.permute.xlu0 %6040
  %6042 = vrot.lane.b32.xlu0 %v5996, 103
  %v6043 = vpop.permute.xlu0 %6042
  %6044 = vrot.lane.b32.xlu0 %v5997, 103
  %v6045 = vpop.permute.xlu0 %6044
  %6046 = vrot.lane.b32.xlu0 %v5998, 103
  %v6047 = vpop.permute.xlu0 %6046
  %6048 = vrot.lane.b32.xlu0 %v5999, 103
  %v6049 = vpop.permute.xlu0 %6048
  %6050 = vrot.lane.b32.xlu0 %v6000, 103
  %v6051 = vpop.permute.xlu0 %6050
  %6052 = vrot.lane.b32.xlu0 %v6001, 103
  %v6053 = vpop.permute.xlu0 %6052
  %6054 = vrot.lane.b32.xlu0 %v6002, 103
  %v6055 = vpop.permute.xlu0 %6054
  %6056 = vrot.lane.b32.xlu0 %v6003, 103
  %v6057 = vpop.permute.xlu0 %6056
  %6058 = vrot.lane.b32.xlu0 %v6004, 103
  %v6059 = vpop.permute.xlu0 %6058
  %6060 = vrot.lane.b32.xlu0 %v6005, 103
  %v6061 = vpop.permute.xlu0 %6060
  %6062 = vrot.lane.b32.xlu0 %v6006, 103
  %v6063 = vpop.permute.xlu0 %6062
  %6064 = vrot.lane.b32.xlu0 %v6007, 103
  %v6065 = vpop.permute.xlu0 %6064
  %6066 = vrot.lane.b32.xlu0 %v6008, 103
  %v6067 = vpop.permute.xlu0 %6066
  %6068 = vrot.lane.b32.xlu0 %v6009, 103
  %v6069 = vpop.permute.xlu0 %6068
  %v6070 = vsel %vm3389, %v6031, %v6033
  %v6071 = vsel %vm3389, %v6033, %v6035
  %v6072 = vsel %vm3389, %v6035, %v6037
  %v6073 = vsel %vm3389, %v6039, %v6041
  %v6074 = vsel %vm3389, %v6041, %v6043
  %v6075 = vsel %vm3389, %v6043, %v6045
  %v6076 = vsel %vm3389, %v6047, %v6049
  %v6077 = vsel %vm3389, %v6049, %v6051
  %v6078 = vsel %vm3389, %v6051, %v6053
  %v6079 = vsel %vm3389, %v6055, %v6057
  %v6080 = vsel %vm3389, %v6057, %v6059
  %v6081 = vsel %vm3389, %v6059, %v6061
  %v6082 = vsel %vm3389, %v6063, %v6065
  %v6083 = vsel %vm3389, %v6065, %v6067
  %v6084 = vsel %vm3389, %v6067, %v6069
  %v6098 = vsel %vm852, %v6082, 0
  %v6101 = vsel %vm852, %v6083, 0
  %v6104 = vsel %vm852, %v6084, 0
  %6106 = vmatprep.subr.bf16.mxu0 %v6071
  %6107 = vmatpush1.bf16.msra.mxu0 %v6070
  %6108 = vmatprep.subr.bf16.mxu0 %v6074
  %6109 = vmatpush1.bf16.msra.mxu0 %v6073
  %6110 = vmatprep.subr.bf16.mxu0 %v6077
  %6111 = vmatpush1.bf16.msra.mxu0 %v6076
  %6112 = vmatprep.subr.bf16.mxu0 %v6080
  %6113 = vmatpush1.bf16.msra.mxu0 %v6079
  %6114 = vmatprep.subr.bf16.mxu0 %v6101
  %6115 = vmatpush1.bf16.msra.mxu0 %v6098
  %6116 = vmatprep.subr.bf16.mxu0 0
  %6117 = vmatpush1.bf16.msra.mxu0 0
  %6118 = vmatprep.subr.bf16.mxu0 0
  %6119 = vmatpush1.bf16.msra.mxu0 0
  %6120 = vmatprep.subr.bf16.mxu0 0
  %6121 = vmatpush1.bf16.msra.mxu0 0
  %6122 = vmatprep.subr.bf16.mxu0 0
  %6123 = vmatpush1.bf16.msra.mxu0 0
  %6124 = vmatprep.subr.bf16.mxu0 0
  %6125 = vmatpush1.bf16.msra.mxu0 0
  %6126 = vmatprep.subr.bf16.mxu0 0
  %6127 = vmatpush1.bf16.msra.mxu0 0
  %6128 = vmatprep.subr.bf16.mxu0 0
  %6129 = vmatpush1.bf16.msra.mxu0 0
  %6130 = vmatprep.subr.bf16.mxu0 0
  %6131 = vmatpush1.bf16.msra.mxu0 0
  %6132 = vmatprep.subr.bf16.mxu0 0
  %6133 = vmatpush1.bf16.msra.mxu0 0
  %6134 = vmatprep.subr.bf16.mxu0 0
  %6135 = vmatpush1.bf16.msra.mxu0 0
  %6136 = vmatprep.subr.bf16.mxu0 0
  %6137 = vmatpush1.bf16.msra.mxu0 0
  %6138 = vmatprep.mubr.bf16.mxu0 0
  %6139 = vmatmul.mubr.bf16.gmra.mrb[0].mxu0 %v3418
  %v6140 = vpop.f32.mrb[0].mxu0
  %v6141 = vadd.f32 %v3327, %v6140
  %v6142 = vpop.f32.mrb[0].mxu0
  %v6143 = vadd.f32 %v3327, %v6142
  %v6144 = vpop.f32.mrb[0].mxu0
  %v6145 = vpop.f32.mrb[0].mxu0
  %6146 = vdwg.mxu0
  %6147 = vmatprep.subr.bf16.mxu0 0
  %6148 = vmatpush1.bf16.msra.mxu0 %v6072
  %6149 = vmatprep.subr.bf16.mxu0 0
  %6150 = vmatpush1.bf16.msra.mxu0 %v6075
  %6151 = vmatprep.subr.bf16.mxu0 0
  %6152 = vmatpush1.bf16.msra.mxu0 %v6078
  %6153 = vmatprep.subr.bf16.mxu0 0
  %6154 = vmatpush1.bf16.msra.mxu0 %v6081
  %6155 = vmatprep.subr.bf16.mxu0 0
  %6156 = vmatpush1.bf16.msra.mxu0 %v6104
  %6157 = vmatprep.subr.bf16.mxu0 0
  %6158 = vmatpush1.bf16.msra.mxu0 0
  %6159 = vmatprep.subr.bf16.mxu0 0
  %6160 = vmatpush1.bf16.msra.mxu0 0
  %6161 = vmatprep.subr.bf16.mxu0 0
  %6162 = vmatpush1.bf16.msra.mxu0 0
  %6163 = vmatprep.subr.bf16.mxu0 0
  %6164 = vmatpush1.bf16.msra.mxu0 0
  %6165 = vmatprep.subr.bf16.mxu0 0
  %6166 = vmatpush1.bf16.msra.mxu0 0
  %6167 = vmatprep.subr.bf16.mxu0 0
  %6168 = vmatpush1.bf16.msra.mxu0 0
  %6169 = vmatprep.subr.bf16.mxu0 0
  %6170 = vmatpush1.bf16.msra.mxu0 0
  %6171 = vmatprep.subr.bf16.mxu0 0
  %6172 = vmatpush1.bf16.msra.mxu0 0
  %6173 = vmatprep.subr.bf16.mxu0 0
  %6174 = vmatpush1.bf16.msra.mxu0 0
  %6175 = vmatprep.subr.bf16.mxu0 0
  %6176 = vmatpush1.bf16.msra.mxu0 0
  %6177 = vmatprep.subr.bf16.mxu0 0
  %6178 = vmatpush1.bf16.msra.mxu0 0
  %6179 = vmatprep.mubr.bf16.mxu0 0
  %6180 = vmatmul.mubr.bf16.gmra.mrb[0].mxu0 %v3418
  %v6181 = vpop.f32.mrb[0].mxu0
  %v6182 = vadd.f32 %v3327, %v6181
  %v6183 = vpop.f32.mrb[0].mxu0
  %v6184 = vpop.f32.mrb[0].mxu0
  %v6185 = vpop.f32.mrb[0].mxu0
  %6186 = vdwg.mxu0
  %vm6187 = vcmp.gt.f32.partialorder %v6141, 0.0
  %vm6188 = vcmp.gt.f32.partialorder %v6143, 0.0
  %vm6189 = vcmp.gt.f32.partialorder %v6182, 0.0
  %v6190 = vmul.f32 %v6141, 0.01
  %v6191 = vmul.f32 %v6143, 0.01
  %v6192 = vmul.f32 %v6182, 0.01
  %v6193 = vsel %vm6187, %v6141, %v6190
  %v6194 = vsel %vm6188, %v6143, %v6191
  %v6195 = vsel %vm6189, %v6182, %v6192
  %6200 = vrot.lane.b32.xlu0 %v2191, 124
  %v6201 = vpop.permute.xlu0 %6200
  %6202 = vrot.lane.b32.xlu0 %v2193, 124
  %v6203 = vpop.permute.xlu0 %6202
  %6204 = vrot.lane.b32.xlu0 %v2337, 124
  %v6205 = vpop.permute.xlu0 %6204
  %6206 = vrot.lane.b32.xlu0 %v2339, 124
  %v6207 = vpop.permute.xlu0 %6206
  %v6208 = vsel %vm2853, %v6201, %v6203
  %v6209 = vsel %vm2853, %v6203, %v6205
  %v6210 = vsel %vm2853, %v6205, %v6207
  %6214 = vrot.lane.b32.xlu0 %v2191, 120
  %v6215 = vpop.permute.xlu0 %6214
  %6216 = vrot.lane.b32.xlu0 %v2193, 120
  %v6217 = vpop.permute.xlu0 %6216
  %6218 = vrot.lane.b32.xlu0 %v2337, 120
  %v6219 = vpop.permute.xlu0 %6218
  %6220 = vrot.lane.b32.xlu0 %v2339, 120
  %v6221 = vpop.permute.xlu0 %6220
  %v6222 = vsel %vm3545, %v6215, %v6217
  %v6223 = vsel %vm3545, %v6217, %v6219
  %v6224 = vsel %vm3545, %v6219, %v6221
  %6228 = vrot.lane.b32.xlu0 %v2191, 32
  %v6229 = vpop.permute.xlu0 %6228
  %6230 = vrot.lane.b32.xlu0 %v2193, 32
  %v6231 = vpop.permute.xlu0 %6230
  %6232 = vrot.lane.b32.xlu0 %v2337, 32
  %v6233 = vpop.permute.xlu0 %6232
  %6234 = vrot.lane.b32.xlu0 %v2339, 32
  %v6235 = vpop.permute.xlu0 %6234
  %v6236 = vsel %vm2916, %v6229, %v6231
  %v6237 = vsel %vm2916, %v6231, %v6233
  %v6238 = vsel %vm2916, %v6233, %v6235
  %6242 = vrot.lane.b32.xlu0 %v2191, 28
  %v6243 = vpop.permute.xlu0 %6242
  %6244 = vrot.lane.b32.xlu0 %v2193, 28
  %v6245 = vpop.permute.xlu0 %6244
  %6246 = vrot.lane.b32.xlu0 %v2337, 28
  %v6247 = vpop.permute.xlu0 %6246
  %6248 = vrot.lane.b32.xlu0 %v2339, 28
  %v6249 = vpop.permute.xlu0 %6248
  %v6250 = vsel %vm2948, %v6243, %v6245
  %v6251 = vsel %vm2948, %v6245, %v6247
  %v6252 = vsel %vm2948, %v6247, %v6249
  %6256 = vrot.lane.b32.xlu0 %v2191, 24
  %v6257 = vpop.permute.xlu0 %6256
  %6258 = vrot.lane.b32.xlu0 %v2193, 24
  %v6259 = vpop.permute.xlu0 %6258
  %6260 = vrot.lane.b32.xlu0 %v2337, 24
  %v6261 = vpop.permute.xlu0 %6260
  %6262 = vrot.lane.b32.xlu0 %v2339, 24
  %v6263 = vpop.permute.xlu0 %6262
  %v6264 = vsel %vm3588, %v6257, %v6259
  %v6265 = vsel %vm3588, %v6259, %v6261
  %v6266 = vsel %vm3588, %v6261, %v6263
  %6271 = vrot.lane.b32.xlu0 %v2193, 64
  %v6272 = vpop.permute.xlu0 %6271
  %6273 = vrot.lane.b32.xlu0 %v2337, 64
  %v6274 = vpop.permute.xlu0 %6273
  %6275 = vrot.lane.b32.xlu0 %v2339, 64
  %v6276 = vpop.permute.xlu0 %6275
  %6277 = vrot.lane.b32.xlu0 %v2464, 64
  %v6278 = vpop.permute.xlu0 %6277
  %v6279 = vsel %vm3604, %v6272, %v6274
  %v6280 = vsel %vm3604, %v6274, %v6276
  %v6281 = vsel %vm3604, %v6276, %v6278
  %6285 = vrot.lane.b32.xlu0 %v2193, 60
  %v6286 = vpop.permute.xlu0 %6285
  %6287 = vrot.lane.b32.xlu0 %v2337, 60
  %v6288 = vpop.permute.xlu0 %6287
  %6289 = vrot.lane.b32.xlu0 %v2339, 60
  %v6290 = vpop.permute.xlu0 %6289
  %6291 = vrot.lane.b32.xlu0 %v2464, 60
  %v6292 = vpop.permute.xlu0 %6291
  %v6293 = vsel %vm3619, %v6286, %v6288
  %v6294 = vsel %vm3619, %v6288, %v6290
  %v6295 = vsel %vm3619, %v6290, %v6292
  %6299 = vrot.lane.b32.xlu0 %v2193, 56
  %v6300 = vpop.permute.xlu0 %6299
  %6301 = vrot.lane.b32.xlu0 %v2337, 56
  %v6302 = vpop.permute.xlu0 %6301
  %6303 = vrot.lane.b32.xlu0 %v2339, 56
  %v6304 = vpop.permute.xlu0 %6303
  %6305 = vrot.lane.b32.xlu0 %v2464, 56
  %v6306 = vpop.permute.xlu0 %6305
  %v6307 = vsel %vm3215, %v6300, %v6302
  %v6308 = vsel %vm3215, %v6302, %v6304
  %v6309 = vsel %vm3215, %v6304, %v6306
  %v6313 = vpack.c.bf16 %v6208, %v2191
  %v6314 = vpack.c.bf16 %v6209, %v2193
  %v6315 = vpack.c.bf16 %v6210, %v2337
  %v6316 = vpack.c.bf16 %v6236, %v6222
  %v6317 = vpack.c.bf16 %v6237, %v6223
  %v6318 = vpack.c.bf16 %v6238, %v6224
  %v6319 = vpack.c.bf16 %v6264, %v6250
  %v6320 = vpack.c.bf16 %v6265, %v6251
  %v6321 = vpack.c.bf16 %v6266, %v6252
  %v6322 = vpack.c.bf16 %v6293, %v6279
  %v6323 = vpack.c.bf16 %v6294, %v6280
  %v6324 = vpack.c.bf16 %v6295, %v6281
  %v6325 = vpack.c.bf16 %v6307, %v6307
  %v6326 = vpack.c.bf16 %v6308, %v6308
  %v6327 = vpack.c.bf16 %v6309, %v6309
  %v6329 = vsel %vm852, %v6325, 0
  %v6332 = vsel %vm852, %v6326, 0
  %v6335 = vsel %vm852, %v6327, 0
  %6337 = vmatprep.subr.bf16.mxu0 %v6314
  %6338 = vmatpush1.bf16.msra.mxu0 %v6313
  %6339 = vmatprep.subr.bf16.mxu0 %v6317
  %6340 = vmatpush1.bf16.msra.mxu0 %v6316
  %6341 = vmatprep.subr.bf16.mxu0 %v6320
  %6342 = vmatpush1.bf16.msra.mxu0 %v6319
  %6343 = vmatprep.subr.bf16.mxu0 %v6323
  %6344 = vmatpush1.bf16.msra.mxu0 %v6322
  %6345 = vmatprep.subr.bf16.mxu0 %v6332
  %6346 = vmatpush1.bf16.msra.mxu0 %v6329
  %6347 = vmatprep.subr.bf16.mxu0 0
  %6348 = vmatpush1.bf16.msra.mxu0 0
  %6349 = vmatprep.subr.bf16.mxu0 0
  %6350 = vmatpush1.bf16.msra.mxu0 0
  %6351 = vmatprep.subr.bf16.mxu0 0
  %6352 = vmatpush1.bf16.msra.mxu0 0
  %6353 = vmatprep.subr.bf16.mxu0 0
  %6354 = vmatpush1.bf16.msra.mxu0 0
  %6355 = vmatprep.subr.bf16.mxu0 0
  %6356 = vmatpush1.bf16.msra.mxu0 0
  %6357 = vmatprep.subr.bf16.mxu0 0
  %6358 = vmatpush1.bf16.msra.mxu0 0
  %6359 = vmatprep.subr.bf16.mxu0 0
  %6360 = vmatpush1.bf16.msra.mxu0 0
  %6361 = vmatprep.subr.bf16.mxu0 0
  %6362 = vmatpush1.bf16.msra.mxu0 0
  %6363 = vmatprep.subr.bf16.mxu0 0
  %6364 = vmatpush1.bf16.msra.mxu0 0
  %6365 = vmatprep.subr.bf16.mxu0 0
  %6366 = vmatpush1.bf16.msra.mxu0 0
  %6367 = vmatprep.subr.bf16.mxu0 0
  %6368 = vmatpush1.bf16.msra.mxu0 0
  %6369 = vmatprep.mubr.bf16.mxu0 0
  %6370 = vmatmul.mubr.bf16.gmra.mrb[0].mxu0 %v3661
  %v6371 = vpop.f32.mrb[0].mxu0
  %v6372 = vadd.f32 %v3658, %v6371
  %v6373 = vpop.f32.mrb[0].mxu0
  %v6374 = vadd.f32 %v3658, %v6373
  %v6375 = vpop.f32.mrb[0].mxu0
  %v6376 = vpop.f32.mrb[0].mxu0
  %6377 = vdwg.mxu0
  %6378 = vmatprep.subr.bf16.mxu0 0
  %6379 = vmatpush1.bf16.msra.mxu0 %v6315
  %6380 = vmatprep.subr.bf16.mxu0 0
  %6381 = vmatpush1.bf16.msra.mxu0 %v6318
  %6382 = vmatprep.subr.bf16.mxu0 0
  %6383 = vmatpush1.bf16.msra.mxu0 %v6321
  %6384 = vmatprep.subr.bf16.mxu0 0
  %6385 = vmatpush1.bf16.msra.mxu0 %v6324
  %6386 = vmatprep.subr.bf16.mxu0 0
  %6387 = vmatpush1.bf16.msra.mxu0 %v6335
  %6388 = vmatprep.subr.bf16.mxu0 0
  %6389 = vmatpush1.bf16.msra.mxu0 0
  %6390 = vmatprep.subr.bf16.mxu0 0
  %6391 = vmatpush1.bf16.msra.mxu0 0
  %6392 = vmatprep.subr.bf16.mxu0 0
  %6393 = vmatpush1.bf16.msra.mxu0 0
  %6394 = vmatprep.subr.bf16.mxu0 0
  %6395 = vmatpush1.bf16.msra.mxu0 0
  %6396 = vmatprep.subr.bf16.mxu0 0
  %6397 = vmatpush1.bf16.msra.mxu0 0
  %6398 = vmatprep.subr.bf16.mxu0 0
  %6399 = vmatpush1.bf16.msra.mxu0 0
  %6400 = vmatprep.subr.bf16.mxu0 0
  %6401 = vmatpush1.bf16.msra.mxu0 0
  %6402 = vmatprep.subr.bf16.mxu0 0
  %6403 = vmatpush1.bf16.msra.mxu0 0
  %6404 = vmatprep.subr.bf16.mxu0 0
  %6405 = vmatpush1.bf16.msra.mxu0 0
  %6406 = vmatprep.subr.bf16.mxu0 0
  %6407 = vmatpush1.bf16.msra.mxu0 0
  %6408 = vmatprep.subr.bf16.mxu0 0
  %6409 = vmatpush1.bf16.msra.mxu0 0
  %6410 = vmatprep.mubr.bf16.mxu0 0
  %6411 = vmatmul.mubr.bf16.gmra.mrb[0].mxu0 %v3661
  %v6412 = vpop.f32.mrb[0].mxu0
  %v6413 = vadd.f32 %v3658, %v6412
  %v6414 = vpop.f32.mrb[0].mxu0
  %v6415 = vpop.f32.mrb[0].mxu0
  %v6416 = vpop.f32.mrb[0].mxu0
  %6417 = vdwg.mxu0
  %vm6418 = vcmp.gt.f32.partialorder %v6372, 0.0
  %vm6419 = vcmp.gt.f32.partialorder %v6374, 0.0
  %vm6420 = vcmp.gt.f32.partialorder %v6413, 0.0
  %v6421 = vmul.f32 %v6372, 0.01
  %v6422 = vmul.f32 %v6374, 0.01
  %v6423 = vmul.f32 %v6413, 0.01
  %v6424 = vsel %vm6418, %v6372, %v6421
  %v6425 = vsel %vm6419, %v6374, %v6422
  %v6426 = vsel %vm6420, %v6413, %v6423
  %v6427 = vpack.c.bf16 %v5862, %v5531
  %v6428 = vpack.c.bf16 %v5863, %v5532
  %v6429 = vpack.c.bf16 %v5864, %v5533
  %v6430 = vpack.c.bf16 %v6424, %v6193
  %v6431 = vpack.c.bf16 %v6425, %v6194
  %v6432 = vpack.c.bf16 %v6426, %v6195
  %6433 = vmatprep.subr.bf16.mxu0 %v1810
  %6434 = vmatpush1.bf16.msra.mxu0 %v1809
  %6435 = vmatprep.subr.bf16.mxu0 %v1815
  %6436 = vmatpush1.bf16.msra.mxu0 %v1814
  %6437 = vmatprep.subr.bf16.mxu0 %v1820
  %6438 = vmatpush1.bf16.msra.mxu0 %v1819
  %6439 = vmatprep.subr.bf16.mxu0 %v1825
  %6440 = vmatpush1.bf16.msra.mxu0 %v1824
  %6441 = vmatprep.subr.bf16.mxu0 %v1830
  %6442 = vmatpush1.bf16.msra.mxu0 %v1829
  %6443 = vmatprep.subr.bf16.mxu0 %v1835
  %6444 = vmatpush1.bf16.msra.mxu0 %v1834
  %6445 = vmatprep.subr.bf16.mxu0 %v1840
  %6446 = vmatpush1.bf16.msra.mxu0 %v1839
  %6447 = vmatprep.subr.bf16.mxu0 %v1845
  %6448 = vmatpush1.bf16.msra.mxu0 %v1844
  %6449 = vmatprep.subr.bf16.mxu0 %v1850
  %6450 = vmatpush1.bf16.msra.mxu0 %v1849
  %6451 = vmatprep.subr.bf16.mxu0 %v1855
  %6452 = vmatpush1.bf16.msra.mxu0 %v1854
  %6453 = vmatprep.subr.bf16.mxu0 %v1860
  %6454 = vmatpush1.bf16.msra.mxu0 %v1859
  %6455 = vmatprep.subr.bf16.mxu0 %v1865
  %6456 = vmatpush1.bf16.msra.mxu0 %v1864
  %6457 = vmatprep.subr.bf16.mxu0 %v1870
  %6458 = vmatpush1.bf16.msra.mxu0 %v1869
  %6459 = vmatprep.subr.bf16.mxu0 %v1875
  %6460 = vmatpush1.bf16.msra.mxu0 %v1874
  %6461 = vmatprep.subr.bf16.mxu0 %v1880
  %6462 = vmatpush1.bf16.msra.mxu0 %v1879
  %6463 = vmatprep.subr.bf16.mxu0 %v1885
  %6464 = vmatpush1.bf16.msra.mxu0 %v1884
  %6465 = vmatprep.mubr.bf16.mxu0 %v6428
  %6466 = vmatmul.mubr.bf16.gmra.mrb[0].mxu0 %v6427
  %v6467 = vpop.f32.mrb[0].mxu0
  %v6468 = vadd.f32 0.0, %v6467
  %v6469 = vpop.f32.mrb[0].mxu0
  %v6470 = vadd.f32 0.0, %v6469
  %v6471 = vpop.f32.mrb[0].mxu0
  %v6472 = vadd.f32 0.0, %v6471
  %v6473 = vpop.f32.mrb[0].mxu0
  %v6474 = vadd.f32 0.0, %v6473
  %6475 = vmatprep.mubr.bf16.mxu0 %v6431
  %6476 = vmatmul.mubr.bf16.gmra.mrb[0].mxu0 %v6430
  %v6477 = vpop.f32.mrb[0].mxu0
  %v6478 = vadd.f32 0.0, %v6477
  %v6479 = vpop.f32.mrb[0].mxu0
  %v6480 = vadd.f32 0.0, %v6479
  %v6481 = vpop.f32.mrb[0].mxu0
  %v6482 = vadd.f32 0.0, %v6481
  %v6483 = vpop.f32.mrb[0].mxu0
  %v6484 = vadd.f32 0.0, %v6483
  %6485 = vdwg.mxu0
  %6486 = vmatprep.subr.bf16.mxu0 %v1890
  %6487 = vmatpush1.bf16.msra.mxu0 %v1889
  %6488 = vmatprep.subr.bf16.mxu0 %v1895
  %6489 = vmatpush1.bf16.msra.mxu0 %v1894
  %6490 = vmatprep.subr.bf16.mxu0 %v1900
  %6491 = vmatpush1.bf16.msra.mxu0 %v1899
  %6492 = vmatprep.subr.bf16.mxu0 %v1905
  %6493 = vmatpush1.bf16.msra.mxu0 %v1904
  %6494 = vmatprep.subr.bf16.mxu0 %v1910
  %6495 = vmatpush1.bf16.msra.mxu0 %v1909
  %6496 = vmatprep.subr.bf16.mxu0 %v1915
  %6497 = vmatpush1.bf16.msra.mxu0 %v1914
  %6498 = vmatprep.subr.bf16.mxu0 %v1920
  %6499 = vmatpush1.bf16.msra.mxu0 %v1919
  %6500 = vmatprep.subr.bf16.mxu0 %v1925
  %6501 = vmatpush1.bf16.msra.mxu0 %v1924
  %6502 = vmatprep.subr.bf16.mxu0 0
  %6503 = vmatpush1.bf16.msra.mxu0 0
  %6504 = vmatprep.subr.bf16.mxu0 0
  %6505 = vmatpush1.bf16.msra.mxu0 0
  %6506 = vmatprep.subr.bf16.mxu0 0
  %6507 = vmatpush1.bf16.msra.mxu0 0
  %6508 = vmatprep.subr.bf16.mxu0 0
  %6509 = vmatpush1.bf16.msra.mxu0 0
  %6510 = vmatprep.subr.bf16.mxu0 0
  %6511 = vmatpush1.bf16.msra.mxu0 0
  %6512 = vmatprep.subr.bf16.mxu0 0
  %6513 = vmatpush1.bf16.msra.mxu0 0
  %6514 = vmatprep.subr.bf16.mxu0 0
  %6515 = vmatpush1.bf16.msra.mxu0 0
  %6516 = vmatprep.subr.bf16.mxu0 0
  %6517 = vmatpush1.bf16.msra.mxu0 0
  %6518 = vmatprep.mubr.bf16.mxu0 0
  %6519 = vmatmul.mubr.bf16.gmra.mrb[0].mxu0 %v6429
  %v6520 = vpop.f32.mrb[0].mxu0
  %v6521 = vadd.f32 %v6468, %v6520
  %v6522 = vpop.f32.mrb[0].mxu0
  %v6523 = vadd.f32 %v6470, %v6522
  %v6524 = vpop.f32.mrb[0].mxu0
  %v6525 = vadd.f32 %v6472, %v6524
  %v6526 = vpop.f32.mrb[0].mxu0
  %v6527 = vadd.f32 %v6474, %v6526
  %6528 = vmatprep.mubr.bf16.mxu0 0
  %6529 = vmatmul.mubr.bf16.gmra.mrb[0].mxu0 %v6432
  %v6530 = vpop.f32.mrb[0].mxu0
  %v6531 = vadd.f32 %v6478, %v6530
  %v6532 = vpop.f32.mrb[0].mxu0
  %v6533 = vadd.f32 %v6480, %v6532
  %v6534 = vpop.f32.mrb[0].mxu0
  %v6535 = vadd.f32 %v6482, %v6534
  %v6536 = vpop.f32.mrb[0].mxu0
  %v6537 = vadd.f32 %v6484, %v6536
  %6538 = vdwg.mxu0
  %6539 = vmatprep.subr.bf16.mxu0 %v1812
  %6540 = vmatpush1.bf16.msra.mxu0 %v1811
  %6541 = vmatprep.subr.bf16.mxu0 %v1817
  %6542 = vmatpush1.bf16.msra.mxu0 %v1816
  %6543 = vmatprep.subr.bf16.mxu0 %v1822
  %6544 = vmatpush1.bf16.msra.mxu0 %v1821
  %6545 = vmatprep.subr.bf16.mxu0 %v1827
  %6546 = vmatpush1.bf16.msra.mxu0 %v1826
  %6547 = vmatprep.subr.bf16.mxu0 %v1832
  %6548 = vmatpush1.bf16.msra.mxu0 %v1831
  %6549 = vmatprep.subr.bf16.mxu0 %v1837
  %6550 = vmatpush1.bf16.msra.mxu0 %v1836
  %6551 = vmatprep.subr.bf16.mxu0 %v1842
  %6552 = vmatpush1.bf16.msra.mxu0 %v1841
  %6553 = vmatprep.subr.bf16.mxu0 %v1847
  %6554 = vmatpush1.bf16.msra.mxu0 %v1846
  %6555 = vmatprep.subr.bf16.mxu0 %v1852
  %6556 = vmatpush1.bf16.msra.mxu0 %v1851
  %6557 = vmatprep.subr.bf16.mxu0 %v1857
  %6558 = vmatpush1.bf16.msra.mxu0 %v1856
  %6559 = vmatprep.subr.bf16.mxu0 %v1862
  %6560 = vmatpush1.bf16.msra.mxu0 %v1861
  %6561 = vmatprep.subr.bf16.mxu0 %v1867
  %6562 = vmatpush1.bf16.msra.mxu0 %v1866
  %6563 = vmatprep.subr.bf16.mxu0 %v1872
  %6564 = vmatpush1.bf16.msra.mxu0 %v1871
  %6565 = vmatprep.subr.bf16.mxu0 %v1877
  %6566 = vmatpush1.bf16.msra.mxu0 %v1876
  %6567 = vmatprep.subr.bf16.mxu0 %v1882
  %6568 = vmatpush1.bf16.msra.mxu0 %v1881
  %6569 = vmatprep.subr.bf16.mxu0 %v1887
  %6570 = vmatpush1.bf16.msra.mxu0 %v1886
  %6571 = vmatprep.mubr.bf16.mxu0 %v6428
  %6572 = vmatmul.mubr.bf16.gmra.mrb[0].mxu0 %v6427
  %v6573 = vpop.f32.mrb[0].mxu0
  %v6574 = vadd.f32 0.0, %v6573
  %v6575 = vpop.f32.mrb[0].mxu0
  %v6576 = vadd.f32 0.0, %v6575
  %v6577 = vpop.f32.mrb[0].mxu0
  %v6578 = vadd.f32 0.0, %v6577
  %v6579 = vpop.f32.mrb[0].mxu0
  %v6580 = vadd.f32 0.0, %v6579
  %6581 = vmatprep.mubr.bf16.mxu0 %v6431
  %6582 = vmatmul.mubr.bf16.gmra.mrb[0].mxu0 %v6430
  %v6583 = vpop.f32.mrb[0].mxu0
  %v6584 = vadd.f32 0.0, %v6583
  %v6585 = vpop.f32.mrb[0].mxu0
  %v6586 = vadd.f32 0.0, %v6585
  %v6587 = vpop.f32.mrb[0].mxu0
  %v6588 = vadd.f32 0.0, %v6587
  %v6589 = vpop.f32.mrb[0].mxu0
  %v6590 = vadd.f32 0.0, %v6589
  %6591 = vdwg.mxu0
  %6592 = vmatprep.subr.bf16.mxu0 %v1892
  %6593 = vmatpush1.bf16.msra.mxu0 %v1891
  %6594 = vmatprep.subr.bf16.mxu0 %v1897
  %6595 = vmatpush1.bf16.msra.mxu0 %v1896
  %6596 = vmatprep.subr.bf16.mxu0 %v1902
  %6597 = vmatpush1.bf16.msra.mxu0 %v1901
  %6598 = vmatprep.subr.bf16.mxu0 %v1907
  %6599 = vmatpush1.bf16.msra.mxu0 %v1906
  %6600 = vmatprep.subr.bf16.mxu0 %v1912
  %6601 = vmatpush1.bf16.msra.mxu0 %v1911
  %6602 = vmatprep.subr.bf16.mxu0 %v1917
  %6603 = vmatpush1.bf16.msra.mxu0 %v1916
  %6604 = vmatprep.subr.bf16.mxu0 %v1922
  %6605 = vmatpush1.bf16.msra.mxu0 %v1921
  %6606 = vmatprep.subr.bf16.mxu0 %v1927
  %6607 = vmatpush1.bf16.msra.mxu0 %v1926
  %6608 = vmatprep.subr.bf16.mxu0 0
  %6609 = vmatpush1.bf16.msra.mxu0 0
  %6610 = vmatprep.subr.bf16.mxu0 0
  %6611 = vmatpush1.bf16.msra.mxu0 0
  %6612 = vmatprep.subr.bf16.mxu0 0
  %6613 = vmatpush1.bf16.msra.mxu0 0
  %6614 = vmatprep.subr.bf16.mxu0 0
  %6615 = vmatpush1.bf16.msra.mxu0 0
  %6616 = vmatprep.subr.bf16.mxu0 0
  %6617 = vmatpush1.bf16.msra.mxu0 0
  %6618 = vmatprep.subr.bf16.mxu0 0
  %6619 = vmatpush1.bf16.msra.mxu0 0
  %6620 = vmatprep.subr.bf16.mxu0 0
  %6621 = vmatpush1.bf16.msra.mxu0 0
  %6622 = vmatprep.subr.bf16.mxu0 0
  %6623 = vmatpush1.bf16.msra.mxu0 0
  %6624 = vmatprep.mubr.bf16.mxu0 0
  %6625 = vmatmul.mubr.bf16.gmra.mrb[0].mxu0 %v6429
  %v6626 = vpop.f32.mrb[0].mxu0
  %v6627 = vadd.f32 %v6574, %v6626
  %v6628 = vpop.f32.mrb[0].mxu0
  %v6629 = vadd.f32 %v6576, %v6628
  %v6630 = vpop.f32.mrb[0].mxu0
  %v6631 = vadd.f32 %v6578, %v6630
  %v6632 = vpop.f32.mrb[0].mxu0
  %v6633 = vadd.f32 %v6580, %v6632
  %6634 = vmatprep.mubr.bf16.mxu0 0
  %6635 = vmatmul.mubr.bf16.gmra.mrb[0].mxu0 %v6432
  %v6636 = vpop.f32.mrb[0].mxu0
  %v6637 = vadd.f32 %v6584, %v6636
  %v6638 = vpop.f32.mrb[0].mxu0
  %v6639 = vadd.f32 %v6586, %v6638
  %v6640 = vpop.f32.mrb[0].mxu0
  %v6641 = vadd.f32 %v6588, %v6640
  %v6642 = vpop.f32.mrb[0].mxu0
  %v6643 = vadd.f32 %v6590, %v6642
  %6644 = vdwg.mxu0
  %6661 = vrot.lane.b32.xlu0 %v6521, 127
  %v6662 = vpop.permute.xlu0 %6661
  %6663 = vrot.lane.b32.xlu0 %v6523, 127
  %v6664 = vpop.permute.xlu0 %6663
  %6665 = vrot.lane.b32.xlu0 %v6627, 127
  %v6666 = vpop.permute.xlu0 %6665
  %6667 = vrot.lane.b32.xlu0 %v6629, 127
  %v6668 = vpop.permute.xlu0 %6667
  %6669 = vrot.lane.b32.xlu0 %v6525, 127
  %v6670 = vpop.permute.xlu0 %6669
  %6671 = vrot.lane.b32.xlu0 %v6527, 127
  %v6672 = vpop.permute.xlu0 %6671
  %6673 = vrot.lane.b32.xlu0 %v6631, 127
  %v6674 = vpop.permute.xlu0 %6673
  %6675 = vrot.lane.b32.xlu0 %v6633, 127
  %v6676 = vpop.permute.xlu0 %6675
  %6677 = vrot.lane.b32.xlu0 %v6531, 127
  %v6678 = vpop.permute.xlu0 %6677
  %6679 = vrot.lane.b32.xlu0 %v6533, 127
  %v6680 = vpop.permute.xlu0 %6679
  %6681 = vrot.lane.b32.xlu0 %v6637, 127
  %v6682 = vpop.permute.xlu0 %6681
  %6683 = vrot.lane.b32.xlu0 %v6639, 127
  %v6684 = vpop.permute.xlu0 %6683
  %6685 = vrot.lane.b32.xlu0 %v6535, 127
  %v6686 = vpop.permute.xlu0 %6685
  %6687 = vrot.lane.b32.xlu0 %v6537, 127
  %v6688 = vpop.permute.xlu0 %6687
  %6689 = vrot.lane.b32.xlu0 %v6641, 127
  %v6690 = vpop.permute.xlu0 %6689
  %6691 = vrot.lane.b32.xlu0 %v6643, 127
  %v6692 = vpop.permute.xlu0 %6691
  %v6693 = vsel %vm688, %v6662, %v6664
  %v6694 = vsel %vm688, %v6664, %v6666
  %v6695 = vsel %vm688, %v6666, %v6668
  %v6696 = vsel %vm688, %v6670, %v6672
  %v6697 = vsel %vm688, %v6672, %v6674
  %v6698 = vsel %vm688, %v6674, %v6676
  %v6699 = vsel %vm688, %v6678, %v6680
  %v6700 = vsel %vm688, %v6680, %v6682
  %v6701 = vsel %vm688, %v6682, %v6684
  %v6702 = vsel %vm688, %v6686, %v6688
  %v6703 = vsel %vm688, %v6688, %v6690
  %v6704 = vsel %vm688, %v6690, %v6692
  %6721 = vrot.lane.b32.xlu0 %v6521, 126
  %v6722 = vpop.permute.xlu0 %6721
  %6723 = vrot.lane.b32.xlu0 %v6523, 126
  %v6724 = vpop.permute.xlu0 %6723
  %6725 = vrot.lane.b32.xlu0 %v6627, 126
  %v6726 = vpop.permute.xlu0 %6725
  %6727 = vrot.lane.b32.xlu0 %v6629, 126
  %v6728 = vpop.permute.xlu0 %6727
  %6729 = vrot.lane.b32.xlu0 %v6525, 126
  %v6730 = vpop.permute.xlu0 %6729
  %6731 = vrot.lane.b32.xlu0 %v6527, 126
  %v6732 = vpop.permute.xlu0 %6731
  %6733 = vrot.lane.b32.xlu0 %v6631, 126
  %v6734 = vpop.permute.xlu0 %6733
  %6735 = vrot.lane.b32.xlu0 %v6633, 126
  %v6736 = vpop.permute.xlu0 %6735
  %6737 = vrot.lane.b32.xlu0 %v6531, 126
  %v6738 = vpop.permute.xlu0 %6737
  %6739 = vrot.lane.b32.xlu0 %v6533, 126
  %v6740 = vpop.permute.xlu0 %6739
  %6741 = vrot.lane.b32.xlu0 %v6637, 126
  %v6742 = vpop.permute.xlu0 %6741
  %6743 = vrot.lane.b32.xlu0 %v6639, 126
  %v6744 = vpop.permute.xlu0 %6743
  %6745 = vrot.lane.b32.xlu0 %v6535, 126
  %v6746 = vpop.permute.xlu0 %6745
  %6747 = vrot.lane.b32.xlu0 %v6537, 126
  %v6748 = vpop.permute.xlu0 %6747
  %6749 = vrot.lane.b32.xlu0 %v6641, 126
  %v6750 = vpop.permute.xlu0 %6749
  %6751 = vrot.lane.b32.xlu0 %v6643, 126
  %v6752 = vpop.permute.xlu0 %6751
  %v6753 = vsel %vm703, %v6722, %v6724
  %v6754 = vsel %vm703, %v6724, %v6726
  %v6755 = vsel %vm703, %v6726, %v6728
  %v6756 = vsel %vm703, %v6730, %v6732
  %v6757 = vsel %vm703, %v6732, %v6734
  %v6758 = vsel %vm703, %v6734, %v6736
  %v6759 = vsel %vm703, %v6738, %v6740
  %v6760 = vsel %vm703, %v6740, %v6742
  %v6761 = vsel %vm703, %v6742, %v6744
  %v6762 = vsel %vm703, %v6746, %v6748
  %v6763 = vsel %vm703, %v6748, %v6750
  %v6764 = vsel %vm703, %v6750, %v6752
  %6781 = vrot.lane.b32.xlu0 %v6521, 104
  %v6782 = vpop.permute.xlu0 %6781
  %6783 = vrot.lane.b32.xlu0 %v6523, 104
  %v6784 = vpop.permute.xlu0 %6783
  %6785 = vrot.lane.b32.xlu0 %v6627, 104
  %v6786 = vpop.permute.xlu0 %6785
  %6787 = vrot.lane.b32.xlu0 %v6629, 104
  %v6788 = vpop.permute.xlu0 %6787
  %6789 = vrot.lane.b32.xlu0 %v6525, 104
  %v6790 = vpop.permute.xlu0 %6789
  %6791 = vrot.lane.b32.xlu0 %v6527, 104
  %v6792 = vpop.permute.xlu0 %6791
  %6793 = vrot.lane.b32.xlu0 %v6631, 104
  %v6794 = vpop.permute.xlu0 %6793
  %6795 = vrot.lane.b32.xlu0 %v6633, 104
  %v6796 = vpop.permute.xlu0 %6795
  %6797 = vrot.lane.b32.xlu0 %v6531, 104
  %v6798 = vpop.permute.xlu0 %6797
  %6799 = vrot.lane.b32.xlu0 %v6533, 104
  %v6800 = vpop.permute.xlu0 %6799
  %6801 = vrot.lane.b32.xlu0 %v6637, 104
  %v6802 = vpop.permute.xlu0 %6801
  %6803 = vrot.lane.b32.xlu0 %v6639, 104
  %v6804 = vpop.permute.xlu0 %6803
  %6805 = vrot.lane.b32.xlu0 %v6535, 104
  %v6806 = vpop.permute.xlu0 %6805
  %6807 = vrot.lane.b32.xlu0 %v6537, 104
  %v6808 = vpop.permute.xlu0 %6807
  %6809 = vrot.lane.b32.xlu0 %v6641, 104
  %v6810 = vpop.permute.xlu0 %6809
  %6811 = vrot.lane.b32.xlu0 %v6643, 104
  %v6812 = vpop.permute.xlu0 %6811
  %v6813 = vsel %vm718, %v6782, %v6784
  %v6814 = vsel %vm718, %v6784, %v6786
  %v6815 = vsel %vm718, %v6786, %v6788
  %v6816 = vsel %vm718, %v6790, %v6792
  %v6817 = vsel %vm718, %v6792, %v6794
  %v6818 = vsel %vm718, %v6794, %v6796
  %v6819 = vsel %vm718, %v6798, %v6800
  %v6820 = vsel %vm718, %v6800, %v6802
  %v6821 = vsel %vm718, %v6802, %v6804
  %v6822 = vsel %vm718, %v6806, %v6808
  %v6823 = vsel %vm718, %v6808, %v6810
  %v6824 = vsel %vm718, %v6810, %v6812
  %6841 = vrot.lane.b32.xlu0 %v6521, 103
  %v6842 = vpop.permute.xlu0 %6841
  %6843 = vrot.lane.b32.xlu0 %v6523, 103
  %v6844 = vpop.permute.xlu0 %6843
  %6845 = vrot.lane.b32.xlu0 %v6627, 103
  %v6846 = vpop.permute.xlu0 %6845
  %6847 = vrot.lane.b32.xlu0 %v6629, 103
  %v6848 = vpop.permute.xlu0 %6847
  %6849 = vrot.lane.b32.xlu0 %v6525, 103
  %v6850 = vpop.permute.xlu0 %6849
  %6851 = vrot.lane.b32.xlu0 %v6527, 103
  %v6852 = vpop.permute.xlu0 %6851
  %6853 = vrot.lane.b32.xlu0 %v6631, 103
  %v6854 = vpop.permute.xlu0 %6853
  %6855 = vrot.lane.b32.xlu0 %v6633, 103
  %v6856 = vpop.permute.xlu0 %6855
  %6857 = vrot.lane.b32.xlu0 %v6531, 103
  %v6858 = vpop.permute.xlu0 %6857
  %6859 = vrot.lane.b32.xlu0 %v6533, 103
  %v6860 = vpop.permute.xlu0 %6859
  %6861 = vrot.lane.b32.xlu0 %v6637, 103
  %v6862 = vpop.permute.xlu0 %6861
  %6863 = vrot.lane.b32.xlu0 %v6639, 103
  %v6864 = vpop.permute.xlu0 %6863
  %6865 = vrot.lane.b32.xlu0 %v6535, 103
  %v6866 = vpop.permute.xlu0 %6865
  %6867 = vrot.lane.b32.xlu0 %v6537, 103
  %v6868 = vpop.permute.xlu0 %6867
  %6869 = vrot.lane.b32.xlu0 %v6641, 103
  %v6870 = vpop.permute.xlu0 %6869
  %6871 = vrot.lane.b32.xlu0 %v6643, 103
  %v6872 = vpop.permute.xlu0 %6871
  %v6873 = vsel %vm733, %v6842, %v6844
  %v6874 = vsel %vm733, %v6844, %v6846
  %v6875 = vsel %vm733, %v6846, %v6848
  %v6876 = vsel %vm733, %v6850, %v6852
  %v6877 = vsel %vm733, %v6852, %v6854
  %v6878 = vsel %vm733, %v6854, %v6856
  %v6879 = vsel %vm733, %v6858, %v6860
  %v6880 = vsel %vm733, %v6860, %v6862
  %v6881 = vsel %vm733, %v6862, %v6864
  %v6882 = vsel %vm733, %v6866, %v6868
  %v6883 = vsel %vm733, %v6868, %v6870
  %v6884 = vsel %vm733, %v6870, %v6872
  %6901 = vrot.lane.b32.xlu0 %v6521, 102
  %v6902 = vpop.permute.xlu0 %6901
  %6903 = vrot.lane.b32.xlu0 %v6523, 102
  %v6904 = vpop.permute.xlu0 %6903
  %6905 = vrot.lane.b32.xlu0 %v6627, 102
  %v6906 = vpop.permute.xlu0 %6905
  %6907 = vrot.lane.b32.xlu0 %v6629, 102
  %v6908 = vpop.permute.xlu0 %6907
  %6909 = vrot.lane.b32.xlu0 %v6525, 102
  %v6910 = vpop.permute.xlu0 %6909
  %6911 = vrot.lane.b32.xlu0 %v6527, 102
  %v6912 = vpop.permute.xlu0 %6911
  %6913 = vrot.lane.b32.xlu0 %v6631, 102
  %v6914 = vpop.permute.xlu0 %6913
  %6915 = vrot.lane.b32.xlu0 %v6633, 102
  %v6916 = vpop.permute.xlu0 %6915
  %6917 = vrot.lane.b32.xlu0 %v6531, 102
  %v6918 = vpop.permute.xlu0 %6917
  %6919 = vrot.lane.b32.xlu0 %v6533, 102
  %v6920 = vpop.permute.xlu0 %6919
  %6921 = vrot.lane.b32.xlu0 %v6637, 102
  %v6922 = vpop.permute.xlu0 %6921
  %6923 = vrot.lane.b32.xlu0 %v6639, 102
  %v6924 = vpop.permute.xlu0 %6923
  %6925 = vrot.lane.b32.xlu0 %v6535, 102
  %v6926 = vpop.permute.xlu0 %6925
  %6927 = vrot.lane.b32.xlu0 %v6537, 102
  %v6928 = vpop.permute.xlu0 %6927
  %6929 = vrot.lane.b32.xlu0 %v6641, 102
  %v6930 = vpop.permute.xlu0 %6929
  %6931 = vrot.lane.b32.xlu0 %v6643, 102
  %v6932 = vpop.permute.xlu0 %6931
  %v6933 = vsel %vm748, %v6902, %v6904
  %v6934 = vsel %vm748, %v6904, %v6906
  %v6935 = vsel %vm748, %v6906, %v6908
  %v6936 = vsel %vm748, %v6910, %v6912
  %v6937 = vsel %vm748, %v6912, %v6914
  %v6938 = vsel %vm748, %v6914, %v6916
  %v6939 = vsel %vm748, %v6918, %v6920
  %v6940 = vsel %vm748, %v6920, %v6922
  %v6941 = vsel %vm748, %v6922, %v6924
  %v6942 = vsel %vm748, %v6926, %v6928
  %v6943 = vsel %vm748, %v6928, %v6930
  %v6944 = vsel %vm748, %v6930, %v6932
  %6961 = vrot.lane.b32.xlu0 %v6521, 80
  %v6962 = vpop.permute.xlu0 %6961
  %6963 = vrot.lane.b32.xlu0 %v6523, 80
  %v6964 = vpop.permute.xlu0 %6963
  %6965 = vrot.lane.b32.xlu0 %v6627, 80
  %v6966 = vpop.permute.xlu0 %6965
  %6967 = vrot.lane.b32.xlu0 %v6629, 80
  %v6968 = vpop.permute.xlu0 %6967
  %6969 = vrot.lane.b32.xlu0 %v6525, 80
  %v6970 = vpop.permute.xlu0 %6969
  %6971 = vrot.lane.b32.xlu0 %v6527, 80
  %v6972 = vpop.permute.xlu0 %6971
  %6973 = vrot.lane.b32.xlu0 %v6631, 80
  %v6974 = vpop.permute.xlu0 %6973
  %6975 = vrot.lane.b32.xlu0 %v6633, 80
  %v6976 = vpop.permute.xlu0 %6975
  %6977 = vrot.lane.b32.xlu0 %v6531, 80
  %v6978 = vpop.permute.xlu0 %6977
  %6979 = vrot.lane.b32.xlu0 %v6533, 80
  %v6980 = vpop.permute.xlu0 %6979
  %6981 = vrot.lane.b32.xlu0 %v6637, 80
  %v6982 = vpop.permute.xlu0 %6981
  %6983 = vrot.lane.b32.xlu0 %v6639, 80
  %v6984 = vpop.permute.xlu0 %6983
  %6985 = vrot.lane.b32.xlu0 %v6535, 80
  %v6986 = vpop.permute.xlu0 %6985
  %6987 = vrot.lane.b32.xlu0 %v6537, 80
  %v6988 = vpop.permute.xlu0 %6987
  %6989 = vrot.lane.b32.xlu0 %v6641, 80
  %v6990 = vpop.permute.xlu0 %6989
  %6991 = vrot.lane.b32.xlu0 %v6643, 80
  %v6992 = vpop.permute.xlu0 %6991
  %v6993 = vsel %vm763, %v6962, %v6964
  %v6994 = vsel %vm763, %v6964, %v6966
  %v6995 = vsel %vm763, %v6966, %v6968
  %v6996 = vsel %vm763, %v6970, %v6972
  %v6997 = vsel %vm763, %v6972, %v6974
  %v6998 = vsel %vm763, %v6974, %v6976
  %v6999 = vsel %vm763, %v6978, %v6980
  %v7000 = vsel %vm763, %v6980, %v6982
  %v7001 = vsel %vm763, %v6982, %v6984
  %v7002 = vsel %vm763, %v6986, %v6988
  %v7003 = vsel %vm763, %v6988, %v6990
  %v7004 = vsel %vm763, %v6990, %v6992
  %7021 = vrot.lane.b32.xlu0 %v6521, 79
  %v7022 = vpop.permute.xlu0 %7021
  %7023 = vrot.lane.b32.xlu0 %v6523, 79
  %v7024 = vpop.permute.xlu0 %7023
  %7025 = vrot.lane.b32.xlu0 %v6627, 79
  %v7026 = vpop.permute.xlu0 %7025
  %7027 = vrot.lane.b32.xlu0 %v6629, 79
  %v7028 = vpop.permute.xlu0 %7027
  %7029 = vrot.lane.b32.xlu0 %v6525, 79
  %v7030 = vpop.permute.xlu0 %7029
  %7031 = vrot.lane.b32.xlu0 %v6527, 79
  %v7032 = vpop.permute.xlu0 %7031
  %7033 = vrot.lane.b32.xlu0 %v6631, 79
  %v7034 = vpop.permute.xlu0 %7033
  %7035 = vrot.lane.b32.xlu0 %v6633, 79
  %v7036 = vpop.permute.xlu0 %7035
  %7037 = vrot.lane.b32.xlu0 %v6531, 79
  %v7038 = vpop.permute.xlu0 %7037
  %7039 = vrot.lane.b32.xlu0 %v6533, 79
  %v7040 = vpop.permute.xlu0 %7039
  %7041 = vrot.lane.b32.xlu0 %v6637, 79
  %v7042 = vpop.permute.xlu0 %7041
  %7043 = vrot.lane.b32.xlu0 %v6639, 79
  %v7044 = vpop.permute.xlu0 %7043
  %7045 = vrot.lane.b32.xlu0 %v6535, 79
  %v7046 = vpop.permute.xlu0 %7045
  %7047 = vrot.lane.b32.xlu0 %v6537, 79
  %v7048 = vpop.permute.xlu0 %7047
  %7049 = vrot.lane.b32.xlu0 %v6641, 79
  %v7050 = vpop.permute.xlu0 %7049
  %7051 = vrot.lane.b32.xlu0 %v6643, 79
  %v7052 = vpop.permute.xlu0 %7051
  %v7053 = vsel %vm778, %v7022, %v7024
  %v7054 = vsel %vm778, %v7024, %v7026
  %v7055 = vsel %vm778, %v7026, %v7028
  %v7056 = vsel %vm778, %v7030, %v7032
  %v7057 = vsel %vm778, %v7032, %v7034
  %v7058 = vsel %vm778, %v7034, %v7036
  %v7059 = vsel %vm778, %v7038, %v7040
  %v7060 = vsel %vm778, %v7040, %v7042
  %v7061 = vsel %vm778, %v7042, %v7044
  %v7062 = vsel %vm778, %v7046, %v7048
  %v7063 = vsel %vm778, %v7048, %v7050
  %v7064 = vsel %vm778, %v7050, %v7052
  %7081 = vrot.lane.b32.xlu0 %v6521, 78
  %v7082 = vpop.permute.xlu0 %7081
  %7083 = vrot.lane.b32.xlu0 %v6523, 78
  %v7084 = vpop.permute.xlu0 %7083
  %7085 = vrot.lane.b32.xlu0 %v6627, 78
  %v7086 = vpop.permute.xlu0 %7085
  %7087 = vrot.lane.b32.xlu0 %v6629, 78
  %v7088 = vpop.permute.xlu0 %7087
  %7089 = vrot.lane.b32.xlu0 %v6525, 78
  %v7090 = vpop.permute.xlu0 %7089
  %7091 = vrot.lane.b32.xlu0 %v6527, 78
  %v7092 = vpop.permute.xlu0 %7091
  %7093 = vrot.lane.b32.xlu0 %v6631, 78
  %v7094 = vpop.permute.xlu0 %7093
  %7095 = vrot.lane.b32.xlu0 %v6633, 78
  %v7096 = vpop.permute.xlu0 %7095
  %7097 = vrot.lane.b32.xlu0 %v6531, 78
  %v7098 = vpop.permute.xlu0 %7097
  %7099 = vrot.lane.b32.xlu0 %v6533, 78
  %v7100 = vpop.permute.xlu0 %7099
  %7101 = vrot.lane.b32.xlu0 %v6637, 78
  %v7102 = vpop.permute.xlu0 %7101
  %7103 = vrot.lane.b32.xlu0 %v6639, 78
  %v7104 = vpop.permute.xlu0 %7103
  %7105 = vrot.lane.b32.xlu0 %v6535, 78
  %v7106 = vpop.permute.xlu0 %7105
  %7107 = vrot.lane.b32.xlu0 %v6537, 78
  %v7108 = vpop.permute.xlu0 %7107
  %7109 = vrot.lane.b32.xlu0 %v6641, 78
  %v7110 = vpop.permute.xlu0 %7109
  %7111 = vrot.lane.b32.xlu0 %v6643, 78
  %v7112 = vpop.permute.xlu0 %7111
  %v7113 = vsel %vm793, %v7082, %v7084
  %v7114 = vsel %vm793, %v7084, %v7086
  %v7115 = vsel %vm793, %v7086, %v7088
  %v7116 = vsel %vm793, %v7090, %v7092
  %v7117 = vsel %vm793, %v7092, %v7094
  %v7118 = vsel %vm793, %v7094, %v7096
  %v7119 = vsel %vm793, %v7098, %v7100
  %v7120 = vsel %vm793, %v7100, %v7102
  %v7121 = vsel %vm793, %v7102, %v7104
  %v7122 = vsel %vm793, %v7106, %v7108
  %v7123 = vsel %vm793, %v7108, %v7110
  %v7124 = vsel %vm793, %v7110, %v7112
  %v7141 = vpack.c.bf16 %v6525, %v6521
  %v7142 = vpack.c.bf16 %v6527, %v6523
  %v7143 = vpack.c.bf16 %v6631, %v6627
  %v7144 = vpack.c.bf16 %v6633, %v6629
  %v7145 = vpack.c.bf16 %v6535, %v6531
  %v7146 = vpack.c.bf16 %v6537, %v6533
  %v7147 = vpack.c.bf16 %v6641, %v6637
  %v7148 = vpack.c.bf16 %v6643, %v6639
  %v7149 = vpack.c.bf16 %v6696, %v6693
  %v7150 = vpack.c.bf16 %v6697, %v6694
  %v7151 = vpack.c.bf16 %v6698, %v6695
  %v7152 = vpack.c.bf16 %v6676, %v6668
  %v7153 = vpack.c.bf16 %v6702, %v6699
  %v7154 = vpack.c.bf16 %v6703, %v6700
  %v7155 = vpack.c.bf16 %v6704, %v6701
  %v7156 = vpack.c.bf16 %v6692, %v6684
  %v7157 = vpack.c.bf16 %v6756, %v6753
  %v7158 = vpack.c.bf16 %v6757, %v6754
  %v7159 = vpack.c.bf16 %v6758, %v6755
  %v7160 = vpack.c.bf16 %v6736, %v6728
  %v7161 = vpack.c.bf16 %v6762, %v6759
  %v7162 = vpack.c.bf16 %v6763, %v6760
  %v7163 = vpack.c.bf16 %v6764, %v6761
  %v7164 = vpack.c.bf16 %v6752, %v6744
  %v7165 = vpack.c.bf16 %v6816, %v6813
  %v7166 = vpack.c.bf16 %v6817, %v6814
  %v7167 = vpack.c.bf16 %v6818, %v6815
  %v7168 = vpack.c.bf16 %v6796, %v6788
  %v7169 = vpack.c.bf16 %v6822, %v6819
  %v7170 = vpack.c.bf16 %v6823, %v6820
  %v7171 = vpack.c.bf16 %v6824, %v6821
  %v7172 = vpack.c.bf16 %v6812, %v6804
  %v7173 = vpack.c.bf16 %v6876, %v6873
  %v7174 = vpack.c.bf16 %v6877, %v6874
  %v7175 = vpack.c.bf16 %v6878, %v6875
  %v7176 = vpack.c.bf16 %v6856, %v6848
  %v7177 = vpack.c.bf16 %v6882, %v6879
  %v7178 = vpack.c.bf16 %v6883, %v6880
  %v7179 = vpack.c.bf16 %v6884, %v6881
  %v7180 = vpack.c.bf16 %v6872, %v6864
  %v7181 = vpack.c.bf16 %v6936, %v6933
  %v7182 = vpack.c.bf16 %v6937, %v6934
  %v7183 = vpack.c.bf16 %v6938, %v6935
  %v7184 = vpack.c.bf16 %v6916, %v6908
  %v7185 = vpack.c.bf16 %v6942, %v6939
  %v7186 = vpack.c.bf16 %v6943, %v6940
  %v7187 = vpack.c.bf16 %v6944, %v6941
  %v7188 = vpack.c.bf16 %v6932, %v6924
  %v7189 = vpack.c.bf16 %v6996, %v6993
  %v7190 = vpack.c.bf16 %v6997, %v6994
  %v7191 = vpack.c.bf16 %v6998, %v6995
  %v7192 = vpack.c.bf16 %v6976, %v6968
  %v7193 = vpack.c.bf16 %v7002, %v6999
  %v7194 = vpack.c.bf16 %v7003, %v7000
  %v7195 = vpack.c.bf16 %v7004, %v7001
  %v7196 = vpack.c.bf16 %v6992, %v6984
  %v7197 = vpack.c.bf16 %v7056, %v7053
  %v7198 = vpack.c.bf16 %v7057, %v7054
  %v7199 = vpack.c.bf16 %v7058, %v7055
  %v7200 = vpack.c.bf16 %v7036, %v7028
  %v7201 = vpack.c.bf16 %v7062, %v7059
  %v7202 = vpack.c.bf16 %v7063, %v7060
  %v7203 = vpack.c.bf16 %v7064, %v7061
  %v7204 = vpack.c.bf16 %v7052, %v7044
  %v7205 = vpack.c.bf16 %v7116, %v7113
  %v7206 = vpack.c.bf16 %v7117, %v7114
  %v7207 = vpack.c.bf16 %v7118, %v7115
  %v7208 = vpack.c.bf16 %v7096, %v7088
  %v7209 = vpack.c.bf16 %v7122, %v7119
  %v7210 = vpack.c.bf16 %v7123, %v7120
  %v7211 = vpack.c.bf16 %v7124, %v7121
  %v7212 = vpack.c.bf16 %v7112, %v7104
  %7285 = vrot.lane.b32.xlu0 %v7141, 53
  %v7286 = vpop.permute.xlu0 %7285
  %7287 = vrot.lane.b32.xlu0 %v7142, 53
  %v7288 = vpop.permute.xlu0 %7287
  %7289 = vrot.lane.b32.xlu0 %v7143, 53
  %v7290 = vpop.permute.xlu0 %7289
  %7291 = vrot.lane.b32.xlu0 %v7144, 53
  %v7292 = vpop.permute.xlu0 %7291
  %7293 = vrot.lane.b32.xlu0 %v7145, 53
  %v7294 = vpop.permute.xlu0 %7293
  %7295 = vrot.lane.b32.xlu0 %v7146, 53
  %v7296 = vpop.permute.xlu0 %7295
  %7297 = vrot.lane.b32.xlu0 %v7147, 53
  %v7298 = vpop.permute.xlu0 %7297
  %7299 = vrot.lane.b32.xlu0 %v7148, 53
  %v7300 = vpop.permute.xlu0 %7299
  %7301 = vrot.lane.b32.xlu0 %v7149, 53
  %v7302 = vpop.permute.xlu0 %7301
  %7303 = vrot.lane.b32.xlu0 %v7150, 53
  %v7304 = vpop.permute.xlu0 %7303
  %7305 = vrot.lane.b32.xlu0 %v7151, 53
  %v7306 = vpop.permute.xlu0 %7305
  %7307 = vrot.lane.b32.xlu0 %v7152, 53
  %v7308 = vpop.permute.xlu0 %7307
  %7309 = vrot.lane.b32.xlu0 %v7153, 53
  %v7310 = vpop.permute.xlu0 %7309
  %7311 = vrot.lane.b32.xlu0 %v7154, 53
  %v7312 = vpop.permute.xlu0 %7311
  %7313 = vrot.lane.b32.xlu0 %v7155, 53
  %v7314 = vpop.permute.xlu0 %7313
  %7315 = vrot.lane.b32.xlu0 %v7156, 53
  %v7316 = vpop.permute.xlu0 %7315
  %7317 = vrot.lane.b32.xlu0 %v7157, 53
  %v7318 = vpop.permute.xlu0 %7317
  %7319 = vrot.lane.b32.xlu0 %v7158, 53
  %v7320 = vpop.permute.xlu0 %7319
  %7321 = vrot.lane.b32.xlu0 %v7159, 53
  %v7322 = vpop.permute.xlu0 %7321
  %7323 = vrot.lane.b32.xlu0 %v7160, 53
  %v7324 = vpop.permute.xlu0 %7323
  %7325 = vrot.lane.b32.xlu0 %v7161, 53
  %v7326 = vpop.permute.xlu0 %7325
  %7327 = vrot.lane.b32.xlu0 %v7162, 53
  %v7328 = vpop.permute.xlu0 %7327
  %7329 = vrot.lane.b32.xlu0 %v7163, 53
  %v7330 = vpop.permute.xlu0 %7329
  %7331 = vrot.lane.b32.xlu0 %v7164, 53
  %v7332 = vpop.permute.xlu0 %7331
  %7333 = vrot.lane.b32.xlu0 %v7165, 53
  %v7334 = vpop.permute.xlu0 %7333
  %7335 = vrot.lane.b32.xlu0 %v7166, 53
  %v7336 = vpop.permute.xlu0 %7335
  %7337 = vrot.lane.b32.xlu0 %v7167, 53
  %v7338 = vpop.permute.xlu0 %7337
  %7339 = vrot.lane.b32.xlu0 %v7168, 53
  %v7340 = vpop.permute.xlu0 %7339
  %7341 = vrot.lane.b32.xlu0 %v7169, 53
  %v7342 = vpop.permute.xlu0 %7341
  %7343 = vrot.lane.b32.xlu0 %v7170, 53
  %v7344 = vpop.permute.xlu0 %7343
  %7345 = vrot.lane.b32.xlu0 %v7171, 53
  %v7346 = vpop.permute.xlu0 %7345
  %7347 = vrot.lane.b32.xlu0 %v7172, 53
  %v7348 = vpop.permute.xlu0 %7347
  %7349 = vrot.lane.b32.xlu0 %v7173, 53
  %v7350 = vpop.permute.xlu0 %7349
  %7351 = vrot.lane.b32.xlu0 %v7174, 53
  %v7352 = vpop.permute.xlu0 %7351
  %7353 = vrot.lane.b32.xlu0 %v7175, 53
  %v7354 = vpop.permute.xlu0 %7353
  %7355 = vrot.lane.b32.xlu0 %v7176, 53
  %v7356 = vpop.permute.xlu0 %7355
  %7357 = vrot.lane.b32.xlu0 %v7177, 53
  %v7358 = vpop.permute.xlu0 %7357
  %7359 = vrot.lane.b32.xlu0 %v7178, 53
  %v7360 = vpop.permute.xlu0 %7359
  %7361 = vrot.lane.b32.xlu0 %v7179, 53
  %v7362 = vpop.permute.xlu0 %7361
  %7363 = vrot.lane.b32.xlu0 %v7180, 53
  %v7364 = vpop.permute.xlu0 %7363
  %7365 = vrot.lane.b32.xlu0 %v7181, 53
  %v7366 = vpop.permute.xlu0 %7365
  %7367 = vrot.lane.b32.xlu0 %v7182, 53
  %v7368 = vpop.permute.xlu0 %7367
  %7369 = vrot.lane.b32.xlu0 %v7183, 53
  %v7370 = vpop.permute.xlu0 %7369
  %7371 = vrot.lane.b32.xlu0 %v7184, 53
  %v7372 = vpop.permute.xlu0 %7371
  %7373 = vrot.lane.b32.xlu0 %v7185, 53
  %v7374 = vpop.permute.xlu0 %7373
  %7375 = vrot.lane.b32.xlu0 %v7186, 53
  %v7376 = vpop.permute.xlu0 %7375
  %7377 = vrot.lane.b32.xlu0 %v7187, 53
  %v7378 = vpop.permute.xlu0 %7377
  %7379 = vrot.lane.b32.xlu0 %v7188, 53
  %v7380 = vpop.permute.xlu0 %7379
  %7381 = vrot.lane.b32.xlu0 %v7189, 53
  %v7382 = vpop.permute.xlu0 %7381
  %7383 = vrot.lane.b32.xlu0 %v7190, 53
  %v7384 = vpop.permute.xlu0 %7383
  %7385 = vrot.lane.b32.xlu0 %v7191, 53
  %v7386 = vpop.permute.xlu0 %7385
  %7387 = vrot.lane.b32.xlu0 %v7192, 53
  %v7388 = vpop.permute.xlu0 %7387
  %7389 = vrot.lane.b32.xlu0 %v7193, 53
  %v7390 = vpop.permute.xlu0 %7389
  %7391 = vrot.lane.b32.xlu0 %v7194, 53
  %v7392 = vpop.permute.xlu0 %7391
  %7393 = vrot.lane.b32.xlu0 %v7195, 53
  %v7394 = vpop.permute.xlu0 %7393
  %7395 = vrot.lane.b32.xlu0 %v7196, 53
  %v7396 = vpop.permute.xlu0 %7395
  %7397 = vrot.lane.b32.xlu0 %v7197, 53
  %v7398 = vpop.permute.xlu0 %7397
  %7399 = vrot.lane.b32.xlu0 %v7198, 53
  %v7400 = vpop.permute.xlu0 %7399
  %7401 = vrot.lane.b32.xlu0 %v7199, 53
  %v7402 = vpop.permute.xlu0 %7401
  %7403 = vrot.lane.b32.xlu0 %v7200, 53
  %v7404 = vpop.permute.xlu0 %7403
  %7405 = vrot.lane.b32.xlu0 %v7201, 53
  %v7406 = vpop.permute.xlu0 %7405
  %7407 = vrot.lane.b32.xlu0 %v7202, 53
  %v7408 = vpop.permute.xlu0 %7407
  %7409 = vrot.lane.b32.xlu0 %v7203, 53
  %v7410 = vpop.permute.xlu0 %7409
  %7411 = vrot.lane.b32.xlu0 %v7204, 53
  %v7412 = vpop.permute.xlu0 %7411
  %7413 = vrot.lane.b32.xlu0 %v7205, 53
  %v7414 = vpop.permute.xlu0 %7413
  %7415 = vrot.lane.b32.xlu0 %v7206, 53
  %v7416 = vpop.permute.xlu0 %7415
  %7417 = vrot.lane.b32.xlu0 %v7207, 53
  %v7418 = vpop.permute.xlu0 %7417
  %7419 = vrot.lane.b32.xlu0 %v7208, 53
  %v7420 = vpop.permute.xlu0 %7419
  %7421 = vrot.lane.b32.xlu0 %v7209, 53
  %v7422 = vpop.permute.xlu0 %7421
  %7423 = vrot.lane.b32.xlu0 %v7210, 53
  %v7424 = vpop.permute.xlu0 %7423
  %7425 = vrot.lane.b32.xlu0 %v7211, 53
  %v7426 = vpop.permute.xlu0 %7425
  %7427 = vrot.lane.b32.xlu0 %v7212, 53
  %v7428 = vpop.permute.xlu0 %7427
  %v7429 = vsel %vm2696, %v7286, %v7288
  %v7430 = vsel %vm2696, %v7288, %v7290
  %v7431 = vsel %vm2696, %v7290, %v7292
  %v7432 = vsel %vm2696, %v7294, %v7296
  %v7433 = vsel %vm2696, %v7296, %v7298
  %v7434 = vsel %vm2696, %v7298, %v7300
  %v7435 = vsel %vm2696, %v7302, %v7304
  %v7436 = vsel %vm2696, %v7304, %v7306
  %v7437 = vsel %vm2696, %v7306, %v7308
  %v7438 = vsel %vm2696, %v7310, %v7312
  %v7439 = vsel %vm2696, %v7312, %v7314
  %v7440 = vsel %vm2696, %v7314, %v7316
  %v7441 = vsel %vm2696, %v7318, %v7320
  %v7442 = vsel %vm2696, %v7320, %v7322
  %v7443 = vsel %vm2696, %v7322, %v7324
  %v7444 = vsel %vm2696, %v7326, %v7328
  %v7445 = vsel %vm2696, %v7328, %v7330
  %v7446 = vsel %vm2696, %v7330, %v7332
  %v7447 = vsel %vm2696, %v7334, %v7336
  %v7448 = vsel %vm2696, %v7336, %v7338
  %v7449 = vsel %vm2696, %v7338, %v7340
  %v7450 = vsel %vm2696, %v7342, %v7344
  %v7451 = vsel %vm2696, %v7344, %v7346
  %v7452 = vsel %vm2696, %v7346, %v7348
  %v7453 = vsel %vm2696, %v7350, %v7352
  %v7454 = vsel %vm2696, %v7352, %v7354
  %v7455 = vsel %vm2696, %v7354, %v7356
  %v7456 = vsel %vm2696, %v7358, %v7360
  %v7457 = vsel %vm2696, %v7360, %v7362
  %v7458 = vsel %vm2696, %v7362, %v7364
  %v7459 = vsel %vm2696, %v7366, %v7368
  %v7460 = vsel %vm2696, %v7368, %v7370
  %v7461 = vsel %vm2696, %v7370, %v7372
  %v7462 = vsel %vm2696, %v7374, %v7376
  %v7463 = vsel %vm2696, %v7376, %v7378
  %v7464 = vsel %vm2696, %v7378, %v7380
  %v7465 = vsel %vm2696, %v7382, %v7384
  %v7466 = vsel %vm2696, %v7384, %v7386
  %v7467 = vsel %vm2696, %v7386, %v7388
  %v7468 = vsel %vm2696, %v7390, %v7392
  %v7469 = vsel %vm2696, %v7392, %v7394
  %v7470 = vsel %vm2696, %v7394, %v7396
  %v7471 = vsel %vm2696, %v7398, %v7400
  %v7472 = vsel %vm2696, %v7400, %v7402
  %v7473 = vsel %vm2696, %v7402, %v7404
  %v7474 = vsel %vm2696, %v7406, %v7408
  %v7475 = vsel %vm2696, %v7408, %v7410
  %v7476 = vsel %vm2696, %v7410, %v7412
  %v7477 = vsel %vm2696, %v7414, %v7416
  %v7478 = vsel %vm2696, %v7416, %v7418
  %v7479 = vsel %vm2696, %v7418, %v7420
  %v7480 = vsel %vm2696, %v7422, %v7424
  %v7481 = vsel %vm2696, %v7424, %v7426
  %v7482 = vsel %vm2696, %v7426, %v7428
  %7537 = vmatprep.subr.bf16.mxu0 %v7430
  %7538 = vmatpush1.bf16.msra.mxu0 %v7429
  %7539 = vmatprep.subr.bf16.mxu0 %v7433
  %7540 = vmatpush1.bf16.msra.mxu0 %v7432
  %7541 = vmatprep.subr.bf16.mxu0 %v7436
  %7542 = vmatpush1.bf16.msra.mxu0 %v7435
  %7543 = vmatprep.subr.bf16.mxu0 %v7439
  %7544 = vmatpush1.bf16.msra.mxu0 %v7438
  %7545 = vmatprep.subr.bf16.mxu0 %v7442
  %7546 = vmatpush1.bf16.msra.mxu0 %v7441
  %7547 = vmatprep.subr.bf16.mxu0 %v7445
  %7548 = vmatpush1.bf16.msra.mxu0 %v7444
  %7549 = vmatprep.subr.bf16.mxu0 %v7448
  %7550 = vmatpush1.bf16.msra.mxu0 %v7447
  %7551 = vmatprep.subr.bf16.mxu0 %v7451
  %7552 = vmatpush1.bf16.msra.mxu0 %v7450
  %7553 = vmatprep.subr.bf16.mxu0 %v7454
  %7554 = vmatpush1.bf16.msra.mxu0 %v7453
  %7555 = vmatprep.subr.bf16.mxu0 %v7457
  %7556 = vmatpush1.bf16.msra.mxu0 %v7456
  %7557 = vmatprep.subr.bf16.mxu0 %v7460
  %7558 = vmatpush1.bf16.msra.mxu0 %v7459
  %7559 = vmatprep.subr.bf16.mxu0 %v7463
  %7560 = vmatpush1.bf16.msra.mxu0 %v7462
  %7561 = vmatprep.subr.bf16.mxu0 %v7466
  %7562 = vmatpush1.bf16.msra.mxu0 %v7465
  %7563 = vmatprep.subr.bf16.mxu0 %v7469
  %7564 = vmatpush1.bf16.msra.mxu0 %v7468
  %7565 = vmatprep.subr.bf16.mxu0 %v7472
  %7566 = vmatpush1.bf16.msra.mxu0 %v7471
  %7567 = vmatprep.subr.bf16.mxu0 %v7475
  %7568 = vmatpush1.bf16.msra.mxu0 %v7474
  %7569 = vmatprep.mubr.bf16.mxu0 %v4589
  %7570 = vmatmul.mubr.bf16.gmra.mrb[0].mxu0 %v4588
  %v7571 = vpop.f32.mrb[0].mxu0
  %v7572 = vadd.f32 %v4551, %v7571
  %v7573 = vpop.f32.mrb[0].mxu0
  %v7574 = vadd.f32 %v4551, %v7573
  %v7575 = vpop.f32.mrb[0].mxu0
  %v7576 = vadd.f32 %v4556, %v7575
  %v7577 = vpop.f32.mrb[0].mxu0
  %v7578 = vadd.f32 %v4556, %v7577
  %7579 = vmatprep.mubr.bf16.mxu0 %v4592
  %7580 = vmatmul.mubr.bf16.gmra.mrb[0].mxu0 %v4591
  %v7581 = vpop.f32.mrb[0].mxu0
  %v7582 = vadd.f32 %v4561, %v7581
  %v7583 = vpop.f32.mrb[0].mxu0
  %v7584 = vadd.f32 %v4561, %v7583
  %v7585 = vpop.f32.mrb[0].mxu0
  %v7586 = vadd.f32 %v4566, %v7585
  %v7587 = vpop.f32.mrb[0].mxu0
  %v7588 = vadd.f32 %v4566, %v7587
  %7589 = vdwg.mxu0
  %7590 = vmatprep.subr.bf16.mxu0 %v7478
  %7591 = vmatpush1.bf16.msra.mxu0 %v7477
  %7592 = vmatprep.subr.bf16.mxu0 %v7481
  %7593 = vmatpush1.bf16.msra.mxu0 %v7480
  %7594 = vmatprep.subr.bf16.mxu0 0
  %7595 = vmatpush1.bf16.msra.mxu0 0
  %7596 = vmatprep.subr.bf16.mxu0 0
  %7597 = vmatpush1.bf16.msra.mxu0 0
  %7598 = vmatprep.subr.bf16.mxu0 0
  %7599 = vmatpush1.bf16.msra.mxu0 0
  %7600 = vmatprep.subr.bf16.mxu0 0
  %7601 = vmatpush1.bf16.msra.mxu0 0
  %7602 = vmatprep.subr.bf16.mxu0 0
  %7603 = vmatpush1.bf16.msra.mxu0 0
  %7604 = vmatprep.subr.bf16.mxu0 0
  %7605 = vmatpush1.bf16.msra.mxu0 0
  %7606 = vmatprep.subr.bf16.mxu0 0
  %7607 = vmatpush1.bf16.msra.mxu0 0
  %7608 = vmatprep.subr.bf16.mxu0 0
  %7609 = vmatpush1.bf16.msra.mxu0 0
  %7610 = vmatprep.subr.bf16.mxu0 0
  %7611 = vmatpush1.bf16.msra.mxu0 0
  %7612 = vmatprep.subr.bf16.mxu0 0
  %7613 = vmatpush1.bf16.msra.mxu0 0
  %7614 = vmatprep.subr.bf16.mxu0 0
  %7615 = vmatpush1.bf16.msra.mxu0 0
  %7616 = vmatprep.subr.bf16.mxu0 0
  %7617 = vmatpush1.bf16.msra.mxu0 0
  %7618 = vmatprep.subr.bf16.mxu0 0
  %7619 = vmatpush1.bf16.msra.mxu0 0
  %7620 = vmatprep.subr.bf16.mxu0 0
  %7621 = vmatpush1.bf16.msra.mxu0 0
  %7622 = vmatprep.mubr.bf16.mxu0 0
  %7623 = vmatmul.mubr.bf16.gmra.mrb[0].mxu0 %v4923
  %v7624 = vpop.f32.mrb[0].mxu0
  %v7625 = vadd.f32 %v7572, %v7624
  %v7626 = vpop.f32.mrb[0].mxu0
  %v7627 = vadd.f32 %v7574, %v7626
  %v7628 = vpop.f32.mrb[0].mxu0
  %v7629 = vadd.f32 %v7576, %v7628
  %v7630 = vpop.f32.mrb[0].mxu0
  %v7631 = vadd.f32 %v7578, %v7630
  %7632 = vmatprep.mubr.bf16.mxu0 0
  %7633 = vmatmul.mubr.bf16.gmra.mrb[0].mxu0 %v4926
  %v7634 = vpop.f32.mrb[0].mxu0
  %v7635 = vadd.f32 %v7582, %v7634
  %v7636 = vpop.f32.mrb[0].mxu0
  %v7637 = vadd.f32 %v7584, %v7636
  %v7638 = vpop.f32.mrb[0].mxu0
  %v7639 = vadd.f32 %v7586, %v7638
  %v7640 = vpop.f32.mrb[0].mxu0
  %v7641 = vadd.f32 %v7588, %v7640
  %7642 = vdwg.mxu0
  %7643 = vmatprep.subr.bf16.mxu0 0
  %7644 = vmatpush1.bf16.msra.mxu0 %v7431
  %7645 = vmatprep.subr.bf16.mxu0 0
  %7646 = vmatpush1.bf16.msra.mxu0 %v7434
  %7647 = vmatprep.subr.bf16.mxu0 0
  %7648 = vmatpush1.bf16.msra.mxu0 %v7437
  %7649 = vmatprep.subr.bf16.mxu0 0
  %7650 = vmatpush1.bf16.msra.mxu0 %v7440
  %7651 = vmatprep.subr.bf16.mxu0 0
  %7652 = vmatpush1.bf16.msra.mxu0 %v7443
  %7653 = vmatprep.subr.bf16.mxu0 0
  %7654 = vmatpush1.bf16.msra.mxu0 %v7446
  %7655 = vmatprep.subr.bf16.mxu0 0
  %7656 = vmatpush1.bf16.msra.mxu0 %v7449
  %7657 = vmatprep.subr.bf16.mxu0 0
  %7658 = vmatpush1.bf16.msra.mxu0 %v7452
  %7659 = vmatprep.subr.bf16.mxu0 0
  %7660 = vmatpush1.bf16.msra.mxu0 %v7455
  %7661 = vmatprep.subr.bf16.mxu0 0
  %7662 = vmatpush1.bf16.msra.mxu0 %v7458
  %7663 = vmatprep.subr.bf16.mxu0 0
  %7664 = vmatpush1.bf16.msra.mxu0 %v7461
  %7665 = vmatprep.subr.bf16.mxu0 0
  %7666 = vmatpush1.bf16.msra.mxu0 %v7464
  %7667 = vmatprep.subr.bf16.mxu0 0
  %7668 = vmatpush1.bf16.msra.mxu0 %v7467
  %7669 = vmatprep.subr.bf16.mxu0 0
  %7670 = vmatpush1.bf16.msra.mxu0 %v7470
  %7671 = vmatprep.subr.bf16.mxu0 0
  %7672 = vmatpush1.bf16.msra.mxu0 %v7473
  %7673 = vmatprep.subr.bf16.mxu0 0
  %7674 = vmatpush1.bf16.msra.mxu0 %v7476
  %7675 = vmatprep.mubr.bf16.mxu0 %v4589
  %7676 = vmatmul.mubr.bf16.gmra.mrb[0].mxu0 %v4588
  %v7677 = vpop.f32.mrb[0].mxu0
  %v7678 = vadd.f32 %v4551, %v7677
  %v7679 = vpop.f32.mrb[0].mxu0
  %v7680 = vpop.f32.mrb[0].mxu0
  %v7681 = vadd.f32 %v4556, %v7680
  %v7682 = vpop.f32.mrb[0].mxu0
  %7683 = vmatprep.mubr.bf16.mxu0 %v4592
  %7684 = vmatmul.mubr.bf16.gmra.mrb[0].mxu0 %v4591
  %v7685 = vpop.f32.mrb[0].mxu0
  %v7686 = vadd.f32 %v4561, %v7685
  %v7687 = vpop.f32.mrb[0].mxu0
  %v7688 = vpop.f32.mrb[0].mxu0
  %v7689 = vadd.f32 %v4566, %v7688
  %v7690 = vpop.f32.mrb[0].mxu0
  %7691 = vdwg.mxu0
  %7692 = vmatprep.subr.bf16.mxu0 0
  %7693 = vmatpush1.bf16.msra.mxu0 %v7479
  %7694 = vmatprep.subr.bf16.mxu0 0
  %7695 = vmatpush1.bf16.msra.mxu0 %v7482
  %7696 = vmatprep.subr.bf16.mxu0 0
  %7697 = vmatpush1.bf16.msra.mxu0 0
  %7698 = vmatprep.subr.bf16.mxu0 0
  %7699 = vmatpush1.bf16.msra.mxu0 0
  %7700 = vmatprep.subr.bf16.mxu0 0
  %7701 = vmatpush1.bf16.msra.mxu0 0
  %7702 = vmatprep.subr.bf16.mxu0 0
  %7703 = vmatpush1.bf16.msra.mxu0 0
  %7704 = vmatprep.subr.bf16.mxu0 0
  %7705 = vmatpush1.bf16.msra.mxu0 0
  %7706 = vmatprep.subr.bf16.mxu0 0
  %7707 = vmatpush1.bf16.msra.mxu0 0
  %7708 = vmatprep.subr.bf16.mxu0 0
  %7709 = vmatpush1.bf16.msra.mxu0 0
  %7710 = vmatprep.subr.bf16.mxu0 0
  %7711 = vmatpush1.bf16.msra.mxu0 0
  %7712 = vmatprep.subr.bf16.mxu0 0
  %7713 = vmatpush1.bf16.msra.mxu0 0
  %7714 = vmatprep.subr.bf16.mxu0 0
  %7715 = vmatpush1.bf16.msra.mxu0 0
  %7716 = vmatprep.subr.bf16.mxu0 0
  %7717 = vmatpush1.bf16.msra.mxu0 0
  %7718 = vmatprep.subr.bf16.mxu0 0
  %7719 = vmatpush1.bf16.msra.mxu0 0
  %7720 = vmatprep.subr.bf16.mxu0 0
  %7721 = vmatpush1.bf16.msra.mxu0 0
  %7722 = vmatprep.subr.bf16.mxu0 0
  %7723 = vmatpush1.bf16.msra.mxu0 0
  %7724 = vmatprep.mubr.bf16.mxu0 0
  %7725 = vmatmul.mubr.bf16.gmra.mrb[0].mxu0 %v4923
  %v7726 = vpop.f32.mrb[0].mxu0
  %v7727 = vadd.f32 %v7678, %v7726
  %v7728 = vpop.f32.mrb[0].mxu0
  %v7729 = vpop.f32.mrb[0].mxu0
  %v7730 = vadd.f32 %v7681, %v7729
  %v7731 = vpop.f32.mrb[0].mxu0
  %7732 = vmatprep.mubr.bf16.mxu0 0
  %7733 = vmatmul.mubr.bf16.gmra.mrb[0].mxu0 %v4926
  %v7734 = vpop.f32.mrb[0].mxu0
  %v7735 = vadd.f32 %v7686, %v7734
  %v7736 = vpop.f32.mrb[0].mxu0
  %v7737 = vpop.f32.mrb[0].mxu0
  %v7738 = vadd.f32 %v7689, %v7737
  %v7739 = vpop.f32.mrb[0].mxu0
  %7740 = vdwg.mxu0
  %vm7741 = vcmp.gt.f32.partialorder %v7625, 0.0
  %vm7742 = vcmp.gt.f32.partialorder %v7627, 0.0
  %vm7743 = vcmp.gt.f32.partialorder %v7727, 0.0
  %vm7744 = vcmp.gt.f32.partialorder %v7629, 0.0
  %vm7745 = vcmp.gt.f32.partialorder %v7631, 0.0
  %vm7746 = vcmp.gt.f32.partialorder %v7730, 0.0
  %vm7747 = vcmp.gt.f32.partialorder %v7635, 0.0
  %vm7748 = vcmp.gt.f32.partialorder %v7637, 0.0
  %vm7749 = vcmp.gt.f32.partialorder %v7735, 0.0
  %vm7750 = vcmp.gt.f32.partialorder %v7639, 0.0
  %vm7751 = vcmp.gt.f32.partialorder %v7641, 0.0
  %vm7752 = vcmp.gt.f32.partialorder %v7738, 0.0
  %v7753 = vmul.f32 %v7625, 0.01
  %v7754 = vmul.f32 %v7627, 0.01
  %v7755 = vmul.f32 %v7727, 0.01
  %v7756 = vmul.f32 %v7629, 0.01
  %v7757 = vmul.f32 %v7631, 0.01
  %v7758 = vmul.f32 %v7730, 0.01
  %v7759 = vmul.f32 %v7635, 0.01
  %v7760 = vmul.f32 %v7637, 0.01
  %v7761 = vmul.f32 %v7735, 0.01
  %v7762 = vmul.f32 %v7639, 0.01
  %v7763 = vmul.f32 %v7641, 0.01
  %v7764 = vmul.f32 %v7738, 0.01
  %v7765 = vsel %vm7741, %v7625, %v7753
  %v7766 = vsel %vm7742, %v7627, %v7754
  %v7767 = vsel %vm7743, %v7727, %v7755
  %v7768 = vsel %vm7744, %v7629, %v7756
  %v7769 = vsel %vm7745, %v7631, %v7757
  %v7770 = vsel %vm7746, %v7730, %v7758
  %v7771 = vsel %vm7747, %v7635, %v7759
  %v7772 = vsel %vm7748, %v7637, %v7760
  %v7773 = vsel %vm7749, %v7735, %v7761
  %v7774 = vsel %vm7750, %v7639, %v7762
  %v7775 = vsel %vm7751, %v7641, %v7763
  %v7776 = vsel %vm7752, %v7738, %v7764
  %v7777 = vld [vmem:[#allocation2 + $0x60] sm:$0xff]
  %v7778 = vld [vmem:[#allocation2 + $0x68] sm:$0xff]
  %v7779 = vld [vmem:[#allocation2 + $0x70] sm:$0xff]
  %v7780 = vld [vmem:[#allocation2 + $0x78] sm:$0xff]
  %v7781 = vld [vmem:[#allocation2 + $0x80] sm:$0xff]
  %v7782 = vld [vmem:[#allocation2 + $0x88] sm:$0xff]
  %v7783 = vld [vmem:[#allocation2 + $0x90] sm:$0xff]
  %v7784 = vld [vmem:[#allocation2 + $0x98] sm:$0xff]
  %v7785 = vld [vmem:[#allocation2 + $0xa0] sm:$0xff]
  %v7786 = vld [vmem:[#allocation2 + $0xa8] sm:$0xff]
  %v7787 = vld [vmem:[#allocation2 + $0xb0] sm:$0xff]
  %v7788 = vld [vmem:[#allocation2 + $0xb8] sm:$0xff]
  %v7789 = vadd.f32 %v7777, %v7765
  %v7790 = vadd.f32 %v7778, %v7766
  %v7791 = vadd.f32 %v7779, %v7767
  %v7792 = vadd.f32 %v7780, %v7768
  %v7793 = vadd.f32 %v7781, %v7769
  %v7794 = vadd.f32 %v7782, %v7770
  %v7795 = vadd.f32 %v7783, %v7771
  %v7796 = vadd.f32 %v7784, %v7772
  %v7797 = vadd.f32 %v7785, %v7773
  %v7798 = vadd.f32 %v7786, %v7774
  %v7799 = vadd.f32 %v7787, %v7775
  %v7800 = vadd.f32 %v7788, %v7776
  %7801 = vst [vmem:[#allocation2 + $0x60] sm:$0xff] %v7789
  %7802 = vst [vmem:[#allocation2 + $0x68] sm:$0xff] %v7790
  %7803 = vst [vmem:[#allocation2 + $0x70] sm:$0xff] %v7791
  %7804 = vst [vmem:[#allocation2 + $0x78] sm:$0xff] %v7792
  %7805 = vst [vmem:[#allocation2 + $0x80] sm:$0xff] %v7793
  %7806 = vst [vmem:[#allocation2 + $0x88] sm:$0xff] %v7794
  %7807 = vst [vmem:[#allocation2 + $0x90] sm:$0xff] %v7795
  %7808 = vst [vmem:[#allocation2 + $0x98] sm:$0xff] %v7796
  %7809 = vst [vmem:[#allocation2 + $0xa0] sm:$0xff] %v7797
  %7810 = vst [vmem:[#allocation2 + $0xa8] sm:$0xff] %v7798
  %7811 = vst [vmem:[#allocation2 + $0xb0] sm:$0xff] %v7799
  %7812 = vst [vmem:[#allocation2 + $0xb8] sm:$0xff] %v7800
  %v7813 = vld [vmem:[#allocation2] sm:$0xff]
  %v7814 = vld [vmem:[#allocation2 + $0x8] sm:$0xff]
  %v7815 = vld [vmem:[#allocation2 + $0x10] sm:$0xff]
  %v7816 = vld [vmem:[#allocation2 + $0x18] sm:$0xff]
  %v7817 = vld [vmem:[#allocation2 + $0x20] sm:$0xff]
  %v7818 = vld [vmem:[#allocation2 + $0x28] sm:$0xff]
  %v7819 = vld [vmem:[#allocation2 + $0x30] sm:$0xff]
  %v7820 = vld [vmem:[#allocation2 + $0x38] sm:$0xff]
  %v7821 = vld [vmem:[#allocation2 + $0x40] sm:$0xff]
  %v7822 = vld [vmem:[#allocation2 + $0x48] sm:$0xff]
  %v7823 = vld [vmem:[#allocation2 + $0x50] sm:$0xff]
  %v7824 = vld [vmem:[#allocation2 + $0x58] sm:$0xff]
  %v7825 = vld [vmem:[#allocation2 + $0x60] sm:$0xff]
  %v7826 = vld [vmem:[#allocation2 + $0x68] sm:$0xff]
  %v7827 = vld [vmem:[#allocation2 + $0x70] sm:$0xff]
  %v7828 = vld [vmem:[#allocation2 + $0x78] sm:$0xff]
  %v7829 = vld [vmem:[#allocation2 + $0x80] sm:$0xff]
  %v7830 = vld [vmem:[#allocation2 + $0x88] sm:$0xff]
  %v7831 = vld [vmem:[#allocation2 + $0x90] sm:$0xff]
  %v7832 = vld [vmem:[#allocation2 + $0x98] sm:$0xff]
  %v7833 = vld [vmem:[#allocation2 + $0xa0] sm:$0xff]
  %v7834 = vld [vmem:[#allocation2 + $0xa8] sm:$0xff]
  %v7835 = vld [vmem:[#allocation2 + $0xb0] sm:$0xff]
  %v7836 = vld [vmem:[#allocation2 + $0xb8] sm:$0xff]
  %v7837 = vld [vmem:[%s3] sm:$0xff]
  %v7838 = vld [vmem:[%s3 + $0x8] sm:$0xff]
  %v7839 = vld [vmem:[%s3 + $0x10] sm:$0xff]
  %v7840 = vld [vmem:[%s3 + $0x18] sm:$0xff]
  %v7841 = vld [vmem:[%s3 + $0x20] sm:$0xff]
  %v7842 = vld [vmem:[%s3 + $0x28] sm:$0xff]
  %v7843 = vld [vmem:[%s3 + $0x30] sm:$0xff]
  %v7844 = vld [vmem:[%s3 + $0x38] sm:$0xff]
  %v7845 = vld [vmem:[%s3 + $0x40] sm:$0xff]
  %v7846 = vld [vmem:[%s3 + $0x48] sm:$0xff]
  %v7847 = vld [vmem:[%s3 + $0x50] sm:$0xff]
  %v7848 = vld [vmem:[%s3 + $0x58] sm:$0xff]
  %v7849 = vld [vmem:[%s3 + $0x60] sm:$0xff]
  %v7850 = vld [vmem:[%s3 + $0x68] sm:$0xff]
  %v7851 = vld [vmem:[%s3 + $0x70] sm:$0xff]
  %v7852 = vld [vmem:[%s3 + $0x78] sm:$0xff]
  %v7853 = vld [vmem:[%s3 + $0x80] sm:$0xff]
  %v7854 = vld [vmem:[%s3 + $0x88] sm:$0xff]
  %v7855 = vld [vmem:[%s3 + $0x90] sm:$0xff]
  %v7856 = vld [vmem:[%s3 + $0x98] sm:$0xff]
  %v7857 = vld [vmem:[%s3 + $0xa0] sm:$0xff]
  %v7858 = vld [vmem:[%s3 + $0xa8] sm:$0xff]
  %v7859 = vld [vmem:[%s3 + $0xb0] sm:$0xff]
  %v7860 = vld [vmem:[%s3 + $0xb8] sm:$0xff]
  %v7861 = vld [vmem:[%s3 + $0xc0] sm:$0xff]
  %v7862 = vld [vmem:[%s3 + $0xc8] sm:$0xff]
  %v7863 = vld [vmem:[%s3 + $0xd0] sm:$0xff]
  %v7864 = vld [vmem:[%s3 + $0xd8] sm:$0xff]
  %v7865 = vld [vmem:[%s3 + $0xe0] sm:$0xff]
  %v7866 = vld [vmem:[%s3 + $0xe8] sm:$0xff]
  %v7867 = vld [vmem:[%s3 + $0xf0] sm:$0xff]
  %v7868 = vld [vmem:[%s3 + $0xf8] sm:$0xff]
  %v7869 = vld [vmem:[%s3 + $0x100] sm:$0xff]
  %v7870 = vld [vmem:[%s3 + $0x108] sm:$0xff]
  %v7871 = vld [vmem:[%s3 + $0x110] sm:$0xff]
  %v7872 = vld [vmem:[%s3 + $0x118] sm:$0xff]
  %v7873 = vld [vmem:[%s3 + $0x120] sm:$0xff]
  %v7874 = vld [vmem:[%s3 + $0x128] sm:$0xff]
  %v7875 = vld [vmem:[%s3 + $0x130] sm:$0xff]
  %v7876 = vld [vmem:[%s3 + $0x138] sm:$0xff]
  %v7877 = vld [vmem:[%s3 + $0x140] sm:$0xff]
  %v7878 = vld [vmem:[%s3 + $0x148] sm:$0xff]
  %v7879 = vld [vmem:[%s3 + $0x150] sm:$0xff]
  %v7880 = vld [vmem:[%s3 + $0x158] sm:$0xff]
  %v7881 = vld [vmem:[%s3 + $0x160] sm:$0xff]
  %v7882 = vld [vmem:[%s3 + $0x168] sm:$0xff]
  %v7883 = vld [vmem:[%s3 + $0x170] sm:$0xff]
  %v7884 = vld [vmem:[%s3 + $0x178] sm:$0xff]
  %v7885 = vld [vmem:[%s3 + $0x180] sm:$0xff]
  %v7886 = vld [vmem:[%s3 + $0x188] sm:$0xff]
  %v7887 = vld [vmem:[%s3 + $0x190] sm:$0xff]
  %v7888 = vld [vmem:[%s3 + $0x198] sm:$0xff]
  %v7889 = vld [vmem:[%s3 + $0x1a0] sm:$0xff]
  %v7890 = vld [vmem:[%s3 + $0x1a8] sm:$0xff]
  %v7891 = vld [vmem:[%s3 + $0x1b0] sm:$0xff]
  %v7892 = vld [vmem:[%s3 + $0x1b8] sm:$0xff]
  %v7893 = vld [vmem:[%s3 + $0x1c0] sm:$0xff]
  %v7894 = vld [vmem:[%s3 + $0x1c8] sm:$0xff]
  %v7895 = vld [vmem:[%s3 + $0x1d0] sm:$0xff]
  %v7896 = vld [vmem:[%s3 + $0x1d8] sm:$0xff]
  %v7897 = vld [vmem:[%s3 + $0x1e0] sm:$0xff]
  %v7898 = vld [vmem:[%s3 + $0x1e8] sm:$0xff]
  %v7899 = vld [vmem:[%s3 + $0x1f0] sm:$0xff]
  %v7900 = vld [vmem:[%s3 + $0x1f8] sm:$0xff]
  %v7901 = vld [vmem:[%s3 + $0x200] sm:$0xff]
  %v7902 = vld [vmem:[%s3 + $0x208] sm:$0xff]
  %v7903 = vld [vmem:[%s3 + $0x210] sm:$0xff]
  %v7904 = vld [vmem:[%s3 + $0x218] sm:$0xff]
  %v7905 = vld [vmem:[%s3 + $0x220] sm:$0xff]
  %v7906 = vld [vmem:[%s3 + $0x228] sm:$0xff]
  %v7907 = vld [vmem:[%s3 + $0x230] sm:$0xff]
  %v7908 = vld [vmem:[%s3 + $0x238] sm:$0xff]
  %v7909 = vld [vmem:[%s3 + $0x240] sm:$0xff]
  %v7910 = vld [vmem:[%s3 + $0x248] sm:$0xff]
  %v7911 = vld [vmem:[%s3 + $0x250] sm:$0xff]
  %v7912 = vld [vmem:[%s3 + $0x258] sm:$0xff]
  %v7913 = vld [vmem:[%s3 + $0x260] sm:$0xff]
  %v7914 = vld [vmem:[%s3 + $0x268] sm:$0xff]
  %v7915 = vld [vmem:[%s3 + $0x270] sm:$0xff]
  %v7916 = vld [vmem:[%s3 + $0x278] sm:$0xff]
  %v7917 = vld [vmem:[%s3 + $0x280] sm:$0xff]
  %v7918 = vld [vmem:[%s3 + $0x288] sm:$0xff]
  %v7919 = vld [vmem:[%s3 + $0x290] sm:$0xff]
  %v7920 = vld [vmem:[%s3 + $0x298] sm:$0xff]
  %v7921 = vld [vmem:[%s3 + $0x2a0] sm:$0xff]
  %v7922 = vld [vmem:[%s3 + $0x2a8] sm:$0xff]
  %v7923 = vld [vmem:[%s3 + $0x2b0] sm:$0xff]
  %v7924 = vld [vmem:[%s3 + $0x2b8] sm:$0xff]
  %v7925 = vld [vmem:[%s3 + $0x2c0] sm:$0xff]
  %v7926 = vld [vmem:[%s3 + $0x2c8] sm:$0xff]
  %v7927 = vld [vmem:[%s3 + $0x2d0] sm:$0xff]
  %v7928 = vld [vmem:[%s3 + $0x2d8] sm:$0xff]
  %v7929 = vld [vmem:[%s3 + $0x2e0] sm:$0xff]
  %v7930 = vld [vmem:[%s3 + $0x2e8] sm:$0xff]
  %v7931 = vld [vmem:[%s3 + $0x2f0] sm:$0xff]
  %v7932 = vld [vmem:[%s3 + $0x2f8] sm:$0xff]
  %7933 = vmatprep.subr.mxu0 %v7838
  %7934 = vmatpush1.msra.mxu0 %v7837
  %7935 = vmatprep.subr.mxu0 %v7840
  %7936 = vmatpush1.msra.mxu0 %v7839
  %7937 = vmatprep.subr.mxu0 %v7842
  %7938 = vmatpush1.msra.mxu0 %v7841
  %7939 = vmatprep.subr.mxu0 %v7844
  %7940 = vmatpush1.msra.mxu0 %v7843
  %7941 = vmatprep.subr.mxu0 %v7846
  %7942 = vmatpush1.msra.mxu0 %v7845
  %7943 = vmatprep.subr.mxu0 %v7848
  %7944 = vmatpush1.msra.mxu0 %v7847
  %7945 = vmatprep.subr.mxu0 %v7850
  %7946 = vmatpush1.msra.mxu0 %v7849
  %7947 = vmatprep.subr.mxu0 %v7852
  %7948 = vmatpush1.msra.mxu0 %v7851
  %7949 = vmatprep.subr.mxu0 %v7854
  %7950 = vmatpush1.msra.mxu0 %v7853
  %7951 = vmatprep.subr.mxu0 %v7856
  %7952 = vmatpush1.msra.mxu0 %v7855
  %7953 = vmatprep.subr.mxu0 %v7858
  %7954 = vmatpush1.msra.mxu0 %v7857
  %7955 = vmatprep.subr.mxu0 %v7860
  %7956 = vmatpush1.msra.mxu0 %v7859
  %7957 = vmatprep.subr.mxu0 %v7862
  %7958 = vmatpush1.msra.mxu0 %v7861
  %7959 = vmatprep.subr.mxu0 %v7864
  %7960 = vmatpush1.msra.mxu0 %v7863
  %7961 = vmatprep.subr.mxu0 %v7866
  %7962 = vmatpush1.msra.mxu0 %v7865
  %7963 = vmatprep.subr.mxu0 %v7868
  %7964 = vmatpush1.msra.mxu0 %v7867
  %7965 = vmatprep.subr.mxu0 %v7870
  %7966 = vmatpush1.msra.mxu0 %v7869
  %7967 = vmatprep.subr.mxu0 %v7872
  %7968 = vmatpush1.msra.mxu0 %v7871
  %7969 = vmatprep.subr.mxu0 %v7874
  %7970 = vmatpush1.msra.mxu0 %v7873
  %7971 = vmatprep.subr.mxu0 %v7876
  %7972 = vmatpush1.msra.mxu0 %v7875
  %7973 = vmatprep.subr.mxu0 %v7878
  %7974 = vmatpush1.msra.mxu0 %v7877
  %7975 = vmatprep.subr.mxu0 %v7880
  %7976 = vmatpush1.msra.mxu0 %v7879
  %7977 = vmatprep.subr.mxu0 %v7882
  %7978 = vmatpush1.msra.mxu0 %v7881
  %7979 = vmatprep.subr.mxu0 %v7884
  %7980 = vmatpush1.msra.mxu0 %v7883
  %7981 = vmatprep.subr.mxu0 %v7886
  %7982 = vmatpush1.msra.mxu0 %v7885
  %7983 = vmatprep.subr.mxu0 %v7888
  %7984 = vmatpush1.msra.mxu0 %v7887
  %7985 = vmatprep.subr.mxu0 %v7890
  %7986 = vmatpush1.msra.mxu0 %v7889
  %7987 = vmatprep.subr.mxu0 %v7892
  %7988 = vmatpush1.msra.mxu0 %v7891
  %7989 = vmatprep.subr.mxu0 %v7894
  %7990 = vmatpush1.msra.mxu0 %v7893
  %7991 = vmatprep.subr.mxu0 %v7896
  %7992 = vmatpush1.msra.mxu0 %v7895
  %7993 = vmatprep.subr.mxu0 %v7898
  %7994 = vmatpush1.msra.mxu0 %v7897
  %7995 = vmatprep.subr.mxu0 %v7900
  %7996 = vmatpush1.msra.mxu0 %v7899
  %7997 = vmatprep.mubr.f32.mxu0 %v7814
  %7998 = vmatmul.mubr.f32.gmra.mrb[0].mxu0 %v7813
  %v7999 = vpop.f32.mrb[0].mxu0
  %v8000 = vadd.f32 0.0, %v7999
  %v8001 = vpop.f32.mrb[0].mxu0
  %v8002 = vadd.f32 0.0, %v8001
  %8003 = vmatprep.mubr.f32.mxu0 %v7817
  %8004 = vmatmul.mubr.f32.gmra.mrb[0].mxu0 %v7816
  %v8005 = vpop.f32.mrb[0].mxu0
  %v8006 = vadd.f32 0.0, %v8005
  %v8007 = vpop.f32.mrb[0].mxu0
  %v8008 = vadd.f32 0.0, %v8007
  %8009 = vmatprep.mubr.f32.mxu0 %v7820
  %8010 = vmatmul.mubr.f32.gmra.mrb[0].mxu0 %v7819
  %v8011 = vpop.f32.mrb[0].mxu0
  %v8012 = vadd.f32 0.0, %v8011
  %v8013 = vpop.f32.mrb[0].mxu0
  %v8014 = vadd.f32 0.0, %v8013
  %8015 = vmatprep.mubr.f32.mxu0 %v7823
  %8016 = vmatmul.mubr.f32.gmra.mrb[0].mxu0 %v7822
  %v8017 = vpop.f32.mrb[0].mxu0
  %v8018 = vadd.f32 0.0, %v8017
  %v8019 = vpop.f32.mrb[0].mxu0
  %v8020 = vadd.f32 0.0, %v8019
  %8021 = vmatprep.mubr.f32.mxu0 %v7826
  %8022 = vmatmul.mubr.f32.gmra.mrb[0].mxu0 %v7825
  %v8023 = vpop.f32.mrb[0].mxu0
  %v8024 = vadd.f32 0.0, %v8023
  %v8025 = vpop.f32.mrb[0].mxu0
  %v8026 = vadd.f32 0.0, %v8025
  %8027 = vmatprep.mubr.f32.mxu0 %v7829
  %8028 = vmatmul.mubr.f32.gmra.mrb[0].mxu0 %v7828
  %v8029 = vpop.f32.mrb[0].mxu0
  %v8030 = vadd.f32 0.0, %v8029
  %v8031 = vpop.f32.mrb[0].mxu0
  %v8032 = vadd.f32 0.0, %v8031
  %8033 = vmatprep.mubr.f32.mxu0 %v7832
  %8034 = vmatmul.mubr.f32.gmra.mrb[0].mxu0 %v7831
  %v8035 = vpop.f32.mrb[0].mxu0
  %v8036 = vadd.f32 0.0, %v8035
  %v8037 = vpop.f32.mrb[0].mxu0
  %v8038 = vadd.f32 0.0, %v8037
  %8039 = vmatprep.mubr.f32.mxu0 %v7835
  %8040 = vmatmul.mubr.f32.gmra.mrb[0].mxu0 %v7834
  %v8041 = vpop.f32.mrb[0].mxu0
  %v8042 = vadd.f32 0.0, %v8041
  %v8043 = vpop.f32.mrb[0].mxu0
  %v8044 = vadd.f32 0.0, %v8043
  %8045 = vdwg.mxu0
  %8046 = vmatprep.subr.mxu0 %v7902
  %8047 = vmatpush1.msra.mxu0 %v7901
  %8048 = vmatprep.subr.mxu0 %v7904
  %8049 = vmatpush1.msra.mxu0 %v7903
  %8050 = vmatprep.subr.mxu0 %v7906
  %8051 = vmatpush1.msra.mxu0 %v7905
  %8052 = vmatprep.subr.mxu0 %v7908
  %8053 = vmatpush1.msra.mxu0 %v7907
  %8054 = vmatprep.subr.mxu0 %v7910
  %8055 = vmatpush1.msra.mxu0 %v7909
  %8056 = vmatprep.subr.mxu0 %v7912
  %8057 = vmatpush1.msra.mxu0 %v7911
  %8058 = vmatprep.subr.mxu0 %v7914
  %8059 = vmatpush1.msra.mxu0 %v7913
  %8060 = vmatprep.subr.mxu0 %v7916
  %8061 = vmatpush1.msra.mxu0 %v7915
  %8062 = vmatprep.subr.mxu0 %v7918
  %8063 = vmatpush1.msra.mxu0 %v7917
  %8064 = vmatprep.subr.mxu0 %v7920
  %8065 = vmatpush1.msra.mxu0 %v7919
  %8066 = vmatprep.subr.mxu0 %v7922
  %8067 = vmatpush1.msra.mxu0 %v7921
  %8068 = vmatprep.subr.mxu0 %v7924
  %8069 = vmatpush1.msra.mxu0 %v7923
  %8070 = vmatprep.subr.mxu0 %v7926
  %8071 = vmatpush1.msra.mxu0 %v7925
  %8072 = vmatprep.subr.mxu0 %v7928
  %8073 = vmatpush1.msra.mxu0 %v7927
  %8074 = vmatprep.subr.mxu0 %v7930
  %8075 = vmatpush1.msra.mxu0 %v7929
  %8076 = vmatprep.subr.mxu0 %v7932
  %8077 = vmatpush1.msra.mxu0 %v7931
  %8078 = vmatprep.subr.mxu0 0.0
  %8079 = vmatpush1.msra.mxu0 0.0
  %8080 = vmatprep.subr.mxu0 0.0
  %8081 = vmatpush1.msra.mxu0 0.0
  %8082 = vmatprep.subr.mxu0 0.0
  %8083 = vmatpush1.msra.mxu0 0.0
  %8084 = vmatprep.subr.mxu0 0.0
  %8085 = vmatpush1.msra.mxu0 0.0
  %8086 = vmatprep.subr.mxu0 0.0
  %8087 = vmatpush1.msra.mxu0 0.0
  %8088 = vmatprep.subr.mxu0 0.0
  %8089 = vmatpush1.msra.mxu0 0.0
  %8090 = vmatprep.subr.mxu0 0.0
  %8091 = vmatpush1.msra.mxu0 0.0
  %8092 = vmatprep.subr.mxu0 0.0
  %8093 = vmatpush1.msra.mxu0 0.0
  %8094 = vmatprep.subr.mxu0 0.0
  %8095 = vmatpush1.msra.mxu0 0.0
  %8096 = vmatprep.subr.mxu0 0.0
  %8097 = vmatpush1.msra.mxu0 0.0
  %8098 = vmatprep.subr.mxu0 0.0
  %8099 = vmatpush1.msra.mxu0 0.0
  %8100 = vmatprep.subr.mxu0 0.0
  %8101 = vmatpush1.msra.mxu0 0.0
  %8102 = vmatprep.subr.mxu0 0.0
  %8103 = vmatpush1.msra.mxu0 0.0
  %8104 = vmatprep.subr.mxu0 0.0
  %8105 = vmatpush1.msra.mxu0 0.0
  %8106 = vmatprep.subr.mxu0 0.0
  %8107 = vmatpush1.msra.mxu0 0.0
  %8108 = vmatprep.subr.mxu0 0.0
  %8109 = vmatpush1.msra.mxu0 0.0
  %8110 = vmatprep.mubr.f32.mxu0 0.0
  %8111 = vmatmul.mubr.f32.gmra.mrb[0].mxu0 %v7815
  %v8112 = vpop.f32.mrb[0].mxu0
  %v8113 = vadd.f32 %v8000, %v8112
  %v8114 = vpop.f32.mrb[0].mxu0
  %v8115 = vadd.f32 %v8002, %v8114
  %8116 = vmatprep.mubr.f32.mxu0 0.0
  %8117 = vmatmul.mubr.f32.gmra.mrb[0].mxu0 %v7818
  %v8118 = vpop.f32.mrb[0].mxu0
  %v8119 = vadd.f32 %v8006, %v8118
  %v8120 = vpop.f32.mrb[0].mxu0
  %v8121 = vadd.f32 %v8008, %v8120
  %8122 = vmatprep.mubr.f32.mxu0 0.0
  %8123 = vmatmul.mubr.f32.gmra.mrb[0].mxu0 %v7821
  %v8124 = vpop.f32.mrb[0].mxu0
  %v8125 = vadd.f32 %v8012, %v8124
  %v8126 = vpop.f32.mrb[0].mxu0
  %v8127 = vadd.f32 %v8014, %v8126
  %8128 = vmatprep.mubr.f32.mxu0 0.0
  %8129 = vmatmul.mubr.f32.gmra.mrb[0].mxu0 %v7824
  %v8130 = vpop.f32.mrb[0].mxu0
  %v8131 = vadd.f32 %v8018, %v8130
  %v8132 = vpop.f32.mrb[0].mxu0
  %v8133 = vadd.f32 %v8020, %v8132
  %8134 = vmatprep.mubr.f32.mxu0 0.0
  %8135 = vmatmul.mubr.f32.gmra.mrb[0].mxu0 %v7827
  %v8136 = vpop.f32.mrb[0].mxu0
  %v8137 = vadd.f32 %v8024, %v8136
  %v8138 = vpop.f32.mrb[0].mxu0
  %v8139 = vadd.f32 %v8026, %v8138
  %8140 = vmatprep.mubr.f32.mxu0 0.0
  %8141 = vmatmul.mubr.f32.gmra.mrb[0].mxu0 %v7830
  %v8142 = vpop.f32.mrb[0].mxu0
  %v8143 = vadd.f32 %v8030, %v8142
  %v8144 = vpop.f32.mrb[0].mxu0
  %v8145 = vadd.f32 %v8032, %v8144
  %8146 = vmatprep.mubr.f32.mxu0 0.0
  %8147 = vmatmul.mubr.f32.gmra.mrb[0].mxu0 %v7833
  %v8148 = vpop.f32.mrb[0].mxu0
  %v8149 = vadd.f32 %v8036, %v8148
  %v8150 = vpop.f32.mrb[0].mxu0
  %v8151 = vadd.f32 %v8038, %v8150
  %8152 = vmatprep.mubr.f32.mxu0 0.0
  %8153 = vmatmul.mubr.f32.gmra.mrb[0].mxu0 %v7836
  %v8154 = vpop.f32.mrb[0].mxu0
  %v8155 = vadd.f32 %v8042, %v8154
  %v8156 = vpop.f32.mrb[0].mxu0
  %v8157 = vadd.f32 %v8044, %v8156
  %8158 = vdwg.mxu0
  %8159 = vst [vmem:[%s16] sm:$0xff] %v8113
  %8160 = vst [vmem:[%s16 + $0x8] sm:$0xff] %v8115
  %8161 = vst [vmem:[%s16 + $0x10] sm:$0xff] %v8119
  %8162 = vst [vmem:[%s16 + $0x18] sm:$0xff] %v8121
  %8163 = vst [vmem:[%s16 + $0x20] sm:$0xff] %v8125
  %8164 = vst [vmem:[%s16 + $0x28] sm:$0xff] %v8127
  %8165 = vst [vmem:[%s16 + $0x30] sm:$0xff] %v8131
  %8166 = vst [vmem:[%s16 + $0x38] sm:$0xff] %v8133
  %8167 = vst [vmem:[%s16 + $0x40] sm:$0xff] %v8137
  %8168 = vst [vmem:[%s16 + $0x48] sm:$0xff] %v8139
  %8169 = vst [vmem:[%s16 + $0x50] sm:$0xff] %v8143
  %8170 = vst [vmem:[%s16 + $0x58] sm:$0xff] %v8145
  %8171 = vst [vmem:[%s16 + $0x60] sm:$0xff] %v8149
  %8172 = vst [vmem:[%s16 + $0x68] sm:$0xff] %v8151
  %8173 = vst [vmem:[%s16 + $0x70] sm:$0xff] %v8155
  %8174 = vst [vmem:[%s16 + $0x78] sm:$0xff] %v8157
  // Predicated region
  $region66: #{feb_forward.1} parent=0 // pred_check
    _
  $region67: #{feb_forward.1} parent=0 // pred_check_branch
    %8176 = sbr.rel (0) target = $region69
  $region68: #{feb_forward.1} parent=0 // pred_region
    _
  $region69: #{feb_forward.1} parent=0 // pred_fallthru
    _
  // Predicated region
  $region70: #{feb_forward.1} parent=0 // pred_check
    _
  $region71: #{feb_forward.1} parent=0 // pred_check_branch
    %8178 = sbr.rel (0) target = $region73
  $region72: #{feb_forward.1} parent=0 // pred_region
    _
  $region73: #{feb_forward.1} parent=0 // pred_fallthru
    _

</llo_original>
